<compile_context>
chip_gen: v7x
topology: tpu7x:2x2x1
jax: 0.10.0
libtpu: 0.0.40
codegen_flags: <defaults>
</compile_context>

<pallas_src>
import functools

import jax
import jax.numpy as jnp
from jax import lax
from jax.experimental import pallas as pl
from jax.experimental.pallas import tpu as pltpu

_BF16 = jnp.bfloat16


# ---------------------------------------------------------------------------
# Fused kernel: conv1(3x3,s)+bn1+relu -> conv2(3x3,1)+bn2 -> +shortcut -> relu
# All activations are flattened (pitch pw) zero-padded NHWC slabs; every tap
# is a unit-stride static slice followed by an MXU matmul with f32 accumulate.
# ---------------------------------------------------------------------------
def _basic_block_kernel(*refs, num_phases, taps1, pw, rows, has_proj):
    phase_refs = refs[:num_phases]
    i = num_phases
    mask_ref = refs[i]          # (rows, 1)  f32: zeros on pitch-padding cols
    w1_ref = refs[i + 1]        # (9, Cin, P)  bf16, BN1 scale folded
    b1_ref = refs[i + 2]        # (1, P)       f32 folded BN1 bias
    w2_ref = refs[i + 3]        # (9, P, P)    bf16, BN2 scale folded
    b2_ref = refs[i + 4]        # (1, P)       f32 folded BN2 bias
    i += 5
    if has_proj:
        ws_ref = refs[i]        # (Cin, P)     bf16, BN0 scale folded
        bs_ref = refs[i + 1]    # (1, P)       f32 folded BN0 bias
        i += 2
    o_ref = refs[i]             # (1, rows, P) bf16
    mid_ref = refs[i + 1]       # ((ho+2)*pw, P) bf16 VMEM scratch

    # ------------------ conv1 (3x3, stride s) + bn1 + relu ------------------
    p0, off0 = taps1[0]
    acc = jnp.dot(phase_refs[p0][0, off0:off0 + rows, :], w1_ref[0],
                  preferred_element_type=jnp.float32)
    for k in range(1, 9):                       # back-to-back MXU accumulation
        p, off = taps1[k]
        acc += jnp.dot(phase_refs[p][0, off:off + rows, :], w1_ref[k],
                       preferred_element_type=jnp.float32)
    acc = jnp.maximum(acc + b1_ref[...], 0.0)
    # Zero the pitch-padding ("junk") columns so that, once written into the
    # padded flat layout below, they become conv2's left/right zero border.
    acc = acc * mask_ref[...]

    # ---- stage conv1 output as conv2's zero-padded flat input (VMEM only) --
    mid_ref[...] = jnp.zeros_like(mid_ref)
    mid_ref[pl.ds(pw + 1, rows), :] = acc.astype(mid_ref.dtype)

    # ------------------ conv2 (3x3, stride 1) + bn2 -------------------------
    acc2 = jnp.dot(mid_ref[pl.ds(0, rows), :], w2_ref[0],
                   preferred_element_type=jnp.float32)
    for k in range(1, 9):
        kh, kw = divmod(k, 3)
        acc2 += jnp.dot(mid_ref[pl.ds(kh * pw + kw, rows), :], w2_ref[k],
                        preferred_element_type=jnp.float32)
    acc2 = acc2 + b2_ref[...]

    # ------------------ shortcut (identity or 1x1 conv + bn0) ---------------
    # Tap (1,1) of the conv1 stencil reads exactly x[r*stride, c*stride],
    # i.e. the shortcut's input -- reuse the already-resident phase refs.
    ps, offs = taps1[4]
    sc = phase_refs[ps][0, offs:offs + rows, :]
    if has_proj:
        acc2 += jnp.dot(sc, ws_ref[...], preferred_element_type=jnp.float32)
        acc2 = acc2 + bs_ref[...]
    else:
        acc2 = acc2 + sc.astype(jnp.float32)

    o_ref[0] = jnp.maximum(acc2, 0.0).astype(o_ref.dtype)


# ---------------------------------------------------------------------------
# Wrapper-side layout helpers (pure XLA glue on the input only)
# ---------------------------------------------------------------------------
def _make_flat_phases(x_nhwc, stride, ho, wo, pw):
    """Zero-pad by 1, phase-decompose for the stride, pad every phase's width
    to the common pitch `pw`, and flatten (H, W).

    Returns (phases, taps): each phase is (N, Ph*pw, C); taps[k] = (phase_idx,
    flat_offset) such that conv output (r, c) for tap (kh, kw) reads
    phases[phase_idx] at flat index r*pw + c + flat_offset.
    """
    assert stride in (1, 2), "only stride 1 or 2 is supported"
    xp = jnp.pad(x_nhwc, ((0, 0), (1, 1), (1, 1), (0, 0)))
    n, _, _, c = x_nhwc.shape
    ph = ho + (2 // stride)
    phases = []
    for rh in range(stride):
        for rw in range(stride):
            p = xp[:, rh::stride, rw::stride, :][:, :ph, :pw, :]
            p = jnp.pad(p, ((0, 0), (0, ph - p.shape[1]),
                            (0, pw - p.shape[2]), (0, 0)))
            phases.append(p.reshape(n, ph * pw, c))
    taps = []
    for kh in range(3):
        for kw in range(3):
            taps.append(((kh % stride) * stride + (kw % stride),
                         (kh // stride) * pw + (kw // stride)))
    return phases, tuple(taps)


def _fold_bn(gamma, beta, mean, var, eps=1e-5):
    scale = gamma / jnp.sqrt(var + eps)
    bias = beta - mean * scale
    return scale, bias


def _fold_conv_bn_weights(w_oihw, scale):
    """(O, I, KH, KW) -> (KH*KW, I, O) with the BN scale folded in, bf16."""
    w = jnp.transpose(w_oihw, (2, 3, 1, 0)) * scale.reshape(1, 1, 1, -1)
    kh, kw, ci, co = w.shape
    return w.reshape(kh * kw, ci, co).astype(_BF16)


# ---------------------------------------------------------------------------
# BasicBlock forward (single fused Pallas call)
# ---------------------------------------------------------------------------
def basic_block_forward(x_nchw, params, *, stride):
    assert stride in (1, 2)
    x = jnp.transpose(x_nchw, (0, 2, 3, 1))              # NCHW -> NHWC
    n, h, w, cin = x.shape
    planes = params["conv1_w"].shape[0]
    ho = (h - 1) // stride + 1
    wo = (w - 1) // stride + 1
    pw = wo + 2                                          # common flat pitch
    rows = (ho - 1) * pw + wo                            # flat output rows
    mid_rows = (ho + 2) * pw                             # conv2 padded rows

    x_bf16 = x.astype(_BF16)
    phases, taps1 = _make_flat_phases(x_bf16, stride, ho, wo, pw)

    # Fold BN running stats into the conv weights / biases.
    s1, b1 = _fold_bn(**params["bn1"])
    s2, b2 = _fold_bn(**params["bn2"])
    w1 = _fold_conv_bn_weights(params["conv1_w"], s1)    # (9, cin, planes)
    w2 = _fold_conv_bn_weights(params["conv2_w"], s2)    # (9, planes, planes)
    b1 = b1.reshape(1, -1).astype(jnp.float32)
    b2 = b2.reshape(1, -1).astype(jnp.float32)

    has_proj = "short_w" in params
    extra, extra_specs = [], []
    if has_proj:
        s0, b0 = _fold_bn(**params["bn0"])
        ws = _fold_conv_bn_weights(params["short_w"], s0)[0]   # (cin, planes)
        bs = b0.reshape(1, -1).astype(jnp.float32)
        extra = [ws, bs]
        extra_specs = [pl.BlockSpec(ws.shape, lambda i: (0, 0)),
                       pl.BlockSpec(bs.shape, lambda i: (0, 0))]

    # Mask that zeroes the (pw - wo) pitch-padding columns of conv1's output.
    col = jnp.arange(rows, dtype=jnp.int32) % pw
    mask = (col < wo).astype(jnp.float32).reshape(rows, 1)

    in_specs = [pl.BlockSpec((1,) + p.shape[1:], lambda i: (i, 0, 0))
                for p in phases]
    in_specs += [pl.BlockSpec(mask.shape, lambda i: (0, 0)),
                 pl.BlockSpec(w1.shape, lambda i: (0, 0, 0)),
                 pl.BlockSpec(b1.shape, lambda i: (0, 0)),
                 pl.BlockSpec(w2.shape, lambda i: (0, 0, 0)),
                 pl.BlockSpec(b2.shape, lambda i: (0, 0))]
    in_specs += extra_specs

    kernel = functools.partial(
        _basic_block_kernel, num_phases=len(phases), taps1=taps1,
        pw=pw, rows=rows, has_proj=has_proj)

    # Per-step VMEM working set -> vmem limit with headroom (capped to the
    # queried chip capacity; row tiling is the TODO once this outgrows v7x).
    phase_bytes = sum(p.shape[1] * p.shape[2] * 2 for p in phases)
    est = (2 * phase_bytes                       # double-buffered phase inputs
           + mid_rows * planes * 2               # bf16 mid scratch
           + 2 * rows * planes * 2               # double-buffered bf16 output
           + 2 * rows * planes * 4               # f32 accumulators
           + w1.size * 2 + w2.size * 2 + 8 * planes * 4)
    try:
        vmem_cap = pltpu.get_tpu_info().vmem_capacity_bytes
    except Exception:
        vmem_cap = 64 * 2**20
    vmem_limit = int(min(max(2 * est, 32 * 2**20), int(0.75 * vmem_cap)))

    out_flat = pl.pallas_call(
        kernel,
        out_shape=jax.ShapeDtypeStruct((n, rows, planes), _BF16),
        grid_spec=pltpu.PrefetchScalarGridSpec(
            num_scalar_prefetch=0,
            grid=(n,),
            in_specs=in_specs,
            out_specs=pl.BlockSpec((1, rows, planes), lambda i: (i, 0, 0)),
            scratch_shapes=[pltpu.VMEM((mid_rows, planes), _BF16)],
        ),
        compiler_params=pltpu.CompilerParams(
            dimension_semantics=("parallel",),
            vmem_limit_bytes=vmem_limit,
        ),
    )(*(list(phases) + [mask, w1, b1, w2, b2] + extra))

    # flat rows (pitch pw) -> NHWC -> NCHW f32 (module boundary layout)
    out = jnp.pad(out_flat, ((0, 0), (0, ho * pw - rows), (0, 0)))
    out = out.reshape(n, ho, pw, planes)[:, :, :wo, :]
    return jnp.transpose(out, (0, 3, 1, 2)).astype(jnp.float32)


# ---------------------------------------------------------------------------
# Parameter init + pure-JAX reference (correctness check)
# ---------------------------------------------------------------------------
def init_basic_block_params(key, in_planes, planes, stride):
    ks = jax.random.split(key, 6)

    def bn_params(k, c):
        k1, k2, k3, k4 = jax.random.split(k, 4)
        return dict(
            gamma=1.0 + 0.1 * jax.random.normal(k1, (c,), jnp.float32),
            beta=0.1 * jax.random.normal(k2, (c,), jnp.float32),
            mean=0.05 * jax.random.normal(k3, (c,), jnp.float32),
            var=1.0 + 0.1 * jnp.abs(jax.random.normal(k4, (c,), jnp.float32)),
        )

    p = {
        "conv1_w": 0.1 * jax.random.normal(ks[0], (planes, in_planes, 3, 3), jnp.float32),
        "bn1": bn_params(ks[1], planes),
        "conv2_w": 0.1 * jax.random.normal(ks[2], (planes, planes, 3, 3), jnp.float32),
        "bn2": bn_params(ks[3], planes),
    }
    if stride != 1 or in_planes != planes:
        p["short_w"] = 0.1 * jax.random.normal(ks[4], (planes, in_planes, 1, 1), jnp.float32)
        p["bn0"] = bn_params(ks[5], planes)
    return p


def reference_forward(x_nchw, params, *, stride):
    def conv(x, w, s, pad):
        return lax.conv_general_dilated(
            x, w, (s, s), [(pad, pad), (pad, pad)],
            dimension_numbers=("NCHW", "OIHW", "NCHW"))

    def bn(x, p, eps=1e-5):
        g = p["gamma"].reshape(1, -1, 1, 1)
        b = p["beta"].reshape(1, -1, 1, 1)
        m = p["mean"].reshape(1, -1, 1, 1)
        v = p["var"].reshape(1, -1, 1, 1)
        return (x - m) / jnp.sqrt(v + eps) * g + b

    out = jax.nn.relu(bn(conv(x_nchw, params["conv1_w"], stride, 1), params["bn1"]))
    out = bn(conv(out, params["conv2_w"], 1, 1), params["bn2"])
    if "short_w" in params:
        sc = bn(conv(x_nchw, params["short_w"], stride, 0), params["bn0"])
    else:
        sc = x_nchw
    return jax.nn.relu(out + sc)


if __name__ == "__main__":
    key = jax.random.PRNGKey(0)
    kx, kp1, kp2 = jax.random.split(key, 3)
    forward = jax.jit(basic_block_forward, static_argnames=("stride",))

    # Case 1: identity shortcut (stride=1, in_planes == planes)
    in_planes, planes, stride = 4, 4, 1
    x = jax.random.normal(kx, (2, in_planes, 16, 16), jnp.float32)
    params = init_basic_block_params(kp1, in_planes, planes, stride)
    out = jax.block_until_ready(forward(x, params, stride=stride))
    ref = reference_forward(x, params, stride=stride)
    assert out.shape == ref.shape == (2, planes, 16, 16)
    # bf16 activations / weights, f32 MXU accumulation -> bf16-level tolerance.
    assert bool(jnp.allclose(out, ref, atol=5e-2, rtol=2e-2)), (
        "identity-shortcut case mismatch: "
        f"{float(jnp.max(jnp.abs(out - ref)))}")

    # Case 2: projection shortcut (stride=2, in_planes != planes)
    in_planes, planes, stride = 4, 8, 2
    x2 = jax.random.normal(kx, (2, in_planes, 16, 16), jnp.float32)
    params2 = init_basic_block_params(kp2, in_planes, planes, stride)
    out2 = jax.block_until_ready(forward(x2, params2, stride=stride))
    ref2 = reference_forward(x2, params2, stride=stride)
    assert out2.shape == ref2.shape == (2, planes, 8, 8)
    assert bool(jnp.allclose(out2, ref2, atol=5e-2, rtol=2e-2)), (
        "projection-shortcut case mismatch: "
        f"{float(jnp.max(jnp.abs(out2 - ref2)))}")

    print("KERNEL_OK")
</pallas_src>

<mosaic_0001>
module attributes {stable_mosaic.version = 11 : i64} {
  func.func @_basic_block_kernel(%arg0: i32, %arg1: memref<1x324x4xbf16, #tpu.memory_space<vmem>>, %arg2: memref<286x1xf32, #tpu.memory_space<vmem>>, %arg3: memref<9x4x4xbf16, #tpu.memory_space<vmem>>, %arg4: memref<1x4xf32, #tpu.memory_space<vmem>>, %arg5: memref<9x4x4xbf16, #tpu.memory_space<vmem>>, %arg6: memref<1x4xf32, #tpu.memory_space<vmem>>, %arg7: memref<1x286x4xbf16, #tpu.memory_space<vmem>>, %arg8: memref<324x4xbf16, #tpu.memory_space<vmem>>) attributes {dimension_semantics = [#tpu.dimension_semantics<parallel>], iteration_bounds = array<i64: 2>, scalar_prefetch = 0 : i64, scratch_operands = 1 : i64, tpu.core_type = #tpu.core_type<tc>, window_params = [{transform_indices = @transform_0, window_bounds = array<i64: 1, 324, 4>}, {pipeline_mode = #tpu.pipeline_mode<synchronous>, transform_indices = @transform_1, window_bounds = array<i64: 286, 1>}, {pipeline_mode = #tpu.pipeline_mode<synchronous>, transform_indices = @transform_2, window_bounds = array<i64: 9, 4, 4>}, {pipeline_mode = #tpu.pipeline_mode<synchronous>, transform_indices = @transform_3, window_bounds = array<i64: 1, 4>}, {pipeline_mode = #tpu.pipeline_mode<synchronous>, transform_indices = @transform_4, window_bounds = array<i64: 9, 4, 4>}, {pipeline_mode = #tpu.pipeline_mode<synchronous>, transform_indices = @transform_5, window_bounds = array<i64: 1, 4>}, {transform_indices = @transform_6, window_bounds = array<i64: 1, 286, 4>}]} {
    %c0 = arith.constant 0 : index
    %c0_0 = arith.constant 0 : index
    %c0_1 = arith.constant 0 : index
    %0 = vector.load %arg1[%c0, %c0_0, %c0_1] : memref<1x324x4xbf16, #tpu.memory_space<vmem>>, vector<1x286x4xbf16>
    %1 = vector.shape_cast %0 : vector<1x286x4xbf16> to vector<286x4xbf16>
    %c0_2 = arith.constant 0 : index
    %c0_3 = arith.constant 0 : index
    %c0_4 = arith.constant 0 : index
    %2 = vector.load %arg3[%c0_2, %c0_3, %c0_4] : memref<9x4x4xbf16, #tpu.memory_space<vmem>>, vector<1x4x4xbf16>
    %3 = vector.shape_cast %2 : vector<1x4x4xbf16> to vector<4x4xbf16>
    %cst = arith.constant dense<0.000000e+00> : vector<286x4xf32>
    %4 = tpu.matmul %1, %3, %cst {dimension_numbers = #tpu.dot_dimension_numbers<[1], [0], [0], [1], [0, 0, 1, 1], [], []>} : vector<286x4xbf16>, vector<4x4xbf16>, vector<286x4xf32> -> vector<286x4xf32>
    %c0_5 = arith.constant 0 : index
    %c1 = arith.constant 1 : index
    %c0_6 = arith.constant 0 : index
    %5 = vector.load %arg1[%c0_5, %c1, %c0_6] : memref<1x324x4xbf16, #tpu.memory_space<vmem>>, vector<1x286x4xbf16>
    %6 = vector.shape_cast %5 : vector<1x286x4xbf16> to vector<286x4xbf16>
    %c1_7 = arith.constant 1 : index
    %c0_8 = arith.constant 0 : index
    %c0_9 = arith.constant 0 : index
    %7 = vector.load %arg3[%c1_7, %c0_8, %c0_9] : memref<9x4x4xbf16, #tpu.memory_space<vmem>>, vector<1x4x4xbf16>
    %8 = vector.shape_cast %7 : vector<1x4x4xbf16> to vector<4x4xbf16>
    %cst_10 = arith.constant dense<0.000000e+00> : vector<286x4xf32>
    %9 = tpu.matmul %6, %8, %cst_10 {dimension_numbers = #tpu.dot_dimension_numbers<[1], [0], [0], [1], [0, 0, 1, 1], [], []>} : vector<286x4xbf16>, vector<4x4xbf16>, vector<286x4xf32> -> vector<286x4xf32>
    %10 = arith.addf %4, %9 : vector<286x4xf32>
    %c0_11 = arith.constant 0 : index
    %c2 = arith.constant 2 : index
    %c0_12 = arith.constant 0 : index
    %11 = vector.load %arg1[%c0_11, %c2, %c0_12] : memref<1x324x4xbf16, #tpu.memory_space<vmem>>, vector<1x286x4xbf16>
    %12 = vector.shape_cast %11 : vector<1x286x4xbf16> to vector<286x4xbf16>
    %c2_13 = arith.constant 2 : index
    %c0_14 = arith.constant 0 : index
    %c0_15 = arith.constant 0 : index
    %13 = vector.load %arg3[%c2_13, %c0_14, %c0_15] : memref<9x4x4xbf16, #tpu.memory_space<vmem>>, vector<1x4x4xbf16>
    %14 = vector.shape_cast %13 : vector<1x4x4xbf16> to vector<4x4xbf16>
    %cst_16 = arith.constant dense<0.000000e+00> : vector<286x4xf32>
    %15 = tpu.matmul %12, %14, %cst_16 {dimension_numbers = #tpu.dot_dimension_numbers<[1], [0], [0], [1], [0, 0, 1, 1], [], []>} : vector<286x4xbf16>, vector<4x4xbf16>, vector<286x4xf32> -> vector<286x4xf32>
    %16 = arith.addf %10, %15 : vector<286x4xf32>
    %c0_17 = arith.constant 0 : index
    %c18 = arith.constant 18 : index
    %c0_18 = arith.constant 0 : index
    %17 = vector.load %arg1[%c0_17, %c18, %c0_18] : memref<1x324x4xbf16, #tpu.memory_space<vmem>>, vector<1x286x4xbf16>
    %18 = vector.shape_cast %17 : vector<1x286x4xbf16> to vector<286x4xbf16>
    %c3 = arith.constant 3 : index
    %c0_19 = arith.constant 0 : index
    %c0_20 = arith.constant 0 : index
    %19 = vector.load %arg3[%c3, %c0_19, %c0_20] : memref<9x4x4xbf16, #tpu.memory_space<vmem>>, vector<1x4x4xbf16>
    %20 = vector.shape_cast %19 : vector<1x4x4xbf16> to vector<4x4xbf16>
    %cst_21 = arith.constant dense<0.000000e+00> : vector<286x4xf32>
    %21 = tpu.matmul %18, %20, %cst_21 {dimension_numbers = #tpu.dot_dimension_numbers<[1], [0], [0], [1], [0, 0, 1, 1], [], []>} : vector<286x4xbf16>, vector<4x4xbf16>, vector<286x4xf32> -> vector<286x4xf32>
    %22 = arith.addf %16, %21 : vector<286x4xf32>
    %c0_22 = arith.constant 0 : index
    %c19 = arith.constant 19 : index
    %c0_23 = arith.constant 0 : index
    %23 = vector.load %arg1[%c0_22, %c19, %c0_23] : memref<1x324x4xbf16, #tpu.memory_space<vmem>>, vector<1x286x4xbf16>
    %24 = vector.shape_cast %23 : vector<1x286x4xbf16> to vector<286x4xbf16>
    %c4 = arith.constant 4 : index
    %c0_24 = arith.constant 0 : index
    %c0_25 = arith.constant 0 : index
    %25 = vector.load %arg3[%c4, %c0_24, %c0_25] : memref<9x4x4xbf16, #tpu.memory_space<vmem>>, vector<1x4x4xbf16>
    %26 = vector.shape_cast %25 : vector<1x4x4xbf16> to vector<4x4xbf16>
    %cst_26 = arith.constant dense<0.000000e+00> : vector<286x4xf32>
    %27 = tpu.matmul %24, %26, %cst_26 {dimension_numbers = #tpu.dot_dimension_numbers<[1], [0], [0], [1], [0, 0, 1, 1], [], []>} : vector<286x4xbf16>, vector<4x4xbf16>, vector<286x4xf32> -> vector<286x4xf32>
    %28 = arith.addf %22, %27 : vector<286x4xf32>
    %c0_27 = arith.constant 0 : index
    %c20 = arith.constant 20 : index
    %c0_28 = arith.constant 0 : index
    %29 = vector.load %arg1[%c0_27, %c20, %c0_28] : memref<1x324x4xbf16, #tpu.memory_space<vmem>>, vector<1x286x4xbf16>
    %30 = vector.shape_cast %29 : vector<1x286x4xbf16> to vector<286x4xbf16>
    %c5 = arith.constant 5 : index
    %c0_29 = arith.constant 0 : index
    %c0_30 = arith.constant 0 : index
    %31 = vector.load %arg3[%c5, %c0_29, %c0_30] : memref<9x4x4xbf16, #tpu.memory_space<vmem>>, vector<1x4x4xbf16>
    %32 = vector.shape_cast %31 : vector<1x4x4xbf16> to vector<4x4xbf16>
    %cst_31 = arith.constant dense<0.000000e+00> : vector<286x4xf32>
    %33 = tpu.matmul %30, %32, %cst_31 {dimension_numbers = #tpu.dot_dimension_numbers<[1], [0], [0], [1], [0, 0, 1, 1], [], []>} : vector<286x4xbf16>, vector<4x4xbf16>, vector<286x4xf32> -> vector<286x4xf32>
    %34 = arith.addf %28, %33 : vector<286x4xf32>
    %c0_32 = arith.constant 0 : index
    %c36 = arith.constant 36 : index
    %c0_33 = arith.constant 0 : index
    %35 = vector.load %arg1[%c0_32, %c36, %c0_33] : memref<1x324x4xbf16, #tpu.memory_space<vmem>>, vector<1x286x4xbf16>
    %36 = vector.shape_cast %35 : vector<1x286x4xbf16> to vector<286x4xbf16>
    %c6 = arith.constant 6 : index
    %c0_34 = arith.constant 0 : index
    %c0_35 = arith.constant 0 : index
    %37 = vector.load %arg3[%c6, %c0_34, %c0_35] : memref<9x4x4xbf16, #tpu.memory_space<vmem>>, vector<1x4x4xbf16>
    %38 = vector.shape_cast %37 : vector<1x4x4xbf16> to vector<4x4xbf16>
    %cst_36 = arith.constant dense<0.000000e+00> : vector<286x4xf32>
    %39 = tpu.matmul %36, %38, %cst_36 {dimension_numbers = #tpu.dot_dimension_numbers<[1], [0], [0], [1], [0, 0, 1, 1], [], []>} : vector<286x4xbf16>, vector<4x4xbf16>, vector<286x4xf32> -> vector<286x4xf32>
    %40 = arith.addf %34, %39 : vector<286x4xf32>
    %c0_37 = arith.constant 0 : index
    %c37 = arith.constant 37 : index
    %c0_38 = arith.constant 0 : index
    %41 = vector.load %arg1[%c0_37, %c37, %c0_38] : memref<1x324x4xbf16, #tpu.memory_space<vmem>>, vector<1x286x4xbf16>
    %42 = vector.shape_cast %41 : vector<1x286x4xbf16> to vector<286x4xbf16>
    %c7 = arith.constant 7 : index
    %c0_39 = arith.constant 0 : index
    %c0_40 = arith.constant 0 : index
    %43 = vector.load %arg3[%c7, %c0_39, %c0_40] : memref<9x4x4xbf16, #tpu.memory_space<vmem>>, vector<1x4x4xbf16>
    %44 = vector.shape_cast %43 : vector<1x4x4xbf16> to vector<4x4xbf16>
    %cst_41 = arith.constant dense<0.000000e+00> : vector<286x4xf32>
    %45 = tpu.matmul %42, %44, %cst_41 {dimension_numbers = #tpu.dot_dimension_numbers<[1], [0], [0], [1], [0, 0, 1, 1], [], []>} : vector<286x4xbf16>, vector<4x4xbf16>, vector<286x4xf32> -> vector<286x4xf32>
    %46 = arith.addf %40, %45 : vector<286x4xf32>
    %c0_42 = arith.constant 0 : index
    %c38 = arith.constant 38 : index
    %c0_43 = arith.constant 0 : index
    %47 = vector.load %arg1[%c0_42, %c38, %c0_43] : memref<1x324x4xbf16, #tpu.memory_space<vmem>>, vector<1x286x4xbf16>
    %48 = vector.shape_cast %47 : vector<1x286x4xbf16> to vector<286x4xbf16>
    %c8 = arith.constant 8 : index
    %c0_44 = arith.constant 0 : index
    %c0_45 = arith.constant 0 : index
    %49 = vector.load %arg3[%c8, %c0_44, %c0_45] : memref<9x4x4xbf16, #tpu.memory_space<vmem>>, vector<1x4x4xbf16>
    %50 = vector.shape_cast %49 : vector<1x4x4xbf16> to vector<4x4xbf16>
    %cst_46 = arith.constant dense<0.000000e+00> : vector<286x4xf32>
    %51 = tpu.matmul %48, %50, %cst_46 {dimension_numbers = #tpu.dot_dimension_numbers<[1], [0], [0], [1], [0, 0, 1, 1], [], []>} : vector<286x4xbf16>, vector<4x4xbf16>, vector<286x4xf32> -> vector<286x4xf32>
    %52 = arith.addf %46, %51 : vector<286x4xf32>
    %c0_47 = arith.constant 0 : index
    %c0_48 = arith.constant 0 : index
    %53 = vector.load %arg4[%c0_47, %c0_48] : memref<1x4xf32, #tpu.memory_space<vmem>>, vector<1x4xf32>
    %54 = vector.broadcast %53 : vector<1x4xf32> to vector<286x4xf32>
    %55 = arith.addf %52, %54 : vector<286x4xf32>
    %cst_49 = arith.constant 0.000000e+00 : f32
    %56 = vector.broadcast %cst_49 : f32 to vector<286x4xf32>
    %57 = arith.maximumf %55, %56 : vector<286x4xf32>
    %c0_50 = arith.constant 0 : index
    %c0_51 = arith.constant 0 : index
    %58 = vector.load %arg2[%c0_50, %c0_51] : memref<286x1xf32, #tpu.memory_space<vmem>>, vector<286x1xf32>
    %59 = vector.broadcast %58 : vector<286x1xf32> to vector<286x4xf32>
    %60 = arith.mulf %57, %59 : vector<286x4xf32>
    %cst_52 = arith.constant 0.000000e+00 : bf16
    %61 = vector.broadcast %cst_52 : bf16 to vector<324x4xbf16>
    %c0_53 = arith.constant 0 : index
    %c0_54 = arith.constant 0 : index
    %62 = vector.load %arg8[%c0_53, %c0_54] : memref<324x4xbf16, #tpu.memory_space<vmem>>, vector<324x4xbf16>
    tpu.vector_store %arg8[%c0_53, %c0_54], %61 {strides = array<i32>} : memref<324x4xbf16, #tpu.memory_space<vmem>>, vector<324x4xbf16>,
    %63 = arith.truncf %60 : vector<286x4xf32> to vector<286x4xbf16>
    %c19_55 = arith.constant 19 : index
    %c0_56 = arith.constant 0 : index
    %64 = vector.load %arg8[%c19_55, %c0_56] : memref<324x4xbf16, #tpu.memory_space<vmem>>, vector<286x4xbf16>
    tpu.vector_store %arg8[%c19_55, %c0_56], %63 {strides = array<i32>} : memref<324x4xbf16, #tpu.memory_space<vmem>>, vector<286x4xbf16>,
    %c0_57 = arith.constant 0 : index
    %c0_58 = arith.constant 0 : index
    %65 = vector.load %arg8[%c0_57, %c0_58] : memref<324x4xbf16, #tpu.memory_space<vmem>>, vector<286x4xbf16>
    %c0_59 = arith.constant 0 : index
    %c0_60 = arith.constant 0 : index
    %c0_61 = arith.constant 0 : index
    %66 = vector.load %arg5[%c0_59, %c0_60, %c0_61] : memref<9x4x4xbf16, #tpu.memory_space<vmem>>, vector<1x4x4xbf16>
    %67 = vector.shape_cast %66 : vector<1x4x4xbf16> to vector<4x4xbf16>
    %cst_62 = arith.constant dense<0.000000e+00> : vector<286x4xf32>
    %68 = tpu.matmul %65, %67, %cst_62 {dimension_numbers = #tpu.dot_dimension_numbers<[1], [0], [0], [1], [0, 0, 1, 1], [], []>} : vector<286x4xbf16>, vector<4x4xbf16>, vector<286x4xf32> -> vector<286x4xf32>
    %c1_63 = arith.constant 1 : index
    %c0_64 = arith.constant 0 : index
    %69 = vector.load %arg8[%c1_63, %c0_64] : memref<324x4xbf16, #tpu.memory_space<vmem>>, vector<286x4xbf16>
    %c1_65 = arith.constant 1 : index
    %c0_66 = arith.constant 0 : index
    %c0_67 = arith.constant 0 : index
    %70 = vector.load %arg5[%c1_65, %c0_66, %c0_67] : memref<9x4x4xbf16, #tpu.memory_space<vmem>>, vector<1x4x4xbf16>
    %71 = vector.shape_cast %70 : vector<1x4x4xbf16> to vector<4x4xbf16>
    %cst_68 = arith.constant dense<0.000000e+00> : vector<286x4xf32>
    %72 = tpu.matmul %69, %71, %cst_68 {dimension_numbers = #tpu.dot_dimension_numbers<[1], [0], [0], [1], [0, 0, 1, 1], [], []>} : vector<286x4xbf16>, vector<4x4xbf16>, vector<286x4xf32> -> vector<286x4xf32>
    %73 = arith.addf %68, %72 : vector<286x4xf32>
    %c2_69 = arith.constant 2 : index
    %c0_70 = arith.constant 0 : index
    %74 = vector.load %arg8[%c2_69, %c0_70] : memref<324x4xbf16, #tpu.memory_space<vmem>>, vector<286x4xbf16>
    %c2_71 = arith.constant 2 : index
    %c0_72 = arith.constant 0 : index
    %c0_73 = arith.constant 0 : index
    %75 = vector.load %arg5[%c2_71, %c0_72, %c0_73] : memref<9x4x4xbf16, #tpu.memory_space<vmem>>, vector<1x4x4xbf16>
    %76 = vector.shape_cast %75 : vector<1x4x4xbf16> to vector<4x4xbf16>
    %cst_74 = arith.constant dense<0.000000e+00> : vector<286x4xf32>
    %77 = tpu.matmul %74, %76, %cst_74 {dimension_numbers = #tpu.dot_dimension_numbers<[1], [0], [0], [1], [0, 0, 1, 1], [], []>} : vector<286x4xbf16>, vector<4x4xbf16>, vector<286x4xf32> -> vector<286x4xf32>
    %78 = arith.addf %73, %77 : vector<286x4xf32>
    %c18_75 = arith.constant 18 : index
    %c0_76 = arith.constant 0 : index
    %79 = vector.load %arg8[%c18_75, %c0_76] : memref<324x4xbf16, #tpu.memory_space<vmem>>, vector<286x4xbf16>
    %c3_77 = arith.constant 3 : index
    %c0_78 = arith.constant 0 : index
    %c0_79 = arith.constant 0 : index
    %80 = vector.load %arg5[%c3_77, %c0_78, %c0_79] : memref<9x4x4xbf16, #tpu.memory_space<vmem>>, vector<1x4x4xbf16>
    %81 = vector.shape_cast %80 : vector<1x4x4xbf16> to vector<4x4xbf16>
    %cst_80 = arith.constant dense<0.000000e+00> : vector<286x4xf32>
    %82 = tpu.matmul %79, %81, %cst_80 {dimension_numbers = #tpu.dot_dimension_numbers<[1], [0], [0], [1], [0, 0, 1, 1], [], []>} : vector<286x4xbf16>, vector<4x4xbf16>, vector<286x4xf32> -> vector<286x4xf32>
    %83 = arith.addf %78, %82 : vector<286x4xf32>
    %c19_81 = arith.constant 19 : index
    %c0_82 = arith.constant 0 : index
    %84 = vector.load %arg8[%c19_81, %c0_82] : memref<324x4xbf16, #tpu.memory_space<vmem>>, vector<286x4xbf16>
    %c4_83 = arith.constant 4 : index
    %c0_84 = arith.constant 0 : index
    %c0_85 = arith.constant 0 : index
    %85 = vector.load %arg5[%c4_83, %c0_84, %c0_85] : memref<9x4x4xbf16, #tpu.memory_space<vmem>>, vector<1x4x4xbf16>
    %86 = vector.shape_cast %85 : vector<1x4x4xbf16> to vector<4x4xbf16>
    %cst_86 = arith.constant dense<0.000000e+00> : vector<286x4xf32>
    %87 = tpu.matmul %84, %86, %cst_86 {dimension_numbers = #tpu.dot_dimension_numbers<[1], [0], [0], [1], [0, 0, 1, 1], [], []>} : vector<286x4xbf16>, vector<4x4xbf16>, vector<286x4xf32> -> vector<286x4xf32>
    %88 = arith.addf %83, %87 : vector<286x4xf32>
    %c20_87 = arith.constant 20 : index
    %c0_88 = arith.constant 0 : index
    %89 = vector.load %arg8[%c20_87, %c0_88] : memref<324x4xbf16, #tpu.memory_space<vmem>>, vector<286x4xbf16>
    %c5_89 = arith.constant 5 : index
    %c0_90 = arith.constant 0 : index
    %c0_91 = arith.constant 0 : index
    %90 = vector.load %arg5[%c5_89, %c0_90, %c0_91] : memref<9x4x4xbf16, #tpu.memory_space<vmem>>, vector<1x4x4xbf16>
    %91 = vector.shape_cast %90 : vector<1x4x4xbf16> to vector<4x4xbf16>
    %cst_92 = arith.constant dense<0.000000e+00> : vector<286x4xf32>
    %92 = tpu.matmul %89, %91, %cst_92 {dimension_numbers = #tpu.dot_dimension_numbers<[1], [0], [0], [1], [0, 0, 1, 1], [], []>} : vector<286x4xbf16>, vector<4x4xbf16>, vector<286x4xf32> -> vector<286x4xf32>
    %93 = arith.addf %88, %92 : vector<286x4xf32>
    %c36_93 = arith.constant 36 : index
    %c0_94 = arith.constant 0 : index
    %94 = vector.load %arg8[%c36_93, %c0_94] : memref<324x4xbf16, #tpu.memory_space<vmem>>, vector<286x4xbf16>
    %c6_95 = arith.constant 6 : index
    %c0_96 = arith.constant 0 : index
    %c0_97 = arith.constant 0 : index
    %95 = vector.load %arg5[%c6_95, %c0_96, %c0_97] : memref<9x4x4xbf16, #tpu.memory_space<vmem>>, vector<1x4x4xbf16>
    %96 = vector.shape_cast %95 : vector<1x4x4xbf16> to vector<4x4xbf16>
    %cst_98 = arith.constant dense<0.000000e+00> : vector<286x4xf32>
    %97 = tpu.matmul %94, %96, %cst_98 {dimension_numbers = #tpu.dot_dimension_numbers<[1], [0], [0], [1], [0, 0, 1, 1], [], []>} : vector<286x4xbf16>, vector<4x4xbf16>, vector<286x4xf32> -> vector<286x4xf32>
    %98 = arith.addf %93, %97 : vector<286x4xf32>
    %c37_99 = arith.constant 37 : index
    %c0_100 = arith.constant 0 : index
    %99 = vector.load %arg8[%c37_99, %c0_100] : memref<324x4xbf16, #tpu.memory_space<vmem>>, vector<286x4xbf16>
    %c7_101 = arith.constant 7 : index
    %c0_102 = arith.constant 0 : index
    %c0_103 = arith.constant 0 : index
    %100 = vector.load %arg5[%c7_101, %c0_102, %c0_103] : memref<9x4x4xbf16, #tpu.memory_space<vmem>>, vector<1x4x4xbf16>
    %101 = vector.shape_cast %100 : vector<1x4x4xbf16> to vector<4x4xbf16>
    %cst_104 = arith.constant dense<0.000000e+00> : vector<286x4xf32>
    %102 = tpu.matmul %99, %101, %cst_104 {dimension_numbers = #tpu.dot_dimension_numbers<[1], [0], [0], [1], [0, 0, 1, 1], [], []>} : vector<286x4xbf16>, vector<4x4xbf16>, vector<286x4xf32> -> vector<286x4xf32>
    %103 = arith.addf %98, %102 : vector<286x4xf32>
    %c38_105 = arith.constant 38 : index
    %c0_106 = arith.constant 0 : index
    %104 = vector.load %arg8[%c38_105, %c0_106] : memref<324x4xbf16, #tpu.memory_space<vmem>>, vector<286x4xbf16>
    %c8_107 = arith.constant 8 : index
    %c0_108 = arith.constant 0 : index
    %c0_109 = arith.constant 0 : index
    %105 = vector.load %arg5[%c8_107, %c0_108, %c0_109] : memref<9x4x4xbf16, #tpu.memory_space<vmem>>, vector<1x4x4xbf16>
    %106 = vector.shape_cast %105 : vector<1x4x4xbf16> to vector<4x4xbf16>
    %cst_110 = arith.constant dense<0.000000e+00> : vector<286x4xf32>
    %107 = tpu.matmul %104, %106, %cst_110 {dimension_numbers = #tpu.dot_dimension_numbers<[1], [0], [0], [1], [0, 0, 1, 1], [], []>} : vector<286x4xbf16>, vector<4x4xbf16>, vector<286x4xf32> -> vector<286x4xf32>
    %108 = arith.addf %103, %107 : vector<286x4xf32>
    %c0_111 = arith.constant 0 : index
    %c0_112 = arith.constant 0 : index
    %109 = vector.load %arg6[%c0_111, %c0_112] : memref<1x4xf32, #tpu.memory_space<vmem>>, vector<1x4xf32>
    %110 = vector.broadcast %109 : vector<1x4xf32> to vector<286x4xf32>
    %111 = arith.addf %108, %110 : vector<286x4xf32>
    %c0_113 = arith.constant 0 : index
    %c19_114 = arith.constant 19 : index
    %c0_115 = arith.constant 0 : index
    %112 = vector.load %arg1[%c0_113, %c19_114, %c0_115] : memref<1x324x4xbf16, #tpu.memory_space<vmem>>, vector<1x286x4xbf16>
    %113 = vector.shape_cast %112 : vector<1x286x4xbf16> to vector<286x4xbf16>
    %114 = arith.extf %113 : vector<286x4xbf16> to vector<286x4xf32>
    %115 = arith.addf %111, %114 : vector<286x4xf32>
    %cst_116 = arith.constant 0.000000e+00 : f32
    %116 = vector.broadcast %cst_116 : f32 to vector<286x4xf32>
    %117 = arith.maximumf %115, %116 : vector<286x4xf32>
    %118 = arith.truncf %117 : vector<286x4xf32> to vector<286x4xbf16>
    %c0_117 = arith.constant 0 : index
    %c0_118 = arith.constant 0 : index
    %c0_119 = arith.constant 0 : index
    %119 = vector.load %arg7[%c0_117, %c0_118, %c0_119] : memref<1x286x4xbf16, #tpu.memory_space<vmem>>, vector<1x286x4xbf16>
    %120 = vector.shape_cast %119 : vector<1x286x4xbf16> to vector<286x4xbf16>
    %121 = vector.shape_cast %118 : vector<286x4xbf16> to vector<1x286x4xbf16>
    tpu.vector_store %arg7[%c0_117, %c0_118, %c0_119], %121 {strides = array<i32>} : memref<1x286x4xbf16, #tpu.memory_space<vmem>>, vector<1x286x4xbf16>,
    return
  }
  func.func @transform_0(%arg0: i32) -> (i32, i32, i32) {
    %c0_i32 = arith.constant 0 : i32
    %c0_i32_0 = arith.constant 0 : i32
    %c0_i32_1 = arith.constant 0 : i32
    return %arg0, %c0_i32, %c0_i32_0 : i32, i32, i32
  }
  func.func @transform_1(%arg0: i32) -> (i32, i32) {
    %c0_i32 = arith.constant 0 : i32
    %c0_i32_0 = arith.constant 0 : i32
    %c0_i32_1 = arith.constant 0 : i32
    return %c0_i32, %c0_i32_0 : i32, i32
  }
  func.func @transform_2(%arg0: i32) -> (i32, i32, i32) {
    %c0_i32 = arith.constant 0 : i32
    %c0_i32_0 = arith.constant 0 : i32
    %c0_i32_1 = arith.constant 0 : i32
    %c0_i32_2 = arith.constant 0 : i32
    return %c0_i32, %c0_i32_0, %c0_i32_1 : i32, i32, i32
  }
  func.func @transform_3(%arg0: i32) -> (i32, i32) {
    %c0_i32 = arith.constant 0 : i32
    %c0_i32_0 = arith.constant 0 : i32
    %c0_i32_1 = arith.constant 0 : i32
    return %c0_i32, %c0_i32_0 : i32, i32
  }
  func.func @transform_4(%arg0: i32) -> (i32, i32, i32) {
    %c0_i32 = arith.constant 0 : i32
    %c0_i32_0 = arith.constant 0 : i32
    %c0_i32_1 = arith.constant 0 : i32
    %c0_i32_2 = arith.constant 0 : i32
    return %c0_i32, %c0_i32_0, %c0_i32_1 : i32, i32, i32
  }
  func.func @transform_5(%arg0: i32) -> (i32, i32) {
    %c0_i32 = arith.constant 0 : i32
    %c0_i32_0 = arith.constant 0 : i32
    %c0_i32_1 = arith.constant 0 : i32
    return %c0_i32, %c0_i32_0 : i32, i32
  }
  func.func @transform_6(%arg0: i32) -> (i32, i32, i32) {
    %c0_i32 = arith.constant 0 : i32
    %c0_i32_0 = arith.constant 0 : i32
    %c0_i32_1 = arith.constant 0 : i32
    return %arg0, %c0_i32, %c0_i32_0 : i32, i32, i32
  }
}

</mosaic_0001>

<llo_original>
// kernel: basic_block_forward.1
$region0: #{basic_block_forward.1}
  #allocation0 [shape = 'u32[]', space=smem, size = 0x4, offset = 0x4, fixed_abs, tag = 'smem constant byte address 0x4 - core index']
  #allocation1 [shape = 'u32[144,128]{1,0:T(1,128)}', space=vmem, size = 0x12000, scoped, tag = 'internal scratch']
  #allocation2 [shape = 'bf16[324,4]{1,0:T(8,128)(2,1)}', space=vmem, size = 0x14800, scoped, tag = 'scratch operand']
  %s0 = inlined_call_operand.vmem [shape: bf16[2,324,4], index: 0, kind: input, shape index: {}]
  %s1 = inlined_call_operand.vmem [shape: f32[286,1], index: 1, kind: input, shape index: {}]
  %s2 = inlined_call_operand.vmem [shape: bf16[9,4,4], index: 2, kind: input, shape index: {}]
  %s3 = inlined_call_operand.vmem [shape: f32[1,4], index: 3, kind: input, shape index: {}]
  %s4 = inlined_call_operand.vmem [shape: bf16[9,4,4], index: 4, kind: input, shape index: {}]
  %s5 = inlined_call_operand.vmem [shape: f32[1,4], index: 5, kind: input, shape index: {}]
  %s6 = inlined_call_operand.vmem [shape: bf16[2,286,4], index: 6, kind: output, shape index: {}]
  %s7 = sld [smem:[#allocation0]]
  $region57: #{basic_block_forward.1} parent=0
    _
  %s9 = ssub.s32 1, %s7
  %s10 = scalar_select 0, %s9, %s7
  loop: start=0, step=1, limit=4
  $region2: #{basic_block_forward.1} parent=0 // loop_pre_header
    _
  $region3: #{basic_block_forward.1} parent=0 // loop_header
    %s12 = sphi 0, %s16
    %p13 = scmp.ge.s32.totalorder %s12, 4
    %s22 = sphi 0, %s24
    %s25 = sphi 0, %s22
    %s26 = sphi 0, %s25
    %s42 = sphi 0, %s26
    %s46 = sphi 0, %s46
    %s48 = sphi 0, %s46
    %s49 = sphi 0, %s48
    %s63 = sphi 0, %s49
    %s67 = sphi 0, %s67
    %s69 = sphi 0, %s67
    %s70 = sphi 0, %s69
    %s84 = sphi 0, %s70
    %s88 = sphi 0, %s88
    %s90 = sphi 0, %s88
    %s91 = sphi 0, %s90
    %s105 = sphi 0, %s91
    %s109 = sphi 0, %s109
    %s111 = sphi 0, %s109
    %s112 = sphi 0, %s111
    %s126 = sphi 0, %s112
    %s130 = sphi 0, %s130
    %s132 = sphi 0, %s130
    %s133 = sphi 0, %s132
    %s147 = sphi 0, %s133
    %s153 = sphi 0, %s155
    %s156 = sphi 0, %s153
    %s157 = sphi 0, %s156
    %s173 = sphi 0, %s157
  $region4: #{basic_block_forward.1} parent=0 // loop_header_branch
    %15 = sbr.rel (%p13) target = $region8
  $region5: #{basic_block_forward.1} parent=0 // loop_body
    %s17 = ssub.s32 %s12, 1
    %s18 = ssub.s32 %s12, 2
    %s19 = sadd.s32 %s12, 1
    %s20 = ssub.s32 %s12, %s19
    %p21 = scmp.eq.s32.totalorder %s20, 0
    %s23 = sadd.s32 %s22, 1
    %s24 = scalar_select %p21, %s22, %s23
    %p27 = pneg %p21
    %p28 = scmp.eq.s32.totalorder %s12, 1
    %p29 = por %p27, %p28
    %p30 = scmp.ne.s32.totalorder %s22, %s25
    %p31 = scmp.eq.s32.totalorder %s12, 0
    %p32 = por %p30, %p31
    %p33 = scmp.ne.s32.totalorder %s22, %s25
    %p34 = scmp.eq.s32.totalorder %s17, 1
    %p35 = por %p33, %p34
    %p36 = scmp.ne.s32.totalorder %s25, %s26
    %p37 = scmp.eq.s32.totalorder %s17, 0
    %p38 = por %p36, %p37
    %p39 = scmp.ne.s32.totalorder %s25, %s26
    %p40 = scmp.eq.s32.totalorder %s18, 1
    %p41 = por %p39, %p40
    %p43 = scmp.ne.s32.totalorder %s26, %s42
    %p44 = scmp.eq.s32.totalorder %s18, 0
    %p45 = por %p43, %p44
    %s47 = sadd.s32 %s46, 1
    %p50 = scmp.eq.s32.totalorder %s12, 1
    %p51 = scmp.ne.s32.totalorder %s46, %s48
    %p52 = scmp.eq.s32.totalorder %s12, 0
    %p53 = por %p51, %p52
    %p54 = scmp.ne.s32.totalorder %s46, %s48
    %p55 = scmp.eq.s32.totalorder %s17, 1
    %p56 = por %p54, %p55
    %p57 = scmp.ne.s32.totalorder %s48, %s49
    %p58 = scmp.eq.s32.totalorder %s17, 0
    %p59 = por %p57, %p58
    %p60 = scmp.ne.s32.totalorder %s48, %s49
    %p61 = scmp.eq.s32.totalorder %s18, 1
    %p62 = por %p60, %p61
    %p64 = scmp.ne.s32.totalorder %s49, %s63
    %p65 = scmp.eq.s32.totalorder %s18, 0
    %p66 = por %p64, %p65
    %s68 = sadd.s32 %s67, 1
    %p71 = scmp.eq.s32.totalorder %s12, 1
    %p72 = scmp.ne.s32.totalorder %s67, %s69
    %p73 = scmp.eq.s32.totalorder %s12, 0
    %p74 = por %p72, %p73
    %p75 = scmp.ne.s32.totalorder %s67, %s69
    %p76 = scmp.eq.s32.totalorder %s17, 1
    %p77 = por %p75, %p76
    %p78 = scmp.ne.s32.totalorder %s69, %s70
    %p79 = scmp.eq.s32.totalorder %s17, 0
    %p80 = por %p78, %p79
    %p81 = scmp.ne.s32.totalorder %s69, %s70
    %p82 = scmp.eq.s32.totalorder %s18, 1
    %p83 = por %p81, %p82
    %p85 = scmp.ne.s32.totalorder %s70, %s84
    %p86 = scmp.eq.s32.totalorder %s18, 0
    %p87 = por %p85, %p86
    %s89 = sadd.s32 %s88, 1
    %p92 = scmp.eq.s32.totalorder %s12, 1
    %p93 = scmp.ne.s32.totalorder %s88, %s90
    %p94 = scmp.eq.s32.totalorder %s12, 0
    %p95 = por %p93, %p94
    %p96 = scmp.ne.s32.totalorder %s88, %s90
    %p97 = scmp.eq.s32.totalorder %s17, 1
    %p98 = por %p96, %p97
    %p99 = scmp.ne.s32.totalorder %s90, %s91
    %p100 = scmp.eq.s32.totalorder %s17, 0
    %p101 = por %p99, %p100
    %p102 = scmp.ne.s32.totalorder %s90, %s91
    %p103 = scmp.eq.s32.totalorder %s18, 1
    %p104 = por %p102, %p103
    %p106 = scmp.ne.s32.totalorder %s91, %s105
    %p107 = scmp.eq.s32.totalorder %s18, 0
    %p108 = por %p106, %p107
    %s110 = sadd.s32 %s109, 1
    %p113 = scmp.eq.s32.totalorder %s12, 1
    %p114 = scmp.ne.s32.totalorder %s109, %s111
    %p115 = scmp.eq.s32.totalorder %s12, 0
    %p116 = por %p114, %p115
    %p117 = scmp.ne.s32.totalorder %s109, %s111
    %p118 = scmp.eq.s32.totalorder %s17, 1
    %p119 = por %p117, %p118
    %p120 = scmp.ne.s32.totalorder %s111, %s112
    %p121 = scmp.eq.s32.totalorder %s17, 0
    %p122 = por %p120, %p121
    %p123 = scmp.ne.s32.totalorder %s111, %s112
    %p124 = scmp.eq.s32.totalorder %s18, 1
    %p125 = por %p123, %p124
    %p127 = scmp.ne.s32.totalorder %s112, %s126
    %p128 = scmp.eq.s32.totalorder %s18, 0
    %p129 = por %p127, %p128
    %s131 = sadd.s32 %s130, 1
    %p134 = scmp.eq.s32.totalorder %s12, 1
    %p135 = scmp.ne.s32.totalorder %s130, %s132
    %p136 = scmp.eq.s32.totalorder %s12, 0
    %p137 = por %p135, %p136
    %p138 = scmp.ne.s32.totalorder %s130, %s132
    %p139 = scmp.eq.s32.totalorder %s17, 1
    %p140 = por %p138, %p139
    %p141 = scmp.ne.s32.totalorder %s132, %s133
    %p142 = scmp.eq.s32.totalorder %s17, 0
    %p143 = por %p141, %p142
    %p144 = scmp.ne.s32.totalorder %s132, %s133
    %p145 = scmp.eq.s32.totalorder %s18, 1
    %p146 = por %p144, %p145
    %p148 = scmp.ne.s32.totalorder %s133, %s147
    %p149 = scmp.eq.s32.totalorder %s18, 0
    %p150 = por %p148, %p149
    %s151 = ssub.s32 %s12, %s19
    %p152 = scmp.eq.s32.totalorder %s151, 0
    %s154 = sadd.s32 %s153, 1
    %s155 = scalar_select %p152, %s153, %s154
    %p158 = pneg %p152
    %p159 = scmp.eq.s32.totalorder %s12, 1
    %p160 = por %p158, %p159
    %p161 = scmp.ne.s32.totalorder %s153, %s156
    %p162 = scmp.eq.s32.totalorder %s12, 0
    %p163 = por %p161, %p162
    %p164 = scmp.ne.s32.totalorder %s153, %s156
    %p165 = scmp.eq.s32.totalorder %s17, 1
    %p166 = por %p164, %p165
    %p167 = scmp.ne.s32.totalorder %s156, %s157
    %p168 = scmp.eq.s32.totalorder %s17, 0
    %p169 = por %p167, %p168
    %p170 = scmp.ne.s32.totalorder %s156, %s157
    %p171 = scmp.eq.s32.totalorder %s18, 1
    %p172 = por %p170, %p171
    %p174 = scmp.ne.s32.totalorder %s157, %s173
    %p175 = scmp.eq.s32.totalorder %s18, 0
    %p176 = por %p174, %p175
    %p177 = scmp.le.s32.totalorder 1, %s12
    %p178 = scmp.lt.s32.totalorder %s12, 3
    %p179 = pnand %p177, %p178
    %p180 = pneg %p179
    // Predicated region
    $region9: #{basic_block_forward.1} parent=5 // pred_check
      _
    $region10: #{basic_block_forward.1} parent=5 // pred_check_branch
      %182 = sbr.rel (%p179) target = $region12
    $region11: #{basic_block_forward.1} parent=5 // pred_region
      %s183 = ssub.s32 %s12, 1
      // Predicated region
      $region13: #{basic_block_forward.1} parent=11 // pred_check
        %p184 = pneg %p59
      $region14: #{basic_block_forward.1} parent=11 // pred_check_branch
        %186 = sbr.rel (%p184) target = $region16
      $region15: #{basic_block_forward.1} parent=11 // pred_region
        _
      $region16: #{basic_block_forward.1} parent=11 // pred_fallthru
        _
      // Predicated region
      $region17: #{basic_block_forward.1} parent=11 // pred_check
        %p187 = pneg %p80
      $region18: #{basic_block_forward.1} parent=11 // pred_check_branch
        %189 = sbr.rel (%p187) target = $region20
      $region19: #{basic_block_forward.1} parent=11 // pred_region
        _
      $region20: #{basic_block_forward.1} parent=11 // pred_fallthru
        _
      // Predicated region
      $region21: #{basic_block_forward.1} parent=11 // pred_check
        %p190 = pneg %p101
      $region22: #{basic_block_forward.1} parent=11 // pred_check_branch
        %192 = sbr.rel (%p190) target = $region24
      $region23: #{basic_block_forward.1} parent=11 // pred_region
        _
      $region24: #{basic_block_forward.1} parent=11 // pred_fallthru
        _
      // Predicated region
      $region25: #{basic_block_forward.1} parent=11 // pred_check
        %p193 = pneg %p122
      $region26: #{basic_block_forward.1} parent=11 // pred_check_branch
        %195 = sbr.rel (%p193) target = $region28
      $region27: #{basic_block_forward.1} parent=11 // pred_region
        _
      $region28: #{basic_block_forward.1} parent=11 // pred_fallthru
        _
      // Predicated region
      $region29: #{basic_block_forward.1} parent=11 // pred_check
        %p196 = pneg %p143
      $region30: #{basic_block_forward.1} parent=11 // pred_check_branch
        %198 = sbr.rel (%p196) target = $region32
      $region31: #{basic_block_forward.1} parent=11 // pred_region
        _
      $region32: #{basic_block_forward.1} parent=11 // pred_fallthru
        _
    $region12: #{basic_block_forward.1} parent=5 // pred_fallthru
      _
    %p199 = scmp.lt.s32.totalorder %s12, 2
    // Predicated region
    $region33: #{basic_block_forward.1} parent=5 // pred_check
      %p200 = pneg %p199
    $region34: #{basic_block_forward.1} parent=5 // pred_check_branch
      %202 = sbr.rel (%p200) target = $region36
    $region35: #{basic_block_forward.1} parent=5 // pred_region
      // Predicated region
      $region37: #{basic_block_forward.1} parent=35 // pred_check
        %p203 = pneg %p32
      $region38: #{basic_block_forward.1} parent=35 // pred_check_branch
        %205 = sbr.rel (%p203) target = $region40
      $region39: #{basic_block_forward.1} parent=35 // pred_region
        %p206 = scmp.lt.s32.totalorder %s12, 1
        %s207 = scalar_select %p206, %s12, 1
        %s208 = smul.addr %s207, 41
        %s209 = smul.addr %s208, 4
        %s210 = scalar_lea.vmem %s0, %s209
      $region40: #{basic_block_forward.1} parent=35 // pred_fallthru
        _
    $region36: #{basic_block_forward.1} parent=5 // pred_fallthru
      _
    %p211 = scmp.le.s32.totalorder 1, %s12
    %p212 = scmp.lt.s32.totalorder %s12, 3
    %p213 = pnand %p211, %p212
    %p214 = pneg %p213
    // Predicated region
    $region41: #{basic_block_forward.1} parent=5 // pred_check
      _
    $region42: #{basic_block_forward.1} parent=5 // pred_check_branch
      %216 = sbr.rel (%p213) target = $region44
    $region43: #{basic_block_forward.1} parent=5 // pred_region
      %s217 = ssub.s32 %s12, 1
      %p218 = scmp.lt.s32.totalorder %s17, 1
      %s219 = scalar_select %p218, %s17, 1
      %s220 = smul.addr %s219, 41
      %s221 = smul.addr %s220, 4
      %s222 = scalar_lea.vmem %s0, %s221
      %p223 = pneg %p38
      %p224 = pneg %p35
      %p225 = pneg %p59
      %p226 = pneg %p56
      %p227 = pneg %p80
      %p228 = pneg %p77
      %p229 = pneg %p101
      %p230 = pneg %p98
      %p231 = pneg %p122
      %p232 = pneg %p119
      %p233 = pneg %p143
      %p234 = pneg %p140
      %p235 = pneg %p169
      %p236 = pneg %p166
      %p237 = scmp.lt.s32.totalorder %s17, 1
      %s238 = scalar_select %p237, %s17, 1
      %s239 = smul.addr %s238, 36
      %s240 = smul.addr %s239, 4
      %s241 = scalar_lea.vmem %s6, %s240
      %p242 = scmp.lt.s32.totalorder %s17, 1
      %s243 = scalar_select %p242, %s17, 1
      %s244 = smul.addr %s243, 41
      %s245 = smul.addr %s244, 4
      %s246 = scalar_lea.vmem %s0, %s245
      %p247 = scmp.lt.s32.totalorder %s17, 1
      %s248 = scalar_select %p247, %s17, 1
      %s249 = smul.addr %s248, 36
      %s250 = smul.addr %s249, 4
      %s251 = scalar_lea.vmem %s6, %s250
      %v253 = vld [vmem:[%s246] sm:$0xf]
      %v254 = vld [vmem:[%s246 + $0x4] sm:$0xf]
      %v255 = vld [vmem:[%s246 + $0x8] sm:$0xf]
      %v256 = vld [vmem:[%s246 + $0xc] sm:$0xf]
      %v257 = vld [vmem:[%s246 + $0x10] sm:$0xf]
      %v258 = vld [vmem:[%s246 + $0x14] sm:$0xf]
      %v259 = vld [vmem:[%s246 + $0x18] sm:$0xf]
      %v260 = vld [vmem:[%s246 + $0x1c] sm:$0xf]
      %v261 = vld [vmem:[%s246 + $0x20] sm:$0xf]
      %v262 = vld [vmem:[%s246 + $0x24] sm:$0xf]
      %v263 = vld [vmem:[%s246 + $0x28] sm:$0xf]
      %v264 = vld [vmem:[%s246 + $0x2c] sm:$0xf]
      %v265 = vld [vmem:[%s246 + $0x30] sm:$0xf]
      %v266 = vld [vmem:[%s246 + $0x34] sm:$0xf]
      %v267 = vld [vmem:[%s246 + $0x38] sm:$0xf]
      %v268 = vld [vmem:[%s246 + $0x3c] sm:$0xf]
      %v269 = vld [vmem:[%s246 + $0x40] sm:$0xf]
      %v270 = vld [vmem:[%s246 + $0x44] sm:$0xf]
      %v271 = vld [vmem:[%s246 + $0x48] sm:$0xf]
      %v272 = vld [vmem:[%s246 + $0x4c] sm:$0xf]
      %v273 = vld [vmem:[%s246 + $0x50] sm:$0xf]
      %v274 = vld [vmem:[%s246 + $0x54] sm:$0xf]
      %v275 = vld [vmem:[%s246 + $0x58] sm:$0xf]
      %v276 = vld [vmem:[%s246 + $0x5c] sm:$0xf]
      %v277 = vld [vmem:[%s246 + $0x60] sm:$0xf]
      %v278 = vld [vmem:[%s246 + $0x64] sm:$0xf]
      %v279 = vld [vmem:[%s246 + $0x68] sm:$0xf]
      %v280 = vld [vmem:[%s246 + $0x6c] sm:$0xf]
      %v281 = vld [vmem:[%s246 + $0x70] sm:$0xf]
      %v282 = vld [vmem:[%s246 + $0x74] sm:$0xf]
      %v283 = vld [vmem:[%s246 + $0x78] sm:$0xf]
      %v284 = vld [vmem:[%s246 + $0x7c] sm:$0xf]
      %v285 = vld [vmem:[%s246 + $0x80] sm:$0xf]
      %v286 = vld [vmem:[%s246 + $0x84] sm:$0xf]
      %v287 = vld [vmem:[%s246 + $0x88] sm:$0xf]
      %v288 = vld [vmem:[%s246 + $0x8c] sm:$0x7]
      %v289 = vld [vmem:[%s2] sm:$0x3]
      %v290 = vld [vmem:[%s246 + $0x8c] sm:$0xf]
      %s291 = scalar_lea.vmem %s2, 2
      %v292 = vld [vmem:[%s291] sm:$0x3]
      %v329 = vunpack.c.l.b16 %v253
      %v330 = vunpack.c.l.b16 %v254
      %v331 = vunpack.c.l.b16 %v255
      %v332 = vunpack.c.l.b16 %v256
      %v333 = vunpack.c.l.b16 %v257
      %v334 = vunpack.c.l.b16 %v258
      %v335 = vunpack.c.l.b16 %v259
      %v336 = vunpack.c.l.b16 %v260
      %v337 = vunpack.c.l.b16 %v261
      %v338 = vunpack.c.l.b16 %v262
      %v339 = vunpack.c.l.b16 %v263
      %v340 = vunpack.c.l.b16 %v264
      %v341 = vunpack.c.l.b16 %v265
      %v342 = vunpack.c.l.b16 %v266
      %v343 = vunpack.c.l.b16 %v267
      %v344 = vunpack.c.l.b16 %v268
      %v345 = vunpack.c.l.b16 %v269
      %v346 = vunpack.c.l.b16 %v270
      %v347 = vunpack.c.l.b16 %v271
      %v348 = vunpack.c.l.b16 %v272
      %v349 = vunpack.c.l.b16 %v273
      %v350 = vunpack.c.l.b16 %v274
      %v351 = vunpack.c.l.b16 %v275
      %v352 = vunpack.c.l.b16 %v276
      %v353 = vunpack.c.l.b16 %v277
      %v354 = vunpack.c.l.b16 %v278
      %v355 = vunpack.c.l.b16 %v279
      %v356 = vunpack.c.l.b16 %v280
      %v357 = vunpack.c.l.b16 %v281
      %v358 = vunpack.c.l.b16 %v282
      %v359 = vunpack.c.l.b16 %v283
      %v360 = vunpack.c.l.b16 %v284
      %v361 = vunpack.c.l.b16 %v285
      %v362 = vunpack.c.l.b16 %v286
      %v363 = vunpack.c.l.b16 %v287
      %v364 = vunpack.c.l.b16 %v290
      %v365 = vpack.c.b16 %v330, %v329
      %v366 = vpack.c.b16 %v332, %v331
      %v367 = vpack.c.b16 %v334, %v333
      %v368 = vpack.c.b16 %v336, %v335
      %v369 = vpack.c.b16 %v338, %v337
      %v370 = vpack.c.b16 %v340, %v339
      %v371 = vpack.c.b16 %v342, %v341
      %v372 = vpack.c.b16 %v344, %v343
      %v373 = vpack.c.b16 %v346, %v345
      %v374 = vpack.c.b16 %v348, %v347
      %v375 = vpack.c.b16 %v350, %v349
      %v376 = vpack.c.b16 %v352, %v351
      %v377 = vpack.c.b16 %v354, %v353
      %v378 = vpack.c.b16 %v356, %v355
      %v379 = vpack.c.b16 %v358, %v357
      %v380 = vpack.c.b16 %v360, %v359
      %v381 = vpack.c.b16 %v362, %v361
      %v382 = vpack.c.b16 %v364, %v363
      %vm383 = vsmask.f32 7424
      %v385 = vshrl.u32 %v365, 16
      %v387 = vshll.u32 %v365, 16
      %v389 = vrot.slane %v387, 1
      %v390 = vor.u32 %v385, %v389
      %v392 = vshll.u32 %v366, 16
      %v394 = vrot.slane %v392, 1
      %v395 = vsel %vm383, %v390, %v394
      %v396 = vshrl.u32 %v366, 16
      %v398 = vor.u32 %v396, %v394
      %v400 = vshll.u32 %v367, 16
      %v402 = vrot.slane %v400, 1
      %v403 = vsel %vm383, %v398, %v402
      %v404 = vshrl.u32 %v367, 16
      %v406 = vor.u32 %v404, %v402
      %v408 = vshll.u32 %v368, 16
      %v410 = vrot.slane %v408, 1
      %v411 = vsel %vm383, %v406, %v410
      %v412 = vshrl.u32 %v368, 16
      %v414 = vor.u32 %v412, %v410
      %v416 = vshll.u32 %v369, 16
      %v418 = vrot.slane %v416, 1
      %v419 = vsel %vm383, %v414, %v418
      %v420 = vshrl.u32 %v369, 16
      %v422 = vor.u32 %v420, %v418
      %v424 = vshll.u32 %v370, 16
      %v426 = vrot.slane %v424, 1
      %v427 = vsel %vm383, %v422, %v426
      %v428 = vshrl.u32 %v370, 16
      %v430 = vor.u32 %v428, %v426
      %v432 = vshll.u32 %v371, 16
      %v434 = vrot.slane %v432, 1
      %v435 = vsel %vm383, %v430, %v434
      %v436 = vshrl.u32 %v371, 16
      %v438 = vor.u32 %v436, %v434
      %v440 = vshll.u32 %v372, 16
      %v442 = vrot.slane %v440, 1
      %v443 = vsel %vm383, %v438, %v442
      %v444 = vshrl.u32 %v372, 16
      %v446 = vor.u32 %v444, %v442
      %v448 = vshll.u32 %v373, 16
      %v450 = vrot.slane %v448, 1
      %v451 = vsel %vm383, %v446, %v450
      %v452 = vshrl.u32 %v373, 16
      %v454 = vor.u32 %v452, %v450
      %v456 = vshll.u32 %v374, 16
      %v458 = vrot.slane %v456, 1
      %v459 = vsel %vm383, %v454, %v458
      %v460 = vshrl.u32 %v374, 16
      %v462 = vor.u32 %v460, %v458
      %v464 = vshll.u32 %v375, 16
      %v466 = vrot.slane %v464, 1
      %v467 = vsel %vm383, %v462, %v466
      %v468 = vshrl.u32 %v375, 16
      %v470 = vor.u32 %v468, %v466
      %v472 = vshll.u32 %v376, 16
      %v474 = vrot.slane %v472, 1
      %v475 = vsel %vm383, %v470, %v474
      %v476 = vshrl.u32 %v376, 16
      %v478 = vor.u32 %v476, %v474
      %v480 = vshll.u32 %v377, 16
      %v482 = vrot.slane %v480, 1
      %v483 = vsel %vm383, %v478, %v482
      %v484 = vshrl.u32 %v377, 16
      %v486 = vor.u32 %v484, %v482
      %v488 = vshll.u32 %v378, 16
      %v490 = vrot.slane %v488, 1
      %v491 = vsel %vm383, %v486, %v490
      %v492 = vshrl.u32 %v378, 16
      %v494 = vor.u32 %v492, %v490
      %v496 = vshll.u32 %v379, 16
      %v498 = vrot.slane %v496, 1
      %v499 = vsel %vm383, %v494, %v498
      %v500 = vshrl.u32 %v379, 16
      %v502 = vor.u32 %v500, %v498
      %v504 = vshll.u32 %v380, 16
      %v506 = vrot.slane %v504, 1
      %v507 = vsel %vm383, %v502, %v506
      %v508 = vshrl.u32 %v380, 16
      %v510 = vor.u32 %v508, %v506
      %v512 = vshll.u32 %v381, 16
      %v514 = vrot.slane %v512, 1
      %v515 = vsel %vm383, %v510, %v514
      %v516 = vshrl.u32 %v381, 16
      %v518 = vor.u32 %v516, %v514
      %v520 = vshll.u32 %v382, 16
      %v522 = vrot.slane %v520, 1
      %v523 = vsel %vm383, %v518, %v522
      %v524 = vshrl.u32 %v382, 16
      %v526 = vor.u32 %v524, %v522
      %vm527 = vcmask 31744
      %v529 = vsel %vm527, %v395, 0
      %v532 = vsel %vm527, %v403, 0
      %v535 = vsel %vm527, %v411, 0
      %v538 = vsel %vm527, %v419, 0
      %v541 = vsel %vm527, %v427, 0
      %v544 = vsel %vm527, %v435, 0
      %v547 = vsel %vm527, %v443, 0
      %v550 = vsel %vm527, %v451, 0
      %v553 = vsel %vm527, %v459, 0
      %v556 = vsel %vm527, %v467, 0
      %v559 = vsel %vm527, %v475, 0
      %v562 = vsel %vm527, %v483, 0
      %v565 = vsel %vm527, %v491, 0
      %v568 = vsel %vm527, %v499, 0
      %v571 = vsel %vm527, %v507, 0
      %v574 = vsel %vm527, %v515, 0
      %v577 = vsel %vm527, %v523, 0
      %v580 = vsel %vm527, %v526, 0
      %vm582 = vcmask 1041408
      %v584 = vsel %vm582, %v292, 0
      %586 = vmatprep.subr.bf16.mxu0 0
      %587 = vmatpush1.bf16.msra.mxu0 %v584
      %588 = vmatprep.subr.bf16.mxu0 0
      %589 = vmatpush1.bf16.msra.mxu0 0
      %590 = vmatprep.subr.bf16.mxu0 0
      %591 = vmatpush1.bf16.msra.mxu0 0
      %592 = vmatprep.subr.bf16.mxu0 0
      %593 = vmatpush1.bf16.msra.mxu0 0
      %594 = vmatprep.subr.bf16.mxu0 0
      %595 = vmatpush1.bf16.msra.mxu0 0
      %596 = vmatprep.subr.bf16.mxu0 0
      %597 = vmatpush1.bf16.msra.mxu0 0
      %598 = vmatprep.subr.bf16.mxu0 0
      %599 = vmatpush1.bf16.msra.mxu0 0
      %600 = vmatprep.subr.bf16.mxu0 0
      %601 = vmatpush1.bf16.msra.mxu0 0
      %602 = vmatprep.subr.bf16.mxu0 0
      %603 = vmatpush1.bf16.msra.mxu0 0
      %604 = vmatprep.subr.bf16.mxu0 0
      %605 = vmatpush1.bf16.msra.mxu0 0
      %606 = vmatprep.subr.bf16.mxu0 0
      %607 = vmatpush1.bf16.msra.mxu0 0
      %608 = vmatprep.subr.bf16.mxu0 0
      %609 = vmatpush1.bf16.msra.mxu0 0
      %610 = vmatprep.subr.bf16.mxu0 0
      %611 = vmatpush1.bf16.msra.mxu0 0
      %612 = vmatprep.subr.bf16.mxu0 0
      %613 = vmatpush1.bf16.msra.mxu0 0
      %614 = vmatprep.subr.bf16.mxu0 0
      %615 = vmatpush1.bf16.msra.mxu0 0
      %616 = vmatprep.subr.bf16.mxu0 0
      %617 = vmatpush1.bf16.msra.mxu0 0
      %618 = vmatprep.mubr.bf16.mxu0 0
      %619 = vmatmul.mubr.bf16.gmra.mrb[0].mxu0 %v529
      %v620 = vpop.f32.mrb[0].mxu0
      %v621 = vadd.f32 0.0, %v620
      %v622 = vpop.f32.mrb[0].mxu0
      %v623 = vpop.f32.mrb[0].mxu0
      %v624 = vadd.f32 0.0, %v623
      %v625 = vpop.f32.mrb[0].mxu0
      %626 = vmatprep.mubr.bf16.mxu0 0
      %627 = vmatmul.mubr.bf16.gmra.mrb[0].mxu0 %v532
      %v628 = vpop.f32.mrb[0].mxu0
      %v629 = vadd.f32 0.0, %v628
      %v630 = vpop.f32.mrb[0].mxu0
      %v631 = vpop.f32.mrb[0].mxu0
      %v632 = vadd.f32 0.0, %v631
      %v633 = vpop.f32.mrb[0].mxu0
      %634 = vmatprep.mubr.bf16.mxu0 0
      %635 = vmatmul.mubr.bf16.gmra.mrb[0].mxu0 %v535
      %v636 = vpop.f32.mrb[0].mxu0
      %v637 = vadd.f32 0.0, %v636
      %v638 = vpop.f32.mrb[0].mxu0
      %v639 = vpop.f32.mrb[0].mxu0
      %v640 = vadd.f32 0.0, %v639
      %v641 = vpop.f32.mrb[0].mxu0
      %642 = vmatprep.mubr.bf16.mxu0 0
      %643 = vmatmul.mubr.bf16.gmra.mrb[0].mxu0 %v538
      %v644 = vpop.f32.mrb[0].mxu0
      %v645 = vadd.f32 0.0, %v644
      %v646 = vpop.f32.mrb[0].mxu0
      %v647 = vpop.f32.mrb[0].mxu0
      %v648 = vadd.f32 0.0, %v647
      %v649 = vpop.f32.mrb[0].mxu0
      %650 = vmatprep.mubr.bf16.mxu0 0
      %651 = vmatmul.mubr.bf16.gmra.mrb[0].mxu0 %v541
      %v652 = vpop.f32.mrb[0].mxu0
      %v653 = vadd.f32 0.0, %v652
      %v654 = vpop.f32.mrb[0].mxu0
      %v655 = vpop.f32.mrb[0].mxu0
      %v656 = vadd.f32 0.0, %v655
      %v657 = vpop.f32.mrb[0].mxu0
      %658 = vmatprep.mubr.bf16.mxu0 0
      %659 = vmatmul.mubr.bf16.gmra.mrb[0].mxu0 %v544
      %v660 = vpop.f32.mrb[0].mxu0
      %v661 = vadd.f32 0.0, %v660
      %v662 = vpop.f32.mrb[0].mxu0
      %v663 = vpop.f32.mrb[0].mxu0
      %v664 = vadd.f32 0.0, %v663
      %v665 = vpop.f32.mrb[0].mxu0
      %666 = vmatprep.mubr.bf16.mxu0 0
      %667 = vmatmul.mubr.bf16.gmra.mrb[0].mxu0 %v547
      %v668 = vpop.f32.mrb[0].mxu0
      %v669 = vadd.f32 0.0, %v668
      %v670 = vpop.f32.mrb[0].mxu0
      %v671 = vpop.f32.mrb[0].mxu0
      %v672 = vadd.f32 0.0, %v671
      %v673 = vpop.f32.mrb[0].mxu0
      %674 = vmatprep.mubr.bf16.mxu0 0
      %675 = vmatmul.mubr.bf16.gmra.mrb[0].mxu0 %v550
      %v676 = vpop.f32.mrb[0].mxu0
      %v677 = vadd.f32 0.0, %v676
      %v678 = vpop.f32.mrb[0].mxu0
      %v679 = vpop.f32.mrb[0].mxu0
      %v680 = vadd.f32 0.0, %v679
      %v681 = vpop.f32.mrb[0].mxu0
      %682 = vmatprep.mubr.bf16.mxu0 0
      %683 = vmatmul.mubr.bf16.gmra.mrb[0].mxu0 %v553
      %v684 = vpop.f32.mrb[0].mxu0
      %v685 = vadd.f32 0.0, %v684
      %v686 = vpop.f32.mrb[0].mxu0
      %v687 = vpop.f32.mrb[0].mxu0
      %v688 = vadd.f32 0.0, %v687
      %v689 = vpop.f32.mrb[0].mxu0
      %690 = vmatprep.mubr.bf16.mxu0 0
      %691 = vmatmul.mubr.bf16.gmra.mrb[0].mxu0 %v556
      %v692 = vpop.f32.mrb[0].mxu0
      %v693 = vadd.f32 0.0, %v692
      %v694 = vpop.f32.mrb[0].mxu0
      %v695 = vpop.f32.mrb[0].mxu0
      %v696 = vadd.f32 0.0, %v695
      %v697 = vpop.f32.mrb[0].mxu0
      %698 = vmatprep.mubr.bf16.mxu0 0
      %699 = vmatmul.mubr.bf16.gmra.mrb[0].mxu0 %v559
      %v700 = vpop.f32.mrb[0].mxu0
      %v701 = vadd.f32 0.0, %v700
      %v702 = vpop.f32.mrb[0].mxu0
      %v703 = vpop.f32.mrb[0].mxu0
      %v704 = vadd.f32 0.0, %v703
      %v705 = vpop.f32.mrb[0].mxu0
      %706 = vmatprep.mubr.bf16.mxu0 0
      %707 = vmatmul.mubr.bf16.gmra.mrb[0].mxu0 %v562
      %v708 = vpop.f32.mrb[0].mxu0
      %v709 = vadd.f32 0.0, %v708
      %v710 = vpop.f32.mrb[0].mxu0
      %v711 = vpop.f32.mrb[0].mxu0
      %v712 = vadd.f32 0.0, %v711
      %v713 = vpop.f32.mrb[0].mxu0
      %714 = vmatprep.mubr.bf16.mxu0 0
      %715 = vmatmul.mubr.bf16.gmra.mrb[0].mxu0 %v565
      %v716 = vpop.f32.mrb[0].mxu0
      %v717 = vadd.f32 0.0, %v716
      %v718 = vpop.f32.mrb[0].mxu0
      %v719 = vpop.f32.mrb[0].mxu0
      %v720 = vadd.f32 0.0, %v719
      %v721 = vpop.f32.mrb[0].mxu0
      %722 = vmatprep.mubr.bf16.mxu0 0
      %723 = vmatmul.mubr.bf16.gmra.mrb[0].mxu0 %v568
      %v724 = vpop.f32.mrb[0].mxu0
      %v725 = vadd.f32 0.0, %v724
      %v726 = vpop.f32.mrb[0].mxu0
      %v727 = vpop.f32.mrb[0].mxu0
      %v728 = vadd.f32 0.0, %v727
      %v729 = vpop.f32.mrb[0].mxu0
      %730 = vmatprep.mubr.bf16.mxu0 0
      %731 = vmatmul.mubr.bf16.gmra.mrb[0].mxu0 %v571
      %v732 = vpop.f32.mrb[0].mxu0
      %v733 = vadd.f32 0.0, %v732
      %v734 = vpop.f32.mrb[0].mxu0
      %v735 = vpop.f32.mrb[0].mxu0
      %v736 = vadd.f32 0.0, %v735
      %v737 = vpop.f32.mrb[0].mxu0
      %738 = vmatprep.mubr.bf16.mxu0 0
      %739 = vmatmul.mubr.bf16.gmra.mrb[0].mxu0 %v574
      %v740 = vpop.f32.mrb[0].mxu0
      %v741 = vadd.f32 0.0, %v740
      %v742 = vpop.f32.mrb[0].mxu0
      %v743 = vpop.f32.mrb[0].mxu0
      %v744 = vadd.f32 0.0, %v743
      %v745 = vpop.f32.mrb[0].mxu0
      %746 = vmatprep.mubr.bf16.mxu0 0
      %747 = vmatmul.mubr.bf16.gmra.mrb[0].mxu0 %v577
      %v748 = vpop.f32.mrb[0].mxu0
      %v749 = vadd.f32 0.0, %v748
      %v750 = vpop.f32.mrb[0].mxu0
      %v751 = vpop.f32.mrb[0].mxu0
      %v752 = vadd.f32 0.0, %v751
      %v753 = vpop.f32.mrb[0].mxu0
      %754 = vmatprep.mubr.bf16.mxu0 0
      %755 = vmatmul.mubr.bf16.gmra.mrb[0].mxu0 %v580
      %v756 = vpop.f32.mrb[0].mxu0
      %v757 = vadd.f32 0.0, %v756
      %v758 = vpop.f32.mrb[0].mxu0
      %v759 = vpop.f32.mrb[0].mxu0
      %v760 = vadd.f32 0.0, %v759
      %v761 = vpop.f32.mrb[0].mxu0
      %762 = vdwg.mxu0
      %v764 = vunpack.c.l.b16 %v288
      %v765 = vpack.c.b16 %v764, %v363
      %v766 = vsel %vm527, %v365, 0
      %v768 = vsel %vm527, %v366, 0
      %v770 = vsel %vm527, %v367, 0
      %v772 = vsel %vm527, %v368, 0
      %v774 = vsel %vm527, %v369, 0
      %v776 = vsel %vm527, %v370, 0
      %v778 = vsel %vm527, %v371, 0
      %v780 = vsel %vm527, %v372, 0
      %v782 = vsel %vm527, %v373, 0
      %v784 = vsel %vm527, %v374, 0
      %v786 = vsel %vm527, %v375, 0
      %v788 = vsel %vm527, %v376, 0
      %v790 = vsel %vm527, %v377, 0
      %v792 = vsel %vm527, %v378, 0
      %v794 = vsel %vm527, %v379, 0
      %v796 = vsel %vm527, %v380, 0
      %v798 = vsel %vm527, %v381, 0
      %v801 = vsel %vm527, %v765, 0
      %v804 = vsel %vm582, %v289, 0
      %806 = vmatprep.subr.bf16.mxu0 0
      %807 = vmatpush1.bf16.msra.mxu0 %v804
      %808 = vmatprep.subr.bf16.mxu0 0
      %809 = vmatpush1.bf16.msra.mxu0 0
      %810 = vmatprep.subr.bf16.mxu0 0
      %811 = vmatpush1.bf16.msra.mxu0 0
      %812 = vmatprep.subr.bf16.mxu0 0
      %813 = vmatpush1.bf16.msra.mxu0 0
      %814 = vmatprep.subr.bf16.mxu0 0
      %815 = vmatpush1.bf16.msra.mxu0 0
      %816 = vmatprep.subr.bf16.mxu0 0
      %817 = vmatpush1.bf16.msra.mxu0 0
      %818 = vmatprep.subr.bf16.mxu0 0
      %819 = vmatpush1.bf16.msra.mxu0 0
      %820 = vmatprep.subr.bf16.mxu0 0
      %821 = vmatpush1.bf16.msra.mxu0 0
      %822 = vmatprep.subr.bf16.mxu0 0
      %823 = vmatpush1.bf16.msra.mxu0 0
      %824 = vmatprep.subr.bf16.mxu0 0
      %825 = vmatpush1.bf16.msra.mxu0 0
      %826 = vmatprep.subr.bf16.mxu0 0
      %827 = vmatpush1.bf16.msra.mxu0 0
      %828 = vmatprep.subr.bf16.mxu0 0
      %829 = vmatpush1.bf16.msra.mxu0 0
      %830 = vmatprep.subr.bf16.mxu0 0
      %831 = vmatpush1.bf16.msra.mxu0 0
      %832 = vmatprep.subr.bf16.mxu0 0
      %833 = vmatpush1.bf16.msra.mxu0 0
      %834 = vmatprep.subr.bf16.mxu0 0
      %835 = vmatpush1.bf16.msra.mxu0 0
      %836 = vmatprep.subr.bf16.mxu0 0
      %837 = vmatpush1.bf16.msra.mxu0 0
      %838 = vmatprep.mubr.bf16.mxu0 0
      %839 = vmatmul.mubr.bf16.gmra.mrb[0].mxu0 %v766
      %v840 = vpop.f32.mrb[0].mxu0
      %v841 = vadd.f32 %v621, %v840
      %v842 = vpop.f32.mrb[0].mxu0
      %v843 = vpop.f32.mrb[0].mxu0
      %v844 = vadd.f32 %v624, %v843
      %v845 = vpop.f32.mrb[0].mxu0
      %846 = vmatprep.mubr.bf16.mxu0 0
      %847 = vmatmul.mubr.bf16.gmra.mrb[0].mxu0 %v768
      %v848 = vpop.f32.mrb[0].mxu0
      %v849 = vadd.f32 %v629, %v848
      %v850 = vpop.f32.mrb[0].mxu0
      %v851 = vpop.f32.mrb[0].mxu0
      %v852 = vadd.f32 %v632, %v851
      %v853 = vpop.f32.mrb[0].mxu0
      %854 = vmatprep.mubr.bf16.mxu0 0
      %855 = vmatmul.mubr.bf16.gmra.mrb[0].mxu0 %v770
      %v856 = vpop.f32.mrb[0].mxu0
      %v857 = vadd.f32 %v637, %v856
      %v858 = vpop.f32.mrb[0].mxu0
      %v859 = vpop.f32.mrb[0].mxu0
      %v860 = vadd.f32 %v640, %v859
      %v861 = vpop.f32.mrb[0].mxu0
      %862 = vmatprep.mubr.bf16.mxu0 0
      %863 = vmatmul.mubr.bf16.gmra.mrb[0].mxu0 %v772
      %v864 = vpop.f32.mrb[0].mxu0
      %v865 = vadd.f32 %v645, %v864
      %v866 = vpop.f32.mrb[0].mxu0
      %v867 = vpop.f32.mrb[0].mxu0
      %v868 = vadd.f32 %v648, %v867
      %v869 = vpop.f32.mrb[0].mxu0
      %870 = vmatprep.mubr.bf16.mxu0 0
      %871 = vmatmul.mubr.bf16.gmra.mrb[0].mxu0 %v774
      %v872 = vpop.f32.mrb[0].mxu0
      %v873 = vadd.f32 %v653, %v872
      %v874 = vpop.f32.mrb[0].mxu0
      %v875 = vpop.f32.mrb[0].mxu0
      %v876 = vadd.f32 %v656, %v875
      %v877 = vpop.f32.mrb[0].mxu0
      %878 = vmatprep.mubr.bf16.mxu0 0
      %879 = vmatmul.mubr.bf16.gmra.mrb[0].mxu0 %v776
      %v880 = vpop.f32.mrb[0].mxu0
      %v881 = vadd.f32 %v661, %v880
      %v882 = vpop.f32.mrb[0].mxu0
      %v883 = vpop.f32.mrb[0].mxu0
      %v884 = vadd.f32 %v664, %v883
      %v885 = vpop.f32.mrb[0].mxu0
      %886 = vmatprep.mubr.bf16.mxu0 0
      %887 = vmatmul.mubr.bf16.gmra.mrb[0].mxu0 %v778
      %v888 = vpop.f32.mrb[0].mxu0
      %v889 = vadd.f32 %v669, %v888
      %v890 = vpop.f32.mrb[0].mxu0
      %v891 = vpop.f32.mrb[0].mxu0
      %v892 = vadd.f32 %v672, %v891
      %v893 = vpop.f32.mrb[0].mxu0
      %894 = vmatprep.mubr.bf16.mxu0 0
      %895 = vmatmul.mubr.bf16.gmra.mrb[0].mxu0 %v780
      %v896 = vpop.f32.mrb[0].mxu0
      %v897 = vadd.f32 %v677, %v896
      %v898 = vpop.f32.mrb[0].mxu0
      %v899 = vpop.f32.mrb[0].mxu0
      %v900 = vadd.f32 %v680, %v899
      %v901 = vpop.f32.mrb[0].mxu0
      %902 = vmatprep.mubr.bf16.mxu0 0
      %903 = vmatmul.mubr.bf16.gmra.mrb[0].mxu0 %v782
      %v904 = vpop.f32.mrb[0].mxu0
      %v905 = vadd.f32 %v685, %v904
      %v906 = vpop.f32.mrb[0].mxu0
      %v907 = vpop.f32.mrb[0].mxu0
      %v908 = vadd.f32 %v688, %v907
      %v909 = vpop.f32.mrb[0].mxu0
      %910 = vmatprep.mubr.bf16.mxu0 0
      %911 = vmatmul.mubr.bf16.gmra.mrb[0].mxu0 %v784
      %v912 = vpop.f32.mrb[0].mxu0
      %v913 = vadd.f32 %v693, %v912
      %v914 = vpop.f32.mrb[0].mxu0
      %v915 = vpop.f32.mrb[0].mxu0
      %v916 = vadd.f32 %v696, %v915
      %v917 = vpop.f32.mrb[0].mxu0
      %918 = vmatprep.mubr.bf16.mxu0 0
      %919 = vmatmul.mubr.bf16.gmra.mrb[0].mxu0 %v786
      %v920 = vpop.f32.mrb[0].mxu0
      %v921 = vadd.f32 %v701, %v920
      %v922 = vpop.f32.mrb[0].mxu0
      %v923 = vpop.f32.mrb[0].mxu0
      %v924 = vadd.f32 %v704, %v923
      %v925 = vpop.f32.mrb[0].mxu0
      %926 = vmatprep.mubr.bf16.mxu0 0
      %927 = vmatmul.mubr.bf16.gmra.mrb[0].mxu0 %v788
      %v928 = vpop.f32.mrb[0].mxu0
      %v929 = vadd.f32 %v709, %v928
      %v930 = vpop.f32.mrb[0].mxu0
      %v931 = vpop.f32.mrb[0].mxu0
      %v932 = vadd.f32 %v712, %v931
      %v933 = vpop.f32.mrb[0].mxu0
      %934 = vmatprep.mubr.bf16.mxu0 0
      %935 = vmatmul.mubr.bf16.gmra.mrb[0].mxu0 %v790
      %v936 = vpop.f32.mrb[0].mxu0
      %v937 = vadd.f32 %v717, %v936
      %v938 = vpop.f32.mrb[0].mxu0
      %v939 = vpop.f32.mrb[0].mxu0
      %v940 = vadd.f32 %v720, %v939
      %v941 = vpop.f32.mrb[0].mxu0
      %942 = vmatprep.mubr.bf16.mxu0 0
      %943 = vmatmul.mubr.bf16.gmra.mrb[0].mxu0 %v792
      %v944 = vpop.f32.mrb[0].mxu0
      %v945 = vadd.f32 %v725, %v944
      %v946 = vpop.f32.mrb[0].mxu0
      %v947 = vpop.f32.mrb[0].mxu0
      %v948 = vadd.f32 %v728, %v947
      %v949 = vpop.f32.mrb[0].mxu0
      %950 = vmatprep.mubr.bf16.mxu0 0
      %951 = vmatmul.mubr.bf16.gmra.mrb[0].mxu0 %v794
      %v952 = vpop.f32.mrb[0].mxu0
      %v953 = vadd.f32 %v733, %v952
      %v954 = vpop.f32.mrb[0].mxu0
      %v955 = vpop.f32.mrb[0].mxu0
      %v956 = vadd.f32 %v736, %v955
      %v957 = vpop.f32.mrb[0].mxu0
      %958 = vmatprep.mubr.bf16.mxu0 0
      %959 = vmatmul.mubr.bf16.gmra.mrb[0].mxu0 %v796
      %v960 = vpop.f32.mrb[0].mxu0
      %v961 = vadd.f32 %v741, %v960
      %v962 = vpop.f32.mrb[0].mxu0
      %v963 = vpop.f32.mrb[0].mxu0
      %v964 = vadd.f32 %v744, %v963
      %v965 = vpop.f32.mrb[0].mxu0
      %966 = vmatprep.mubr.bf16.mxu0 0
      %967 = vmatmul.mubr.bf16.gmra.mrb[0].mxu0 %v798
      %v968 = vpop.f32.mrb[0].mxu0
      %v969 = vadd.f32 %v749, %v968
      %v970 = vpop.f32.mrb[0].mxu0
      %v971 = vpop.f32.mrb[0].mxu0
      %v972 = vadd.f32 %v752, %v971
      %v973 = vpop.f32.mrb[0].mxu0
      %974 = vmatprep.mubr.bf16.mxu0 0
      %975 = vmatmul.mubr.bf16.gmra.mrb[0].mxu0 %v801
      %v976 = vpop.f32.mrb[0].mxu0
      %v977 = vadd.f32 %v757, %v976
      %v978 = vpop.f32.mrb[0].mxu0
      %v979 = vpop.f32.mrb[0].mxu0
      %v980 = vadd.f32 %v760, %v979
      %v981 = vpop.f32.mrb[0].mxu0
      %982 = vdwg.mxu0
      %v983 = vld [vmem:[%s246] sm:$0xe]
      %s984 = scalar_lea.vmem %s2, 4
      %v985 = vld [vmem:[%s984] sm:$0x3]
      %v987 = vunpack.c.l.b16 %v983
      %v988 = vpack.c.b16 %v330, %v987
      %vm989 = vcmask 1046528
      %v990 = vrot.slane %v988, 1
      %v991 = vrot.slane %v366, 1
      %v992 = vsel %vm989, %v990, %v991
      %v993 = vrot.slane %v367, 1
      %v994 = vsel %vm989, %v991, %v993
      %v995 = vrot.slane %v368, 1
      %v996 = vsel %vm989, %v993, %v995
      %v997 = vrot.slane %v369, 1
      %v998 = vsel %vm989, %v995, %v997
      %v999 = vrot.slane %v370, 1
      %v1000 = vsel %vm989, %v997, %v999
      %v1001 = vrot.slane %v371, 1
      %v1002 = vsel %vm989, %v999, %v1001
      %v1003 = vrot.slane %v372, 1
      %v1004 = vsel %vm989, %v1001, %v1003
      %v1005 = vrot.slane %v373, 1
      %v1006 = vsel %vm989, %v1003, %v1005
      %v1007 = vrot.slane %v374, 1
      %v1008 = vsel %vm989, %v1005, %v1007
      %v1009 = vrot.slane %v375, 1
      %v1010 = vsel %vm989, %v1007, %v1009
      %v1011 = vrot.slane %v376, 1
      %v1012 = vsel %vm989, %v1009, %v1011
      %v1013 = vrot.slane %v377, 1
      %v1014 = vsel %vm989, %v1011, %v1013
      %v1015 = vrot.slane %v378, 1
      %v1016 = vsel %vm989, %v1013, %v1015
      %v1017 = vrot.slane %v379, 1
      %v1018 = vsel %vm989, %v1015, %v1017
      %v1019 = vrot.slane %v380, 1
      %v1020 = vsel %vm989, %v1017, %v1019
      %v1021 = vrot.slane %v381, 1
      %v1022 = vsel %vm989, %v1019, %v1021
      %v1023 = vrot.slane %v382, 1
      %v1024 = vsel %vm989, %v1021, %v1023
      %v1026 = vsel %vm527, %v992, 0
      %v1029 = vsel %vm527, %v994, 0
      %v1032 = vsel %vm527, %v996, 0
      %v1035 = vsel %vm527, %v998, 0
      %v1038 = vsel %vm527, %v1000, 0
      %v1041 = vsel %vm527, %v1002, 0
      %v1044 = vsel %vm527, %v1004, 0
      %v1047 = vsel %vm527, %v1006, 0
      %v1050 = vsel %vm527, %v1008, 0
      %v1053 = vsel %vm527, %v1010, 0
      %v1056 = vsel %vm527, %v1012, 0
      %v1059 = vsel %vm527, %v1014, 0
      %v1062 = vsel %vm527, %v1016, 0
      %v1065 = vsel %vm527, %v1018, 0
      %v1068 = vsel %vm527, %v1020, 0
      %v1071 = vsel %vm527, %v1022, 0
      %v1074 = vsel %vm527, %v1024, 0
      %v1077 = vsel %vm527, %v1023, 0
      %v1080 = vsel %vm582, %v985, 0
      %1082 = vmatprep.subr.bf16.mxu0 0
      %1083 = vmatpush1.bf16.msra.mxu0 %v1080
      %1084 = vmatprep.subr.bf16.mxu0 0
      %1085 = vmatpush1.bf16.msra.mxu0 0
      %1086 = vmatprep.subr.bf16.mxu0 0
      %1087 = vmatpush1.bf16.msra.mxu0 0
      %1088 = vmatprep.subr.bf16.mxu0 0
      %1089 = vmatpush1.bf16.msra.mxu0 0
      %1090 = vmatprep.subr.bf16.mxu0 0
      %1091 = vmatpush1.bf16.msra.mxu0 0
      %1092 = vmatprep.subr.bf16.mxu0 0
      %1093 = vmatpush1.bf16.msra.mxu0 0
      %1094 = vmatprep.subr.bf16.mxu0 0
      %1095 = vmatpush1.bf16.msra.mxu0 0
      %1096 = vmatprep.subr.bf16.mxu0 0
      %1097 = vmatpush1.bf16.msra.mxu0 0
      %1098 = vmatprep.subr.bf16.mxu0 0
      %1099 = vmatpush1.bf16.msra.mxu0 0
      %1100 = vmatprep.subr.bf16.mxu0 0
      %1101 = vmatpush1.bf16.msra.mxu0 0
      %1102 = vmatprep.subr.bf16.mxu0 0
      %1103 = vmatpush1.bf16.msra.mxu0 0
      %1104 = vmatprep.subr.bf16.mxu0 0
      %1105 = vmatpush1.bf16.msra.mxu0 0
      %1106 = vmatprep.subr.bf16.mxu0 0
      %1107 = vmatpush1.bf16.msra.mxu0 0
      %1108 = vmatprep.subr.bf16.mxu0 0
      %1109 = vmatpush1.bf16.msra.mxu0 0
      %1110 = vmatprep.subr.bf16.mxu0 0
      %1111 = vmatpush1.bf16.msra.mxu0 0
      %1112 = vmatprep.subr.bf16.mxu0 0
      %1113 = vmatpush1.bf16.msra.mxu0 0
      %1114 = vmatprep.mubr.bf16.mxu0 0
      %1115 = vmatmul.mubr.bf16.gmra.mrb[0].mxu0 %v1026
      %v1116 = vpop.f32.mrb[0].mxu0
      %v1117 = vadd.f32 0.0, %v1116
      %v1118 = vpop.f32.mrb[0].mxu0
      %v1119 = vpop.f32.mrb[0].mxu0
      %v1120 = vadd.f32 0.0, %v1119
      %v1121 = vpop.f32.mrb[0].mxu0
      %1122 = vmatprep.mubr.bf16.mxu0 0
      %1123 = vmatmul.mubr.bf16.gmra.mrb[0].mxu0 %v1029
      %v1124 = vpop.f32.mrb[0].mxu0
      %v1125 = vadd.f32 0.0, %v1124
      %v1126 = vpop.f32.mrb[0].mxu0
      %v1127 = vpop.f32.mrb[0].mxu0
      %v1128 = vadd.f32 0.0, %v1127
      %v1129 = vpop.f32.mrb[0].mxu0
      %1130 = vmatprep.mubr.bf16.mxu0 0
      %1131 = vmatmul.mubr.bf16.gmra.mrb[0].mxu0 %v1032
      %v1132 = vpop.f32.mrb[0].mxu0
      %v1133 = vadd.f32 0.0, %v1132
      %v1134 = vpop.f32.mrb[0].mxu0
      %v1135 = vpop.f32.mrb[0].mxu0
      %v1136 = vadd.f32 0.0, %v1135
      %v1137 = vpop.f32.mrb[0].mxu0
      %1138 = vmatprep.mubr.bf16.mxu0 0
      %1139 = vmatmul.mubr.bf16.gmra.mrb[0].mxu0 %v1035
      %v1140 = vpop.f32.mrb[0].mxu0
      %v1141 = vadd.f32 0.0, %v1140
      %v1142 = vpop.f32.mrb[0].mxu0
      %v1143 = vpop.f32.mrb[0].mxu0
      %v1144 = vadd.f32 0.0, %v1143
      %v1145 = vpop.f32.mrb[0].mxu0
      %1146 = vmatprep.mubr.bf16.mxu0 0
      %1147 = vmatmul.mubr.bf16.gmra.mrb[0].mxu0 %v1038
      %v1148 = vpop.f32.mrb[0].mxu0
      %v1149 = vadd.f32 0.0, %v1148
      %v1150 = vpop.f32.mrb[0].mxu0
      %v1151 = vpop.f32.mrb[0].mxu0
      %v1152 = vadd.f32 0.0, %v1151
      %v1153 = vpop.f32.mrb[0].mxu0
      %1154 = vmatprep.mubr.bf16.mxu0 0
      %1155 = vmatmul.mubr.bf16.gmra.mrb[0].mxu0 %v1041
      %v1156 = vpop.f32.mrb[0].mxu0
      %v1157 = vadd.f32 0.0, %v1156
      %v1158 = vpop.f32.mrb[0].mxu0
      %v1159 = vpop.f32.mrb[0].mxu0
      %v1160 = vadd.f32 0.0, %v1159
      %v1161 = vpop.f32.mrb[0].mxu0
      %1162 = vmatprep.mubr.bf16.mxu0 0
      %1163 = vmatmul.mubr.bf16.gmra.mrb[0].mxu0 %v1044
      %v1164 = vpop.f32.mrb[0].mxu0
      %v1165 = vadd.f32 0.0, %v1164
      %v1166 = vpop.f32.mrb[0].mxu0
      %v1167 = vpop.f32.mrb[0].mxu0
      %v1168 = vadd.f32 0.0, %v1167
      %v1169 = vpop.f32.mrb[0].mxu0
      %1170 = vmatprep.mubr.bf16.mxu0 0
      %1171 = vmatmul.mubr.bf16.gmra.mrb[0].mxu0 %v1047
      %v1172 = vpop.f32.mrb[0].mxu0
      %v1173 = vadd.f32 0.0, %v1172
      %v1174 = vpop.f32.mrb[0].mxu0
      %v1175 = vpop.f32.mrb[0].mxu0
      %v1176 = vadd.f32 0.0, %v1175
      %v1177 = vpop.f32.mrb[0].mxu0
      %1178 = vmatprep.mubr.bf16.mxu0 0
      %1179 = vmatmul.mubr.bf16.gmra.mrb[0].mxu0 %v1050
      %v1180 = vpop.f32.mrb[0].mxu0
      %v1181 = vadd.f32 0.0, %v1180
      %v1182 = vpop.f32.mrb[0].mxu0
      %v1183 = vpop.f32.mrb[0].mxu0
      %v1184 = vadd.f32 0.0, %v1183
      %v1185 = vpop.f32.mrb[0].mxu0
      %1186 = vmatprep.mubr.bf16.mxu0 0
      %1187 = vmatmul.mubr.bf16.gmra.mrb[0].mxu0 %v1053
      %v1188 = vpop.f32.mrb[0].mxu0
      %v1189 = vadd.f32 0.0, %v1188
      %v1190 = vpop.f32.mrb[0].mxu0
      %v1191 = vpop.f32.mrb[0].mxu0
      %v1192 = vadd.f32 0.0, %v1191
      %v1193 = vpop.f32.mrb[0].mxu0
      %1194 = vmatprep.mubr.bf16.mxu0 0
      %1195 = vmatmul.mubr.bf16.gmra.mrb[0].mxu0 %v1056
      %v1196 = vpop.f32.mrb[0].mxu0
      %v1197 = vadd.f32 0.0, %v1196
      %v1198 = vpop.f32.mrb[0].mxu0
      %v1199 = vpop.f32.mrb[0].mxu0
      %v1200 = vadd.f32 0.0, %v1199
      %v1201 = vpop.f32.mrb[0].mxu0
      %1202 = vmatprep.mubr.bf16.mxu0 0
      %1203 = vmatmul.mubr.bf16.gmra.mrb[0].mxu0 %v1059
      %v1204 = vpop.f32.mrb[0].mxu0
      %v1205 = vadd.f32 0.0, %v1204
      %v1206 = vpop.f32.mrb[0].mxu0
      %v1207 = vpop.f32.mrb[0].mxu0
      %v1208 = vadd.f32 0.0, %v1207
      %v1209 = vpop.f32.mrb[0].mxu0
      %1210 = vmatprep.mubr.bf16.mxu0 0
      %1211 = vmatmul.mubr.bf16.gmra.mrb[0].mxu0 %v1062
      %v1212 = vpop.f32.mrb[0].mxu0
      %v1213 = vadd.f32 0.0, %v1212
      %v1214 = vpop.f32.mrb[0].mxu0
      %v1215 = vpop.f32.mrb[0].mxu0
      %v1216 = vadd.f32 0.0, %v1215
      %v1217 = vpop.f32.mrb[0].mxu0
      %1218 = vmatprep.mubr.bf16.mxu0 0
      %1219 = vmatmul.mubr.bf16.gmra.mrb[0].mxu0 %v1065
      %v1220 = vpop.f32.mrb[0].mxu0
      %v1221 = vadd.f32 0.0, %v1220
      %v1222 = vpop.f32.mrb[0].mxu0
      %v1223 = vpop.f32.mrb[0].mxu0
      %v1224 = vadd.f32 0.0, %v1223
      %v1225 = vpop.f32.mrb[0].mxu0
      %1226 = vmatprep.mubr.bf16.mxu0 0
      %1227 = vmatmul.mubr.bf16.gmra.mrb[0].mxu0 %v1068
      %v1228 = vpop.f32.mrb[0].mxu0
      %v1229 = vadd.f32 0.0, %v1228
      %v1230 = vpop.f32.mrb[0].mxu0
      %v1231 = vpop.f32.mrb[0].mxu0
      %v1232 = vadd.f32 0.0, %v1231
      %v1233 = vpop.f32.mrb[0].mxu0
      %1234 = vmatprep.mubr.bf16.mxu0 0
      %1235 = vmatmul.mubr.bf16.gmra.mrb[0].mxu0 %v1071
      %v1236 = vpop.f32.mrb[0].mxu0
      %v1237 = vadd.f32 0.0, %v1236
      %v1238 = vpop.f32.mrb[0].mxu0
      %v1239 = vpop.f32.mrb[0].mxu0
      %v1240 = vadd.f32 0.0, %v1239
      %v1241 = vpop.f32.mrb[0].mxu0
      %1242 = vmatprep.mubr.bf16.mxu0 0
      %1243 = vmatmul.mubr.bf16.gmra.mrb[0].mxu0 %v1074
      %v1244 = vpop.f32.mrb[0].mxu0
      %v1245 = vadd.f32 0.0, %v1244
      %v1246 = vpop.f32.mrb[0].mxu0
      %v1247 = vpop.f32.mrb[0].mxu0
      %v1248 = vadd.f32 0.0, %v1247
      %v1249 = vpop.f32.mrb[0].mxu0
      %1250 = vmatprep.mubr.bf16.mxu0 0
      %1251 = vmatmul.mubr.bf16.gmra.mrb[0].mxu0 %v1077
      %v1252 = vpop.f32.mrb[0].mxu0
      %v1253 = vadd.f32 0.0, %v1252
      %v1254 = vpop.f32.mrb[0].mxu0
      %v1255 = vpop.f32.mrb[0].mxu0
      %v1256 = vadd.f32 0.0, %v1255
      %v1257 = vpop.f32.mrb[0].mxu0
      %1258 = vdwg.mxu0
      %v1259 = vadd.f32 %v841, %v1117
      %v1260 = vadd.f32 %v844, %v1120
      %v1261 = vadd.f32 %v849, %v1125
      %v1262 = vadd.f32 %v852, %v1128
      %v1263 = vadd.f32 %v857, %v1133
      %v1264 = vadd.f32 %v860, %v1136
      %v1265 = vadd.f32 %v865, %v1141
      %v1266 = vadd.f32 %v868, %v1144
      %v1267 = vadd.f32 %v873, %v1149
      %v1268 = vadd.f32 %v876, %v1152
      %v1269 = vadd.f32 %v881, %v1157
      %v1270 = vadd.f32 %v884, %v1160
      %v1271 = vadd.f32 %v889, %v1165
      %v1272 = vadd.f32 %v892, %v1168
      %v1273 = vadd.f32 %v897, %v1173
      %v1274 = vadd.f32 %v900, %v1176
      %v1275 = vadd.f32 %v905, %v1181
      %v1276 = vadd.f32 %v908, %v1184
      %v1277 = vadd.f32 %v913, %v1189
      %v1278 = vadd.f32 %v916, %v1192
      %v1279 = vadd.f32 %v921, %v1197
      %v1280 = vadd.f32 %v924, %v1200
      %v1281 = vadd.f32 %v929, %v1205
      %v1282 = vadd.f32 %v932, %v1208
      %v1283 = vadd.f32 %v937, %v1213
      %v1284 = vadd.f32 %v940, %v1216
      %v1285 = vadd.f32 %v945, %v1221
      %v1286 = vadd.f32 %v948, %v1224
      %v1287 = vadd.f32 %v953, %v1229
      %v1288 = vadd.f32 %v956, %v1232
      %v1289 = vadd.f32 %v961, %v1237
      %v1290 = vadd.f32 %v964, %v1240
      %v1291 = vadd.f32 %v969, %v1245
      %v1292 = vadd.f32 %v972, %v1248
      %v1293 = vadd.f32 %v977, %v1253
      %v1294 = vadd.f32 %v980, %v1256
      %v1295 = vld [vmem:[%s246 + $0x8] sm:$0xe]
      %v1296 = vld [vmem:[%s246 + $0xc] sm:$0xf]
      %v1297 = vld [vmem:[%s246 + $0x10] sm:$0xf]
      %v1298 = vld [vmem:[%s246 + $0x14] sm:$0xf]
      %v1299 = vld [vmem:[%s246 + $0x18] sm:$0xf]
      %v1300 = vld [vmem:[%s246 + $0x1c] sm:$0xf]
      %v1301 = vld [vmem:[%s246 + $0x20] sm:$0xf]
      %v1302 = vld [vmem:[%s246 + $0x24] sm:$0xf]
      %v1303 = vld [vmem:[%s246 + $0x28] sm:$0xf]
      %v1304 = vld [vmem:[%s246 + $0x2c] sm:$0xf]
      %v1305 = vld [vmem:[%s246 + $0x30] sm:$0xf]
      %v1306 = vld [vmem:[%s246 + $0x34] sm:$0xf]
      %v1307 = vld [vmem:[%s246 + $0x38] sm:$0xf]
      %v1308 = vld [vmem:[%s246 + $0x3c] sm:$0xf]
      %v1309 = vld [vmem:[%s246 + $0x40] sm:$0xf]
      %v1310 = vld [vmem:[%s246 + $0x44] sm:$0xf]
      %v1311 = vld [vmem:[%s246 + $0x48] sm:$0xf]
      %v1312 = vld [vmem:[%s246 + $0x4c] sm:$0xf]
      %v1313 = vld [vmem:[%s246 + $0x50] sm:$0xf]
      %v1314 = vld [vmem:[%s246 + $0x54] sm:$0xf]
      %v1315 = vld [vmem:[%s246 + $0x58] sm:$0xf]
      %v1316 = vld [vmem:[%s246 + $0x5c] sm:$0xf]
      %v1317 = vld [vmem:[%s246 + $0x60] sm:$0xf]
      %v1318 = vld [vmem:[%s246 + $0x64] sm:$0xf]
      %v1319 = vld [vmem:[%s246 + $0x68] sm:$0xf]
      %v1320 = vld [vmem:[%s246 + $0x6c] sm:$0xf]
      %v1321 = vld [vmem:[%s246 + $0x70] sm:$0xf]
      %v1322 = vld [vmem:[%s246 + $0x74] sm:$0xf]
      %v1323 = vld [vmem:[%s246 + $0x78] sm:$0xf]
      %v1324 = vld [vmem:[%s246 + $0x7c] sm:$0xf]
      %v1325 = vld [vmem:[%s246 + $0x80] sm:$0xf]
      %v1326 = vld [vmem:[%s246 + $0x84] sm:$0xf]
      %v1327 = vld [vmem:[%s246 + $0x88] sm:$0xf]
      %v1328 = vld [vmem:[%s246 + $0x8c] sm:$0xf]
      %v1329 = vld [vmem:[%s246 + $0x90] sm:$0xf]
      %v1330 = vld [vmem:[%s246 + $0x94] sm:$0xf]
      %s1331 = scalar_lea.vmem %s2, 6
      %v1332 = vld [vmem:[%s1331] sm:$0x3]
      %v1369 = vunpack.c.l.b16 %v1295
      %v1370 = vunpack.c.l.b16 %v1296
      %v1371 = vunpack.c.l.b16 %v1297
      %v1372 = vunpack.c.l.b16 %v1298
      %v1373 = vunpack.c.l.b16 %v1299
      %v1374 = vunpack.c.l.b16 %v1300
      %v1375 = vunpack.c.l.b16 %v1301
      %v1376 = vunpack.c.l.b16 %v1302
      %v1377 = vunpack.c.l.b16 %v1303
      %v1378 = vunpack.c.l.b16 %v1304
      %v1379 = vunpack.c.l.b16 %v1305
      %v1380 = vunpack.c.l.b16 %v1306
      %v1381 = vunpack.c.l.b16 %v1307
      %v1382 = vunpack.c.l.b16 %v1308
      %v1383 = vunpack.c.l.b16 %v1309
      %v1384 = vunpack.c.l.b16 %v1310
      %v1385 = vunpack.c.l.b16 %v1311
      %v1386 = vunpack.c.l.b16 %v1312
      %v1387 = vunpack.c.l.b16 %v1313
      %v1388 = vunpack.c.l.b16 %v1314
      %v1389 = vunpack.c.l.b16 %v1315
      %v1390 = vunpack.c.l.b16 %v1316
      %v1391 = vunpack.c.l.b16 %v1317
      %v1392 = vunpack.c.l.b16 %v1318
      %v1393 = vunpack.c.l.b16 %v1319
      %v1394 = vunpack.c.l.b16 %v1320
      %v1395 = vunpack.c.l.b16 %v1321
      %v1396 = vunpack.c.l.b16 %v1322
      %v1397 = vunpack.c.l.b16 %v1323
      %v1398 = vunpack.c.l.b16 %v1324
      %v1399 = vunpack.c.l.b16 %v1325
      %v1400 = vunpack.c.l.b16 %v1326
      %v1401 = vunpack.c.l.b16 %v1327
      %v1402 = vunpack.c.l.b16 %v1328
      %v1403 = vunpack.c.l.b16 %v1329
      %v1404 = vunpack.c.l.b16 %v1330
      %v1405 = vpack.c.b16 %v1370, %v1369
      %v1406 = vpack.c.b16 %v1372, %v1371
      %v1407 = vpack.c.b16 %v1374, %v1373
      %v1408 = vpack.c.b16 %v1376, %v1375
      %v1409 = vpack.c.b16 %v1378, %v1377
      %v1410 = vpack.c.b16 %v1380, %v1379
      %v1411 = vpack.c.b16 %v1382, %v1381
      %v1412 = vpack.c.b16 %v1384, %v1383
      %v1413 = vpack.c.b16 %v1386, %v1385
      %v1414 = vpack.c.b16 %v1388, %v1387
      %v1415 = vpack.c.b16 %v1390, %v1389
      %v1416 = vpack.c.b16 %v1392, %v1391
      %v1417 = vpack.c.b16 %v1394, %v1393
      %v1418 = vpack.c.b16 %v1396, %v1395
      %v1419 = vpack.c.b16 %v1398, %v1397
      %v1420 = vpack.c.b16 %v1400, %v1399
      %v1421 = vpack.c.b16 %v1402, %v1401
      %v1422 = vpack.c.b16 %v1404, %v1403
      %v1423 = vrot.slane %v1405, 1
      %v1424 = vrot.slane %v1406, 1
      %v1425 = vsel %vm989, %v1423, %v1424
      %v1426 = vrot.slane %v1407, 1
      %v1427 = vsel %vm989, %v1424, %v1426
      %v1428 = vrot.slane %v1408, 1
      %v1429 = vsel %vm989, %v1426, %v1428
      %v1430 = vrot.slane %v1409, 1
      %v1431 = vsel %vm989, %v1428, %v1430
      %v1432 = vrot.slane %v1410, 1
      %v1433 = vsel %vm989, %v1430, %v1432
      %v1434 = vrot.slane %v1411, 1
      %v1435 = vsel %vm989, %v1432, %v1434
      %v1436 = vrot.slane %v1412, 1
      %v1437 = vsel %vm989, %v1434, %v1436
      %v1438 = vrot.slane %v1413, 1
      %v1439 = vsel %vm989, %v1436, %v1438
      %v1440 = vrot.slane %v1414, 1
      %v1441 = vsel %vm989, %v1438, %v1440
      %v1442 = vrot.slane %v1415, 1
      %v1443 = vsel %vm989, %v1440, %v1442
      %v1444 = vrot.slane %v1416, 1
      %v1445 = vsel %vm989, %v1442, %v1444
      %v1446 = vrot.slane %v1417, 1
      %v1447 = vsel %vm989, %v1444, %v1446
      %v1448 = vrot.slane %v1418, 1
      %v1449 = vsel %vm989, %v1446, %v1448
      %v1450 = vrot.slane %v1419, 1
      %v1451 = vsel %vm989, %v1448, %v1450
      %v1452 = vrot.slane %v1420, 1
      %v1453 = vsel %vm989, %v1450, %v1452
      %v1454 = vrot.slane %v1421, 1
      %v1455 = vsel %vm989, %v1452, %v1454
      %v1456 = vrot.slane %v1422, 1
      %v1457 = vsel %vm989, %v1454, %v1456
      %v1459 = vsel %vm527, %v1425, 0
      %v1462 = vsel %vm527, %v1427, 0
      %v1465 = vsel %vm527, %v1429, 0
      %v1468 = vsel %vm527, %v1431, 0
      %v1471 = vsel %vm527, %v1433, 0
      %v1474 = vsel %vm527, %v1435, 0
      %v1477 = vsel %vm527, %v1437, 0
      %v1480 = vsel %vm527, %v1439, 0
      %v1483 = vsel %vm527, %v1441, 0
      %v1486 = vsel %vm527, %v1443, 0
      %v1489 = vsel %vm527, %v1445, 0
      %v1492 = vsel %vm527, %v1447, 0
      %v1495 = vsel %vm527, %v1449, 0
      %v1498 = vsel %vm527, %v1451, 0
      %v1501 = vsel %vm527, %v1453, 0
      %v1504 = vsel %vm527, %v1455, 0
      %v1507 = vsel %vm527, %v1457, 0
      %v1510 = vsel %vm527, %v1456, 0
      %v1513 = vsel %vm582, %v1332, 0
      %1515 = vmatprep.subr.bf16.mxu0 0
      %1516 = vmatpush1.bf16.msra.mxu0 %v1513
      %1517 = vmatprep.subr.bf16.mxu0 0
      %1518 = vmatpush1.bf16.msra.mxu0 0
      %1519 = vmatprep.subr.bf16.mxu0 0
      %1520 = vmatpush1.bf16.msra.mxu0 0
      %1521 = vmatprep.subr.bf16.mxu0 0
      %1522 = vmatpush1.bf16.msra.mxu0 0
      %1523 = vmatprep.subr.bf16.mxu0 0
      %1524 = vmatpush1.bf16.msra.mxu0 0
      %1525 = vmatprep.subr.bf16.mxu0 0
      %1526 = vmatpush1.bf16.msra.mxu0 0
      %1527 = vmatprep.subr.bf16.mxu0 0
      %1528 = vmatpush1.bf16.msra.mxu0 0
      %1529 = vmatprep.subr.bf16.mxu0 0
      %1530 = vmatpush1.bf16.msra.mxu0 0
      %1531 = vmatprep.subr.bf16.mxu0 0
      %1532 = vmatpush1.bf16.msra.mxu0 0
      %1533 = vmatprep.subr.bf16.mxu0 0
      %1534 = vmatpush1.bf16.msra.mxu0 0
      %1535 = vmatprep.subr.bf16.mxu0 0
      %1536 = vmatpush1.bf16.msra.mxu0 0
      %1537 = vmatprep.subr.bf16.mxu0 0
      %1538 = vmatpush1.bf16.msra.mxu0 0
      %1539 = vmatprep.subr.bf16.mxu0 0
      %1540 = vmatpush1.bf16.msra.mxu0 0
      %1541 = vmatprep.subr.bf16.mxu0 0
      %1542 = vmatpush1.bf16.msra.mxu0 0
      %1543 = vmatprep.subr.bf16.mxu0 0
      %1544 = vmatpush1.bf16.msra.mxu0 0
      %1545 = vmatprep.subr.bf16.mxu0 0
      %1546 = vmatpush1.bf16.msra.mxu0 0
      %1547 = vmatprep.mubr.bf16.mxu0 0
      %1548 = vmatmul.mubr.bf16.gmra.mrb[0].mxu0 %v1459
      %v1549 = vpop.f32.mrb[0].mxu0
      %v1550 = vadd.f32 0.0, %v1549
      %v1551 = vpop.f32.mrb[0].mxu0
      %v1552 = vpop.f32.mrb[0].mxu0
      %v1553 = vadd.f32 0.0, %v1552
      %v1554 = vpop.f32.mrb[0].mxu0
      %1555 = vmatprep.mubr.bf16.mxu0 0
      %1556 = vmatmul.mubr.bf16.gmra.mrb[0].mxu0 %v1462
      %v1557 = vpop.f32.mrb[0].mxu0
      %v1558 = vadd.f32 0.0, %v1557
      %v1559 = vpop.f32.mrb[0].mxu0
      %v1560 = vpop.f32.mrb[0].mxu0
      %v1561 = vadd.f32 0.0, %v1560
      %v1562 = vpop.f32.mrb[0].mxu0
      %1563 = vmatprep.mubr.bf16.mxu0 0
      %1564 = vmatmul.mubr.bf16.gmra.mrb[0].mxu0 %v1465
      %v1565 = vpop.f32.mrb[0].mxu0
      %v1566 = vadd.f32 0.0, %v1565
      %v1567 = vpop.f32.mrb[0].mxu0
      %v1568 = vpop.f32.mrb[0].mxu0
      %v1569 = vadd.f32 0.0, %v1568
      %v1570 = vpop.f32.mrb[0].mxu0
      %1571 = vmatprep.mubr.bf16.mxu0 0
      %1572 = vmatmul.mubr.bf16.gmra.mrb[0].mxu0 %v1468
      %v1573 = vpop.f32.mrb[0].mxu0
      %v1574 = vadd.f32 0.0, %v1573
      %v1575 = vpop.f32.mrb[0].mxu0
      %v1576 = vpop.f32.mrb[0].mxu0
      %v1577 = vadd.f32 0.0, %v1576
      %v1578 = vpop.f32.mrb[0].mxu0
      %1579 = vmatprep.mubr.bf16.mxu0 0
      %1580 = vmatmul.mubr.bf16.gmra.mrb[0].mxu0 %v1471
      %v1581 = vpop.f32.mrb[0].mxu0
      %v1582 = vadd.f32 0.0, %v1581
      %v1583 = vpop.f32.mrb[0].mxu0
      %v1584 = vpop.f32.mrb[0].mxu0
      %v1585 = vadd.f32 0.0, %v1584
      %v1586 = vpop.f32.mrb[0].mxu0
      %1587 = vmatprep.mubr.bf16.mxu0 0
      %1588 = vmatmul.mubr.bf16.gmra.mrb[0].mxu0 %v1474
      %v1589 = vpop.f32.mrb[0].mxu0
      %v1590 = vadd.f32 0.0, %v1589
      %v1591 = vpop.f32.mrb[0].mxu0
      %v1592 = vpop.f32.mrb[0].mxu0
      %v1593 = vadd.f32 0.0, %v1592
      %v1594 = vpop.f32.mrb[0].mxu0
      %1595 = vmatprep.mubr.bf16.mxu0 0
      %1596 = vmatmul.mubr.bf16.gmra.mrb[0].mxu0 %v1477
      %v1597 = vpop.f32.mrb[0].mxu0
      %v1598 = vadd.f32 0.0, %v1597
      %v1599 = vpop.f32.mrb[0].mxu0
      %v1600 = vpop.f32.mrb[0].mxu0
      %v1601 = vadd.f32 0.0, %v1600
      %v1602 = vpop.f32.mrb[0].mxu0
      %1603 = vmatprep.mubr.bf16.mxu0 0
      %1604 = vmatmul.mubr.bf16.gmra.mrb[0].mxu0 %v1480
      %v1605 = vpop.f32.mrb[0].mxu0
      %v1606 = vadd.f32 0.0, %v1605
      %v1607 = vpop.f32.mrb[0].mxu0
      %v1608 = vpop.f32.mrb[0].mxu0
      %v1609 = vadd.f32 0.0, %v1608
      %v1610 = vpop.f32.mrb[0].mxu0
      %1611 = vmatprep.mubr.bf16.mxu0 0
      %1612 = vmatmul.mubr.bf16.gmra.mrb[0].mxu0 %v1483
      %v1613 = vpop.f32.mrb[0].mxu0
      %v1614 = vadd.f32 0.0, %v1613
      %v1615 = vpop.f32.mrb[0].mxu0
      %v1616 = vpop.f32.mrb[0].mxu0
      %v1617 = vadd.f32 0.0, %v1616
      %v1618 = vpop.f32.mrb[0].mxu0
      %1619 = vmatprep.mubr.bf16.mxu0 0
      %1620 = vmatmul.mubr.bf16.gmra.mrb[0].mxu0 %v1486
      %v1621 = vpop.f32.mrb[0].mxu0
      %v1622 = vadd.f32 0.0, %v1621
      %v1623 = vpop.f32.mrb[0].mxu0
      %v1624 = vpop.f32.mrb[0].mxu0
      %v1625 = vadd.f32 0.0, %v1624
      %v1626 = vpop.f32.mrb[0].mxu0
      %1627 = vmatprep.mubr.bf16.mxu0 0
      %1628 = vmatmul.mubr.bf16.gmra.mrb[0].mxu0 %v1489
      %v1629 = vpop.f32.mrb[0].mxu0
      %v1630 = vadd.f32 0.0, %v1629
      %v1631 = vpop.f32.mrb[0].mxu0
      %v1632 = vpop.f32.mrb[0].mxu0
      %v1633 = vadd.f32 0.0, %v1632
      %v1634 = vpop.f32.mrb[0].mxu0
      %1635 = vmatprep.mubr.bf16.mxu0 0
      %1636 = vmatmul.mubr.bf16.gmra.mrb[0].mxu0 %v1492
      %v1637 = vpop.f32.mrb[0].mxu0
      %v1638 = vadd.f32 0.0, %v1637
      %v1639 = vpop.f32.mrb[0].mxu0
      %v1640 = vpop.f32.mrb[0].mxu0
      %v1641 = vadd.f32 0.0, %v1640
      %v1642 = vpop.f32.mrb[0].mxu0
      %1643 = vmatprep.mubr.bf16.mxu0 0
      %1644 = vmatmul.mubr.bf16.gmra.mrb[0].mxu0 %v1495
      %v1645 = vpop.f32.mrb[0].mxu0
      %v1646 = vadd.f32 0.0, %v1645
      %v1647 = vpop.f32.mrb[0].mxu0
      %v1648 = vpop.f32.mrb[0].mxu0
      %v1649 = vadd.f32 0.0, %v1648
      %v1650 = vpop.f32.mrb[0].mxu0
      %1651 = vmatprep.mubr.bf16.mxu0 0
      %1652 = vmatmul.mubr.bf16.gmra.mrb[0].mxu0 %v1498
      %v1653 = vpop.f32.mrb[0].mxu0
      %v1654 = vadd.f32 0.0, %v1653
      %v1655 = vpop.f32.mrb[0].mxu0
      %v1656 = vpop.f32.mrb[0].mxu0
      %v1657 = vadd.f32 0.0, %v1656
      %v1658 = vpop.f32.mrb[0].mxu0
      %1659 = vmatprep.mubr.bf16.mxu0 0
      %1660 = vmatmul.mubr.bf16.gmra.mrb[0].mxu0 %v1501
      %v1661 = vpop.f32.mrb[0].mxu0
      %v1662 = vadd.f32 0.0, %v1661
      %v1663 = vpop.f32.mrb[0].mxu0
      %v1664 = vpop.f32.mrb[0].mxu0
      %v1665 = vadd.f32 0.0, %v1664
      %v1666 = vpop.f32.mrb[0].mxu0
      %1667 = vmatprep.mubr.bf16.mxu0 0
      %1668 = vmatmul.mubr.bf16.gmra.mrb[0].mxu0 %v1504
      %v1669 = vpop.f32.mrb[0].mxu0
      %v1670 = vadd.f32 0.0, %v1669
      %v1671 = vpop.f32.mrb[0].mxu0
      %v1672 = vpop.f32.mrb[0].mxu0
      %v1673 = vadd.f32 0.0, %v1672
      %v1674 = vpop.f32.mrb[0].mxu0
      %1675 = vmatprep.mubr.bf16.mxu0 0
      %1676 = vmatmul.mubr.bf16.gmra.mrb[0].mxu0 %v1507
      %v1677 = vpop.f32.mrb[0].mxu0
      %v1678 = vadd.f32 0.0, %v1677
      %v1679 = vpop.f32.mrb[0].mxu0
      %v1680 = vpop.f32.mrb[0].mxu0
      %v1681 = vadd.f32 0.0, %v1680
      %v1682 = vpop.f32.mrb[0].mxu0
      %1683 = vmatprep.mubr.bf16.mxu0 0
      %1684 = vmatmul.mubr.bf16.gmra.mrb[0].mxu0 %v1510
      %v1685 = vpop.f32.mrb[0].mxu0
      %v1686 = vadd.f32 0.0, %v1685
      %v1687 = vpop.f32.mrb[0].mxu0
      %v1688 = vpop.f32.mrb[0].mxu0
      %v1689 = vadd.f32 0.0, %v1688
      %v1690 = vpop.f32.mrb[0].mxu0
      %1691 = vdwg.mxu0
      %v1692 = vadd.f32 %v1259, %v1550
      %v1693 = vadd.f32 %v1260, %v1553
      %v1694 = vadd.f32 %v1261, %v1558
      %v1695 = vadd.f32 %v1262, %v1561
      %v1696 = vadd.f32 %v1263, %v1566
      %v1697 = vadd.f32 %v1264, %v1569
      %v1698 = vadd.f32 %v1265, %v1574
      %v1699 = vadd.f32 %v1266, %v1577
      %v1700 = vadd.f32 %v1267, %v1582
      %v1701 = vadd.f32 %v1268, %v1585
      %v1702 = vadd.f32 %v1269, %v1590
      %v1703 = vadd.f32 %v1270, %v1593
      %v1704 = vadd.f32 %v1271, %v1598
      %v1705 = vadd.f32 %v1272, %v1601
      %v1706 = vadd.f32 %v1273, %v1606
      %v1707 = vadd.f32 %v1274, %v1609
      %v1708 = vadd.f32 %v1275, %v1614
      %v1709 = vadd.f32 %v1276, %v1617
      %v1710 = vadd.f32 %v1277, %v1622
      %v1711 = vadd.f32 %v1278, %v1625
      %v1712 = vadd.f32 %v1279, %v1630
      %v1713 = vadd.f32 %v1280, %v1633
      %v1714 = vadd.f32 %v1281, %v1638
      %v1715 = vadd.f32 %v1282, %v1641
      %v1716 = vadd.f32 %v1283, %v1646
      %v1717 = vadd.f32 %v1284, %v1649
      %v1718 = vadd.f32 %v1285, %v1654
      %v1719 = vadd.f32 %v1286, %v1657
      %v1720 = vadd.f32 %v1287, %v1662
      %v1721 = vadd.f32 %v1288, %v1665
      %v1722 = vadd.f32 %v1289, %v1670
      %v1723 = vadd.f32 %v1290, %v1673
      %v1724 = vadd.f32 %v1291, %v1678
      %v1725 = vadd.f32 %v1292, %v1681
      %v1726 = vadd.f32 %v1293, %v1686
      %v1727 = vadd.f32 %v1294, %v1689
      %v1728 = vld [vmem:[%s246 + $0x8] sm:$0xe]
      %v1729 = vld [vmem:[%s246 + $0xc] sm:$0xf]
      %v1730 = vld [vmem:[%s246 + $0x10] sm:$0xf]
      %v1731 = vld [vmem:[%s246 + $0x14] sm:$0xf]
      %v1732 = vld [vmem:[%s246 + $0x18] sm:$0xf]
      %v1733 = vld [vmem:[%s246 + $0x1c] sm:$0xf]
      %v1734 = vld [vmem:[%s246 + $0x20] sm:$0xf]
      %v1735 = vld [vmem:[%s246 + $0x24] sm:$0xf]
      %v1736 = vld [vmem:[%s246 + $0x28] sm:$0xf]
      %v1737 = vld [vmem:[%s246 + $0x2c] sm:$0xf]
      %v1738 = vld [vmem:[%s246 + $0x30] sm:$0xf]
      %v1739 = vld [vmem:[%s246 + $0x34] sm:$0xf]
      %v1740 = vld [vmem:[%s246 + $0x38] sm:$0xf]
      %v1741 = vld [vmem:[%s246 + $0x3c] sm:$0xf]
      %v1742 = vld [vmem:[%s246 + $0x40] sm:$0xf]
      %v1743 = vld [vmem:[%s246 + $0x44] sm:$0xf]
      %v1744 = vld [vmem:[%s246 + $0x48] sm:$0xf]
      %v1745 = vld [vmem:[%s246 + $0x4c] sm:$0xf]
      %v1746 = vld [vmem:[%s246 + $0x50] sm:$0xf]
      %v1747 = vld [vmem:[%s246 + $0x54] sm:$0xf]
      %v1748 = vld [vmem:[%s246 + $0x58] sm:$0xf]
      %v1749 = vld [vmem:[%s246 + $0x5c] sm:$0xf]
      %v1750 = vld [vmem:[%s246 + $0x60] sm:$0xf]
      %v1751 = vld [vmem:[%s246 + $0x64] sm:$0xf]
      %v1752 = vld [vmem:[%s246 + $0x68] sm:$0xf]
      %v1753 = vld [vmem:[%s246 + $0x6c] sm:$0xf]
      %v1754 = vld [vmem:[%s246 + $0x70] sm:$0xf]
      %v1755 = vld [vmem:[%s246 + $0x74] sm:$0xf]
      %v1756 = vld [vmem:[%s246 + $0x78] sm:$0xf]
      %v1757 = vld [vmem:[%s246 + $0x7c] sm:$0xf]
      %v1758 = vld [vmem:[%s246 + $0x80] sm:$0xf]
      %v1759 = vld [vmem:[%s246 + $0x84] sm:$0xf]
      %v1760 = vld [vmem:[%s246 + $0x88] sm:$0xf]
      %v1761 = vld [vmem:[%s246 + $0x8c] sm:$0xf]
      %v1762 = vld [vmem:[%s246 + $0x90] sm:$0xf]
      %v1763 = vld [vmem:[%s246 + $0x94] sm:$0xf]
      %v1764 = vld [vmem:[%s246 + $0x98] sm:$0x1]
      %s1765 = scalar_lea.vmem %s2, 8
      %v1766 = vld [vmem:[%s1765] sm:$0x3]
      %v1804 = vunpack.c.l.b16 %v1728
      %v1805 = vunpack.c.l.b16 %v1729
      %v1806 = vunpack.c.l.b16 %v1730
      %v1807 = vunpack.c.l.b16 %v1731
      %v1808 = vunpack.c.l.b16 %v1732
      %v1809 = vunpack.c.l.b16 %v1733
      %v1810 = vunpack.c.l.b16 %v1734
      %v1811 = vunpack.c.l.b16 %v1735
      %v1812 = vunpack.c.l.b16 %v1736
      %v1813 = vunpack.c.l.b16 %v1737
      %v1814 = vunpack.c.l.b16 %v1738
      %v1815 = vunpack.c.l.b16 %v1739
      %v1816 = vunpack.c.l.b16 %v1740
      %v1817 = vunpack.c.l.b16 %v1741
      %v1818 = vunpack.c.l.b16 %v1742
      %v1819 = vunpack.c.l.b16 %v1743
      %v1820 = vunpack.c.l.b16 %v1744
      %v1821 = vunpack.c.l.b16 %v1745
      %v1822 = vunpack.c.l.b16 %v1746
      %v1823 = vunpack.c.l.b16 %v1747
      %v1824 = vunpack.c.l.b16 %v1748
      %v1825 = vunpack.c.l.b16 %v1749
      %v1826 = vunpack.c.l.b16 %v1750
      %v1827 = vunpack.c.l.b16 %v1751
      %v1828 = vunpack.c.l.b16 %v1752
      %v1829 = vunpack.c.l.b16 %v1753
      %v1830 = vunpack.c.l.b16 %v1754
      %v1831 = vunpack.c.l.b16 %v1755
      %v1832 = vunpack.c.l.b16 %v1756
      %v1833 = vunpack.c.l.b16 %v1757
      %v1834 = vunpack.c.l.b16 %v1758
      %v1835 = vunpack.c.l.b16 %v1759
      %v1836 = vunpack.c.l.b16 %v1760
      %v1837 = vunpack.c.l.b16 %v1761
      %v1838 = vunpack.c.l.b16 %v1762
      %v1839 = vunpack.c.l.b16 %v1763
      %v1840 = vunpack.c.l.b16 %v1764
      %v1841 = vpack.c.b16 %v1805, %v1804
      %v1842 = vpack.c.b16 %v1807, %v1806
      %v1843 = vpack.c.b16 %v1809, %v1808
      %v1844 = vpack.c.b16 %v1811, %v1810
      %v1845 = vpack.c.b16 %v1813, %v1812
      %v1846 = vpack.c.b16 %v1815, %v1814
      %v1847 = vpack.c.b16 %v1817, %v1816
      %v1848 = vpack.c.b16 %v1819, %v1818
      %v1849 = vpack.c.b16 %v1821, %v1820
      %v1850 = vpack.c.b16 %v1823, %v1822
      %v1851 = vpack.c.b16 %v1825, %v1824
      %v1852 = vpack.c.b16 %v1827, %v1826
      %v1853 = vpack.c.b16 %v1829, %v1828
      %v1854 = vpack.c.b16 %v1831, %v1830
      %v1855 = vpack.c.b16 %v1833, %v1832
      %v1856 = vpack.c.b16 %v1835, %v1834
      %v1857 = vpack.c.b16 %v1837, %v1836
      %v1858 = vpack.c.b16 %v1839, %v1838
      %v1859 = vpack.c.b16 %v1840, %v1840
      %vm1860 = vsmask.f32 6400
      %v1862 = vshrl.u32 %v1841, 16
      %v1864 = vrot.slane %v1862, 1
      %v1865 = vshll.u32 %v1841, 16
      %v1867 = vrot.slane %v1865, 2
      %v1868 = vor.u32 %v1864, %v1867
      %v1870 = vshrl.u32 %v1842, 16
      %v1872 = vrot.slane %v1870, 1
      %v1873 = vshll.u32 %v1842, 16
      %v1875 = vrot.slane %v1873, 2
      %v1876 = vor.u32 %v1872, %v1875
      %v1877 = vsel %vm1860, %v1868, %v1876
      %v1879 = vshrl.u32 %v1843, 16
      %v1881 = vrot.slane %v1879, 1
      %v1882 = vshll.u32 %v1843, 16
      %v1884 = vrot.slane %v1882, 2
      %v1885 = vor.u32 %v1881, %v1884
      %v1886 = vsel %vm1860, %v1876, %v1885
      %v1888 = vshrl.u32 %v1844, 16
      %v1890 = vrot.slane %v1888, 1
      %v1891 = vshll.u32 %v1844, 16
      %v1893 = vrot.slane %v1891, 2
      %v1894 = vor.u32 %v1890, %v1893
      %v1895 = vsel %vm1860, %v1885, %v1894
      %v1897 = vshrl.u32 %v1845, 16
      %v1899 = vrot.slane %v1897, 1
      %v1900 = vshll.u32 %v1845, 16
      %v1902 = vrot.slane %v1900, 2
      %v1903 = vor.u32 %v1899, %v1902
      %v1904 = vsel %vm1860, %v1894, %v1903
      %v1906 = vshrl.u32 %v1846, 16
      %v1908 = vrot.slane %v1906, 1
      %v1909 = vshll.u32 %v1846, 16
      %v1911 = vrot.slane %v1909, 2
      %v1912 = vor.u32 %v1908, %v1911
      %v1913 = vsel %vm1860, %v1903, %v1912
      %v1915 = vshrl.u32 %v1847, 16
      %v1917 = vrot.slane %v1915, 1
      %v1918 = vshll.u32 %v1847, 16
      %v1920 = vrot.slane %v1918, 2
      %v1921 = vor.u32 %v1917, %v1920
      %v1922 = vsel %vm1860, %v1912, %v1921
      %v1924 = vshrl.u32 %v1848, 16
      %v1926 = vrot.slane %v1924, 1
      %v1927 = vshll.u32 %v1848, 16
      %v1929 = vrot.slane %v1927, 2
      %v1930 = vor.u32 %v1926, %v1929
      %v1931 = vsel %vm1860, %v1921, %v1930
      %v1933 = vshrl.u32 %v1849, 16
      %v1935 = vrot.slane %v1933, 1
      %v1936 = vshll.u32 %v1849, 16
      %v1938 = vrot.slane %v1936, 2
      %v1939 = vor.u32 %v1935, %v1938
      %v1940 = vsel %vm1860, %v1930, %v1939
      %v1942 = vshrl.u32 %v1850, 16
      %v1944 = vrot.slane %v1942, 1
      %v1945 = vshll.u32 %v1850, 16
      %v1947 = vrot.slane %v1945, 2
      %v1948 = vor.u32 %v1944, %v1947
      %v1949 = vsel %vm1860, %v1939, %v1948
      %v1951 = vshrl.u32 %v1851, 16
      %v1953 = vrot.slane %v1951, 1
      %v1954 = vshll.u32 %v1851, 16
      %v1956 = vrot.slane %v1954, 2
      %v1957 = vor.u32 %v1953, %v1956
      %v1958 = vsel %vm1860, %v1948, %v1957
      %v1960 = vshrl.u32 %v1852, 16
      %v1962 = vrot.slane %v1960, 1
      %v1963 = vshll.u32 %v1852, 16
      %v1965 = vrot.slane %v1963, 2
      %v1966 = vor.u32 %v1962, %v1965
      %v1967 = vsel %vm1860, %v1957, %v1966
      %v1969 = vshrl.u32 %v1853, 16
      %v1971 = vrot.slane %v1969, 1
      %v1972 = vshll.u32 %v1853, 16
      %v1974 = vrot.slane %v1972, 2
      %v1975 = vor.u32 %v1971, %v1974
      %v1976 = vsel %vm1860, %v1966, %v1975
      %v1978 = vshrl.u32 %v1854, 16
      %v1980 = vrot.slane %v1978, 1
      %v1981 = vshll.u32 %v1854, 16
      %v1983 = vrot.slane %v1981, 2
      %v1984 = vor.u32 %v1980, %v1983
      %v1985 = vsel %vm1860, %v1975, %v1984
      %v1987 = vshrl.u32 %v1855, 16
      %v1989 = vrot.slane %v1987, 1
      %v1990 = vshll.u32 %v1855, 16
      %v1992 = vrot.slane %v1990, 2
      %v1993 = vor.u32 %v1989, %v1992
      %v1994 = vsel %vm1860, %v1984, %v1993
      %v1996 = vshrl.u32 %v1856, 16
      %v1998 = vrot.slane %v1996, 1
      %v1999 = vshll.u32 %v1856, 16
      %v2001 = vrot.slane %v1999, 2
      %v2002 = vor.u32 %v1998, %v2001
      %v2003 = vsel %vm1860, %v1993, %v2002
      %v2005 = vshrl.u32 %v1857, 16
      %v2007 = vrot.slane %v2005, 1
      %v2008 = vshll.u32 %v1857, 16
      %v2010 = vrot.slane %v2008, 2
      %v2011 = vor.u32 %v2007, %v2010
      %v2012 = vsel %vm1860, %v2002, %v2011
      %v2014 = vshrl.u32 %v1858, 16
      %v2016 = vrot.slane %v2014, 1
      %v2017 = vshll.u32 %v1858, 16
      %v2019 = vrot.slane %v2017, 2
      %v2020 = vor.u32 %v2016, %v2019
      %v2021 = vsel %vm1860, %v2011, %v2020
      %v2023 = vshll.u32 %v1859, 16
      %v2025 = vrot.slane %v2023, 2
      %v2026 = vsel %vm1860, %v2020, %v2025
      %v2028 = vsel %vm527, %v1877, 0
      %v2031 = vsel %vm527, %v1886, 0
      %v2034 = vsel %vm527, %v1895, 0
      %v2037 = vsel %vm527, %v1904, 0
      %v2040 = vsel %vm527, %v1913, 0
      %v2043 = vsel %vm527, %v1922, 0
      %v2046 = vsel %vm527, %v1931, 0
      %v2049 = vsel %vm527, %v1940, 0
      %v2052 = vsel %vm527, %v1949, 0
      %v2055 = vsel %vm527, %v1958, 0
      %v2058 = vsel %vm527, %v1967, 0
      %v2061 = vsel %vm527, %v1976, 0
      %v2064 = vsel %vm527, %v1985, 0
      %v2067 = vsel %vm527, %v1994, 0
      %v2070 = vsel %vm527, %v2003, 0
      %v2073 = vsel %vm527, %v2012, 0
      %v2076 = vsel %vm527, %v2021, 0
      %v2079 = vsel %vm527, %v2026, 0
      %v2082 = vsel %vm582, %v1766, 0
      %2084 = vmatprep.subr.bf16.mxu0 0
      %2085 = vmatpush1.bf16.msra.mxu0 %v2082
      %2086 = vmatprep.subr.bf16.mxu0 0
      %2087 = vmatpush1.bf16.msra.mxu0 0
      %2088 = vmatprep.subr.bf16.mxu0 0
      %2089 = vmatpush1.bf16.msra.mxu0 0
      %2090 = vmatprep.subr.bf16.mxu0 0
      %2091 = vmatpush1.bf16.msra.mxu0 0
      %2092 = vmatprep.subr.bf16.mxu0 0
      %2093 = vmatpush1.bf16.msra.mxu0 0
      %2094 = vmatprep.subr.bf16.mxu0 0
      %2095 = vmatpush1.bf16.msra.mxu0 0
      %2096 = vmatprep.subr.bf16.mxu0 0
      %2097 = vmatpush1.bf16.msra.mxu0 0
      %2098 = vmatprep.subr.bf16.mxu0 0
      %2099 = vmatpush1.bf16.msra.mxu0 0
      %2100 = vmatprep.subr.bf16.mxu0 0
      %2101 = vmatpush1.bf16.msra.mxu0 0
      %2102 = vmatprep.subr.bf16.mxu0 0
      %2103 = vmatpush1.bf16.msra.mxu0 0
      %2104 = vmatprep.subr.bf16.mxu0 0
      %2105 = vmatpush1.bf16.msra.mxu0 0
      %2106 = vmatprep.subr.bf16.mxu0 0
      %2107 = vmatpush1.bf16.msra.mxu0 0
      %2108 = vmatprep.subr.bf16.mxu0 0
      %2109 = vmatpush1.bf16.msra.mxu0 0
      %2110 = vmatprep.subr.bf16.mxu0 0
      %2111 = vmatpush1.bf16.msra.mxu0 0
      %2112 = vmatprep.subr.bf16.mxu0 0
      %2113 = vmatpush1.bf16.msra.mxu0 0
      %2114 = vmatprep.subr.bf16.mxu0 0
      %2115 = vmatpush1.bf16.msra.mxu0 0
      %2116 = vmatprep.mubr.bf16.mxu0 0
      %2117 = vmatmul.mubr.bf16.gmra.mrb[0].mxu0 %v2028
      %v2118 = vpop.f32.mrb[0].mxu0
      %v2119 = vadd.f32 0.0, %v2118
      %v2120 = vpop.f32.mrb[0].mxu0
      %v2121 = vpop.f32.mrb[0].mxu0
      %v2122 = vadd.f32 0.0, %v2121
      %v2123 = vpop.f32.mrb[0].mxu0
      %2124 = vmatprep.mubr.bf16.mxu0 0
      %2125 = vmatmul.mubr.bf16.gmra.mrb[0].mxu0 %v2031
      %v2126 = vpop.f32.mrb[0].mxu0
      %v2127 = vadd.f32 0.0, %v2126
      %v2128 = vpop.f32.mrb[0].mxu0
      %v2129 = vpop.f32.mrb[0].mxu0
      %v2130 = vadd.f32 0.0, %v2129
      %v2131 = vpop.f32.mrb[0].mxu0
      %2132 = vmatprep.mubr.bf16.mxu0 0
      %2133 = vmatmul.mubr.bf16.gmra.mrb[0].mxu0 %v2034
      %v2134 = vpop.f32.mrb[0].mxu0
      %v2135 = vadd.f32 0.0, %v2134
      %v2136 = vpop.f32.mrb[0].mxu0
      %v2137 = vpop.f32.mrb[0].mxu0
      %v2138 = vadd.f32 0.0, %v2137
      %v2139 = vpop.f32.mrb[0].mxu0
      %2140 = vmatprep.mubr.bf16.mxu0 0
      %2141 = vmatmul.mubr.bf16.gmra.mrb[0].mxu0 %v2037
      %v2142 = vpop.f32.mrb[0].mxu0
      %v2143 = vadd.f32 0.0, %v2142
      %v2144 = vpop.f32.mrb[0].mxu0
      %v2145 = vpop.f32.mrb[0].mxu0
      %v2146 = vadd.f32 0.0, %v2145
      %v2147 = vpop.f32.mrb[0].mxu0
      %2148 = vmatprep.mubr.bf16.mxu0 0
      %2149 = vmatmul.mubr.bf16.gmra.mrb[0].mxu0 %v2040
      %v2150 = vpop.f32.mrb[0].mxu0
      %v2151 = vadd.f32 0.0, %v2150
      %v2152 = vpop.f32.mrb[0].mxu0
      %v2153 = vpop.f32.mrb[0].mxu0
      %v2154 = vadd.f32 0.0, %v2153
      %v2155 = vpop.f32.mrb[0].mxu0
      %2156 = vmatprep.mubr.bf16.mxu0 0
      %2157 = vmatmul.mubr.bf16.gmra.mrb[0].mxu0 %v2043
      %v2158 = vpop.f32.mrb[0].mxu0
      %v2159 = vadd.f32 0.0, %v2158
      %v2160 = vpop.f32.mrb[0].mxu0
      %v2161 = vpop.f32.mrb[0].mxu0
      %v2162 = vadd.f32 0.0, %v2161
      %v2163 = vpop.f32.mrb[0].mxu0
      %2164 = vmatprep.mubr.bf16.mxu0 0
      %2165 = vmatmul.mubr.bf16.gmra.mrb[0].mxu0 %v2046
      %v2166 = vpop.f32.mrb[0].mxu0
      %v2167 = vadd.f32 0.0, %v2166
      %v2168 = vpop.f32.mrb[0].mxu0
      %v2169 = vpop.f32.mrb[0].mxu0
      %v2170 = vadd.f32 0.0, %v2169
      %v2171 = vpop.f32.mrb[0].mxu0
      %2172 = vmatprep.mubr.bf16.mxu0 0
      %2173 = vmatmul.mubr.bf16.gmra.mrb[0].mxu0 %v2049
      %v2174 = vpop.f32.mrb[0].mxu0
      %v2175 = vadd.f32 0.0, %v2174
      %v2176 = vpop.f32.mrb[0].mxu0
      %v2177 = vpop.f32.mrb[0].mxu0
      %v2178 = vadd.f32 0.0, %v2177
      %v2179 = vpop.f32.mrb[0].mxu0
      %2180 = vmatprep.mubr.bf16.mxu0 0
      %2181 = vmatmul.mubr.bf16.gmra.mrb[0].mxu0 %v2052
      %v2182 = vpop.f32.mrb[0].mxu0
      %v2183 = vadd.f32 0.0, %v2182
      %v2184 = vpop.f32.mrb[0].mxu0
      %v2185 = vpop.f32.mrb[0].mxu0
      %v2186 = vadd.f32 0.0, %v2185
      %v2187 = vpop.f32.mrb[0].mxu0
      %2188 = vmatprep.mubr.bf16.mxu0 0
      %2189 = vmatmul.mubr.bf16.gmra.mrb[0].mxu0 %v2055
      %v2190 = vpop.f32.mrb[0].mxu0
      %v2191 = vadd.f32 0.0, %v2190
      %v2192 = vpop.f32.mrb[0].mxu0
      %v2193 = vpop.f32.mrb[0].mxu0
      %v2194 = vadd.f32 0.0, %v2193
      %v2195 = vpop.f32.mrb[0].mxu0
      %2196 = vmatprep.mubr.bf16.mxu0 0
      %2197 = vmatmul.mubr.bf16.gmra.mrb[0].mxu0 %v2058
      %v2198 = vpop.f32.mrb[0].mxu0
      %v2199 = vadd.f32 0.0, %v2198
      %v2200 = vpop.f32.mrb[0].mxu0
      %v2201 = vpop.f32.mrb[0].mxu0
      %v2202 = vadd.f32 0.0, %v2201
      %v2203 = vpop.f32.mrb[0].mxu0
      %2204 = vmatprep.mubr.bf16.mxu0 0
      %2205 = vmatmul.mubr.bf16.gmra.mrb[0].mxu0 %v2061
      %v2206 = vpop.f32.mrb[0].mxu0
      %v2207 = vadd.f32 0.0, %v2206
      %v2208 = vpop.f32.mrb[0].mxu0
      %v2209 = vpop.f32.mrb[0].mxu0
      %v2210 = vadd.f32 0.0, %v2209
      %v2211 = vpop.f32.mrb[0].mxu0
      %2212 = vmatprep.mubr.bf16.mxu0 0
      %2213 = vmatmul.mubr.bf16.gmra.mrb[0].mxu0 %v2064
      %v2214 = vpop.f32.mrb[0].mxu0
      %v2215 = vadd.f32 0.0, %v2214
      %v2216 = vpop.f32.mrb[0].mxu0
      %v2217 = vpop.f32.mrb[0].mxu0
      %v2218 = vadd.f32 0.0, %v2217
      %v2219 = vpop.f32.mrb[0].mxu0
      %2220 = vmatprep.mubr.bf16.mxu0 0
      %2221 = vmatmul.mubr.bf16.gmra.mrb[0].mxu0 %v2067
      %v2222 = vpop.f32.mrb[0].mxu0
      %v2223 = vadd.f32 0.0, %v2222
      %v2224 = vpop.f32.mrb[0].mxu0
      %v2225 = vpop.f32.mrb[0].mxu0
      %v2226 = vadd.f32 0.0, %v2225
      %v2227 = vpop.f32.mrb[0].mxu0
      %2228 = vmatprep.mubr.bf16.mxu0 0
      %2229 = vmatmul.mubr.bf16.gmra.mrb[0].mxu0 %v2070
      %v2230 = vpop.f32.mrb[0].mxu0
      %v2231 = vadd.f32 0.0, %v2230
      %v2232 = vpop.f32.mrb[0].mxu0
      %v2233 = vpop.f32.mrb[0].mxu0
      %v2234 = vadd.f32 0.0, %v2233
      %v2235 = vpop.f32.mrb[0].mxu0
      %2236 = vmatprep.mubr.bf16.mxu0 0
      %2237 = vmatmul.mubr.bf16.gmra.mrb[0].mxu0 %v2073
      %v2238 = vpop.f32.mrb[0].mxu0
      %v2239 = vadd.f32 0.0, %v2238
      %v2240 = vpop.f32.mrb[0].mxu0
      %v2241 = vpop.f32.mrb[0].mxu0
      %v2242 = vadd.f32 0.0, %v2241
      %v2243 = vpop.f32.mrb[0].mxu0
      %2244 = vmatprep.mubr.bf16.mxu0 0
      %2245 = vmatmul.mubr.bf16.gmra.mrb[0].mxu0 %v2076
      %v2246 = vpop.f32.mrb[0].mxu0
      %v2247 = vadd.f32 0.0, %v2246
      %v2248 = vpop.f32.mrb[0].mxu0
      %v2249 = vpop.f32.mrb[0].mxu0
      %v2250 = vadd.f32 0.0, %v2249
      %v2251 = vpop.f32.mrb[0].mxu0
      %2252 = vmatprep.mubr.bf16.mxu0 0
      %2253 = vmatmul.mubr.bf16.gmra.mrb[0].mxu0 %v2079
      %v2254 = vpop.f32.mrb[0].mxu0
      %v2255 = vadd.f32 0.0, %v2254
      %v2256 = vpop.f32.mrb[0].mxu0
      %v2257 = vpop.f32.mrb[0].mxu0
      %v2258 = vadd.f32 0.0, %v2257
      %v2259 = vpop.f32.mrb[0].mxu0
      %2260 = vdwg.mxu0
      %v2261 = vadd.f32 %v1692, %v2119
      %v2262 = vadd.f32 %v1693, %v2122
      %v2263 = vadd.f32 %v1694, %v2127
      %v2264 = vadd.f32 %v1695, %v2130
      %v2265 = vadd.f32 %v1696, %v2135
      %v2266 = vadd.f32 %v1697, %v2138
      %v2267 = vadd.f32 %v1698, %v2143
      %v2268 = vadd.f32 %v1699, %v2146
      %v2269 = vadd.f32 %v1700, %v2151
      %v2270 = vadd.f32 %v1701, %v2154
      %v2271 = vadd.f32 %v1702, %v2159
      %v2272 = vadd.f32 %v1703, %v2162
      %v2273 = vadd.f32 %v1704, %v2167
      %v2274 = vadd.f32 %v1705, %v2170
      %v2275 = vadd.f32 %v1706, %v2175
      %v2276 = vadd.f32 %v1707, %v2178
      %v2277 = vadd.f32 %v1708, %v2183
      %v2278 = vadd.f32 %v1709, %v2186
      %v2279 = vadd.f32 %v1710, %v2191
      %v2280 = vadd.f32 %v1711, %v2194
      %v2281 = vadd.f32 %v1712, %v2199
      %v2282 = vadd.f32 %v1713, %v2202
      %v2283 = vadd.f32 %v1714, %v2207
      %v2284 = vadd.f32 %v1715, %v2210
      %v2285 = vadd.f32 %v1716, %v2215
      %v2286 = vadd.f32 %v1717, %v2218
      %v2287 = vadd.f32 %v1718, %v2223
      %v2288 = vadd.f32 %v1719, %v2226
      %v2289 = vadd.f32 %v1720, %v2231
      %v2290 = vadd.f32 %v1721, %v2234
      %v2291 = vadd.f32 %v1722, %v2239
      %v2292 = vadd.f32 %v1723, %v2242
      %v2293 = vadd.f32 %v1724, %v2247
      %v2294 = vadd.f32 %v1725, %v2250
      %v2295 = vadd.f32 %v1726, %v2255
      %v2296 = vadd.f32 %v1727, %v2258
      %v2297 = vld [vmem:[%s246 + $0x8] sm:$0xc]
      %s2298 = scalar_lea.vmem %s2, 10
      %v2299 = vld [vmem:[%s2298] sm:$0x3]
      %v2301 = vunpack.c.l.b16 %v2297
      %v2302 = vpack.c.b16 %v1805, %v2301
      %vm2303 = vcmask 1045504
      %v2304 = vrot.slane %v2302, 2
      %v2305 = vrot.slane %v1842, 2
      %v2306 = vsel %vm2303, %v2304, %v2305
      %v2307 = vrot.slane %v1843, 2
      %v2308 = vsel %vm2303, %v2305, %v2307
      %v2309 = vrot.slane %v1844, 2
      %v2310 = vsel %vm2303, %v2307, %v2309
      %v2311 = vrot.slane %v1845, 2
      %v2312 = vsel %vm2303, %v2309, %v2311
      %v2313 = vrot.slane %v1846, 2
      %v2314 = vsel %vm2303, %v2311, %v2313
      %v2315 = vrot.slane %v1847, 2
      %v2316 = vsel %vm2303, %v2313, %v2315
      %v2317 = vrot.slane %v1848, 2
      %v2318 = vsel %vm2303, %v2315, %v2317
      %v2319 = vrot.slane %v1849, 2
      %v2320 = vsel %vm2303, %v2317, %v2319
      %v2321 = vrot.slane %v1850, 2
      %v2322 = vsel %vm2303, %v2319, %v2321
      %v2323 = vrot.slane %v1851, 2
      %v2324 = vsel %vm2303, %v2321, %v2323
      %v2325 = vrot.slane %v1852, 2
      %v2326 = vsel %vm2303, %v2323, %v2325
      %v2327 = vrot.slane %v1853, 2
      %v2328 = vsel %vm2303, %v2325, %v2327
      %v2329 = vrot.slane %v1854, 2
      %v2330 = vsel %vm2303, %v2327, %v2329
      %v2331 = vrot.slane %v1855, 2
      %v2332 = vsel %vm2303, %v2329, %v2331
      %v2333 = vrot.slane %v1856, 2
      %v2334 = vsel %vm2303, %v2331, %v2333
      %v2335 = vrot.slane %v1857, 2
      %v2336 = vsel %vm2303, %v2333, %v2335
      %v2337 = vrot.slane %v1858, 2
      %v2338 = vsel %vm2303, %v2335, %v2337
      %v2339 = vrot.slane %v1859, 2
      %v2340 = vsel %vm2303, %v2337, %v2339
      %v2342 = vsel %vm527, %v2306, 0
      %v2345 = vsel %vm527, %v2308, 0
      %v2348 = vsel %vm527, %v2310, 0
      %v2351 = vsel %vm527, %v2312, 0
      %v2354 = vsel %vm527, %v2314, 0
      %v2357 = vsel %vm527, %v2316, 0
      %v2360 = vsel %vm527, %v2318, 0
      %v2363 = vsel %vm527, %v2320, 0
      %v2366 = vsel %vm527, %v2322, 0
      %v2369 = vsel %vm527, %v2324, 0
      %v2372 = vsel %vm527, %v2326, 0
      %v2375 = vsel %vm527, %v2328, 0
      %v2378 = vsel %vm527, %v2330, 0
      %v2381 = vsel %vm527, %v2332, 0
      %v2384 = vsel %vm527, %v2334, 0
      %v2387 = vsel %vm527, %v2336, 0
      %v2390 = vsel %vm527, %v2338, 0
      %v2393 = vsel %vm527, %v2340, 0
      %v2396 = vsel %vm582, %v2299, 0
      %2398 = vmatprep.subr.bf16.mxu0 0
      %2399 = vmatpush1.bf16.msra.mxu0 %v2396
      %2400 = vmatprep.subr.bf16.mxu0 0
      %2401 = vmatpush1.bf16.msra.mxu0 0
      %2402 = vmatprep.subr.bf16.mxu0 0
      %2403 = vmatpush1.bf16.msra.mxu0 0
      %2404 = vmatprep.subr.bf16.mxu0 0
      %2405 = vmatpush1.bf16.msra.mxu0 0
      %2406 = vmatprep.subr.bf16.mxu0 0
      %2407 = vmatpush1.bf16.msra.mxu0 0
      %2408 = vmatprep.subr.bf16.mxu0 0
      %2409 = vmatpush1.bf16.msra.mxu0 0
      %2410 = vmatprep.subr.bf16.mxu0 0
      %2411 = vmatpush1.bf16.msra.mxu0 0
      %2412 = vmatprep.subr.bf16.mxu0 0
      %2413 = vmatpush1.bf16.msra.mxu0 0
      %2414 = vmatprep.subr.bf16.mxu0 0
      %2415 = vmatpush1.bf16.msra.mxu0 0
      %2416 = vmatprep.subr.bf16.mxu0 0
      %2417 = vmatpush1.bf16.msra.mxu0 0
      %2418 = vmatprep.subr.bf16.mxu0 0
      %2419 = vmatpush1.bf16.msra.mxu0 0
      %2420 = vmatprep.subr.bf16.mxu0 0
      %2421 = vmatpush1.bf16.msra.mxu0 0
      %2422 = vmatprep.subr.bf16.mxu0 0
      %2423 = vmatpush1.bf16.msra.mxu0 0
      %2424 = vmatprep.subr.bf16.mxu0 0
      %2425 = vmatpush1.bf16.msra.mxu0 0
      %2426 = vmatprep.subr.bf16.mxu0 0
      %2427 = vmatpush1.bf16.msra.mxu0 0
      %2428 = vmatprep.subr.bf16.mxu0 0
      %2429 = vmatpush1.bf16.msra.mxu0 0
      %2430 = vmatprep.mubr.bf16.mxu0 0
      %2431 = vmatmul.mubr.bf16.gmra.mrb[0].mxu0 %v2342
      %v2432 = vpop.f32.mrb[0].mxu0
      %v2433 = vadd.f32 0.0, %v2432
      %v2434 = vpop.f32.mrb[0].mxu0
      %v2435 = vpop.f32.mrb[0].mxu0
      %v2436 = vadd.f32 0.0, %v2435
      %v2437 = vpop.f32.mrb[0].mxu0
      %2438 = vmatprep.mubr.bf16.mxu0 0
      %2439 = vmatmul.mubr.bf16.gmra.mrb[0].mxu0 %v2345
      %v2440 = vpop.f32.mrb[0].mxu0
      %v2441 = vadd.f32 0.0, %v2440
      %v2442 = vpop.f32.mrb[0].mxu0
      %v2443 = vpop.f32.mrb[0].mxu0
      %v2444 = vadd.f32 0.0, %v2443
      %v2445 = vpop.f32.mrb[0].mxu0
      %2446 = vmatprep.mubr.bf16.mxu0 0
      %2447 = vmatmul.mubr.bf16.gmra.mrb[0].mxu0 %v2348
      %v2448 = vpop.f32.mrb[0].mxu0
      %v2449 = vadd.f32 0.0, %v2448
      %v2450 = vpop.f32.mrb[0].mxu0
      %v2451 = vpop.f32.mrb[0].mxu0
      %v2452 = vadd.f32 0.0, %v2451
      %v2453 = vpop.f32.mrb[0].mxu0
      %2454 = vmatprep.mubr.bf16.mxu0 0
      %2455 = vmatmul.mubr.bf16.gmra.mrb[0].mxu0 %v2351
      %v2456 = vpop.f32.mrb[0].mxu0
      %v2457 = vadd.f32 0.0, %v2456
      %v2458 = vpop.f32.mrb[0].mxu0
      %v2459 = vpop.f32.mrb[0].mxu0
      %v2460 = vadd.f32 0.0, %v2459
      %v2461 = vpop.f32.mrb[0].mxu0
      %2462 = vmatprep.mubr.bf16.mxu0 0
      %2463 = vmatmul.mubr.bf16.gmra.mrb[0].mxu0 %v2354
      %v2464 = vpop.f32.mrb[0].mxu0
      %v2465 = vadd.f32 0.0, %v2464
      %v2466 = vpop.f32.mrb[0].mxu0
      %v2467 = vpop.f32.mrb[0].mxu0
      %v2468 = vadd.f32 0.0, %v2467
      %v2469 = vpop.f32.mrb[0].mxu0
      %2470 = vmatprep.mubr.bf16.mxu0 0
      %2471 = vmatmul.mubr.bf16.gmra.mrb[0].mxu0 %v2357
      %v2472 = vpop.f32.mrb[0].mxu0
      %v2473 = vadd.f32 0.0, %v2472
      %v2474 = vpop.f32.mrb[0].mxu0
      %v2475 = vpop.f32.mrb[0].mxu0
      %v2476 = vadd.f32 0.0, %v2475
      %v2477 = vpop.f32.mrb[0].mxu0
      %2478 = vmatprep.mubr.bf16.mxu0 0
      %2479 = vmatmul.mubr.bf16.gmra.mrb[0].mxu0 %v2360
      %v2480 = vpop.f32.mrb[0].mxu0
      %v2481 = vadd.f32 0.0, %v2480
      %v2482 = vpop.f32.mrb[0].mxu0
      %v2483 = vpop.f32.mrb[0].mxu0
      %v2484 = vadd.f32 0.0, %v2483
      %v2485 = vpop.f32.mrb[0].mxu0
      %2486 = vmatprep.mubr.bf16.mxu0 0
      %2487 = vmatmul.mubr.bf16.gmra.mrb[0].mxu0 %v2363
      %v2488 = vpop.f32.mrb[0].mxu0
      %v2489 = vadd.f32 0.0, %v2488
      %v2490 = vpop.f32.mrb[0].mxu0
      %v2491 = vpop.f32.mrb[0].mxu0
      %v2492 = vadd.f32 0.0, %v2491
      %v2493 = vpop.f32.mrb[0].mxu0
      %2494 = vmatprep.mubr.bf16.mxu0 0
      %2495 = vmatmul.mubr.bf16.gmra.mrb[0].mxu0 %v2366
      %v2496 = vpop.f32.mrb[0].mxu0
      %v2497 = vadd.f32 0.0, %v2496
      %v2498 = vpop.f32.mrb[0].mxu0
      %v2499 = vpop.f32.mrb[0].mxu0
      %v2500 = vadd.f32 0.0, %v2499
      %v2501 = vpop.f32.mrb[0].mxu0
      %2502 = vmatprep.mubr.bf16.mxu0 0
      %2503 = vmatmul.mubr.bf16.gmra.mrb[0].mxu0 %v2369
      %v2504 = vpop.f32.mrb[0].mxu0
      %v2505 = vadd.f32 0.0, %v2504
      %v2506 = vpop.f32.mrb[0].mxu0
      %v2507 = vpop.f32.mrb[0].mxu0
      %v2508 = vadd.f32 0.0, %v2507
      %v2509 = vpop.f32.mrb[0].mxu0
      %2510 = vmatprep.mubr.bf16.mxu0 0
      %2511 = vmatmul.mubr.bf16.gmra.mrb[0].mxu0 %v2372
      %v2512 = vpop.f32.mrb[0].mxu0
      %v2513 = vadd.f32 0.0, %v2512
      %v2514 = vpop.f32.mrb[0].mxu0
      %v2515 = vpop.f32.mrb[0].mxu0
      %v2516 = vadd.f32 0.0, %v2515
      %v2517 = vpop.f32.mrb[0].mxu0
      %2518 = vmatprep.mubr.bf16.mxu0 0
      %2519 = vmatmul.mubr.bf16.gmra.mrb[0].mxu0 %v2375
      %v2520 = vpop.f32.mrb[0].mxu0
      %v2521 = vadd.f32 0.0, %v2520
      %v2522 = vpop.f32.mrb[0].mxu0
      %v2523 = vpop.f32.mrb[0].mxu0
      %v2524 = vadd.f32 0.0, %v2523
      %v2525 = vpop.f32.mrb[0].mxu0
      %2526 = vmatprep.mubr.bf16.mxu0 0
      %2527 = vmatmul.mubr.bf16.gmra.mrb[0].mxu0 %v2378
      %v2528 = vpop.f32.mrb[0].mxu0
      %v2529 = vadd.f32 0.0, %v2528
      %v2530 = vpop.f32.mrb[0].mxu0
      %v2531 = vpop.f32.mrb[0].mxu0
      %v2532 = vadd.f32 0.0, %v2531
      %v2533 = vpop.f32.mrb[0].mxu0
      %2534 = vmatprep.mubr.bf16.mxu0 0
      %2535 = vmatmul.mubr.bf16.gmra.mrb[0].mxu0 %v2381
      %v2536 = vpop.f32.mrb[0].mxu0
      %v2537 = vadd.f32 0.0, %v2536
      %v2538 = vpop.f32.mrb[0].mxu0
      %v2539 = vpop.f32.mrb[0].mxu0
      %v2540 = vadd.f32 0.0, %v2539
      %v2541 = vpop.f32.mrb[0].mxu0
      %2542 = vmatprep.mubr.bf16.mxu0 0
      %2543 = vmatmul.mubr.bf16.gmra.mrb[0].mxu0 %v2384
      %v2544 = vpop.f32.mrb[0].mxu0
      %v2545 = vadd.f32 0.0, %v2544
      %v2546 = vpop.f32.mrb[0].mxu0
      %v2547 = vpop.f32.mrb[0].mxu0
      %v2548 = vadd.f32 0.0, %v2547
      %v2549 = vpop.f32.mrb[0].mxu0
      %2550 = vmatprep.mubr.bf16.mxu0 0
      %2551 = vmatmul.mubr.bf16.gmra.mrb[0].mxu0 %v2387
      %v2552 = vpop.f32.mrb[0].mxu0
      %v2553 = vadd.f32 0.0, %v2552
      %v2554 = vpop.f32.mrb[0].mxu0
      %v2555 = vpop.f32.mrb[0].mxu0
      %v2556 = vadd.f32 0.0, %v2555
      %v2557 = vpop.f32.mrb[0].mxu0
      %2558 = vmatprep.mubr.bf16.mxu0 0
      %2559 = vmatmul.mubr.bf16.gmra.mrb[0].mxu0 %v2390
      %v2560 = vpop.f32.mrb[0].mxu0
      %v2561 = vadd.f32 0.0, %v2560
      %v2562 = vpop.f32.mrb[0].mxu0
      %v2563 = vpop.f32.mrb[0].mxu0
      %v2564 = vadd.f32 0.0, %v2563
      %v2565 = vpop.f32.mrb[0].mxu0
      %2566 = vmatprep.mubr.bf16.mxu0 0
      %2567 = vmatmul.mubr.bf16.gmra.mrb[0].mxu0 %v2393
      %v2568 = vpop.f32.mrb[0].mxu0
      %v2569 = vadd.f32 0.0, %v2568
      %v2570 = vpop.f32.mrb[0].mxu0
      %v2571 = vpop.f32.mrb[0].mxu0
      %v2572 = vadd.f32 0.0, %v2571
      %v2573 = vpop.f32.mrb[0].mxu0
      %2574 = vdwg.mxu0
      %v2575 = vadd.f32 %v2261, %v2433
      %v2576 = vadd.f32 %v2262, %v2436
      %v2577 = vadd.f32 %v2263, %v2441
      %v2578 = vadd.f32 %v2264, %v2444
      %v2579 = vadd.f32 %v2265, %v2449
      %v2580 = vadd.f32 %v2266, %v2452
      %v2581 = vadd.f32 %v2267, %v2457
      %v2582 = vadd.f32 %v2268, %v2460
      %v2583 = vadd.f32 %v2269, %v2465
      %v2584 = vadd.f32 %v2270, %v2468
      %v2585 = vadd.f32 %v2271, %v2473
      %v2586 = vadd.f32 %v2272, %v2476
      %v2587 = vadd.f32 %v2273, %v2481
      %v2588 = vadd.f32 %v2274, %v2484
      %v2589 = vadd.f32 %v2275, %v2489
      %v2590 = vadd.f32 %v2276, %v2492
      %v2591 = vadd.f32 %v2277, %v2497
      %v2592 = vadd.f32 %v2278, %v2500
      %v2593 = vadd.f32 %v2279, %v2505
      %v2594 = vadd.f32 %v2280, %v2508
      %v2595 = vadd.f32 %v2281, %v2513
      %v2596 = vadd.f32 %v2282, %v2516
      %v2597 = vadd.f32 %v2283, %v2521
      %v2598 = vadd.f32 %v2284, %v2524
      %v2599 = vadd.f32 %v2285, %v2529
      %v2600 = vadd.f32 %v2286, %v2532
      %v2601 = vadd.f32 %v2287, %v2537
      %v2602 = vadd.f32 %v2288, %v2540
      %v2603 = vadd.f32 %v2289, %v2545
      %v2604 = vadd.f32 %v2290, %v2548
      %v2605 = vadd.f32 %v2291, %v2553
      %v2606 = vadd.f32 %v2292, %v2556
      %v2607 = vadd.f32 %v2293, %v2561
      %v2608 = vadd.f32 %v2294, %v2564
      %v2609 = vadd.f32 %v2295, %v2569
      %v2610 = vadd.f32 %v2296, %v2572
      %v2611 = vld [vmem:[%s246 + $0x10] sm:$0xc]
      %v2612 = vld [vmem:[%s246 + $0x14] sm:$0xf]
      %v2613 = vld [vmem:[%s246 + $0x18] sm:$0xf]
      %v2614 = vld [vmem:[%s246 + $0x1c] sm:$0xf]
      %v2615 = vld [vmem:[%s246 + $0x20] sm:$0xf]
      %v2616 = vld [vmem:[%s246 + $0x24] sm:$0xf]
      %v2617 = vld [vmem:[%s246 + $0x28] sm:$0xf]
      %v2618 = vld [vmem:[%s246 + $0x2c] sm:$0xf]
      %v2619 = vld [vmem:[%s246 + $0x30] sm:$0xf]
      %v2620 = vld [vmem:[%s246 + $0x34] sm:$0xf]
      %v2621 = vld [vmem:[%s246 + $0x38] sm:$0xf]
      %v2622 = vld [vmem:[%s246 + $0x3c] sm:$0xf]
      %v2623 = vld [vmem:[%s246 + $0x40] sm:$0xf]
      %v2624 = vld [vmem:[%s246 + $0x44] sm:$0xf]
      %v2625 = vld [vmem:[%s246 + $0x48] sm:$0xf]
      %v2626 = vld [vmem:[%s246 + $0x4c] sm:$0xf]
      %v2627 = vld [vmem:[%s246 + $0x50] sm:$0xf]
      %v2628 = vld [vmem:[%s246 + $0x54] sm:$0xf]
      %v2629 = vld [vmem:[%s246 + $0x58] sm:$0xf]
      %v2630 = vld [vmem:[%s246 + $0x5c] sm:$0xf]
      %v2631 = vld [vmem:[%s246 + $0x60] sm:$0xf]
      %v2632 = vld [vmem:[%s246 + $0x64] sm:$0xf]
      %v2633 = vld [vmem:[%s246 + $0x68] sm:$0xf]
      %v2634 = vld [vmem:[%s246 + $0x6c] sm:$0xf]
      %v2635 = vld [vmem:[%s246 + $0x70] sm:$0xf]
      %v2636 = vld [vmem:[%s246 + $0x74] sm:$0xf]
      %v2637 = vld [vmem:[%s246 + $0x78] sm:$0xf]
      %v2638 = vld [vmem:[%s246 + $0x7c] sm:$0xf]
      %v2639 = vld [vmem:[%s246 + $0x80] sm:$0xf]
      %v2640 = vld [vmem:[%s246 + $0x84] sm:$0xf]
      %v2641 = vld [vmem:[%s246 + $0x88] sm:$0xf]
      %v2642 = vld [vmem:[%s246 + $0x8c] sm:$0xf]
      %v2643 = vld [vmem:[%s246 + $0x90] sm:$0xf]
      %v2644 = vld [vmem:[%s246 + $0x94] sm:$0xf]
      %v2645 = vld [vmem:[%s246 + $0x98] sm:$0xf]
      %v2646 = vld [vmem:[%s246 + $0x9c] sm:$0xf]
      %v2647 = vld [vmem:[%s246 + $0xa0] sm:$0x1]
      %s2648 = scalar_lea.vmem %s2, 12
      %v2649 = vld [vmem:[%s2648] sm:$0x3]
      %v2687 = vunpack.c.l.b16 %v2611
      %v2688 = vunpack.c.l.b16 %v2612
      %v2689 = vunpack.c.l.b16 %v2613
      %v2690 = vunpack.c.l.b16 %v2614
      %v2691 = vunpack.c.l.b16 %v2615
      %v2692 = vunpack.c.l.b16 %v2616
      %v2693 = vunpack.c.l.b16 %v2617
      %v2694 = vunpack.c.l.b16 %v2618
      %v2695 = vunpack.c.l.b16 %v2619
      %v2696 = vunpack.c.l.b16 %v2620
      %v2697 = vunpack.c.l.b16 %v2621
      %v2698 = vunpack.c.l.b16 %v2622
      %v2699 = vunpack.c.l.b16 %v2623
      %v2700 = vunpack.c.l.b16 %v2624
      %v2701 = vunpack.c.l.b16 %v2625
      %v2702 = vunpack.c.l.b16 %v2626
      %v2703 = vunpack.c.l.b16 %v2627
      %v2704 = vunpack.c.l.b16 %v2628
      %v2705 = vunpack.c.l.b16 %v2629
      %v2706 = vunpack.c.l.b16 %v2630
      %v2707 = vunpack.c.l.b16 %v2631
      %v2708 = vunpack.c.l.b16 %v2632
      %v2709 = vunpack.c.l.b16 %v2633
      %v2710 = vunpack.c.l.b16 %v2634
      %v2711 = vunpack.c.l.b16 %v2635
      %v2712 = vunpack.c.l.b16 %v2636
      %v2713 = vunpack.c.l.b16 %v2637
      %v2714 = vunpack.c.l.b16 %v2638
      %v2715 = vunpack.c.l.b16 %v2639
      %v2716 = vunpack.c.l.b16 %v2640
      %v2717 = vunpack.c.l.b16 %v2641
      %v2718 = vunpack.c.l.b16 %v2642
      %v2719 = vunpack.c.l.b16 %v2643
      %v2720 = vunpack.c.l.b16 %v2644
      %v2721 = vunpack.c.l.b16 %v2645
      %v2722 = vunpack.c.l.b16 %v2646
      %v2723 = vunpack.c.l.b16 %v2647
      %v2724 = vpack.c.b16 %v2688, %v2687
      %v2725 = vpack.c.b16 %v2690, %v2689
      %v2726 = vpack.c.b16 %v2692, %v2691
      %v2727 = vpack.c.b16 %v2694, %v2693
      %v2728 = vpack.c.b16 %v2696, %v2695
      %v2729 = vpack.c.b16 %v2698, %v2697
      %v2730 = vpack.c.b16 %v2700, %v2699
      %v2731 = vpack.c.b16 %v2702, %v2701
      %v2732 = vpack.c.b16 %v2704, %v2703
      %v2733 = vpack.c.b16 %v2706, %v2705
      %v2734 = vpack.c.b16 %v2708, %v2707
      %v2735 = vpack.c.b16 %v2710, %v2709
      %v2736 = vpack.c.b16 %v2712, %v2711
      %v2737 = vpack.c.b16 %v2714, %v2713
      %v2738 = vpack.c.b16 %v2716, %v2715
      %v2739 = vpack.c.b16 %v2718, %v2717
      %v2740 = vpack.c.b16 %v2720, %v2719
      %v2741 = vpack.c.b16 %v2722, %v2721
      %v2742 = vpack.c.b16 %v2723, %v2723
      %v2743 = vrot.slane %v2724, 2
      %v2744 = vrot.slane %v2725, 2
      %v2745 = vsel %vm2303, %v2743, %v2744
      %v2746 = vrot.slane %v2726, 2
      %v2747 = vsel %vm2303, %v2744, %v2746
      %v2748 = vrot.slane %v2727, 2
      %v2749 = vsel %vm2303, %v2746, %v2748
      %v2750 = vrot.slane %v2728, 2
      %v2751 = vsel %vm2303, %v2748, %v2750
      %v2752 = vrot.slane %v2729, 2
      %v2753 = vsel %vm2303, %v2750, %v2752
      %v2754 = vrot.slane %v2730, 2
      %v2755 = vsel %vm2303, %v2752, %v2754
      %v2756 = vrot.slane %v2731, 2
      %v2757 = vsel %vm2303, %v2754, %v2756
      %v2758 = vrot.slane %v2732, 2
      %v2759 = vsel %vm2303, %v2756, %v2758
      %v2760 = vrot.slane %v2733, 2
      %v2761 = vsel %vm2303, %v2758, %v2760
      %v2762 = vrot.slane %v2734, 2
      %v2763 = vsel %vm2303, %v2760, %v2762
      %v2764 = vrot.slane %v2735, 2
      %v2765 = vsel %vm2303, %v2762, %v2764
      %v2766 = vrot.slane %v2736, 2
      %v2767 = vsel %vm2303, %v2764, %v2766
      %v2768 = vrot.slane %v2737, 2
      %v2769 = vsel %vm2303, %v2766, %v2768
      %v2770 = vrot.slane %v2738, 2
      %v2771 = vsel %vm2303, %v2768, %v2770
      %v2772 = vrot.slane %v2739, 2
      %v2773 = vsel %vm2303, %v2770, %v2772
      %v2774 = vrot.slane %v2740, 2
      %v2775 = vsel %vm2303, %v2772, %v2774
      %v2776 = vrot.slane %v2741, 2
      %v2777 = vsel %vm2303, %v2774, %v2776
      %v2778 = vrot.slane %v2742, 2
      %v2779 = vsel %vm2303, %v2776, %v2778
      %v2781 = vsel %vm527, %v2745, 0
      %v2784 = vsel %vm527, %v2747, 0
      %v2787 = vsel %vm527, %v2749, 0
      %v2790 = vsel %vm527, %v2751, 0
      %v2793 = vsel %vm527, %v2753, 0
      %v2796 = vsel %vm527, %v2755, 0
      %v2799 = vsel %vm527, %v2757, 0
      %v2802 = vsel %vm527, %v2759, 0
      %v2805 = vsel %vm527, %v2761, 0
      %v2808 = vsel %vm527, %v2763, 0
      %v2811 = vsel %vm527, %v2765, 0
      %v2814 = vsel %vm527, %v2767, 0
      %v2817 = vsel %vm527, %v2769, 0
      %v2820 = vsel %vm527, %v2771, 0
      %v2823 = vsel %vm527, %v2773, 0
      %v2826 = vsel %vm527, %v2775, 0
      %v2829 = vsel %vm527, %v2777, 0
      %v2832 = vsel %vm527, %v2779, 0
      %v2835 = vsel %vm582, %v2649, 0
      %2837 = vmatprep.subr.bf16.mxu0 0
      %2838 = vmatpush1.bf16.msra.mxu0 %v2835
      %2839 = vmatprep.subr.bf16.mxu0 0
      %2840 = vmatpush1.bf16.msra.mxu0 0
      %2841 = vmatprep.subr.bf16.mxu0 0
      %2842 = vmatpush1.bf16.msra.mxu0 0
      %2843 = vmatprep.subr.bf16.mxu0 0
      %2844 = vmatpush1.bf16.msra.mxu0 0
      %2845 = vmatprep.subr.bf16.mxu0 0
      %2846 = vmatpush1.bf16.msra.mxu0 0
      %2847 = vmatprep.subr.bf16.mxu0 0
      %2848 = vmatpush1.bf16.msra.mxu0 0
      %2849 = vmatprep.subr.bf16.mxu0 0
      %2850 = vmatpush1.bf16.msra.mxu0 0
      %2851 = vmatprep.subr.bf16.mxu0 0
      %2852 = vmatpush1.bf16.msra.mxu0 0
      %2853 = vmatprep.subr.bf16.mxu0 0
      %2854 = vmatpush1.bf16.msra.mxu0 0
      %2855 = vmatprep.subr.bf16.mxu0 0
      %2856 = vmatpush1.bf16.msra.mxu0 0
      %2857 = vmatprep.subr.bf16.mxu0 0
      %2858 = vmatpush1.bf16.msra.mxu0 0
      %2859 = vmatprep.subr.bf16.mxu0 0
      %2860 = vmatpush1.bf16.msra.mxu0 0
      %2861 = vmatprep.subr.bf16.mxu0 0
      %2862 = vmatpush1.bf16.msra.mxu0 0
      %2863 = vmatprep.subr.bf16.mxu0 0
      %2864 = vmatpush1.bf16.msra.mxu0 0
      %2865 = vmatprep.subr.bf16.mxu0 0
      %2866 = vmatpush1.bf16.msra.mxu0 0
      %2867 = vmatprep.subr.bf16.mxu0 0
      %2868 = vmatpush1.bf16.msra.mxu0 0
      %2869 = vmatprep.mubr.bf16.mxu0 0
      %2870 = vmatmul.mubr.bf16.gmra.mrb[0].mxu0 %v2781
      %v2871 = vpop.f32.mrb[0].mxu0
      %v2872 = vadd.f32 0.0, %v2871
      %v2873 = vpop.f32.mrb[0].mxu0
      %v2874 = vpop.f32.mrb[0].mxu0
      %v2875 = vadd.f32 0.0, %v2874
      %v2876 = vpop.f32.mrb[0].mxu0
      %2877 = vmatprep.mubr.bf16.mxu0 0
      %2878 = vmatmul.mubr.bf16.gmra.mrb[0].mxu0 %v2784
      %v2879 = vpop.f32.mrb[0].mxu0
      %v2880 = vadd.f32 0.0, %v2879
      %v2881 = vpop.f32.mrb[0].mxu0
      %v2882 = vpop.f32.mrb[0].mxu0
      %v2883 = vadd.f32 0.0, %v2882
      %v2884 = vpop.f32.mrb[0].mxu0
      %2885 = vmatprep.mubr.bf16.mxu0 0
      %2886 = vmatmul.mubr.bf16.gmra.mrb[0].mxu0 %v2787
      %v2887 = vpop.f32.mrb[0].mxu0
      %v2888 = vadd.f32 0.0, %v2887
      %v2889 = vpop.f32.mrb[0].mxu0
      %v2890 = vpop.f32.mrb[0].mxu0
      %v2891 = vadd.f32 0.0, %v2890
      %v2892 = vpop.f32.mrb[0].mxu0
      %2893 = vmatprep.mubr.bf16.mxu0 0
      %2894 = vmatmul.mubr.bf16.gmra.mrb[0].mxu0 %v2790
      %v2895 = vpop.f32.mrb[0].mxu0
      %v2896 = vadd.f32 0.0, %v2895
      %v2897 = vpop.f32.mrb[0].mxu0
      %v2898 = vpop.f32.mrb[0].mxu0
      %v2899 = vadd.f32 0.0, %v2898
      %v2900 = vpop.f32.mrb[0].mxu0
      %2901 = vmatprep.mubr.bf16.mxu0 0
      %2902 = vmatmul.mubr.bf16.gmra.mrb[0].mxu0 %v2793
      %v2903 = vpop.f32.mrb[0].mxu0
      %v2904 = vadd.f32 0.0, %v2903
      %v2905 = vpop.f32.mrb[0].mxu0
      %v2906 = vpop.f32.mrb[0].mxu0
      %v2907 = vadd.f32 0.0, %v2906
      %v2908 = vpop.f32.mrb[0].mxu0
      %2909 = vmatprep.mubr.bf16.mxu0 0
      %2910 = vmatmul.mubr.bf16.gmra.mrb[0].mxu0 %v2796
      %v2911 = vpop.f32.mrb[0].mxu0
      %v2912 = vadd.f32 0.0, %v2911
      %v2913 = vpop.f32.mrb[0].mxu0
      %v2914 = vpop.f32.mrb[0].mxu0
      %v2915 = vadd.f32 0.0, %v2914
      %v2916 = vpop.f32.mrb[0].mxu0
      %2917 = vmatprep.mubr.bf16.mxu0 0
      %2918 = vmatmul.mubr.bf16.gmra.mrb[0].mxu0 %v2799
      %v2919 = vpop.f32.mrb[0].mxu0
      %v2920 = vadd.f32 0.0, %v2919
      %v2921 = vpop.f32.mrb[0].mxu0
      %v2922 = vpop.f32.mrb[0].mxu0
      %v2923 = vadd.f32 0.0, %v2922
      %v2924 = vpop.f32.mrb[0].mxu0
      %2925 = vmatprep.mubr.bf16.mxu0 0
      %2926 = vmatmul.mubr.bf16.gmra.mrb[0].mxu0 %v2802
      %v2927 = vpop.f32.mrb[0].mxu0
      %v2928 = vadd.f32 0.0, %v2927
      %v2929 = vpop.f32.mrb[0].mxu0
      %v2930 = vpop.f32.mrb[0].mxu0
      %v2931 = vadd.f32 0.0, %v2930
      %v2932 = vpop.f32.mrb[0].mxu0
      %2933 = vmatprep.mubr.bf16.mxu0 0
      %2934 = vmatmul.mubr.bf16.gmra.mrb[0].mxu0 %v2805
      %v2935 = vpop.f32.mrb[0].mxu0
      %v2936 = vadd.f32 0.0, %v2935
      %v2937 = vpop.f32.mrb[0].mxu0
      %v2938 = vpop.f32.mrb[0].mxu0
      %v2939 = vadd.f32 0.0, %v2938
      %v2940 = vpop.f32.mrb[0].mxu0
      %2941 = vmatprep.mubr.bf16.mxu0 0
      %2942 = vmatmul.mubr.bf16.gmra.mrb[0].mxu0 %v2808
      %v2943 = vpop.f32.mrb[0].mxu0
      %v2944 = vadd.f32 0.0, %v2943
      %v2945 = vpop.f32.mrb[0].mxu0
      %v2946 = vpop.f32.mrb[0].mxu0
      %v2947 = vadd.f32 0.0, %v2946
      %v2948 = vpop.f32.mrb[0].mxu0
      %2949 = vmatprep.mubr.bf16.mxu0 0
      %2950 = vmatmul.mubr.bf16.gmra.mrb[0].mxu0 %v2811
      %v2951 = vpop.f32.mrb[0].mxu0
      %v2952 = vadd.f32 0.0, %v2951
      %v2953 = vpop.f32.mrb[0].mxu0
      %v2954 = vpop.f32.mrb[0].mxu0
      %v2955 = vadd.f32 0.0, %v2954
      %v2956 = vpop.f32.mrb[0].mxu0
      %2957 = vmatprep.mubr.bf16.mxu0 0
      %2958 = vmatmul.mubr.bf16.gmra.mrb[0].mxu0 %v2814
      %v2959 = vpop.f32.mrb[0].mxu0
      %v2960 = vadd.f32 0.0, %v2959
      %v2961 = vpop.f32.mrb[0].mxu0
      %v2962 = vpop.f32.mrb[0].mxu0
      %v2963 = vadd.f32 0.0, %v2962
      %v2964 = vpop.f32.mrb[0].mxu0
      %2965 = vmatprep.mubr.bf16.mxu0 0
      %2966 = vmatmul.mubr.bf16.gmra.mrb[0].mxu0 %v2817
      %v2967 = vpop.f32.mrb[0].mxu0
      %v2968 = vadd.f32 0.0, %v2967
      %v2969 = vpop.f32.mrb[0].mxu0
      %v2970 = vpop.f32.mrb[0].mxu0
      %v2971 = vadd.f32 0.0, %v2970
      %v2972 = vpop.f32.mrb[0].mxu0
      %2973 = vmatprep.mubr.bf16.mxu0 0
      %2974 = vmatmul.mubr.bf16.gmra.mrb[0].mxu0 %v2820
      %v2975 = vpop.f32.mrb[0].mxu0
      %v2976 = vadd.f32 0.0, %v2975
      %v2977 = vpop.f32.mrb[0].mxu0
      %v2978 = vpop.f32.mrb[0].mxu0
      %v2979 = vadd.f32 0.0, %v2978
      %v2980 = vpop.f32.mrb[0].mxu0
      %2981 = vmatprep.mubr.bf16.mxu0 0
      %2982 = vmatmul.mubr.bf16.gmra.mrb[0].mxu0 %v2823
      %v2983 = vpop.f32.mrb[0].mxu0
      %v2984 = vadd.f32 0.0, %v2983
      %v2985 = vpop.f32.mrb[0].mxu0
      %v2986 = vpop.f32.mrb[0].mxu0
      %v2987 = vadd.f32 0.0, %v2986
      %v2988 = vpop.f32.mrb[0].mxu0
      %2989 = vmatprep.mubr.bf16.mxu0 0
      %2990 = vmatmul.mubr.bf16.gmra.mrb[0].mxu0 %v2826
      %v2991 = vpop.f32.mrb[0].mxu0
      %v2992 = vadd.f32 0.0, %v2991
      %v2993 = vpop.f32.mrb[0].mxu0
      %v2994 = vpop.f32.mrb[0].mxu0
      %v2995 = vadd.f32 0.0, %v2994
      %v2996 = vpop.f32.mrb[0].mxu0
      %2997 = vmatprep.mubr.bf16.mxu0 0
      %2998 = vmatmul.mubr.bf16.gmra.mrb[0].mxu0 %v2829
      %v2999 = vpop.f32.mrb[0].mxu0
      %v3000 = vadd.f32 0.0, %v2999
      %v3001 = vpop.f32.mrb[0].mxu0
      %v3002 = vpop.f32.mrb[0].mxu0
      %v3003 = vadd.f32 0.0, %v3002
      %v3004 = vpop.f32.mrb[0].mxu0
      %3005 = vmatprep.mubr.bf16.mxu0 0
      %3006 = vmatmul.mubr.bf16.gmra.mrb[0].mxu0 %v2832
      %v3007 = vpop.f32.mrb[0].mxu0
      %v3008 = vadd.f32 0.0, %v3007
      %v3009 = vpop.f32.mrb[0].mxu0
      %v3010 = vpop.f32.mrb[0].mxu0
      %v3011 = vadd.f32 0.0, %v3010
      %v3012 = vpop.f32.mrb[0].mxu0
      %3013 = vdwg.mxu0
      %v3014 = vadd.f32 %v2575, %v2872
      %v3015 = vadd.f32 %v2576, %v2875
      %v3016 = vadd.f32 %v2577, %v2880
      %v3017 = vadd.f32 %v2578, %v2883
      %v3018 = vadd.f32 %v2579, %v2888
      %v3019 = vadd.f32 %v2580, %v2891
      %v3020 = vadd.f32 %v2581, %v2896
      %v3021 = vadd.f32 %v2582, %v2899
      %v3022 = vadd.f32 %v2583, %v2904
      %v3023 = vadd.f32 %v2584, %v2907
      %v3024 = vadd.f32 %v2585, %v2912
      %v3025 = vadd.f32 %v2586, %v2915
      %v3026 = vadd.f32 %v2587, %v2920
      %v3027 = vadd.f32 %v2588, %v2923
      %v3028 = vadd.f32 %v2589, %v2928
      %v3029 = vadd.f32 %v2590, %v2931
      %v3030 = vadd.f32 %v2591, %v2936
      %v3031 = vadd.f32 %v2592, %v2939
      %v3032 = vadd.f32 %v2593, %v2944
      %v3033 = vadd.f32 %v2594, %v2947
      %v3034 = vadd.f32 %v2595, %v2952
      %v3035 = vadd.f32 %v2596, %v2955
      %v3036 = vadd.f32 %v2597, %v2960
      %v3037 = vadd.f32 %v2598, %v2963
      %v3038 = vadd.f32 %v2599, %v2968
      %v3039 = vadd.f32 %v2600, %v2971
      %v3040 = vadd.f32 %v2601, %v2976
      %v3041 = vadd.f32 %v2602, %v2979
      %v3042 = vadd.f32 %v2603, %v2984
      %v3043 = vadd.f32 %v2604, %v2987
      %v3044 = vadd.f32 %v2605, %v2992
      %v3045 = vadd.f32 %v2606, %v2995
      %v3046 = vadd.f32 %v2607, %v3000
      %v3047 = vadd.f32 %v2608, %v3003
      %v3048 = vadd.f32 %v2609, %v3008
      %v3049 = vadd.f32 %v2610, %v3011
      %v3050 = vld [vmem:[%s246 + $0xa0] sm:$0x3]
      %s3051 = scalar_lea.vmem %s2, 14
      %v3052 = vld [vmem:[%s3051] sm:$0x3]
      %v3054 = vunpack.c.l.b16 %v3050
      %v3055 = vpack.c.b16 %v3054, %v3054
      %vm3056 = vsmask.f32 5376
      %v3058 = vshrl.u32 %v2724, 16
      %v3060 = vrot.slane %v3058, 2
      %v3061 = vshll.u32 %v2724, 16
      %v3063 = vrot.slane %v3061, 3
      %v3064 = vor.u32 %v3060, %v3063
      %v3066 = vshrl.u32 %v2725, 16
      %v3068 = vrot.slane %v3066, 2
      %v3069 = vshll.u32 %v2725, 16
      %v3071 = vrot.slane %v3069, 3
      %v3072 = vor.u32 %v3068, %v3071
      %v3073 = vsel %vm3056, %v3064, %v3072
      %v3075 = vshrl.u32 %v2726, 16
      %v3077 = vrot.slane %v3075, 2
      %v3078 = vshll.u32 %v2726, 16
      %v3080 = vrot.slane %v3078, 3
      %v3081 = vor.u32 %v3077, %v3080
      %v3082 = vsel %vm3056, %v3072, %v3081
      %v3084 = vshrl.u32 %v2727, 16
      %v3086 = vrot.slane %v3084, 2
      %v3087 = vshll.u32 %v2727, 16
      %v3089 = vrot.slane %v3087, 3
      %v3090 = vor.u32 %v3086, %v3089
      %v3091 = vsel %vm3056, %v3081, %v3090
      %v3093 = vshrl.u32 %v2728, 16
      %v3095 = vrot.slane %v3093, 2
      %v3096 = vshll.u32 %v2728, 16
      %v3098 = vrot.slane %v3096, 3
      %v3099 = vor.u32 %v3095, %v3098
      %v3100 = vsel %vm3056, %v3090, %v3099
      %v3102 = vshrl.u32 %v2729, 16
      %v3104 = vrot.slane %v3102, 2
      %v3105 = vshll.u32 %v2729, 16
      %v3107 = vrot.slane %v3105, 3
      %v3108 = vor.u32 %v3104, %v3107
      %v3109 = vsel %vm3056, %v3099, %v3108
      %v3111 = vshrl.u32 %v2730, 16
      %v3113 = vrot.slane %v3111, 2
      %v3114 = vshll.u32 %v2730, 16
      %v3116 = vrot.slane %v3114, 3
      %v3117 = vor.u32 %v3113, %v3116
      %v3118 = vsel %vm3056, %v3108, %v3117
      %v3120 = vshrl.u32 %v2731, 16
      %v3122 = vrot.slane %v3120, 2
      %v3123 = vshll.u32 %v2731, 16
      %v3125 = vrot.slane %v3123, 3
      %v3126 = vor.u32 %v3122, %v3125
      %v3127 = vsel %vm3056, %v3117, %v3126
      %v3129 = vshrl.u32 %v2732, 16
      %v3131 = vrot.slane %v3129, 2
      %v3132 = vshll.u32 %v2732, 16
      %v3134 = vrot.slane %v3132, 3
      %v3135 = vor.u32 %v3131, %v3134
      %v3136 = vsel %vm3056, %v3126, %v3135
      %v3138 = vshrl.u32 %v2733, 16
      %v3140 = vrot.slane %v3138, 2
      %v3141 = vshll.u32 %v2733, 16
      %v3143 = vrot.slane %v3141, 3
      %v3144 = vor.u32 %v3140, %v3143
      %v3145 = vsel %vm3056, %v3135, %v3144
      %v3147 = vshrl.u32 %v2734, 16
      %v3149 = vrot.slane %v3147, 2
      %v3150 = vshll.u32 %v2734, 16
      %v3152 = vrot.slane %v3150, 3
      %v3153 = vor.u32 %v3149, %v3152
      %v3154 = vsel %vm3056, %v3144, %v3153
      %v3156 = vshrl.u32 %v2735, 16
      %v3158 = vrot.slane %v3156, 2
      %v3159 = vshll.u32 %v2735, 16
      %v3161 = vrot.slane %v3159, 3
      %v3162 = vor.u32 %v3158, %v3161
      %v3163 = vsel %vm3056, %v3153, %v3162
      %v3165 = vshrl.u32 %v2736, 16
      %v3167 = vrot.slane %v3165, 2
      %v3168 = vshll.u32 %v2736, 16
      %v3170 = vrot.slane %v3168, 3
      %v3171 = vor.u32 %v3167, %v3170
      %v3172 = vsel %vm3056, %v3162, %v3171
      %v3174 = vshrl.u32 %v2737, 16
      %v3176 = vrot.slane %v3174, 2
      %v3177 = vshll.u32 %v2737, 16
      %v3179 = vrot.slane %v3177, 3
      %v3180 = vor.u32 %v3176, %v3179
      %v3181 = vsel %vm3056, %v3171, %v3180
      %v3183 = vshrl.u32 %v2738, 16
      %v3185 = vrot.slane %v3183, 2
      %v3186 = vshll.u32 %v2738, 16
      %v3188 = vrot.slane %v3186, 3
      %v3189 = vor.u32 %v3185, %v3188
      %v3190 = vsel %vm3056, %v3180, %v3189
      %v3192 = vshrl.u32 %v2739, 16
      %v3194 = vrot.slane %v3192, 2
      %v3195 = vshll.u32 %v2739, 16
      %v3197 = vrot.slane %v3195, 3
      %v3198 = vor.u32 %v3194, %v3197
      %v3199 = vsel %vm3056, %v3189, %v3198
      %v3201 = vshrl.u32 %v2740, 16
      %v3203 = vrot.slane %v3201, 2
      %v3204 = vshll.u32 %v2740, 16
      %v3206 = vrot.slane %v3204, 3
      %v3207 = vor.u32 %v3203, %v3206
      %v3208 = vsel %vm3056, %v3198, %v3207
      %v3210 = vshrl.u32 %v2741, 16
      %v3212 = vrot.slane %v3210, 2
      %v3213 = vshll.u32 %v2741, 16
      %v3215 = vrot.slane %v3213, 3
      %v3216 = vor.u32 %v3212, %v3215
      %v3217 = vsel %vm3056, %v3207, %v3216
      %v3219 = vshrl.u32 %v3055, 16
      %v3221 = vrot.slane %v3219, 2
      %v3222 = vshll.u32 %v3055, 16
      %v3224 = vrot.slane %v3222, 3
      %v3225 = vor.u32 %v3221, %v3224
      %v3226 = vsel %vm3056, %v3216, %v3225
      %v3228 = vsel %vm527, %v3073, 0
      %v3231 = vsel %vm527, %v3082, 0
      %v3234 = vsel %vm527, %v3091, 0
      %v3237 = vsel %vm527, %v3100, 0
      %v3240 = vsel %vm527, %v3109, 0
      %v3243 = vsel %vm527, %v3118, 0
      %v3246 = vsel %vm527, %v3127, 0
      %v3249 = vsel %vm527, %v3136, 0
      %v3252 = vsel %vm527, %v3145, 0
      %v3255 = vsel %vm527, %v3154, 0
      %v3258 = vsel %vm527, %v3163, 0
      %v3261 = vsel %vm527, %v3172, 0
      %v3264 = vsel %vm527, %v3181, 0
      %v3267 = vsel %vm527, %v3190, 0
      %v3270 = vsel %vm527, %v3199, 0
      %v3273 = vsel %vm527, %v3208, 0
      %v3276 = vsel %vm527, %v3217, 0
      %v3279 = vsel %vm527, %v3226, 0
      %v3282 = vsel %vm582, %v3052, 0
      %3284 = vmatprep.subr.bf16.mxu0 0
      %3285 = vmatpush1.bf16.msra.mxu0 %v3282
      %3286 = vmatprep.subr.bf16.mxu0 0
      %3287 = vmatpush1.bf16.msra.mxu0 0
      %3288 = vmatprep.subr.bf16.mxu0 0
      %3289 = vmatpush1.bf16.msra.mxu0 0
      %3290 = vmatprep.subr.bf16.mxu0 0
      %3291 = vmatpush1.bf16.msra.mxu0 0
      %3292 = vmatprep.subr.bf16.mxu0 0
      %3293 = vmatpush1.bf16.msra.mxu0 0
      %3294 = vmatprep.subr.bf16.mxu0 0
      %3295 = vmatpush1.bf16.msra.mxu0 0
      %3296 = vmatprep.subr.bf16.mxu0 0
      %3297 = vmatpush1.bf16.msra.mxu0 0
      %3298 = vmatprep.subr.bf16.mxu0 0
      %3299 = vmatpush1.bf16.msra.mxu0 0
      %3300 = vmatprep.subr.bf16.mxu0 0
      %3301 = vmatpush1.bf16.msra.mxu0 0
      %3302 = vmatprep.subr.bf16.mxu0 0
      %3303 = vmatpush1.bf16.msra.mxu0 0
      %3304 = vmatprep.subr.bf16.mxu0 0
      %3305 = vmatpush1.bf16.msra.mxu0 0
      %3306 = vmatprep.subr.bf16.mxu0 0
      %3307 = vmatpush1.bf16.msra.mxu0 0
      %3308 = vmatprep.subr.bf16.mxu0 0
      %3309 = vmatpush1.bf16.msra.mxu0 0
      %3310 = vmatprep.subr.bf16.mxu0 0
      %3311 = vmatpush1.bf16.msra.mxu0 0
      %3312 = vmatprep.subr.bf16.mxu0 0
      %3313 = vmatpush1.bf16.msra.mxu0 0
      %3314 = vmatprep.subr.bf16.mxu0 0
      %3315 = vmatpush1.bf16.msra.mxu0 0
      %3316 = vmatprep.mubr.bf16.mxu0 0
      %3317 = vmatmul.mubr.bf16.gmra.mrb[0].mxu0 %v3228
      %v3318 = vpop.f32.mrb[0].mxu0
      %v3319 = vadd.f32 0.0, %v3318
      %v3320 = vpop.f32.mrb[0].mxu0
      %v3321 = vpop.f32.mrb[0].mxu0
      %v3322 = vadd.f32 0.0, %v3321
      %v3323 = vpop.f32.mrb[0].mxu0
      %3324 = vmatprep.mubr.bf16.mxu0 0
      %3325 = vmatmul.mubr.bf16.gmra.mrb[0].mxu0 %v3231
      %v3326 = vpop.f32.mrb[0].mxu0
      %v3327 = vadd.f32 0.0, %v3326
      %v3328 = vpop.f32.mrb[0].mxu0
      %v3329 = vpop.f32.mrb[0].mxu0
      %v3330 = vadd.f32 0.0, %v3329
      %v3331 = vpop.f32.mrb[0].mxu0
      %3332 = vmatprep.mubr.bf16.mxu0 0
      %3333 = vmatmul.mubr.bf16.gmra.mrb[0].mxu0 %v3234
      %v3334 = vpop.f32.mrb[0].mxu0
      %v3335 = vadd.f32 0.0, %v3334
      %v3336 = vpop.f32.mrb[0].mxu0
      %v3337 = vpop.f32.mrb[0].mxu0
      %v3338 = vadd.f32 0.0, %v3337
      %v3339 = vpop.f32.mrb[0].mxu0
      %3340 = vmatprep.mubr.bf16.mxu0 0
      %3341 = vmatmul.mubr.bf16.gmra.mrb[0].mxu0 %v3237
      %v3342 = vpop.f32.mrb[0].mxu0
      %v3343 = vadd.f32 0.0, %v3342
      %v3344 = vpop.f32.mrb[0].mxu0
      %v3345 = vpop.f32.mrb[0].mxu0
      %v3346 = vadd.f32 0.0, %v3345
      %v3347 = vpop.f32.mrb[0].mxu0
      %3348 = vmatprep.mubr.bf16.mxu0 0
      %3349 = vmatmul.mubr.bf16.gmra.mrb[0].mxu0 %v3240
      %v3350 = vpop.f32.mrb[0].mxu0
      %v3351 = vadd.f32 0.0, %v3350
      %v3352 = vpop.f32.mrb[0].mxu0
      %v3353 = vpop.f32.mrb[0].mxu0
      %v3354 = vadd.f32 0.0, %v3353
      %v3355 = vpop.f32.mrb[0].mxu0
      %3356 = vmatprep.mubr.bf16.mxu0 0
      %3357 = vmatmul.mubr.bf16.gmra.mrb[0].mxu0 %v3243
      %v3358 = vpop.f32.mrb[0].mxu0
      %v3359 = vadd.f32 0.0, %v3358
      %v3360 = vpop.f32.mrb[0].mxu0
      %v3361 = vpop.f32.mrb[0].mxu0
      %v3362 = vadd.f32 0.0, %v3361
      %v3363 = vpop.f32.mrb[0].mxu0
      %3364 = vmatprep.mubr.bf16.mxu0 0
      %3365 = vmatmul.mubr.bf16.gmra.mrb[0].mxu0 %v3246
      %v3366 = vpop.f32.mrb[0].mxu0
      %v3367 = vadd.f32 0.0, %v3366
      %v3368 = vpop.f32.mrb[0].mxu0
      %v3369 = vpop.f32.mrb[0].mxu0
      %v3370 = vadd.f32 0.0, %v3369
      %v3371 = vpop.f32.mrb[0].mxu0
      %3372 = vmatprep.mubr.bf16.mxu0 0
      %3373 = vmatmul.mubr.bf16.gmra.mrb[0].mxu0 %v3249
      %v3374 = vpop.f32.mrb[0].mxu0
      %v3375 = vadd.f32 0.0, %v3374
      %v3376 = vpop.f32.mrb[0].mxu0
      %v3377 = vpop.f32.mrb[0].mxu0
      %v3378 = vadd.f32 0.0, %v3377
      %v3379 = vpop.f32.mrb[0].mxu0
      %3380 = vmatprep.mubr.bf16.mxu0 0
      %3381 = vmatmul.mubr.bf16.gmra.mrb[0].mxu0 %v3252
      %v3382 = vpop.f32.mrb[0].mxu0
      %v3383 = vadd.f32 0.0, %v3382
      %v3384 = vpop.f32.mrb[0].mxu0
      %v3385 = vpop.f32.mrb[0].mxu0
      %v3386 = vadd.f32 0.0, %v3385
      %v3387 = vpop.f32.mrb[0].mxu0
      %3388 = vmatprep.mubr.bf16.mxu0 0
      %3389 = vmatmul.mubr.bf16.gmra.mrb[0].mxu0 %v3255
      %v3390 = vpop.f32.mrb[0].mxu0
      %v3391 = vadd.f32 0.0, %v3390
      %v3392 = vpop.f32.mrb[0].mxu0
      %v3393 = vpop.f32.mrb[0].mxu0
      %v3394 = vadd.f32 0.0, %v3393
      %v3395 = vpop.f32.mrb[0].mxu0
      %3396 = vmatprep.mubr.bf16.mxu0 0
      %3397 = vmatmul.mubr.bf16.gmra.mrb[0].mxu0 %v3258
      %v3398 = vpop.f32.mrb[0].mxu0
      %v3399 = vadd.f32 0.0, %v3398
      %v3400 = vpop.f32.mrb[0].mxu0
      %v3401 = vpop.f32.mrb[0].mxu0
      %v3402 = vadd.f32 0.0, %v3401
      %v3403 = vpop.f32.mrb[0].mxu0
      %3404 = vmatprep.mubr.bf16.mxu0 0
      %3405 = vmatmul.mubr.bf16.gmra.mrb[0].mxu0 %v3261
      %v3406 = vpop.f32.mrb[0].mxu0
      %v3407 = vadd.f32 0.0, %v3406
      %v3408 = vpop.f32.mrb[0].mxu0
      %v3409 = vpop.f32.mrb[0].mxu0
      %v3410 = vadd.f32 0.0, %v3409
      %v3411 = vpop.f32.mrb[0].mxu0
      %3412 = vmatprep.mubr.bf16.mxu0 0
      %3413 = vmatmul.mubr.bf16.gmra.mrb[0].mxu0 %v3264
      %v3414 = vpop.f32.mrb[0].mxu0
      %v3415 = vadd.f32 0.0, %v3414
      %v3416 = vpop.f32.mrb[0].mxu0
      %v3417 = vpop.f32.mrb[0].mxu0
      %v3418 = vadd.f32 0.0, %v3417
      %v3419 = vpop.f32.mrb[0].mxu0
      %3420 = vmatprep.mubr.bf16.mxu0 0
      %3421 = vmatmul.mubr.bf16.gmra.mrb[0].mxu0 %v3267
      %v3422 = vpop.f32.mrb[0].mxu0
      %v3423 = vadd.f32 0.0, %v3422
      %v3424 = vpop.f32.mrb[0].mxu0
      %v3425 = vpop.f32.mrb[0].mxu0
      %v3426 = vadd.f32 0.0, %v3425
      %v3427 = vpop.f32.mrb[0].mxu0
      %3428 = vmatprep.mubr.bf16.mxu0 0
      %3429 = vmatmul.mubr.bf16.gmra.mrb[0].mxu0 %v3270
      %v3430 = vpop.f32.mrb[0].mxu0
      %v3431 = vadd.f32 0.0, %v3430
      %v3432 = vpop.f32.mrb[0].mxu0
      %v3433 = vpop.f32.mrb[0].mxu0
      %v3434 = vadd.f32 0.0, %v3433
      %v3435 = vpop.f32.mrb[0].mxu0
      %3436 = vmatprep.mubr.bf16.mxu0 0
      %3437 = vmatmul.mubr.bf16.gmra.mrb[0].mxu0 %v3273
      %v3438 = vpop.f32.mrb[0].mxu0
      %v3439 = vadd.f32 0.0, %v3438
      %v3440 = vpop.f32.mrb[0].mxu0
      %v3441 = vpop.f32.mrb[0].mxu0
      %v3442 = vadd.f32 0.0, %v3441
      %v3443 = vpop.f32.mrb[0].mxu0
      %3444 = vmatprep.mubr.bf16.mxu0 0
      %3445 = vmatmul.mubr.bf16.gmra.mrb[0].mxu0 %v3276
      %v3446 = vpop.f32.mrb[0].mxu0
      %v3447 = vadd.f32 0.0, %v3446
      %v3448 = vpop.f32.mrb[0].mxu0
      %v3449 = vpop.f32.mrb[0].mxu0
      %v3450 = vadd.f32 0.0, %v3449
      %v3451 = vpop.f32.mrb[0].mxu0
      %3452 = vmatprep.mubr.bf16.mxu0 0
      %3453 = vmatmul.mubr.bf16.gmra.mrb[0].mxu0 %v3279
      %v3454 = vpop.f32.mrb[0].mxu0
      %v3455 = vadd.f32 0.0, %v3454
      %v3456 = vpop.f32.mrb[0].mxu0
      %v3457 = vpop.f32.mrb[0].mxu0
      %v3458 = vadd.f32 0.0, %v3457
      %v3459 = vpop.f32.mrb[0].mxu0
      %3460 = vdwg.mxu0
      %v3461 = vadd.f32 %v3014, %v3319
      %v3462 = vadd.f32 %v3015, %v3322
      %v3463 = vadd.f32 %v3016, %v3327
      %v3464 = vadd.f32 %v3017, %v3330
      %v3465 = vadd.f32 %v3018, %v3335
      %v3466 = vadd.f32 %v3019, %v3338
      %v3467 = vadd.f32 %v3020, %v3343
      %v3468 = vadd.f32 %v3021, %v3346
      %v3469 = vadd.f32 %v3022, %v3351
      %v3470 = vadd.f32 %v3023, %v3354
      %v3471 = vadd.f32 %v3024, %v3359
      %v3472 = vadd.f32 %v3025, %v3362
      %v3473 = vadd.f32 %v3026, %v3367
      %v3474 = vadd.f32 %v3027, %v3370
      %v3475 = vadd.f32 %v3028, %v3375
      %v3476 = vadd.f32 %v3029, %v3378
      %v3477 = vadd.f32 %v3030, %v3383
      %v3478 = vadd.f32 %v3031, %v3386
      %v3479 = vadd.f32 %v3032, %v3391
      %v3480 = vadd.f32 %v3033, %v3394
      %v3481 = vadd.f32 %v3034, %v3399
      %v3482 = vadd.f32 %v3035, %v3402
      %v3483 = vadd.f32 %v3036, %v3407
      %v3484 = vadd.f32 %v3037, %v3410
      %v3485 = vadd.f32 %v3038, %v3415
      %v3486 = vadd.f32 %v3039, %v3418
      %v3487 = vadd.f32 %v3040, %v3423
      %v3488 = vadd.f32 %v3041, %v3426
      %v3489 = vadd.f32 %v3042, %v3431
      %v3490 = vadd.f32 %v3043, %v3434
      %v3491 = vadd.f32 %v3044, %v3439
      %v3492 = vadd.f32 %v3045, %v3442
      %v3493 = vadd.f32 %v3046, %v3447
      %v3494 = vadd.f32 %v3047, %v3450
      %v3495 = vadd.f32 %v3048, %v3455
      %v3496 = vadd.f32 %v3049, %v3458
      %v3497 = vld [vmem:[%s246 + $0x10] sm:$0x8]
      %s3498 = scalar_lea.vmem %s2, 16
      %v3499 = vld [vmem:[%s3498] sm:$0x3]
      %v3501 = vunpack.c.l.b16 %v3497
      %v3502 = vpack.c.b16 %v2688, %v3501
      %vm3503 = vcmask 1044480
      %v3504 = vrot.slane %v3502, 3
      %v3505 = vrot.slane %v2725, 3
      %v3506 = vsel %vm3503, %v3504, %v3505
      %v3507 = vrot.slane %v2726, 3
      %v3508 = vsel %vm3503, %v3505, %v3507
      %v3509 = vrot.slane %v2727, 3
      %v3510 = vsel %vm3503, %v3507, %v3509
      %v3511 = vrot.slane %v2728, 3
      %v3512 = vsel %vm3503, %v3509, %v3511
      %v3513 = vrot.slane %v2729, 3
      %v3514 = vsel %vm3503, %v3511, %v3513
      %v3515 = vrot.slane %v2730, 3
      %v3516 = vsel %vm3503, %v3513, %v3515
      %v3517 = vrot.slane %v2731, 3
      %v3518 = vsel %vm3503, %v3515, %v3517
      %v3519 = vrot.slane %v2732, 3
      %v3520 = vsel %vm3503, %v3517, %v3519
      %v3521 = vrot.slane %v2733, 3
      %v3522 = vsel %vm3503, %v3519, %v3521
      %v3523 = vrot.slane %v2734, 3
      %v3524 = vsel %vm3503, %v3521, %v3523
      %v3525 = vrot.slane %v2735, 3
      %v3526 = vsel %vm3503, %v3523, %v3525
      %v3527 = vrot.slane %v2736, 3
      %v3528 = vsel %vm3503, %v3525, %v3527
      %v3529 = vrot.slane %v2737, 3
      %v3530 = vsel %vm3503, %v3527, %v3529
      %v3531 = vrot.slane %v2738, 3
      %v3532 = vsel %vm3503, %v3529, %v3531
      %v3533 = vrot.slane %v2739, 3
      %v3534 = vsel %vm3503, %v3531, %v3533
      %v3535 = vrot.slane %v2740, 3
      %v3536 = vsel %vm3503, %v3533, %v3535
      %v3537 = vrot.slane %v2741, 3
      %v3538 = vsel %vm3503, %v3535, %v3537
      %v3539 = vrot.slane %v3055, 3
      %v3540 = vsel %vm3503, %v3537, %v3539
      %v3542 = vsel %vm527, %v3506, 0
      %v3545 = vsel %vm527, %v3508, 0
      %v3548 = vsel %vm527, %v3510, 0
      %v3551 = vsel %vm527, %v3512, 0
      %v3554 = vsel %vm527, %v3514, 0
      %v3557 = vsel %vm527, %v3516, 0
      %v3560 = vsel %vm527, %v3518, 0
      %v3563 = vsel %vm527, %v3520, 0
      %v3566 = vsel %vm527, %v3522, 0
      %v3569 = vsel %vm527, %v3524, 0
      %v3572 = vsel %vm527, %v3526, 0
      %v3575 = vsel %vm527, %v3528, 0
      %v3578 = vsel %vm527, %v3530, 0
      %v3581 = vsel %vm527, %v3532, 0
      %v3584 = vsel %vm527, %v3534, 0
      %v3587 = vsel %vm527, %v3536, 0
      %v3590 = vsel %vm527, %v3538, 0
      %v3593 = vsel %vm527, %v3540, 0
      %v3596 = vsel %vm582, %v3499, 0
      %3598 = vmatprep.subr.bf16.mxu0 0
      %3599 = vmatpush1.bf16.msra.mxu0 %v3596
      %3600 = vmatprep.subr.bf16.mxu0 0
      %3601 = vmatpush1.bf16.msra.mxu0 0
      %3602 = vmatprep.subr.bf16.mxu0 0
      %3603 = vmatpush1.bf16.msra.mxu0 0
      %3604 = vmatprep.subr.bf16.mxu0 0
      %3605 = vmatpush1.bf16.msra.mxu0 0
      %3606 = vmatprep.subr.bf16.mxu0 0
      %3607 = vmatpush1.bf16.msra.mxu0 0
      %3608 = vmatprep.subr.bf16.mxu0 0
      %3609 = vmatpush1.bf16.msra.mxu0 0
      %3610 = vmatprep.subr.bf16.mxu0 0
      %3611 = vmatpush1.bf16.msra.mxu0 0
      %3612 = vmatprep.subr.bf16.mxu0 0
      %3613 = vmatpush1.bf16.msra.mxu0 0
      %3614 = vmatprep.subr.bf16.mxu0 0
      %3615 = vmatpush1.bf16.msra.mxu0 0
      %3616 = vmatprep.subr.bf16.mxu0 0
      %3617 = vmatpush1.bf16.msra.mxu0 0
      %3618 = vmatprep.subr.bf16.mxu0 0
      %3619 = vmatpush1.bf16.msra.mxu0 0
      %3620 = vmatprep.subr.bf16.mxu0 0
      %3621 = vmatpush1.bf16.msra.mxu0 0
      %3622 = vmatprep.subr.bf16.mxu0 0
      %3623 = vmatpush1.bf16.msra.mxu0 0
      %3624 = vmatprep.subr.bf16.mxu0 0
      %3625 = vmatpush1.bf16.msra.mxu0 0
      %3626 = vmatprep.subr.bf16.mxu0 0
      %3627 = vmatpush1.bf16.msra.mxu0 0
      %3628 = vmatprep.subr.bf16.mxu0 0
      %3629 = vmatpush1.bf16.msra.mxu0 0
      %3630 = vmatprep.mubr.bf16.mxu0 0
      %3631 = vmatmul.mubr.bf16.gmra.mrb[0].mxu0 %v3542
      %v3632 = vpop.f32.mrb[0].mxu0
      %v3633 = vadd.f32 0.0, %v3632
      %v3634 = vpop.f32.mrb[0].mxu0
      %v3635 = vpop.f32.mrb[0].mxu0
      %v3636 = vadd.f32 0.0, %v3635
      %v3637 = vpop.f32.mrb[0].mxu0
      %3638 = vmatprep.mubr.bf16.mxu0 0
      %3639 = vmatmul.mubr.bf16.gmra.mrb[0].mxu0 %v3545
      %v3640 = vpop.f32.mrb[0].mxu0
      %v3641 = vadd.f32 0.0, %v3640
      %v3642 = vpop.f32.mrb[0].mxu0
      %v3643 = vpop.f32.mrb[0].mxu0
      %v3644 = vadd.f32 0.0, %v3643
      %v3645 = vpop.f32.mrb[0].mxu0
      %3646 = vmatprep.mubr.bf16.mxu0 0
      %3647 = vmatmul.mubr.bf16.gmra.mrb[0].mxu0 %v3548
      %v3648 = vpop.f32.mrb[0].mxu0
      %v3649 = vadd.f32 0.0, %v3648
      %v3650 = vpop.f32.mrb[0].mxu0
      %v3651 = vpop.f32.mrb[0].mxu0
      %v3652 = vadd.f32 0.0, %v3651
      %v3653 = vpop.f32.mrb[0].mxu0
      %3654 = vmatprep.mubr.bf16.mxu0 0
      %3655 = vmatmul.mubr.bf16.gmra.mrb[0].mxu0 %v3551
      %v3656 = vpop.f32.mrb[0].mxu0
      %v3657 = vadd.f32 0.0, %v3656
      %v3658 = vpop.f32.mrb[0].mxu0
      %v3659 = vpop.f32.mrb[0].mxu0
      %v3660 = vadd.f32 0.0, %v3659
      %v3661 = vpop.f32.mrb[0].mxu0
      %3662 = vmatprep.mubr.bf16.mxu0 0
      %3663 = vmatmul.mubr.bf16.gmra.mrb[0].mxu0 %v3554
      %v3664 = vpop.f32.mrb[0].mxu0
      %v3665 = vadd.f32 0.0, %v3664
      %v3666 = vpop.f32.mrb[0].mxu0
      %v3667 = vpop.f32.mrb[0].mxu0
      %v3668 = vadd.f32 0.0, %v3667
      %v3669 = vpop.f32.mrb[0].mxu0
      %3670 = vmatprep.mubr.bf16.mxu0 0
      %3671 = vmatmul.mubr.bf16.gmra.mrb[0].mxu0 %v3557
      %v3672 = vpop.f32.mrb[0].mxu0
      %v3673 = vadd.f32 0.0, %v3672
      %v3674 = vpop.f32.mrb[0].mxu0
      %v3675 = vpop.f32.mrb[0].mxu0
      %v3676 = vadd.f32 0.0, %v3675
      %v3677 = vpop.f32.mrb[0].mxu0
      %3678 = vmatprep.mubr.bf16.mxu0 0
      %3679 = vmatmul.mubr.bf16.gmra.mrb[0].mxu0 %v3560
      %v3680 = vpop.f32.mrb[0].mxu0
      %v3681 = vadd.f32 0.0, %v3680
      %v3682 = vpop.f32.mrb[0].mxu0
      %v3683 = vpop.f32.mrb[0].mxu0
      %v3684 = vadd.f32 0.0, %v3683
      %v3685 = vpop.f32.mrb[0].mxu0
      %3686 = vmatprep.mubr.bf16.mxu0 0
      %3687 = vmatmul.mubr.bf16.gmra.mrb[0].mxu0 %v3563
      %v3688 = vpop.f32.mrb[0].mxu0
      %v3689 = vadd.f32 0.0, %v3688
      %v3690 = vpop.f32.mrb[0].mxu0
      %v3691 = vpop.f32.mrb[0].mxu0
      %v3692 = vadd.f32 0.0, %v3691
      %v3693 = vpop.f32.mrb[0].mxu0
      %3694 = vmatprep.mubr.bf16.mxu0 0
      %3695 = vmatmul.mubr.bf16.gmra.mrb[0].mxu0 %v3566
      %v3696 = vpop.f32.mrb[0].mxu0
      %v3697 = vadd.f32 0.0, %v3696
      %v3698 = vpop.f32.mrb[0].mxu0
      %v3699 = vpop.f32.mrb[0].mxu0
      %v3700 = vadd.f32 0.0, %v3699
      %v3701 = vpop.f32.mrb[0].mxu0
      %3702 = vmatprep.mubr.bf16.mxu0 0
      %3703 = vmatmul.mubr.bf16.gmra.mrb[0].mxu0 %v3569
      %v3704 = vpop.f32.mrb[0].mxu0
      %v3705 = vadd.f32 0.0, %v3704
      %v3706 = vpop.f32.mrb[0].mxu0
      %v3707 = vpop.f32.mrb[0].mxu0
      %v3708 = vadd.f32 0.0, %v3707
      %v3709 = vpop.f32.mrb[0].mxu0
      %3710 = vmatprep.mubr.bf16.mxu0 0
      %3711 = vmatmul.mubr.bf16.gmra.mrb[0].mxu0 %v3572
      %v3712 = vpop.f32.mrb[0].mxu0
      %v3713 = vadd.f32 0.0, %v3712
      %v3714 = vpop.f32.mrb[0].mxu0
      %v3715 = vpop.f32.mrb[0].mxu0
      %v3716 = vadd.f32 0.0, %v3715
      %v3717 = vpop.f32.mrb[0].mxu0
      %3718 = vmatprep.mubr.bf16.mxu0 0
      %3719 = vmatmul.mubr.bf16.gmra.mrb[0].mxu0 %v3575
      %v3720 = vpop.f32.mrb[0].mxu0
      %v3721 = vadd.f32 0.0, %v3720
      %v3722 = vpop.f32.mrb[0].mxu0
      %v3723 = vpop.f32.mrb[0].mxu0
      %v3724 = vadd.f32 0.0, %v3723
      %v3725 = vpop.f32.mrb[0].mxu0
      %3726 = vmatprep.mubr.bf16.mxu0 0
      %3727 = vmatmul.mubr.bf16.gmra.mrb[0].mxu0 %v3578
      %v3728 = vpop.f32.mrb[0].mxu0
      %v3729 = vadd.f32 0.0, %v3728
      %v3730 = vpop.f32.mrb[0].mxu0
      %v3731 = vpop.f32.mrb[0].mxu0
      %v3732 = vadd.f32 0.0, %v3731
      %v3733 = vpop.f32.mrb[0].mxu0
      %3734 = vmatprep.mubr.bf16.mxu0 0
      %3735 = vmatmul.mubr.bf16.gmra.mrb[0].mxu0 %v3581
      %v3736 = vpop.f32.mrb[0].mxu0
      %v3737 = vadd.f32 0.0, %v3736
      %v3738 = vpop.f32.mrb[0].mxu0
      %v3739 = vpop.f32.mrb[0].mxu0
      %v3740 = vadd.f32 0.0, %v3739
      %v3741 = vpop.f32.mrb[0].mxu0
      %3742 = vmatprep.mubr.bf16.mxu0 0
      %3743 = vmatmul.mubr.bf16.gmra.mrb[0].mxu0 %v3584
      %v3744 = vpop.f32.mrb[0].mxu0
      %v3745 = vadd.f32 0.0, %v3744
      %v3746 = vpop.f32.mrb[0].mxu0
      %v3747 = vpop.f32.mrb[0].mxu0
      %v3748 = vadd.f32 0.0, %v3747
      %v3749 = vpop.f32.mrb[0].mxu0
      %3750 = vmatprep.mubr.bf16.mxu0 0
      %3751 = vmatmul.mubr.bf16.gmra.mrb[0].mxu0 %v3587
      %v3752 = vpop.f32.mrb[0].mxu0
      %v3753 = vadd.f32 0.0, %v3752
      %v3754 = vpop.f32.mrb[0].mxu0
      %v3755 = vpop.f32.mrb[0].mxu0
      %v3756 = vadd.f32 0.0, %v3755
      %v3757 = vpop.f32.mrb[0].mxu0
      %3758 = vmatprep.mubr.bf16.mxu0 0
      %3759 = vmatmul.mubr.bf16.gmra.mrb[0].mxu0 %v3590
      %v3760 = vpop.f32.mrb[0].mxu0
      %v3761 = vadd.f32 0.0, %v3760
      %v3762 = vpop.f32.mrb[0].mxu0
      %v3763 = vpop.f32.mrb[0].mxu0
      %v3764 = vadd.f32 0.0, %v3763
      %v3765 = vpop.f32.mrb[0].mxu0
      %3766 = vmatprep.mubr.bf16.mxu0 0
      %3767 = vmatmul.mubr.bf16.gmra.mrb[0].mxu0 %v3593
      %v3768 = vpop.f32.mrb[0].mxu0
      %v3769 = vadd.f32 0.0, %v3768
      %v3770 = vpop.f32.mrb[0].mxu0
      %v3771 = vpop.f32.mrb[0].mxu0
      %v3772 = vadd.f32 0.0, %v3771
      %v3773 = vpop.f32.mrb[0].mxu0
      %3774 = vdwg.mxu0
      %v3775 = vadd.f32 %v3461, %v3633
      %v3776 = vadd.f32 %v3462, %v3636
      %v3777 = vadd.f32 %v3463, %v3641
      %v3778 = vadd.f32 %v3464, %v3644
      %v3779 = vadd.f32 %v3465, %v3649
      %v3780 = vadd.f32 %v3466, %v3652
      %v3781 = vadd.f32 %v3467, %v3657
      %v3782 = vadd.f32 %v3468, %v3660
      %v3783 = vadd.f32 %v3469, %v3665
      %v3784 = vadd.f32 %v3470, %v3668
      %v3785 = vadd.f32 %v3471, %v3673
      %v3786 = vadd.f32 %v3472, %v3676
      %v3787 = vadd.f32 %v3473, %v3681
      %v3788 = vadd.f32 %v3474, %v3684
      %v3789 = vadd.f32 %v3475, %v3689
      %v3790 = vadd.f32 %v3476, %v3692
      %v3791 = vadd.f32 %v3477, %v3697
      %v3792 = vadd.f32 %v3478, %v3700
      %v3793 = vadd.f32 %v3479, %v3705
      %v3794 = vadd.f32 %v3480, %v3708
      %v3795 = vadd.f32 %v3481, %v3713
      %v3796 = vadd.f32 %v3482, %v3716
      %v3797 = vadd.f32 %v3483, %v3721
      %v3798 = vadd.f32 %v3484, %v3724
      %v3799 = vadd.f32 %v3485, %v3729
      %v3800 = vadd.f32 %v3486, %v3732
      %v3801 = vadd.f32 %v3487, %v3737
      %v3802 = vadd.f32 %v3488, %v3740
      %v3803 = vadd.f32 %v3489, %v3745
      %v3804 = vadd.f32 %v3490, %v3748
      %v3805 = vadd.f32 %v3491, %v3753
      %v3806 = vadd.f32 %v3492, %v3756
      %v3807 = vadd.f32 %v3493, %v3761
      %v3808 = vadd.f32 %v3494, %v3764
      %v3809 = vadd.f32 %v3495, %v3769
      %v3810 = vadd.f32 %v3496, %v3772
      %v3811 = vld [vmem:[%s3] sm:$0x1]
      %v3813 = vlaneseq
      %v3814 = vshrl.u32 %v3813, 7
      %v3815 = vsub.s32 0, %v3814
      %v3816 = vrot.slane %v3811, %v3815
      %v3818 = vadd.f32 %v3775, %v3816
      %v3819 = vadd.f32 %v3776, %v3816
      %v3820 = vadd.f32 %v3777, %v3816
      %v3821 = vadd.f32 %v3778, %v3816
      %v3822 = vadd.f32 %v3779, %v3816
      %v3823 = vadd.f32 %v3780, %v3816
      %v3824 = vadd.f32 %v3781, %v3816
      %v3825 = vadd.f32 %v3782, %v3816
      %v3826 = vadd.f32 %v3783, %v3816
      %v3827 = vadd.f32 %v3784, %v3816
      %v3828 = vadd.f32 %v3785, %v3816
      %v3829 = vadd.f32 %v3786, %v3816
      %v3830 = vadd.f32 %v3787, %v3816
      %v3831 = vadd.f32 %v3788, %v3816
      %v3832 = vadd.f32 %v3789, %v3816
      %v3833 = vadd.f32 %v3790, %v3816
      %v3834 = vadd.f32 %v3791, %v3816
      %v3835 = vadd.f32 %v3792, %v3816
      %v3836 = vadd.f32 %v3793, %v3816
      %v3837 = vadd.f32 %v3794, %v3816
      %v3838 = vadd.f32 %v3795, %v3816
      %v3839 = vadd.f32 %v3796, %v3816
      %v3840 = vadd.f32 %v3797, %v3816
      %v3841 = vadd.f32 %v3798, %v3816
      %v3842 = vadd.f32 %v3799, %v3816
      %v3843 = vadd.f32 %v3800, %v3816
      %v3844 = vadd.f32 %v3801, %v3816
      %v3845 = vadd.f32 %v3802, %v3816
      %v3846 = vadd.f32 %v3803, %v3816
      %v3847 = vadd.f32 %v3804, %v3816
      %v3848 = vadd.f32 %v3805, %v3816
      %v3849 = vadd.f32 %v3806, %v3816
      %v3850 = vadd.f32 %v3807, %v3816
      %v3851 = vadd.f32 %v3808, %v3816
      %v3852 = vadd.f32 %v3809, %v3816
      %v3853 = vadd.f32 %v3810, %v3816
      %v3854 = vmax.f32 %v3818, 0.0
      %v3855 = vmax.f32 %v3819, 0.0
      %v3856 = vmax.f32 %v3820, 0.0
      %v3857 = vmax.f32 %v3821, 0.0
      %v3858 = vmax.f32 %v3822, 0.0
      %v3859 = vmax.f32 %v3823, 0.0
      %v3860 = vmax.f32 %v3824, 0.0
      %v3861 = vmax.f32 %v3825, 0.0
      %v3862 = vmax.f32 %v3826, 0.0
      %v3863 = vmax.f32 %v3827, 0.0
      %v3864 = vmax.f32 %v3828, 0.0
      %v3865 = vmax.f32 %v3829, 0.0
      %v3866 = vmax.f32 %v3830, 0.0
      %v3867 = vmax.f32 %v3831, 0.0
      %v3868 = vmax.f32 %v3832, 0.0
      %v3869 = vmax.f32 %v3833, 0.0
      %v3870 = vmax.f32 %v3834, 0.0
      %v3871 = vmax.f32 %v3835, 0.0
      %v3872 = vmax.f32 %v3836, 0.0
      %v3873 = vmax.f32 %v3837, 0.0
      %v3874 = vmax.f32 %v3838, 0.0
      %v3875 = vmax.f32 %v3839, 0.0
      %v3876 = vmax.f32 %v3840, 0.0
      %v3877 = vmax.f32 %v3841, 0.0
      %v3878 = vmax.f32 %v3842, 0.0
      %v3879 = vmax.f32 %v3843, 0.0
      %v3880 = vmax.f32 %v3844, 0.0
      %v3881 = vmax.f32 %v3845, 0.0
      %v3882 = vmax.f32 %v3846, 0.0
      %v3883 = vmax.f32 %v3847, 0.0
      %v3884 = vmax.f32 %v3848, 0.0
      %v3885 = vmax.f32 %v3849, 0.0
      %v3886 = vmax.f32 %v3850, 0.0
      %v3887 = vmax.f32 %v3851, 0.0
      %v3888 = vmax.f32 %v3852, 0.0
      %v3889 = vmax.f32 %v3853, 0.0
      %v3890 = vld [vmem:[%s1] sm:$0xff]
      %v3891 = vld [vmem:[%s1 + $0x8] sm:$0xff]
      %v3892 = vld [vmem:[%s1 + $0x10] sm:$0xff]
      %v3893 = vld [vmem:[%s1 + $0x18] sm:$0xff]
      %v3894 = vld [vmem:[%s1 + $0x20] sm:$0xff]
      %v3895 = vld [vmem:[%s1 + $0x28] sm:$0xff]
      %v3896 = vld [vmem:[%s1 + $0x30] sm:$0xff]
      %v3897 = vld [vmem:[%s1 + $0x38] sm:$0xff]
      %v3898 = vld [vmem:[%s1 + $0x40] sm:$0xff]
      %v3899 = vld [vmem:[%s1 + $0x48] sm:$0xff]
      %v3900 = vld [vmem:[%s1 + $0x50] sm:$0xff]
      %v3901 = vld [vmem:[%s1 + $0x58] sm:$0xff]
      %v3902 = vld [vmem:[%s1 + $0x60] sm:$0xff]
      %v3903 = vld [vmem:[%s1 + $0x68] sm:$0xff]
      %v3904 = vld [vmem:[%s1 + $0x70] sm:$0xff]
      %v3905 = vld [vmem:[%s1 + $0x78] sm:$0xff]
      %v3906 = vld [vmem:[%s1 + $0x80] sm:$0xff]
      %v3907 = vld [vmem:[%s1 + $0x88] sm:$0xff]
      %v3908 = vld [vmem:[%s1 + $0x90] sm:$0xff]
      %v3909 = vld [vmem:[%s1 + $0x98] sm:$0xff]
      %v3910 = vld [vmem:[%s1 + $0xa0] sm:$0xff]
      %v3911 = vld [vmem:[%s1 + $0xa8] sm:$0xff]
      %v3912 = vld [vmem:[%s1 + $0xb0] sm:$0xff]
      %v3913 = vld [vmem:[%s1 + $0xb8] sm:$0xff]
      %v3914 = vld [vmem:[%s1 + $0xc0] sm:$0xff]
      %v3915 = vld [vmem:[%s1 + $0xc8] sm:$0xff]
      %v3916 = vld [vmem:[%s1 + $0xd0] sm:$0xff]
      %v3917 = vld [vmem:[%s1 + $0xd8] sm:$0xff]
      %v3918 = vld [vmem:[%s1 + $0xe0] sm:$0xff]
      %v3919 = vld [vmem:[%s1 + $0xe8] sm:$0xff]
      %v3920 = vld [vmem:[%s1 + $0xf0] sm:$0xff]
      %v3921 = vld [vmem:[%s1 + $0xf8] sm:$0xff]
      %v3922 = vld [vmem:[%s1 + $0x100] sm:$0xff]
      %v3923 = vld [vmem:[%s1 + $0x108] sm:$0xff]
      %v3924 = vld [vmem:[%s1 + $0x110] sm:$0xff]
      %v3925 = vld [vmem:[%s1 + $0x118] sm:$0x3f]
      %3927 = vset.pattern.permute.xlu0 0
      %3928 = vperm.xlu0 %3927, %v3890
      %v3929 = vpop.permute.xlu0 %3928
      %3932 = vset.pattern.permute.xlu0 0
      %3933 = vperm.xlu0 %3932, %v3891
      %v3934 = vpop.permute.xlu0 %3933
      %3937 = vset.pattern.permute.xlu0 0
      %3938 = vperm.xlu0 %3937, %v3892
      %v3939 = vpop.permute.xlu0 %3938
      %3942 = vset.pattern.permute.xlu0 0
      %3943 = vperm.xlu0 %3942, %v3893
      %v3944 = vpop.permute.xlu0 %3943
      %3947 = vset.pattern.permute.xlu0 0
      %3948 = vperm.xlu0 %3947, %v3894
      %v3949 = vpop.permute.xlu0 %3948
      %3952 = vset.pattern.permute.xlu0 0
      %3953 = vperm.xlu0 %3952, %v3895
      %v3954 = vpop.permute.xlu0 %3953
      %3957 = vset.pattern.permute.xlu0 0
      %3958 = vperm.xlu0 %3957, %v3896
      %v3959 = vpop.permute.xlu0 %3958
      %3962 = vset.pattern.permute.xlu0 0
      %3963 = vperm.xlu0 %3962, %v3897
      %v3964 = vpop.permute.xlu0 %3963
      %3967 = vset.pattern.permute.xlu0 0
      %3968 = vperm.xlu0 %3967, %v3898
      %v3969 = vpop.permute.xlu0 %3968
      %3972 = vset.pattern.permute.xlu0 0
      %3973 = vperm.xlu0 %3972, %v3899
      %v3974 = vpop.permute.xlu0 %3973
      %3977 = vset.pattern.permute.xlu0 0
      %3978 = vperm.xlu0 %3977, %v3900
      %v3979 = vpop.permute.xlu0 %3978
      %3982 = vset.pattern.permute.xlu0 0
      %3983 = vperm.xlu0 %3982, %v3901
      %v3984 = vpop.permute.xlu0 %3983
      %3987 = vset.pattern.permute.xlu0 0
      %3988 = vperm.xlu0 %3987, %v3902
      %v3989 = vpop.permute.xlu0 %3988
      %3992 = vset.pattern.permute.xlu0 0
      %3993 = vperm.xlu0 %3992, %v3903
      %v3994 = vpop.permute.xlu0 %3993
      %3997 = vset.pattern.permute.xlu0 0
      %3998 = vperm.xlu0 %3997, %v3904
      %v3999 = vpop.permute.xlu0 %3998
      %4002 = vset.pattern.permute.xlu0 0
      %4003 = vperm.xlu0 %4002, %v3905
      %v4004 = vpop.permute.xlu0 %4003
      %4007 = vset.pattern.permute.xlu0 0
      %4008 = vperm.xlu0 %4007, %v3906
      %v4009 = vpop.permute.xlu0 %4008
      %4012 = vset.pattern.permute.xlu0 0
      %4013 = vperm.xlu0 %4012, %v3907
      %v4014 = vpop.permute.xlu0 %4013
      %4017 = vset.pattern.permute.xlu0 0
      %4018 = vperm.xlu0 %4017, %v3908
      %v4019 = vpop.permute.xlu0 %4018
      %4022 = vset.pattern.permute.xlu0 0
      %4023 = vperm.xlu0 %4022, %v3909
      %v4024 = vpop.permute.xlu0 %4023
      %4027 = vset.pattern.permute.xlu0 0
      %4028 = vperm.xlu0 %4027, %v3910
      %v4029 = vpop.permute.xlu0 %4028
      %4032 = vset.pattern.permute.xlu0 0
      %4033 = vperm.xlu0 %4032, %v3911
      %v4034 = vpop.permute.xlu0 %4033
      %4037 = vset.pattern.permute.xlu0 0
      %4038 = vperm.xlu0 %4037, %v3912
      %v4039 = vpop.permute.xlu0 %4038
      %4042 = vset.pattern.permute.xlu0 0
      %4043 = vperm.xlu0 %4042, %v3913
      %v4044 = vpop.permute.xlu0 %4043
      %4047 = vset.pattern.permute.xlu0 0
      %4048 = vperm.xlu0 %4047, %v3914
      %v4049 = vpop.permute.xlu0 %4048
      %4052 = vset.pattern.permute.xlu0 0
      %4053 = vperm.xlu0 %4052, %v3915
      %v4054 = vpop.permute.xlu0 %4053
      %4057 = vset.pattern.permute.xlu0 0
      %4058 = vperm.xlu0 %4057, %v3916
      %v4059 = vpop.permute.xlu0 %4058
      %4062 = vset.pattern.permute.xlu0 0
      %4063 = vperm.xlu0 %4062, %v3917
      %v4064 = vpop.permute.xlu0 %4063
      %4067 = vset.pattern.permute.xlu0 0
      %4068 = vperm.xlu0 %4067, %v3918
      %v4069 = vpop.permute.xlu0 %4068
      %4072 = vset.pattern.permute.xlu0 0
      %4073 = vperm.xlu0 %4072, %v3919
      %v4074 = vpop.permute.xlu0 %4073
      %4077 = vset.pattern.permute.xlu0 0
      %4078 = vperm.xlu0 %4077, %v3920
      %v4079 = vpop.permute.xlu0 %4078
      %4082 = vset.pattern.permute.xlu0 0
      %4083 = vperm.xlu0 %4082, %v3921
      %v4084 = vpop.permute.xlu0 %4083
      %4087 = vset.pattern.permute.xlu0 0
      %4088 = vperm.xlu0 %4087, %v3922
      %v4089 = vpop.permute.xlu0 %4088
      %4092 = vset.pattern.permute.xlu0 0
      %4093 = vperm.xlu0 %4092, %v3923
      %v4094 = vpop.permute.xlu0 %4093
      %4097 = vset.pattern.permute.xlu0 0
      %4098 = vperm.xlu0 %4097, %v3924
      %v4099 = vpop.permute.xlu0 %4098
      %4102 = vset.pattern.permute.xlu0 0
      %4103 = vperm.xlu0 %4102, %v3925
      %v4104 = vpop.permute.xlu0 %4103
      %v4106 = vmul.f32 %v3854, %v3929
      %v4107 = vmul.f32 %v3855, %v3934
      %v4108 = vmul.f32 %v3856, %v3939
      %v4109 = vmul.f32 %v3857, %v3944
      %v4110 = vmul.f32 %v3858, %v3949
      %v4111 = vmul.f32 %v3859, %v3954
      %v4112 = vmul.f32 %v3860, %v3959
      %v4113 = vmul.f32 %v3861, %v3964
      %v4114 = vmul.f32 %v3862, %v3969
      %v4115 = vmul.f32 %v3863, %v3974
      %v4116 = vmul.f32 %v3864, %v3979
      %v4117 = vmul.f32 %v3865, %v3984
      %v4118 = vmul.f32 %v3866, %v3989
      %v4119 = vmul.f32 %v3867, %v3994
      %v4120 = vmul.f32 %v3868, %v3999
      %v4121 = vmul.f32 %v3869, %v4004
      %v4122 = vmul.f32 %v3870, %v4009
      %v4123 = vmul.f32 %v3871, %v4014
      %v4124 = vmul.f32 %v3872, %v4019
      %v4125 = vmul.f32 %v3873, %v4024
      %v4126 = vmul.f32 %v3874, %v4029
      %v4127 = vmul.f32 %v3875, %v4034
      %v4128 = vmul.f32 %v3876, %v4039
      %v4129 = vmul.f32 %v3877, %v4044
      %v4130 = vmul.f32 %v3878, %v4049
      %v4131 = vmul.f32 %v3879, %v4054
      %v4132 = vmul.f32 %v3880, %v4059
      %v4133 = vmul.f32 %v3881, %v4064
      %v4134 = vmul.f32 %v3882, %v4069
      %v4135 = vmul.f32 %v3883, %v4074
      %v4136 = vmul.f32 %v3884, %v4079
      %v4137 = vmul.f32 %v3885, %v4084
      %v4138 = vmul.f32 %v3886, %v4089
      %v4139 = vmul.f32 %v3887, %v4094
      %v4140 = vmul.f32 %v3888, %v4099
      %v4141 = vmul.f32 %v3889, %v4104
      %vm4142 = vcmask 27648
      %4143 = vst.msk [vmem:[#allocation2] sm:$0xf] %vm4142, 0
      %4144 = vst.msk [vmem:[#allocation2 + $0x4] sm:$0xf] %vm4142, 0
      %4145 = vst.msk [vmem:[#allocation2 + $0x8] sm:$0xf] %vm4142, 0
      %4146 = vst.msk [vmem:[#allocation2 + $0xc] sm:$0xf] %vm4142, 0
      %4147 = vst.msk [vmem:[#allocation2 + $0x10] sm:$0xf] %vm4142, 0
      %4148 = vst.msk [vmem:[#allocation2 + $0x14] sm:$0xf] %vm4142, 0
      %4149 = vst.msk [vmem:[#allocation2 + $0x18] sm:$0xf] %vm4142, 0
      %4150 = vst.msk [vmem:[#allocation2 + $0x1c] sm:$0xf] %vm4142, 0
      %4151 = vst.msk [vmem:[#allocation2 + $0x20] sm:$0xf] %vm4142, 0
      %4152 = vst.msk [vmem:[#allocation2 + $0x24] sm:$0xf] %vm4142, 0
      %4153 = vst.msk [vmem:[#allocation2 + $0x28] sm:$0xf] %vm4142, 0
      %4154 = vst.msk [vmem:[#allocation2 + $0x2c] sm:$0xf] %vm4142, 0
      %4155 = vst.msk [vmem:[#allocation2 + $0x30] sm:$0xf] %vm4142, 0
      %4156 = vst.msk [vmem:[#allocation2 + $0x34] sm:$0xf] %vm4142, 0
      %4157 = vst.msk [vmem:[#allocation2 + $0x38] sm:$0xf] %vm4142, 0
      %4158 = vst.msk [vmem:[#allocation2 + $0x3c] sm:$0xf] %vm4142, 0
      %4159 = vst.msk [vmem:[#allocation2 + $0x40] sm:$0xf] %vm4142, 0
      %4160 = vst.msk [vmem:[#allocation2 + $0x44] sm:$0xf] %vm4142, 0
      %4161 = vst.msk [vmem:[#allocation2 + $0x48] sm:$0xf] %vm4142, 0
      %4162 = vst.msk [vmem:[#allocation2 + $0x4c] sm:$0xf] %vm4142, 0
      %4163 = vst.msk [vmem:[#allocation2 + $0x50] sm:$0xf] %vm4142, 0
      %4164 = vst.msk [vmem:[#allocation2 + $0x54] sm:$0xf] %vm4142, 0
      %4165 = vst.msk [vmem:[#allocation2 + $0x58] sm:$0xf] %vm4142, 0
      %4166 = vst.msk [vmem:[#allocation2 + $0x5c] sm:$0xf] %vm4142, 0
      %4167 = vst.msk [vmem:[#allocation2 + $0x60] sm:$0xf] %vm4142, 0
      %4168 = vst.msk [vmem:[#allocation2 + $0x64] sm:$0xf] %vm4142, 0
      %4169 = vst.msk [vmem:[#allocation2 + $0x68] sm:$0xf] %vm4142, 0
      %4170 = vst.msk [vmem:[#allocation2 + $0x6c] sm:$0xf] %vm4142, 0
      %4171 = vst.msk [vmem:[#allocation2 + $0x70] sm:$0xf] %vm4142, 0
      %4172 = vst.msk [vmem:[#allocation2 + $0x74] sm:$0xf] %vm4142, 0
      %4173 = vst.msk [vmem:[#allocation2 + $0x78] sm:$0xf] %vm4142, 0
      %4174 = vst.msk [vmem:[#allocation2 + $0x7c] sm:$0xf] %vm4142, 0
      %4175 = vst.msk [vmem:[#allocation2 + $0x80] sm:$0xf] %vm4142, 0
      %4176 = vst.msk [vmem:[#allocation2 + $0x84] sm:$0xf] %vm4142, 0
      %4177 = vst.msk [vmem:[#allocation2 + $0x88] sm:$0xf] %vm4142, 0
      %4178 = vst.msk [vmem:[#allocation2 + $0x8c] sm:$0xf] %vm4142, 0
      %4179 = vst.msk [vmem:[#allocation2 + $0x90] sm:$0xf] %vm4142, 0
      %4180 = vst.msk [vmem:[#allocation2 + $0x94] sm:$0xf] %vm4142, 0
      %4181 = vst.msk [vmem:[#allocation2 + $0x98] sm:$0xf] %vm4142, 0
      %4182 = vst.msk [vmem:[#allocation2 + $0x9c] sm:$0xf] %vm4142, 0
      %vm4183 = vcmask 25600
      %4184 = vst.msk [vmem:[#allocation2 + $0xa0] sm:$0x3] %vm4183, 0
      %v4185 = vpack.c.bf16 %v4107, %v4106
      %v4186 = vpack.c.bf16 %v4109, %v4108
      %v4187 = vpack.c.bf16 %v4111, %v4110
      %v4188 = vpack.c.bf16 %v4113, %v4112
      %v4189 = vpack.c.bf16 %v4115, %v4114
      %v4190 = vpack.c.bf16 %v4117, %v4116
      %v4191 = vpack.c.bf16 %v4119, %v4118
      %v4192 = vpack.c.bf16 %v4121, %v4120
      %v4193 = vpack.c.bf16 %v4123, %v4122
      %v4194 = vpack.c.bf16 %v4125, %v4124
      %v4195 = vpack.c.bf16 %v4127, %v4126
      %v4196 = vpack.c.bf16 %v4129, %v4128
      %v4197 = vpack.c.bf16 %v4131, %v4130
      %v4198 = vpack.c.bf16 %v4133, %v4132
      %v4199 = vpack.c.bf16 %v4135, %v4134
      %v4200 = vpack.c.bf16 %v4137, %v4136
      %v4201 = vpack.c.bf16 %v4139, %v4138
      %v4202 = vpack.c.bf16 %v4141, %v4140
      %v4221 = vunpack.c.l.b16 %v4185
      %v4222 = vunpack.c.h.b16 %v4185
      %v4223 = vunpack.c.l.b16 %v4186
      %v4224 = vunpack.c.h.b16 %v4186
      %v4225 = vunpack.c.l.b16 %v4187
      %v4226 = vunpack.c.h.b16 %v4187
      %v4227 = vunpack.c.l.b16 %v4188
      %v4228 = vunpack.c.h.b16 %v4188
      %v4229 = vunpack.c.l.b16 %v4189
      %v4230 = vunpack.c.h.b16 %v4189
      %v4231 = vunpack.c.l.b16 %v4190
      %v4232 = vunpack.c.h.b16 %v4190
      %v4233 = vunpack.c.l.b16 %v4191
      %v4234 = vunpack.c.h.b16 %v4191
      %v4235 = vunpack.c.l.b16 %v4192
      %v4236 = vunpack.c.h.b16 %v4192
      %v4237 = vunpack.c.l.b16 %v4193
      %v4238 = vunpack.c.h.b16 %v4193
      %v4239 = vunpack.c.l.b16 %v4194
      %v4240 = vunpack.c.h.b16 %v4194
      %v4241 = vunpack.c.l.b16 %v4195
      %v4242 = vunpack.c.h.b16 %v4195
      %v4243 = vunpack.c.l.b16 %v4196
      %v4244 = vunpack.c.h.b16 %v4196
      %v4245 = vunpack.c.l.b16 %v4197
      %v4246 = vunpack.c.h.b16 %v4197
      %v4247 = vunpack.c.l.b16 %v4198
      %v4248 = vunpack.c.h.b16 %v4198
      %v4249 = vunpack.c.l.b16 %v4199
      %v4250 = vunpack.c.h.b16 %v4199
      %v4251 = vunpack.c.l.b16 %v4200
      %v4252 = vunpack.c.h.b16 %v4200
      %v4253 = vunpack.c.l.b16 %v4201
      %v4254 = vunpack.c.h.b16 %v4201
      %v4255 = vunpack.c.l.b16 %v4202
      %v4256 = vunpack.c.h.b16 %v4202
      %v4257 = vpack.c.b16 %v4221, %v4221
      %v4258 = vpack.c.b16 %v4222, %v4222
      %v4259 = vpack.c.b16 %v4223, %v4223
      %v4260 = vpack.c.b16 %v4224, %v4224
      %v4261 = vpack.c.b16 %v4225, %v4225
      %v4262 = vpack.c.b16 %v4226, %v4226
      %v4263 = vpack.c.b16 %v4227, %v4227
      %v4264 = vpack.c.b16 %v4228, %v4228
      %v4265 = vpack.c.b16 %v4229, %v4229
      %v4266 = vpack.c.b16 %v4230, %v4230
      %v4267 = vpack.c.b16 %v4231, %v4231
      %v4268 = vpack.c.b16 %v4232, %v4232
      %v4269 = vpack.c.b16 %v4233, %v4233
      %v4270 = vpack.c.b16 %v4234, %v4234
      %v4271 = vpack.c.b16 %v4235, %v4235
      %v4272 = vpack.c.b16 %v4236, %v4236
      %v4273 = vpack.c.b16 %v4237, %v4237
      %v4274 = vpack.c.b16 %v4238, %v4238
      %v4275 = vpack.c.b16 %v4239, %v4239
      %v4276 = vpack.c.b16 %v4240, %v4240
      %v4277 = vpack.c.b16 %v4241, %v4241
      %v4278 = vpack.c.b16 %v4242, %v4242
      %v4279 = vpack.c.b16 %v4243, %v4243
      %v4280 = vpack.c.b16 %v4244, %v4244
      %v4281 = vpack.c.b16 %v4245, %v4245
      %v4282 = vpack.c.b16 %v4246, %v4246
      %v4283 = vpack.c.b16 %v4247, %v4247
      %v4284 = vpack.c.b16 %v4248, %v4248
      %v4285 = vpack.c.b16 %v4249, %v4249
      %v4286 = vpack.c.b16 %v4250, %v4250
      %v4287 = vpack.c.b16 %v4251, %v4251
      %v4288 = vpack.c.b16 %v4252, %v4252
      %v4289 = vpack.c.b16 %v4253, %v4253
      %v4290 = vpack.c.b16 %v4254, %v4254
      %v4291 = vpack.c.b16 %v4255, %v4255
      %v4292 = vpack.c.b16 %v4256, %v4256
      %vm4293 = vsmask.f32 1280
      %vm4294 = vsmask.f32 5392
      %vm4295 = vmor %vm4293, %vm4294
      %v4297 = vshrl.u32 %v4257, 16
      %v4299 = vrot.slane %v4297, 6
      %v4300 = vshll.u32 %v4257, 16
      %v4302 = vrot.slane %v4300, 7
      %v4303 = vor.u32 %v4299, %v4302
      %v4304 = vrot.slane %v4303, 4
      %v4306 = vshrl.u32 %v4258, 16
      %v4308 = vrot.slane %v4306, 6
      %v4309 = vshll.u32 %v4258, 16
      %v4311 = vrot.slane %v4309, 7
      %v4312 = vor.u32 %v4308, %v4311
      %v4313 = vsel %vm4295, %v4304, %v4312
      %v4314 = vrot.slane %v4312, 4
      %v4316 = vshrl.u32 %v4259, 16
      %v4318 = vrot.slane %v4316, 6
      %v4319 = vshll.u32 %v4259, 16
      %v4321 = vrot.slane %v4319, 7
      %v4322 = vor.u32 %v4318, %v4321
      %v4323 = vsel %vm4295, %v4314, %v4322
      %v4324 = vrot.slane %v4322, 4
      %v4326 = vshrl.u32 %v4260, 16
      %v4328 = vrot.slane %v4326, 6
      %v4329 = vshll.u32 %v4260, 16
      %v4331 = vrot.slane %v4329, 7
      %v4332 = vor.u32 %v4328, %v4331
      %v4333 = vsel %vm4295, %v4324, %v4332
      %v4334 = vrot.slane %v4332, 4
      %v4336 = vshrl.u32 %v4261, 16
      %v4338 = vrot.slane %v4336, 6
      %v4339 = vshll.u32 %v4261, 16
      %v4341 = vrot.slane %v4339, 7
      %v4342 = vor.u32 %v4338, %v4341
      %v4343 = vsel %vm4295, %v4334, %v4342
      %v4344 = vrot.slane %v4342, 4
      %v4346 = vshrl.u32 %v4262, 16
      %v4348 = vrot.slane %v4346, 6
      %v4349 = vshll.u32 %v4262, 16
      %v4351 = vrot.slane %v4349, 7
      %v4352 = vor.u32 %v4348, %v4351
      %v4353 = vsel %vm4295, %v4344, %v4352
      %v4354 = vrot.slane %v4352, 4
      %v4356 = vshrl.u32 %v4263, 16
      %v4358 = vrot.slane %v4356, 6
      %v4359 = vshll.u32 %v4263, 16
      %v4361 = vrot.slane %v4359, 7
      %v4362 = vor.u32 %v4358, %v4361
      %v4363 = vsel %vm4295, %v4354, %v4362
      %v4364 = vrot.slane %v4362, 4
      %v4366 = vshrl.u32 %v4264, 16
      %v4368 = vrot.slane %v4366, 6
      %v4369 = vshll.u32 %v4264, 16
      %v4371 = vrot.slane %v4369, 7
      %v4372 = vor.u32 %v4368, %v4371
      %v4373 = vsel %vm4295, %v4364, %v4372
      %v4374 = vrot.slane %v4372, 4
      %v4376 = vshrl.u32 %v4265, 16
      %v4378 = vrot.slane %v4376, 6
      %v4379 = vshll.u32 %v4265, 16
      %v4381 = vrot.slane %v4379, 7
      %v4382 = vor.u32 %v4378, %v4381
      %v4383 = vsel %vm4295, %v4374, %v4382
      %v4384 = vrot.slane %v4382, 4
      %v4386 = vshrl.u32 %v4266, 16
      %v4388 = vrot.slane %v4386, 6
      %v4389 = vshll.u32 %v4266, 16
      %v4391 = vrot.slane %v4389, 7
      %v4392 = vor.u32 %v4388, %v4391
      %v4393 = vsel %vm4295, %v4384, %v4392
      %v4394 = vrot.slane %v4392, 4
      %v4396 = vshrl.u32 %v4267, 16
      %v4398 = vrot.slane %v4396, 6
      %v4399 = vshll.u32 %v4267, 16
      %v4401 = vrot.slane %v4399, 7
      %v4402 = vor.u32 %v4398, %v4401
      %v4403 = vsel %vm4295, %v4394, %v4402
      %v4404 = vrot.slane %v4402, 4
      %v4406 = vshrl.u32 %v4268, 16
      %v4408 = vrot.slane %v4406, 6
      %v4409 = vshll.u32 %v4268, 16
      %v4411 = vrot.slane %v4409, 7
      %v4412 = vor.u32 %v4408, %v4411
      %v4413 = vsel %vm4295, %v4404, %v4412
      %v4414 = vrot.slane %v4412, 4
      %v4416 = vshrl.u32 %v4269, 16
      %v4418 = vrot.slane %v4416, 6
      %v4419 = vshll.u32 %v4269, 16
      %v4421 = vrot.slane %v4419, 7
      %v4422 = vor.u32 %v4418, %v4421
      %v4423 = vsel %vm4295, %v4414, %v4422
      %v4424 = vrot.slane %v4422, 4
      %v4426 = vshrl.u32 %v4270, 16
      %v4428 = vrot.slane %v4426, 6
      %v4429 = vshll.u32 %v4270, 16
      %v4431 = vrot.slane %v4429, 7
      %v4432 = vor.u32 %v4428, %v4431
      %v4433 = vsel %vm4295, %v4424, %v4432
      %v4434 = vrot.slane %v4432, 4
      %v4436 = vshrl.u32 %v4271, 16
      %v4438 = vrot.slane %v4436, 6
      %v4439 = vshll.u32 %v4271, 16
      %v4441 = vrot.slane %v4439, 7
      %v4442 = vor.u32 %v4438, %v4441
      %v4443 = vsel %vm4295, %v4434, %v4442
      %v4444 = vrot.slane %v4442, 4
      %v4446 = vshrl.u32 %v4272, 16
      %v4448 = vrot.slane %v4446, 6
      %v4449 = vshll.u32 %v4272, 16
      %v4451 = vrot.slane %v4449, 7
      %v4452 = vor.u32 %v4448, %v4451
      %v4453 = vsel %vm4295, %v4444, %v4452
      %v4454 = vrot.slane %v4452, 4
      %v4456 = vshrl.u32 %v4273, 16
      %v4458 = vrot.slane %v4456, 6
      %v4459 = vshll.u32 %v4273, 16
      %v4461 = vrot.slane %v4459, 7
      %v4462 = vor.u32 %v4458, %v4461
      %v4463 = vsel %vm4295, %v4454, %v4462
      %v4464 = vrot.slane %v4462, 4
      %v4466 = vshrl.u32 %v4274, 16
      %v4468 = vrot.slane %v4466, 6
      %v4469 = vshll.u32 %v4274, 16
      %v4471 = vrot.slane %v4469, 7
      %v4472 = vor.u32 %v4468, %v4471
      %v4473 = vsel %vm4295, %v4464, %v4472
      %v4474 = vrot.slane %v4472, 4
      %v4476 = vshrl.u32 %v4275, 16
      %v4478 = vrot.slane %v4476, 6
      %v4479 = vshll.u32 %v4275, 16
      %v4481 = vrot.slane %v4479, 7
      %v4482 = vor.u32 %v4478, %v4481
      %v4483 = vsel %vm4295, %v4474, %v4482
      %v4484 = vrot.slane %v4482, 4
      %v4486 = vshrl.u32 %v4276, 16
      %v4488 = vrot.slane %v4486, 6
      %v4489 = vshll.u32 %v4276, 16
      %v4491 = vrot.slane %v4489, 7
      %v4492 = vor.u32 %v4488, %v4491
      %v4493 = vsel %vm4295, %v4484, %v4492
      %v4494 = vrot.slane %v4492, 4
      %v4496 = vshrl.u32 %v4277, 16
      %v4498 = vrot.slane %v4496, 6
      %v4499 = vshll.u32 %v4277, 16
      %v4501 = vrot.slane %v4499, 7
      %v4502 = vor.u32 %v4498, %v4501
      %v4503 = vsel %vm4295, %v4494, %v4502
      %v4504 = vrot.slane %v4502, 4
      %v4506 = vshrl.u32 %v4278, 16
      %v4508 = vrot.slane %v4506, 6
      %v4509 = vshll.u32 %v4278, 16
      %v4511 = vrot.slane %v4509, 7
      %v4512 = vor.u32 %v4508, %v4511
      %v4513 = vsel %vm4295, %v4504, %v4512
      %v4514 = vrot.slane %v4512, 4
      %v4516 = vshrl.u32 %v4279, 16
      %v4518 = vrot.slane %v4516, 6
      %v4519 = vshll.u32 %v4279, 16
      %v4521 = vrot.slane %v4519, 7
      %v4522 = vor.u32 %v4518, %v4521
      %v4523 = vsel %vm4295, %v4514, %v4522
      %v4524 = vrot.slane %v4522, 4
      %v4526 = vshrl.u32 %v4280, 16
      %v4528 = vrot.slane %v4526, 6
      %v4529 = vshll.u32 %v4280, 16
      %v4531 = vrot.slane %v4529, 7
      %v4532 = vor.u32 %v4528, %v4531
      %v4533 = vsel %vm4295, %v4524, %v4532
      %v4534 = vrot.slane %v4532, 4
      %v4536 = vshrl.u32 %v4281, 16
      %v4538 = vrot.slane %v4536, 6
      %v4539 = vshll.u32 %v4281, 16
      %v4541 = vrot.slane %v4539, 7
      %v4542 = vor.u32 %v4538, %v4541
      %v4543 = vsel %vm4295, %v4534, %v4542
      %v4544 = vrot.slane %v4542, 4
      %v4546 = vshrl.u32 %v4282, 16
      %v4548 = vrot.slane %v4546, 6
      %v4549 = vshll.u32 %v4282, 16
      %v4551 = vrot.slane %v4549, 7
      %v4552 = vor.u32 %v4548, %v4551
      %v4553 = vsel %vm4295, %v4544, %v4552
      %v4554 = vrot.slane %v4552, 4
      %v4556 = vshrl.u32 %v4283, 16
      %v4558 = vrot.slane %v4556, 6
      %v4559 = vshll.u32 %v4283, 16
      %v4561 = vrot.slane %v4559, 7
      %v4562 = vor.u32 %v4558, %v4561
      %v4563 = vsel %vm4295, %v4554, %v4562
      %v4564 = vrot.slane %v4562, 4
      %v4566 = vshrl.u32 %v4284, 16
      %v4568 = vrot.slane %v4566, 6
      %v4569 = vshll.u32 %v4284, 16
      %v4571 = vrot.slane %v4569, 7
      %v4572 = vor.u32 %v4568, %v4571
      %v4573 = vsel %vm4295, %v4564, %v4572
      %v4574 = vrot.slane %v4572, 4
      %v4576 = vshrl.u32 %v4285, 16
      %v4578 = vrot.slane %v4576, 6
      %v4579 = vshll.u32 %v4285, 16
      %v4581 = vrot.slane %v4579, 7
      %v4582 = vor.u32 %v4578, %v4581
      %v4583 = vsel %vm4295, %v4574, %v4582
      %v4584 = vrot.slane %v4582, 4
      %v4586 = vshrl.u32 %v4286, 16
      %v4588 = vrot.slane %v4586, 6
      %v4589 = vshll.u32 %v4286, 16
      %v4591 = vrot.slane %v4589, 7
      %v4592 = vor.u32 %v4588, %v4591
      %v4593 = vsel %vm4295, %v4584, %v4592
      %v4594 = vrot.slane %v4592, 4
      %v4596 = vshrl.u32 %v4287, 16
      %v4598 = vrot.slane %v4596, 6
      %v4599 = vshll.u32 %v4287, 16
      %v4601 = vrot.slane %v4599, 7
      %v4602 = vor.u32 %v4598, %v4601
      %v4603 = vsel %vm4295, %v4594, %v4602
      %v4604 = vrot.slane %v4602, 4
      %v4606 = vshrl.u32 %v4288, 16
      %v4608 = vrot.slane %v4606, 6
      %v4609 = vshll.u32 %v4288, 16
      %v4611 = vrot.slane %v4609, 7
      %v4612 = vor.u32 %v4608, %v4611
      %v4613 = vsel %vm4295, %v4604, %v4612
      %v4614 = vrot.slane %v4612, 4
      %v4616 = vshrl.u32 %v4289, 16
      %v4618 = vrot.slane %v4616, 6
      %v4619 = vshll.u32 %v4289, 16
      %v4621 = vrot.slane %v4619, 7
      %v4622 = vor.u32 %v4618, %v4621
      %v4623 = vsel %vm4295, %v4614, %v4622
      %v4624 = vrot.slane %v4622, 4
      %v4626 = vshrl.u32 %v4290, 16
      %v4628 = vrot.slane %v4626, 6
      %v4629 = vshll.u32 %v4290, 16
      %v4631 = vrot.slane %v4629, 7
      %v4632 = vor.u32 %v4628, %v4631
      %v4633 = vsel %vm4295, %v4624, %v4632
      %v4634 = vrot.slane %v4632, 4
      %v4636 = vshrl.u32 %v4291, 16
      %v4638 = vrot.slane %v4636, 6
      %v4639 = vshll.u32 %v4291, 16
      %v4641 = vrot.slane %v4639, 7
      %v4642 = vor.u32 %v4638, %v4641
      %v4643 = vsel %vm4295, %v4634, %v4642
      %v4644 = vrot.slane %v4642, 4
      %v4646 = vshrl.u32 %v4292, 16
      %v4648 = vrot.slane %v4646, 6
      %v4649 = vshll.u32 %v4292, 16
      %v4651 = vrot.slane %v4649, 7
      %v4652 = vor.u32 %v4648, %v4651
      %v4653 = vsel %vm4295, %v4644, %v4652
      %v4654 = vrot.slane %v4648, 4
      %vm4692 = vcmask 27649
      %vm4693 = vsmask.f32 7942
      %vm4694 = vmand %vm4692, %vm4693
      %v4695 = vld [vmem:[#allocation2 + $0x8] sm:$0xe]
      %v4696 = vsel %vm4694, %v4303, %v4695
      %4697 = vst [vmem:[#allocation2 + $0x8] sm:$0xe] %v4696
      %4698 = vst.msk [vmem:[#allocation2 + $0xc] sm:$0xf] %vm4142, %v4313
      %4699 = vst.msk [vmem:[#allocation2 + $0x10] sm:$0xf] %vm4142, %v4323
      %4700 = vst.msk [vmem:[#allocation2 + $0x14] sm:$0xf] %vm4142, %v4333
      %4701 = vst.msk [vmem:[#allocation2 + $0x18] sm:$0xf] %vm4142, %v4343
      %4702 = vst.msk [vmem:[#allocation2 + $0x1c] sm:$0xf] %vm4142, %v4353
      %4703 = vst.msk [vmem:[#allocation2 + $0x20] sm:$0xf] %vm4142, %v4363
      %4704 = vst.msk [vmem:[#allocation2 + $0x24] sm:$0xf] %vm4142, %v4373
      %4705 = vst.msk [vmem:[#allocation2 + $0x28] sm:$0xf] %vm4142, %v4383
      %4706 = vst.msk [vmem:[#allocation2 + $0x2c] sm:$0xf] %vm4142, %v4393
      %4707 = vst.msk [vmem:[#allocation2 + $0x30] sm:$0xf] %vm4142, %v4403
      %4708 = vst.msk [vmem:[#allocation2 + $0x34] sm:$0xf] %vm4142, %v4413
      %4709 = vst.msk [vmem:[#allocation2 + $0x38] sm:$0xf] %vm4142, %v4423
      %4710 = vst.msk [vmem:[#allocation2 + $0x3c] sm:$0xf] %vm4142, %v4433
      %4711 = vst.msk [vmem:[#allocation2 + $0x40] sm:$0xf] %vm4142, %v4443
      %4712 = vst.msk [vmem:[#allocation2 + $0x44] sm:$0xf] %vm4142, %v4453
      %4713 = vst.msk [vmem:[#allocation2 + $0x48] sm:$0xf] %vm4142, %v4463
      %4714 = vst.msk [vmem:[#allocation2 + $0x4c] sm:$0xf] %vm4142, %v4473
      %4715 = vst.msk [vmem:[#allocation2 + $0x50] sm:$0xf] %vm4142, %v4483
      %4716 = vst.msk [vmem:[#allocation2 + $0x54] sm:$0xf] %vm4142, %v4493
      %4717 = vst.msk [vmem:[#allocation2 + $0x58] sm:$0xf] %vm4142, %v4503
      %4718 = vst.msk [vmem:[#allocation2 + $0x5c] sm:$0xf] %vm4142, %v4513
      %4719 = vst.msk [vmem:[#allocation2 + $0x60] sm:$0xf] %vm4142, %v4523
      %4720 = vst.msk [vmem:[#allocation2 + $0x64] sm:$0xf] %vm4142, %v4533
      %4721 = vst.msk [vmem:[#allocation2 + $0x68] sm:$0xf] %vm4142, %v4543
      %4722 = vst.msk [vmem:[#allocation2 + $0x6c] sm:$0xf] %vm4142, %v4553
      %4723 = vst.msk [vmem:[#allocation2 + $0x70] sm:$0xf] %vm4142, %v4563
      %4724 = vst.msk [vmem:[#allocation2 + $0x74] sm:$0xf] %vm4142, %v4573
      %4725 = vst.msk [vmem:[#allocation2 + $0x78] sm:$0xf] %vm4142, %v4583
      %4726 = vst.msk [vmem:[#allocation2 + $0x7c] sm:$0xf] %vm4142, %v4593
      %4727 = vst.msk [vmem:[#allocation2 + $0x80] sm:$0xf] %vm4142, %v4603
      %4728 = vst.msk [vmem:[#allocation2 + $0x84] sm:$0xf] %vm4142, %v4613
      %4729 = vst.msk [vmem:[#allocation2 + $0x88] sm:$0xf] %vm4142, %v4623
      %4730 = vst.msk [vmem:[#allocation2 + $0x8c] sm:$0xf] %vm4142, %v4633
      %4731 = vst.msk [vmem:[#allocation2 + $0x90] sm:$0xf] %vm4142, %v4643
      %4732 = vst.msk [vmem:[#allocation2 + $0x94] sm:$0xf] %vm4142, %v4653
      %vm4733 = vcmask 24576
      %vm4734 = vsmask.f32 256
      %vm4735 = vmand %vm4733, %vm4734
      %v4736 = vld [vmem:[#allocation2 + $0x98] sm:$0x1]
      %v4737 = vsel %vm4735, %v4654, %v4736
      %4738 = vst [vmem:[#allocation2 + $0x98] sm:$0x1] %v4737
      %v4739 = vld [vmem:[#allocation2] sm:$0xf]
      %v4740 = vld [vmem:[#allocation2 + $0x4] sm:$0xf]
      %v4741 = vld [vmem:[#allocation2 + $0x8] sm:$0xf]
      %v4742 = vld [vmem:[#allocation2 + $0xc] sm:$0xf]
      %v4743 = vld [vmem:[#allocation2 + $0x10] sm:$0xf]
      %v4744 = vld [vmem:[#allocation2 + $0x14] sm:$0xf]
      %v4745 = vld [vmem:[#allocation2 + $0x18] sm:$0xf]
      %v4746 = vld [vmem:[#allocation2 + $0x1c] sm:$0xf]
      %v4747 = vld [vmem:[#allocation2 + $0x20] sm:$0xf]
      %v4748 = vld [vmem:[#allocation2 + $0x24] sm:$0xf]
      %v4749 = vld [vmem:[#allocation2 + $0x28] sm:$0xf]
      %v4750 = vld [vmem:[#allocation2 + $0x2c] sm:$0xf]
      %v4751 = vld [vmem:[#allocation2 + $0x30] sm:$0xf]
      %v4752 = vld [vmem:[#allocation2 + $0x34] sm:$0xf]
      %v4753 = vld [vmem:[#allocation2 + $0x38] sm:$0xf]
      %v4754 = vld [vmem:[#allocation2 + $0x3c] sm:$0xf]
      %v4755 = vld [vmem:[#allocation2 + $0x40] sm:$0xf]
      %v4756 = vld [vmem:[#allocation2 + $0x44] sm:$0xf]
      %v4757 = vld [vmem:[#allocation2 + $0x48] sm:$0xf]
      %v4758 = vld [vmem:[#allocation2 + $0x4c] sm:$0xf]
      %v4759 = vld [vmem:[#allocation2 + $0x50] sm:$0xf]
      %v4760 = vld [vmem:[#allocation2 + $0x54] sm:$0xf]
      %v4761 = vld [vmem:[#allocation2 + $0x58] sm:$0xf]
      %v4762 = vld [vmem:[#allocation2 + $0x5c] sm:$0xf]
      %v4763 = vld [vmem:[#allocation2 + $0x60] sm:$0xf]
      %v4764 = vld [vmem:[#allocation2 + $0x64] sm:$0xf]
      %v4765 = vld [vmem:[#allocation2 + $0x68] sm:$0xf]
      %v4766 = vld [vmem:[#allocation2 + $0x6c] sm:$0xf]
      %v4767 = vld [vmem:[#allocation2 + $0x70] sm:$0xf]
      %v4768 = vld [vmem:[#allocation2 + $0x74] sm:$0xf]
      %v4769 = vld [vmem:[#allocation2 + $0x78] sm:$0xf]
      %v4770 = vld [vmem:[#allocation2 + $0x7c] sm:$0xf]
      %v4771 = vld [vmem:[#allocation2 + $0x80] sm:$0xf]
      %v4772 = vld [vmem:[#allocation2 + $0x84] sm:$0xf]
      %v4773 = vld [vmem:[#allocation2 + $0x88] sm:$0xf]
      %v4774 = vld [vmem:[#allocation2 + $0x8c] sm:$0x7]
      %v4775 = vld [vmem:[%s4] sm:$0x3]
      %v4776 = vld [vmem:[#allocation2 + $0x8c] sm:$0xf]
      %s4777 = scalar_lea.vmem %s4, 2
      %v4778 = vld [vmem:[%s4777] sm:$0x3]
      %v4815 = vunpack.c.l.b16 %v4739
      %v4816 = vunpack.c.l.b16 %v4740
      %v4817 = vunpack.c.l.b16 %v4741
      %v4818 = vunpack.c.l.b16 %v4742
      %v4819 = vunpack.c.l.b16 %v4743
      %v4820 = vunpack.c.l.b16 %v4744
      %v4821 = vunpack.c.l.b16 %v4745
      %v4822 = vunpack.c.l.b16 %v4746
      %v4823 = vunpack.c.l.b16 %v4747
      %v4824 = vunpack.c.l.b16 %v4748
      %v4825 = vunpack.c.l.b16 %v4749
      %v4826 = vunpack.c.l.b16 %v4750
      %v4827 = vunpack.c.l.b16 %v4751
      %v4828 = vunpack.c.l.b16 %v4752
      %v4829 = vunpack.c.l.b16 %v4753
      %v4830 = vunpack.c.l.b16 %v4754
      %v4831 = vunpack.c.l.b16 %v4755
      %v4832 = vunpack.c.l.b16 %v4756
      %v4833 = vunpack.c.l.b16 %v4757
      %v4834 = vunpack.c.l.b16 %v4758
      %v4835 = vunpack.c.l.b16 %v4759
      %v4836 = vunpack.c.l.b16 %v4760
      %v4837 = vunpack.c.l.b16 %v4761
      %v4838 = vunpack.c.l.b16 %v4762
      %v4839 = vunpack.c.l.b16 %v4763
      %v4840 = vunpack.c.l.b16 %v4764
      %v4841 = vunpack.c.l.b16 %v4765
      %v4842 = vunpack.c.l.b16 %v4766
      %v4843 = vunpack.c.l.b16 %v4767
      %v4844 = vunpack.c.l.b16 %v4768
      %v4845 = vunpack.c.l.b16 %v4769
      %v4846 = vunpack.c.l.b16 %v4770
      %v4847 = vunpack.c.l.b16 %v4771
      %v4848 = vunpack.c.l.b16 %v4772
      %v4849 = vunpack.c.l.b16 %v4773
      %v4850 = vunpack.c.l.b16 %v4776
      %v4851 = vpack.c.b16 %v4816, %v4815
      %v4852 = vpack.c.b16 %v4818, %v4817
      %v4853 = vpack.c.b16 %v4820, %v4819
      %v4854 = vpack.c.b16 %v4822, %v4821
      %v4855 = vpack.c.b16 %v4824, %v4823
      %v4856 = vpack.c.b16 %v4826, %v4825
      %v4857 = vpack.c.b16 %v4828, %v4827
      %v4858 = vpack.c.b16 %v4830, %v4829
      %v4859 = vpack.c.b16 %v4832, %v4831
      %v4860 = vpack.c.b16 %v4834, %v4833
      %v4861 = vpack.c.b16 %v4836, %v4835
      %v4862 = vpack.c.b16 %v4838, %v4837
      %v4863 = vpack.c.b16 %v4840, %v4839
      %v4864 = vpack.c.b16 %v4842, %v4841
      %v4865 = vpack.c.b16 %v4844, %v4843
      %v4866 = vpack.c.b16 %v4846, %v4845
      %v4867 = vpack.c.b16 %v4848, %v4847
      %v4868 = vpack.c.b16 %v4850, %v4849
      %v4870 = vshrl.u32 %v4851, 16
      %v4872 = vshll.u32 %v4851, 16
      %v4874 = vrot.slane %v4872, 1
      %v4875 = vor.u32 %v4870, %v4874
      %v4877 = vshll.u32 %v4852, 16
      %v4879 = vrot.slane %v4877, 1
      %v4880 = vsel %vm383, %v4875, %v4879
      %v4881 = vshrl.u32 %v4852, 16
      %v4883 = vor.u32 %v4881, %v4879
      %v4885 = vshll.u32 %v4853, 16
      %v4887 = vrot.slane %v4885, 1
      %v4888 = vsel %vm383, %v4883, %v4887
      %v4889 = vshrl.u32 %v4853, 16
      %v4891 = vor.u32 %v4889, %v4887
      %v4893 = vshll.u32 %v4854, 16
      %v4895 = vrot.slane %v4893, 1
      %v4896 = vsel %vm383, %v4891, %v4895
      %v4897 = vshrl.u32 %v4854, 16
      %v4899 = vor.u32 %v4897, %v4895
      %v4901 = vshll.u32 %v4855, 16
      %v4903 = vrot.slane %v4901, 1
      %v4904 = vsel %vm383, %v4899, %v4903
      %v4905 = vshrl.u32 %v4855, 16
      %v4907 = vor.u32 %v4905, %v4903
      %v4909 = vshll.u32 %v4856, 16
      %v4911 = vrot.slane %v4909, 1
      %v4912 = vsel %vm383, %v4907, %v4911
      %v4913 = vshrl.u32 %v4856, 16
      %v4915 = vor.u32 %v4913, %v4911
      %v4917 = vshll.u32 %v4857, 16
      %v4919 = vrot.slane %v4917, 1
      %v4920 = vsel %vm383, %v4915, %v4919
      %v4921 = vshrl.u32 %v4857, 16
      %v4923 = vor.u32 %v4921, %v4919
      %v4925 = vshll.u32 %v4858, 16
      %v4927 = vrot.slane %v4925, 1
      %v4928 = vsel %vm383, %v4923, %v4927
      %v4929 = vshrl.u32 %v4858, 16
      %v4931 = vor.u32 %v4929, %v4927
      %v4933 = vshll.u32 %v4859, 16
      %v4935 = vrot.slane %v4933, 1
      %v4936 = vsel %vm383, %v4931, %v4935
      %v4937 = vshrl.u32 %v4859, 16
      %v4939 = vor.u32 %v4937, %v4935
      %v4941 = vshll.u32 %v4860, 16
      %v4943 = vrot.slane %v4941, 1
      %v4944 = vsel %vm383, %v4939, %v4943
      %v4945 = vshrl.u32 %v4860, 16
      %v4947 = vor.u32 %v4945, %v4943
      %v4949 = vshll.u32 %v4861, 16
      %v4951 = vrot.slane %v4949, 1
      %v4952 = vsel %vm383, %v4947, %v4951
      %v4953 = vshrl.u32 %v4861, 16
      %v4955 = vor.u32 %v4953, %v4951
      %v4957 = vshll.u32 %v4862, 16
      %v4959 = vrot.slane %v4957, 1
      %v4960 = vsel %vm383, %v4955, %v4959
      %v4961 = vshrl.u32 %v4862, 16
      %v4963 = vor.u32 %v4961, %v4959
      %v4965 = vshll.u32 %v4863, 16
      %v4967 = vrot.slane %v4965, 1
      %v4968 = vsel %vm383, %v4963, %v4967
      %v4969 = vshrl.u32 %v4863, 16
      %v4971 = vor.u32 %v4969, %v4967
      %v4973 = vshll.u32 %v4864, 16
      %v4975 = vrot.slane %v4973, 1
      %v4976 = vsel %vm383, %v4971, %v4975
      %v4977 = vshrl.u32 %v4864, 16
      %v4979 = vor.u32 %v4977, %v4975
      %v4981 = vshll.u32 %v4865, 16
      %v4983 = vrot.slane %v4981, 1
      %v4984 = vsel %vm383, %v4979, %v4983
      %v4985 = vshrl.u32 %v4865, 16
      %v4987 = vor.u32 %v4985, %v4983
      %v4989 = vshll.u32 %v4866, 16
      %v4991 = vrot.slane %v4989, 1
      %v4992 = vsel %vm383, %v4987, %v4991
      %v4993 = vshrl.u32 %v4866, 16
      %v4995 = vor.u32 %v4993, %v4991
      %v4997 = vshll.u32 %v4867, 16
      %v4999 = vrot.slane %v4997, 1
      %v5000 = vsel %vm383, %v4995, %v4999
      %v5001 = vshrl.u32 %v4867, 16
      %v5003 = vor.u32 %v5001, %v4999
      %v5005 = vshll.u32 %v4868, 16
      %v5007 = vrot.slane %v5005, 1
      %v5008 = vsel %vm383, %v5003, %v5007
      %v5009 = vshrl.u32 %v4868, 16
      %v5011 = vor.u32 %v5009, %v5007
      %v5013 = vsel %vm527, %v4880, 0
      %v5016 = vsel %vm527, %v4888, 0
      %v5019 = vsel %vm527, %v4896, 0
      %v5022 = vsel %vm527, %v4904, 0
      %v5025 = vsel %vm527, %v4912, 0
      %v5028 = vsel %vm527, %v4920, 0
      %v5031 = vsel %vm527, %v4928, 0
      %v5034 = vsel %vm527, %v4936, 0
      %v5037 = vsel %vm527, %v4944, 0
      %v5040 = vsel %vm527, %v4952, 0
      %v5043 = vsel %vm527, %v4960, 0
      %v5046 = vsel %vm527, %v4968, 0
      %v5049 = vsel %vm527, %v4976, 0
      %v5052 = vsel %vm527, %v4984, 0
      %v5055 = vsel %vm527, %v4992, 0
      %v5058 = vsel %vm527, %v5000, 0
      %v5061 = vsel %vm527, %v5008, 0
      %v5064 = vsel %vm527, %v5011, 0
      %v5067 = vsel %vm582, %v4778, 0
      %5069 = vmatprep.subr.bf16.mxu0 0
      %5070 = vmatpush1.bf16.msra.mxu0 %v5067
      %5071 = vmatprep.subr.bf16.mxu0 0
      %5072 = vmatpush1.bf16.msra.mxu0 0
      %5073 = vmatprep.subr.bf16.mxu0 0
      %5074 = vmatpush1.bf16.msra.mxu0 0
      %5075 = vmatprep.subr.bf16.mxu0 0
      %5076 = vmatpush1.bf16.msra.mxu0 0
      %5077 = vmatprep.subr.bf16.mxu0 0
      %5078 = vmatpush1.bf16.msra.mxu0 0
      %5079 = vmatprep.subr.bf16.mxu0 0
      %5080 = vmatpush1.bf16.msra.mxu0 0
      %5081 = vmatprep.subr.bf16.mxu0 0
      %5082 = vmatpush1.bf16.msra.mxu0 0
      %5083 = vmatprep.subr.bf16.mxu0 0
      %5084 = vmatpush1.bf16.msra.mxu0 0
      %5085 = vmatprep.subr.bf16.mxu0 0
      %5086 = vmatpush1.bf16.msra.mxu0 0
      %5087 = vmatprep.subr.bf16.mxu0 0
      %5088 = vmatpush1.bf16.msra.mxu0 0
      %5089 = vmatprep.subr.bf16.mxu0 0
      %5090 = vmatpush1.bf16.msra.mxu0 0
      %5091 = vmatprep.subr.bf16.mxu0 0
      %5092 = vmatpush1.bf16.msra.mxu0 0
      %5093 = vmatprep.subr.bf16.mxu0 0
      %5094 = vmatpush1.bf16.msra.mxu0 0
      %5095 = vmatprep.subr.bf16.mxu0 0
      %5096 = vmatpush1.bf16.msra.mxu0 0
      %5097 = vmatprep.subr.bf16.mxu0 0
      %5098 = vmatpush1.bf16.msra.mxu0 0
      %5099 = vmatprep.subr.bf16.mxu0 0
      %5100 = vmatpush1.bf16.msra.mxu0 0
      %5101 = vmatprep.mubr.bf16.mxu0 0
      %5102 = vmatmul.mubr.bf16.gmra.mrb[0].mxu0 %v5013
      %v5103 = vpop.f32.mrb[0].mxu0
      %v5104 = vadd.f32 0.0, %v5103
      %v5105 = vpop.f32.mrb[0].mxu0
      %v5106 = vpop.f32.mrb[0].mxu0
      %v5107 = vadd.f32 0.0, %v5106
      %v5108 = vpop.f32.mrb[0].mxu0
      %5109 = vmatprep.mubr.bf16.mxu0 0
      %5110 = vmatmul.mubr.bf16.gmra.mrb[0].mxu0 %v5016
      %v5111 = vpop.f32.mrb[0].mxu0
      %v5112 = vadd.f32 0.0, %v5111
      %v5113 = vpop.f32.mrb[0].mxu0
      %v5114 = vpop.f32.mrb[0].mxu0
      %v5115 = vadd.f32 0.0, %v5114
      %v5116 = vpop.f32.mrb[0].mxu0
      %5117 = vmatprep.mubr.bf16.mxu0 0
      %5118 = vmatmul.mubr.bf16.gmra.mrb[0].mxu0 %v5019
      %v5119 = vpop.f32.mrb[0].mxu0
      %v5120 = vadd.f32 0.0, %v5119
      %v5121 = vpop.f32.mrb[0].mxu0
      %v5122 = vpop.f32.mrb[0].mxu0
      %v5123 = vadd.f32 0.0, %v5122
      %v5124 = vpop.f32.mrb[0].mxu0
      %5125 = vmatprep.mubr.bf16.mxu0 0
      %5126 = vmatmul.mubr.bf16.gmra.mrb[0].mxu0 %v5022
      %v5127 = vpop.f32.mrb[0].mxu0
      %v5128 = vadd.f32 0.0, %v5127
      %v5129 = vpop.f32.mrb[0].mxu0
      %v5130 = vpop.f32.mrb[0].mxu0
      %v5131 = vadd.f32 0.0, %v5130
      %v5132 = vpop.f32.mrb[0].mxu0
      %5133 = vmatprep.mubr.bf16.mxu0 0
      %5134 = vmatmul.mubr.bf16.gmra.mrb[0].mxu0 %v5025
      %v5135 = vpop.f32.mrb[0].mxu0
      %v5136 = vadd.f32 0.0, %v5135
      %v5137 = vpop.f32.mrb[0].mxu0
      %v5138 = vpop.f32.mrb[0].mxu0
      %v5139 = vadd.f32 0.0, %v5138
      %v5140 = vpop.f32.mrb[0].mxu0
      %5141 = vmatprep.mubr.bf16.mxu0 0
      %5142 = vmatmul.mubr.bf16.gmra.mrb[0].mxu0 %v5028
      %v5143 = vpop.f32.mrb[0].mxu0
      %v5144 = vadd.f32 0.0, %v5143
      %v5145 = vpop.f32.mrb[0].mxu0
      %v5146 = vpop.f32.mrb[0].mxu0
      %v5147 = vadd.f32 0.0, %v5146
      %v5148 = vpop.f32.mrb[0].mxu0
      %5149 = vmatprep.mubr.bf16.mxu0 0
      %5150 = vmatmul.mubr.bf16.gmra.mrb[0].mxu0 %v5031
      %v5151 = vpop.f32.mrb[0].mxu0
      %v5152 = vadd.f32 0.0, %v5151
      %v5153 = vpop.f32.mrb[0].mxu0
      %v5154 = vpop.f32.mrb[0].mxu0
      %v5155 = vadd.f32 0.0, %v5154
      %v5156 = vpop.f32.mrb[0].mxu0
      %5157 = vmatprep.mubr.bf16.mxu0 0
      %5158 = vmatmul.mubr.bf16.gmra.mrb[0].mxu0 %v5034
      %v5159 = vpop.f32.mrb[0].mxu0
      %v5160 = vadd.f32 0.0, %v5159
      %v5161 = vpop.f32.mrb[0].mxu0
      %v5162 = vpop.f32.mrb[0].mxu0
      %v5163 = vadd.f32 0.0, %v5162
      %v5164 = vpop.f32.mrb[0].mxu0
      %5165 = vmatprep.mubr.bf16.mxu0 0
      %5166 = vmatmul.mubr.bf16.gmra.mrb[0].mxu0 %v5037
      %v5167 = vpop.f32.mrb[0].mxu0
      %v5168 = vadd.f32 0.0, %v5167
      %v5169 = vpop.f32.mrb[0].mxu0
      %v5170 = vpop.f32.mrb[0].mxu0
      %v5171 = vadd.f32 0.0, %v5170
      %v5172 = vpop.f32.mrb[0].mxu0
      %5173 = vmatprep.mubr.bf16.mxu0 0
      %5174 = vmatmul.mubr.bf16.gmra.mrb[0].mxu0 %v5040
      %v5175 = vpop.f32.mrb[0].mxu0
      %v5176 = vadd.f32 0.0, %v5175
      %v5177 = vpop.f32.mrb[0].mxu0
      %v5178 = vpop.f32.mrb[0].mxu0
      %v5179 = vadd.f32 0.0, %v5178
      %v5180 = vpop.f32.mrb[0].mxu0
      %5181 = vmatprep.mubr.bf16.mxu0 0
      %5182 = vmatmul.mubr.bf16.gmra.mrb[0].mxu0 %v5043
      %v5183 = vpop.f32.mrb[0].mxu0
      %v5184 = vadd.f32 0.0, %v5183
      %v5185 = vpop.f32.mrb[0].mxu0
      %v5186 = vpop.f32.mrb[0].mxu0
      %v5187 = vadd.f32 0.0, %v5186
      %v5188 = vpop.f32.mrb[0].mxu0
      %5189 = vmatprep.mubr.bf16.mxu0 0
      %5190 = vmatmul.mubr.bf16.gmra.mrb[0].mxu0 %v5046
      %v5191 = vpop.f32.mrb[0].mxu0
      %v5192 = vadd.f32 0.0, %v5191
      %v5193 = vpop.f32.mrb[0].mxu0
      %v5194 = vpop.f32.mrb[0].mxu0
      %v5195 = vadd.f32 0.0, %v5194
      %v5196 = vpop.f32.mrb[0].mxu0
      %5197 = vmatprep.mubr.bf16.mxu0 0
      %5198 = vmatmul.mubr.bf16.gmra.mrb[0].mxu0 %v5049
      %v5199 = vpop.f32.mrb[0].mxu0
      %v5200 = vadd.f32 0.0, %v5199
      %v5201 = vpop.f32.mrb[0].mxu0
      %v5202 = vpop.f32.mrb[0].mxu0
      %v5203 = vadd.f32 0.0, %v5202
      %v5204 = vpop.f32.mrb[0].mxu0
      %5205 = vmatprep.mubr.bf16.mxu0 0
      %5206 = vmatmul.mubr.bf16.gmra.mrb[0].mxu0 %v5052
      %v5207 = vpop.f32.mrb[0].mxu0
      %v5208 = vadd.f32 0.0, %v5207
      %v5209 = vpop.f32.mrb[0].mxu0
      %v5210 = vpop.f32.mrb[0].mxu0
      %v5211 = vadd.f32 0.0, %v5210
      %v5212 = vpop.f32.mrb[0].mxu0
      %5213 = vmatprep.mubr.bf16.mxu0 0
      %5214 = vmatmul.mubr.bf16.gmra.mrb[0].mxu0 %v5055
      %v5215 = vpop.f32.mrb[0].mxu0
      %v5216 = vadd.f32 0.0, %v5215
      %v5217 = vpop.f32.mrb[0].mxu0
      %v5218 = vpop.f32.mrb[0].mxu0
      %v5219 = vadd.f32 0.0, %v5218
      %v5220 = vpop.f32.mrb[0].mxu0
      %5221 = vmatprep.mubr.bf16.mxu0 0
      %5222 = vmatmul.mubr.bf16.gmra.mrb[0].mxu0 %v5058
      %v5223 = vpop.f32.mrb[0].mxu0
      %v5224 = vadd.f32 0.0, %v5223
      %v5225 = vpop.f32.mrb[0].mxu0
      %v5226 = vpop.f32.mrb[0].mxu0
      %v5227 = vadd.f32 0.0, %v5226
      %v5228 = vpop.f32.mrb[0].mxu0
      %5229 = vmatprep.mubr.bf16.mxu0 0
      %5230 = vmatmul.mubr.bf16.gmra.mrb[0].mxu0 %v5061
      %v5231 = vpop.f32.mrb[0].mxu0
      %v5232 = vadd.f32 0.0, %v5231
      %v5233 = vpop.f32.mrb[0].mxu0
      %v5234 = vpop.f32.mrb[0].mxu0
      %v5235 = vadd.f32 0.0, %v5234
      %v5236 = vpop.f32.mrb[0].mxu0
      %5237 = vmatprep.mubr.bf16.mxu0 0
      %5238 = vmatmul.mubr.bf16.gmra.mrb[0].mxu0 %v5064
      %v5239 = vpop.f32.mrb[0].mxu0
      %v5240 = vadd.f32 0.0, %v5239
      %v5241 = vpop.f32.mrb[0].mxu0
      %v5242 = vpop.f32.mrb[0].mxu0
      %v5243 = vadd.f32 0.0, %v5242
      %v5244 = vpop.f32.mrb[0].mxu0
      %5245 = vdwg.mxu0
      %v5247 = vunpack.c.l.b16 %v4774
      %v5248 = vpack.c.b16 %v5247, %v4849
      %v5249 = vsel %vm527, %v4851, 0
      %v5251 = vsel %vm527, %v4852, 0
      %v5253 = vsel %vm527, %v4853, 0
      %v5255 = vsel %vm527, %v4854, 0
      %v5257 = vsel %vm527, %v4855, 0
      %v5259 = vsel %vm527, %v4856, 0
      %v5261 = vsel %vm527, %v4857, 0
      %v5263 = vsel %vm527, %v4858, 0
      %v5265 = vsel %vm527, %v4859, 0
      %v5267 = vsel %vm527, %v4860, 0
      %v5269 = vsel %vm527, %v4861, 0
      %v5271 = vsel %vm527, %v4862, 0
      %v5273 = vsel %vm527, %v4863, 0
      %v5275 = vsel %vm527, %v4864, 0
      %v5277 = vsel %vm527, %v4865, 0
      %v5279 = vsel %vm527, %v4866, 0
      %v5281 = vsel %vm527, %v4867, 0
      %v5284 = vsel %vm527, %v5248, 0
      %v5287 = vsel %vm582, %v4775, 0
      %5289 = vmatprep.subr.bf16.mxu0 0
      %5290 = vmatpush1.bf16.msra.mxu0 %v5287
      %5291 = vmatprep.subr.bf16.mxu0 0
      %5292 = vmatpush1.bf16.msra.mxu0 0
      %5293 = vmatprep.subr.bf16.mxu0 0
      %5294 = vmatpush1.bf16.msra.mxu0 0
      %5295 = vmatprep.subr.bf16.mxu0 0
      %5296 = vmatpush1.bf16.msra.mxu0 0
      %5297 = vmatprep.subr.bf16.mxu0 0
      %5298 = vmatpush1.bf16.msra.mxu0 0
      %5299 = vmatprep.subr.bf16.mxu0 0
      %5300 = vmatpush1.bf16.msra.mxu0 0
      %5301 = vmatprep.subr.bf16.mxu0 0
      %5302 = vmatpush1.bf16.msra.mxu0 0
      %5303 = vmatprep.subr.bf16.mxu0 0
      %5304 = vmatpush1.bf16.msra.mxu0 0
      %5305 = vmatprep.subr.bf16.mxu0 0
      %5306 = vmatpush1.bf16.msra.mxu0 0
      %5307 = vmatprep.subr.bf16.mxu0 0
      %5308 = vmatpush1.bf16.msra.mxu0 0
      %5309 = vmatprep.subr.bf16.mxu0 0
      %5310 = vmatpush1.bf16.msra.mxu0 0
      %5311 = vmatprep.subr.bf16.mxu0 0
      %5312 = vmatpush1.bf16.msra.mxu0 0
      %5313 = vmatprep.subr.bf16.mxu0 0
      %5314 = vmatpush1.bf16.msra.mxu0 0
      %5315 = vmatprep.subr.bf16.mxu0 0
      %5316 = vmatpush1.bf16.msra.mxu0 0
      %5317 = vmatprep.subr.bf16.mxu0 0
      %5318 = vmatpush1.bf16.msra.mxu0 0
      %5319 = vmatprep.subr.bf16.mxu0 0
      %5320 = vmatpush1.bf16.msra.mxu0 0
      %5321 = vmatprep.mubr.bf16.mxu0 0
      %5322 = vmatmul.mubr.bf16.gmra.mrb[0].mxu0 %v5249
      %v5323 = vpop.f32.mrb[0].mxu0
      %v5324 = vadd.f32 %v5104, %v5323
      %v5325 = vpop.f32.mrb[0].mxu0
      %v5326 = vpop.f32.mrb[0].mxu0
      %v5327 = vadd.f32 %v5107, %v5326
      %v5328 = vpop.f32.mrb[0].mxu0
      %5329 = vmatprep.mubr.bf16.mxu0 0
      %5330 = vmatmul.mubr.bf16.gmra.mrb[0].mxu0 %v5251
      %v5331 = vpop.f32.mrb[0].mxu0
      %v5332 = vadd.f32 %v5112, %v5331
      %v5333 = vpop.f32.mrb[0].mxu0
      %v5334 = vpop.f32.mrb[0].mxu0
      %v5335 = vadd.f32 %v5115, %v5334
      %v5336 = vpop.f32.mrb[0].mxu0
      %5337 = vmatprep.mubr.bf16.mxu0 0
      %5338 = vmatmul.mubr.bf16.gmra.mrb[0].mxu0 %v5253
      %v5339 = vpop.f32.mrb[0].mxu0
      %v5340 = vadd.f32 %v5120, %v5339
      %v5341 = vpop.f32.mrb[0].mxu0
      %v5342 = vpop.f32.mrb[0].mxu0
      %v5343 = vadd.f32 %v5123, %v5342
      %v5344 = vpop.f32.mrb[0].mxu0
      %5345 = vmatprep.mubr.bf16.mxu0 0
      %5346 = vmatmul.mubr.bf16.gmra.mrb[0].mxu0 %v5255
      %v5347 = vpop.f32.mrb[0].mxu0
      %v5348 = vadd.f32 %v5128, %v5347
      %v5349 = vpop.f32.mrb[0].mxu0
      %v5350 = vpop.f32.mrb[0].mxu0
      %v5351 = vadd.f32 %v5131, %v5350
      %v5352 = vpop.f32.mrb[0].mxu0
      %5353 = vmatprep.mubr.bf16.mxu0 0
      %5354 = vmatmul.mubr.bf16.gmra.mrb[0].mxu0 %v5257
      %v5355 = vpop.f32.mrb[0].mxu0
      %v5356 = vadd.f32 %v5136, %v5355
      %v5357 = vpop.f32.mrb[0].mxu0
      %v5358 = vpop.f32.mrb[0].mxu0
      %v5359 = vadd.f32 %v5139, %v5358
      %v5360 = vpop.f32.mrb[0].mxu0
      %5361 = vmatprep.mubr.bf16.mxu0 0
      %5362 = vmatmul.mubr.bf16.gmra.mrb[0].mxu0 %v5259
      %v5363 = vpop.f32.mrb[0].mxu0
      %v5364 = vadd.f32 %v5144, %v5363
      %v5365 = vpop.f32.mrb[0].mxu0
      %v5366 = vpop.f32.mrb[0].mxu0
      %v5367 = vadd.f32 %v5147, %v5366
      %v5368 = vpop.f32.mrb[0].mxu0
      %5369 = vmatprep.mubr.bf16.mxu0 0
      %5370 = vmatmul.mubr.bf16.gmra.mrb[0].mxu0 %v5261
      %v5371 = vpop.f32.mrb[0].mxu0
      %v5372 = vadd.f32 %v5152, %v5371
      %v5373 = vpop.f32.mrb[0].mxu0
      %v5374 = vpop.f32.mrb[0].mxu0
      %v5375 = vadd.f32 %v5155, %v5374
      %v5376 = vpop.f32.mrb[0].mxu0
      %5377 = vmatprep.mubr.bf16.mxu0 0
      %5378 = vmatmul.mubr.bf16.gmra.mrb[0].mxu0 %v5263
      %v5379 = vpop.f32.mrb[0].mxu0
      %v5380 = vadd.f32 %v5160, %v5379
      %v5381 = vpop.f32.mrb[0].mxu0
      %v5382 = vpop.f32.mrb[0].mxu0
      %v5383 = vadd.f32 %v5163, %v5382
      %v5384 = vpop.f32.mrb[0].mxu0
      %5385 = vmatprep.mubr.bf16.mxu0 0
      %5386 = vmatmul.mubr.bf16.gmra.mrb[0].mxu0 %v5265
      %v5387 = vpop.f32.mrb[0].mxu0
      %v5388 = vadd.f32 %v5168, %v5387
      %v5389 = vpop.f32.mrb[0].mxu0
      %v5390 = vpop.f32.mrb[0].mxu0
      %v5391 = vadd.f32 %v5171, %v5390
      %v5392 = vpop.f32.mrb[0].mxu0
      %5393 = vmatprep.mubr.bf16.mxu0 0
      %5394 = vmatmul.mubr.bf16.gmra.mrb[0].mxu0 %v5267
      %v5395 = vpop.f32.mrb[0].mxu0
      %v5396 = vadd.f32 %v5176, %v5395
      %v5397 = vpop.f32.mrb[0].mxu0
      %v5398 = vpop.f32.mrb[0].mxu0
      %v5399 = vadd.f32 %v5179, %v5398
      %v5400 = vpop.f32.mrb[0].mxu0
      %5401 = vmatprep.mubr.bf16.mxu0 0
      %5402 = vmatmul.mubr.bf16.gmra.mrb[0].mxu0 %v5269
      %v5403 = vpop.f32.mrb[0].mxu0
      %v5404 = vadd.f32 %v5184, %v5403
      %v5405 = vpop.f32.mrb[0].mxu0
      %v5406 = vpop.f32.mrb[0].mxu0
      %v5407 = vadd.f32 %v5187, %v5406
      %v5408 = vpop.f32.mrb[0].mxu0
      %5409 = vmatprep.mubr.bf16.mxu0 0
      %5410 = vmatmul.mubr.bf16.gmra.mrb[0].mxu0 %v5271
      %v5411 = vpop.f32.mrb[0].mxu0
      %v5412 = vadd.f32 %v5192, %v5411
      %v5413 = vpop.f32.mrb[0].mxu0
      %v5414 = vpop.f32.mrb[0].mxu0
      %v5415 = vadd.f32 %v5195, %v5414
      %v5416 = vpop.f32.mrb[0].mxu0
      %5417 = vmatprep.mubr.bf16.mxu0 0
      %5418 = vmatmul.mubr.bf16.gmra.mrb[0].mxu0 %v5273
      %v5419 = vpop.f32.mrb[0].mxu0
      %v5420 = vadd.f32 %v5200, %v5419
      %v5421 = vpop.f32.mrb[0].mxu0
      %v5422 = vpop.f32.mrb[0].mxu0
      %v5423 = vadd.f32 %v5203, %v5422
      %v5424 = vpop.f32.mrb[0].mxu0
      %5425 = vmatprep.mubr.bf16.mxu0 0
      %5426 = vmatmul.mubr.bf16.gmra.mrb[0].mxu0 %v5275
      %v5427 = vpop.f32.mrb[0].mxu0
      %v5428 = vadd.f32 %v5208, %v5427
      %v5429 = vpop.f32.mrb[0].mxu0
      %v5430 = vpop.f32.mrb[0].mxu0
      %v5431 = vadd.f32 %v5211, %v5430
      %v5432 = vpop.f32.mrb[0].mxu0
      %5433 = vmatprep.mubr.bf16.mxu0 0
      %5434 = vmatmul.mubr.bf16.gmra.mrb[0].mxu0 %v5277
      %v5435 = vpop.f32.mrb[0].mxu0
      %v5436 = vadd.f32 %v5216, %v5435
      %v5437 = vpop.f32.mrb[0].mxu0
      %v5438 = vpop.f32.mrb[0].mxu0
      %v5439 = vadd.f32 %v5219, %v5438
      %v5440 = vpop.f32.mrb[0].mxu0
      %5441 = vmatprep.mubr.bf16.mxu0 0
      %5442 = vmatmul.mubr.bf16.gmra.mrb[0].mxu0 %v5279
      %v5443 = vpop.f32.mrb[0].mxu0
      %v5444 = vadd.f32 %v5224, %v5443
      %v5445 = vpop.f32.mrb[0].mxu0
      %v5446 = vpop.f32.mrb[0].mxu0
      %v5447 = vadd.f32 %v5227, %v5446
      %v5448 = vpop.f32.mrb[0].mxu0
      %5449 = vmatprep.mubr.bf16.mxu0 0
      %5450 = vmatmul.mubr.bf16.gmra.mrb[0].mxu0 %v5281
      %v5451 = vpop.f32.mrb[0].mxu0
      %v5452 = vadd.f32 %v5232, %v5451
      %v5453 = vpop.f32.mrb[0].mxu0
      %v5454 = vpop.f32.mrb[0].mxu0
      %v5455 = vadd.f32 %v5235, %v5454
      %v5456 = vpop.f32.mrb[0].mxu0
      %5457 = vmatprep.mubr.bf16.mxu0 0
      %5458 = vmatmul.mubr.bf16.gmra.mrb[0].mxu0 %v5284
      %v5459 = vpop.f32.mrb[0].mxu0
      %v5460 = vadd.f32 %v5240, %v5459
      %v5461 = vpop.f32.mrb[0].mxu0
      %v5462 = vpop.f32.mrb[0].mxu0
      %v5463 = vadd.f32 %v5243, %v5462
      %v5464 = vpop.f32.mrb[0].mxu0
      %5465 = vdwg.mxu0
      %v5466 = vld [vmem:[#allocation2] sm:$0xe]
      %s5467 = scalar_lea.vmem %s4, 4
      %v5468 = vld [vmem:[%s5467] sm:$0x3]
      %v5470 = vunpack.c.l.b16 %v5466
      %v5471 = vpack.c.b16 %v4816, %v5470
      %v5472 = vrot.slane %v5471, 1
      %v5473 = vrot.slane %v4852, 1
      %v5474 = vsel %vm989, %v5472, %v5473
      %v5475 = vrot.slane %v4853, 1
      %v5476 = vsel %vm989, %v5473, %v5475
      %v5477 = vrot.slane %v4854, 1
      %v5478 = vsel %vm989, %v5475, %v5477
      %v5479 = vrot.slane %v4855, 1
      %v5480 = vsel %vm989, %v5477, %v5479
      %v5481 = vrot.slane %v4856, 1
      %v5482 = vsel %vm989, %v5479, %v5481
      %v5483 = vrot.slane %v4857, 1
      %v5484 = vsel %vm989, %v5481, %v5483
      %v5485 = vrot.slane %v4858, 1
      %v5486 = vsel %vm989, %v5483, %v5485
      %v5487 = vrot.slane %v4859, 1
      %v5488 = vsel %vm989, %v5485, %v5487
      %v5489 = vrot.slane %v4860, 1
      %v5490 = vsel %vm989, %v5487, %v5489
      %v5491 = vrot.slane %v4861, 1
      %v5492 = vsel %vm989, %v5489, %v5491
      %v5493 = vrot.slane %v4862, 1
      %v5494 = vsel %vm989, %v5491, %v5493
      %v5495 = vrot.slane %v4863, 1
      %v5496 = vsel %vm989, %v5493, %v5495
      %v5497 = vrot.slane %v4864, 1
      %v5498 = vsel %vm989, %v5495, %v5497
      %v5499 = vrot.slane %v4865, 1
      %v5500 = vsel %vm989, %v5497, %v5499
      %v5501 = vrot.slane %v4866, 1
      %v5502 = vsel %vm989, %v5499, %v5501
      %v5503 = vrot.slane %v4867, 1
      %v5504 = vsel %vm989, %v5501, %v5503
      %v5505 = vrot.slane %v4868, 1
      %v5506 = vsel %vm989, %v5503, %v5505
      %v5508 = vsel %vm527, %v5474, 0
      %v5511 = vsel %vm527, %v5476, 0
      %v5514 = vsel %vm527, %v5478, 0
      %v5517 = vsel %vm527, %v5480, 0
      %v5520 = vsel %vm527, %v5482, 0
      %v5523 = vsel %vm527, %v5484, 0
      %v5526 = vsel %vm527, %v5486, 0
      %v5529 = vsel %vm527, %v5488, 0
      %v5532 = vsel %vm527, %v5490, 0
      %v5535 = vsel %vm527, %v5492, 0
      %v5538 = vsel %vm527, %v5494, 0
      %v5541 = vsel %vm527, %v5496, 0
      %v5544 = vsel %vm527, %v5498, 0
      %v5547 = vsel %vm527, %v5500, 0
      %v5550 = vsel %vm527, %v5502, 0
      %v5553 = vsel %vm527, %v5504, 0
      %v5556 = vsel %vm527, %v5506, 0
      %v5559 = vsel %vm527, %v5505, 0
      %v5562 = vsel %vm582, %v5468, 0
      %5564 = vmatprep.subr.bf16.mxu0 0
      %5565 = vmatpush1.bf16.msra.mxu0 %v5562
      %5566 = vmatprep.subr.bf16.mxu0 0
      %5567 = vmatpush1.bf16.msra.mxu0 0
      %5568 = vmatprep.subr.bf16.mxu0 0
      %5569 = vmatpush1.bf16.msra.mxu0 0
      %5570 = vmatprep.subr.bf16.mxu0 0
      %5571 = vmatpush1.bf16.msra.mxu0 0
      %5572 = vmatprep.subr.bf16.mxu0 0
      %5573 = vmatpush1.bf16.msra.mxu0 0
      %5574 = vmatprep.subr.bf16.mxu0 0
      %5575 = vmatpush1.bf16.msra.mxu0 0
      %5576 = vmatprep.subr.bf16.mxu0 0
      %5577 = vmatpush1.bf16.msra.mxu0 0
      %5578 = vmatprep.subr.bf16.mxu0 0
      %5579 = vmatpush1.bf16.msra.mxu0 0
      %5580 = vmatprep.subr.bf16.mxu0 0
      %5581 = vmatpush1.bf16.msra.mxu0 0
      %5582 = vmatprep.subr.bf16.mxu0 0
      %5583 = vmatpush1.bf16.msra.mxu0 0
      %5584 = vmatprep.subr.bf16.mxu0 0
      %5585 = vmatpush1.bf16.msra.mxu0 0
      %5586 = vmatprep.subr.bf16.mxu0 0
      %5587 = vmatpush1.bf16.msra.mxu0 0
      %5588 = vmatprep.subr.bf16.mxu0 0
      %5589 = vmatpush1.bf16.msra.mxu0 0
      %5590 = vmatprep.subr.bf16.mxu0 0
      %5591 = vmatpush1.bf16.msra.mxu0 0
      %5592 = vmatprep.subr.bf16.mxu0 0
      %5593 = vmatpush1.bf16.msra.mxu0 0
      %5594 = vmatprep.subr.bf16.mxu0 0
      %5595 = vmatpush1.bf16.msra.mxu0 0
      %5596 = vmatprep.mubr.bf16.mxu0 0
      %5597 = vmatmul.mubr.bf16.gmra.mrb[0].mxu0 %v5508
      %v5598 = vpop.f32.mrb[0].mxu0
      %v5599 = vadd.f32 0.0, %v5598
      %v5600 = vpop.f32.mrb[0].mxu0
      %v5601 = vpop.f32.mrb[0].mxu0
      %v5602 = vadd.f32 0.0, %v5601
      %v5603 = vpop.f32.mrb[0].mxu0
      %5604 = vmatprep.mubr.bf16.mxu0 0
      %5605 = vmatmul.mubr.bf16.gmra.mrb[0].mxu0 %v5511
      %v5606 = vpop.f32.mrb[0].mxu0
      %v5607 = vadd.f32 0.0, %v5606
      %v5608 = vpop.f32.mrb[0].mxu0
      %v5609 = vpop.f32.mrb[0].mxu0
      %v5610 = vadd.f32 0.0, %v5609
      %v5611 = vpop.f32.mrb[0].mxu0
      %5612 = vmatprep.mubr.bf16.mxu0 0
      %5613 = vmatmul.mubr.bf16.gmra.mrb[0].mxu0 %v5514
      %v5614 = vpop.f32.mrb[0].mxu0
      %v5615 = vadd.f32 0.0, %v5614
      %v5616 = vpop.f32.mrb[0].mxu0
      %v5617 = vpop.f32.mrb[0].mxu0
      %v5618 = vadd.f32 0.0, %v5617
      %v5619 = vpop.f32.mrb[0].mxu0
      %5620 = vmatprep.mubr.bf16.mxu0 0
      %5621 = vmatmul.mubr.bf16.gmra.mrb[0].mxu0 %v5517
      %v5622 = vpop.f32.mrb[0].mxu0
      %v5623 = vadd.f32 0.0, %v5622
      %v5624 = vpop.f32.mrb[0].mxu0
      %v5625 = vpop.f32.mrb[0].mxu0
      %v5626 = vadd.f32 0.0, %v5625
      %v5627 = vpop.f32.mrb[0].mxu0
      %5628 = vmatprep.mubr.bf16.mxu0 0
      %5629 = vmatmul.mubr.bf16.gmra.mrb[0].mxu0 %v5520
      %v5630 = vpop.f32.mrb[0].mxu0
      %v5631 = vadd.f32 0.0, %v5630
      %v5632 = vpop.f32.mrb[0].mxu0
      %v5633 = vpop.f32.mrb[0].mxu0
      %v5634 = vadd.f32 0.0, %v5633
      %v5635 = vpop.f32.mrb[0].mxu0
      %5636 = vmatprep.mubr.bf16.mxu0 0
      %5637 = vmatmul.mubr.bf16.gmra.mrb[0].mxu0 %v5523
      %v5638 = vpop.f32.mrb[0].mxu0
      %v5639 = vadd.f32 0.0, %v5638
      %v5640 = vpop.f32.mrb[0].mxu0
      %v5641 = vpop.f32.mrb[0].mxu0
      %v5642 = vadd.f32 0.0, %v5641
      %v5643 = vpop.f32.mrb[0].mxu0
      %5644 = vmatprep.mubr.bf16.mxu0 0
      %5645 = vmatmul.mubr.bf16.gmra.mrb[0].mxu0 %v5526
      %v5646 = vpop.f32.mrb[0].mxu0
      %v5647 = vadd.f32 0.0, %v5646
      %v5648 = vpop.f32.mrb[0].mxu0
      %v5649 = vpop.f32.mrb[0].mxu0
      %v5650 = vadd.f32 0.0, %v5649
      %v5651 = vpop.f32.mrb[0].mxu0
      %5652 = vmatprep.mubr.bf16.mxu0 0
      %5653 = vmatmul.mubr.bf16.gmra.mrb[0].mxu0 %v5529
      %v5654 = vpop.f32.mrb[0].mxu0
      %v5655 = vadd.f32 0.0, %v5654
      %v5656 = vpop.f32.mrb[0].mxu0
      %v5657 = vpop.f32.mrb[0].mxu0
      %v5658 = vadd.f32 0.0, %v5657
      %v5659 = vpop.f32.mrb[0].mxu0
      %5660 = vmatprep.mubr.bf16.mxu0 0
      %5661 = vmatmul.mubr.bf16.gmra.mrb[0].mxu0 %v5532
      %v5662 = vpop.f32.mrb[0].mxu0
      %v5663 = vadd.f32 0.0, %v5662
      %v5664 = vpop.f32.mrb[0].mxu0
      %v5665 = vpop.f32.mrb[0].mxu0
      %v5666 = vadd.f32 0.0, %v5665
      %v5667 = vpop.f32.mrb[0].mxu0
      %5668 = vmatprep.mubr.bf16.mxu0 0
      %5669 = vmatmul.mubr.bf16.gmra.mrb[0].mxu0 %v5535
      %v5670 = vpop.f32.mrb[0].mxu0
      %v5671 = vadd.f32 0.0, %v5670
      %v5672 = vpop.f32.mrb[0].mxu0
      %v5673 = vpop.f32.mrb[0].mxu0
      %v5674 = vadd.f32 0.0, %v5673
      %v5675 = vpop.f32.mrb[0].mxu0
      %5676 = vmatprep.mubr.bf16.mxu0 0
      %5677 = vmatmul.mubr.bf16.gmra.mrb[0].mxu0 %v5538
      %v5678 = vpop.f32.mrb[0].mxu0
      %v5679 = vadd.f32 0.0, %v5678
      %v5680 = vpop.f32.mrb[0].mxu0
      %v5681 = vpop.f32.mrb[0].mxu0
      %v5682 = vadd.f32 0.0, %v5681
      %v5683 = vpop.f32.mrb[0].mxu0
      %5684 = vmatprep.mubr.bf16.mxu0 0
      %5685 = vmatmul.mubr.bf16.gmra.mrb[0].mxu0 %v5541
      %v5686 = vpop.f32.mrb[0].mxu0
      %v5687 = vadd.f32 0.0, %v5686
      %v5688 = vpop.f32.mrb[0].mxu0
      %v5689 = vpop.f32.mrb[0].mxu0
      %v5690 = vadd.f32 0.0, %v5689
      %v5691 = vpop.f32.mrb[0].mxu0
      %5692 = vmatprep.mubr.bf16.mxu0 0
      %5693 = vmatmul.mubr.bf16.gmra.mrb[0].mxu0 %v5544
      %v5694 = vpop.f32.mrb[0].mxu0
      %v5695 = vadd.f32 0.0, %v5694
      %v5696 = vpop.f32.mrb[0].mxu0
      %v5697 = vpop.f32.mrb[0].mxu0
      %v5698 = vadd.f32 0.0, %v5697
      %v5699 = vpop.f32.mrb[0].mxu0
      %5700 = vmatprep.mubr.bf16.mxu0 0
      %5701 = vmatmul.mubr.bf16.gmra.mrb[0].mxu0 %v5547
      %v5702 = vpop.f32.mrb[0].mxu0
      %v5703 = vadd.f32 0.0, %v5702
      %v5704 = vpop.f32.mrb[0].mxu0
      %v5705 = vpop.f32.mrb[0].mxu0
      %v5706 = vadd.f32 0.0, %v5705
      %v5707 = vpop.f32.mrb[0].mxu0
      %5708 = vmatprep.mubr.bf16.mxu0 0
      %5709 = vmatmul.mubr.bf16.gmra.mrb[0].mxu0 %v5550
      %v5710 = vpop.f32.mrb[0].mxu0
      %v5711 = vadd.f32 0.0, %v5710
      %v5712 = vpop.f32.mrb[0].mxu0
      %v5713 = vpop.f32.mrb[0].mxu0
      %v5714 = vadd.f32 0.0, %v5713
      %v5715 = vpop.f32.mrb[0].mxu0
      %5716 = vmatprep.mubr.bf16.mxu0 0
      %5717 = vmatmul.mubr.bf16.gmra.mrb[0].mxu0 %v5553
      %v5718 = vpop.f32.mrb[0].mxu0
      %v5719 = vadd.f32 0.0, %v5718
      %v5720 = vpop.f32.mrb[0].mxu0
      %v5721 = vpop.f32.mrb[0].mxu0
      %v5722 = vadd.f32 0.0, %v5721
      %v5723 = vpop.f32.mrb[0].mxu0
      %5724 = vmatprep.mubr.bf16.mxu0 0
      %5725 = vmatmul.mubr.bf16.gmra.mrb[0].mxu0 %v5556
      %v5726 = vpop.f32.mrb[0].mxu0
      %v5727 = vadd.f32 0.0, %v5726
      %v5728 = vpop.f32.mrb[0].mxu0
      %v5729 = vpop.f32.mrb[0].mxu0
      %v5730 = vadd.f32 0.0, %v5729
      %v5731 = vpop.f32.mrb[0].mxu0
      %5732 = vmatprep.mubr.bf16.mxu0 0
      %5733 = vmatmul.mubr.bf16.gmra.mrb[0].mxu0 %v5559
      %v5734 = vpop.f32.mrb[0].mxu0
      %v5735 = vadd.f32 0.0, %v5734
      %v5736 = vpop.f32.mrb[0].mxu0
      %v5737 = vpop.f32.mrb[0].mxu0
      %v5738 = vadd.f32 0.0, %v5737
      %v5739 = vpop.f32.mrb[0].mxu0
      %5740 = vdwg.mxu0
      %v5741 = vadd.f32 %v5324, %v5599
      %v5742 = vadd.f32 %v5327, %v5602
      %v5743 = vadd.f32 %v5332, %v5607
      %v5744 = vadd.f32 %v5335, %v5610
      %v5745 = vadd.f32 %v5340, %v5615
      %v5746 = vadd.f32 %v5343, %v5618
      %v5747 = vadd.f32 %v5348, %v5623
      %v5748 = vadd.f32 %v5351, %v5626
      %v5749 = vadd.f32 %v5356, %v5631
      %v5750 = vadd.f32 %v5359, %v5634
      %v5751 = vadd.f32 %v5364, %v5639
      %v5752 = vadd.f32 %v5367, %v5642
      %v5753 = vadd.f32 %v5372, %v5647
      %v5754 = vadd.f32 %v5375, %v5650
      %v5755 = vadd.f32 %v5380, %v5655
      %v5756 = vadd.f32 %v5383, %v5658
      %v5757 = vadd.f32 %v5388, %v5663
      %v5758 = vadd.f32 %v5391, %v5666
      %v5759 = vadd.f32 %v5396, %v5671
      %v5760 = vadd.f32 %v5399, %v5674
      %v5761 = vadd.f32 %v5404, %v5679
      %v5762 = vadd.f32 %v5407, %v5682
      %v5763 = vadd.f32 %v5412, %v5687
      %v5764 = vadd.f32 %v5415, %v5690
      %v5765 = vadd.f32 %v5420, %v5695
      %v5766 = vadd.f32 %v5423, %v5698
      %v5767 = vadd.f32 %v5428, %v5703
      %v5768 = vadd.f32 %v5431, %v5706
      %v5769 = vadd.f32 %v5436, %v5711
      %v5770 = vadd.f32 %v5439, %v5714
      %v5771 = vadd.f32 %v5444, %v5719
      %v5772 = vadd.f32 %v5447, %v5722
      %v5773 = vadd.f32 %v5452, %v5727
      %v5774 = vadd.f32 %v5455, %v5730
      %v5775 = vadd.f32 %v5460, %v5735
      %v5776 = vadd.f32 %v5463, %v5738
      %v5777 = vld [vmem:[#allocation2 + $0x8] sm:$0xe]
      %v5778 = vld [vmem:[#allocation2 + $0xc] sm:$0xf]
      %v5779 = vld [vmem:[#allocation2 + $0x10] sm:$0xf]
      %v5780 = vld [vmem:[#allocation2 + $0x14] sm:$0xf]
      %v5781 = vld [vmem:[#allocation2 + $0x18] sm:$0xf]
      %v5782 = vld [vmem:[#allocation2 + $0x1c] sm:$0xf]
      %v5783 = vld [vmem:[#allocation2 + $0x20] sm:$0xf]
      %v5784 = vld [vmem:[#allocation2 + $0x24] sm:$0xf]
      %v5785 = vld [vmem:[#allocation2 + $0x28] sm:$0xf]
      %v5786 = vld [vmem:[#allocation2 + $0x2c] sm:$0xf]
      %v5787 = vld [vmem:[#allocation2 + $0x30] sm:$0xf]
      %v5788 = vld [vmem:[#allocation2 + $0x34] sm:$0xf]
      %v5789 = vld [vmem:[#allocation2 + $0x38] sm:$0xf]
      %v5790 = vld [vmem:[#allocation2 + $0x3c] sm:$0xf]
      %v5791 = vld [vmem:[#allocation2 + $0x40] sm:$0xf]
      %v5792 = vld [vmem:[#allocation2 + $0x44] sm:$0xf]
      %v5793 = vld [vmem:[#allocation2 + $0x48] sm:$0xf]
      %v5794 = vld [vmem:[#allocation2 + $0x4c] sm:$0xf]
      %v5795 = vld [vmem:[#allocation2 + $0x50] sm:$0xf]
      %v5796 = vld [vmem:[#allocation2 + $0x54] sm:$0xf]
      %v5797 = vld [vmem:[#allocation2 + $0x58] sm:$0xf]
      %v5798 = vld [vmem:[#allocation2 + $0x5c] sm:$0xf]
      %v5799 = vld [vmem:[#allocation2 + $0x60] sm:$0xf]
      %v5800 = vld [vmem:[#allocation2 + $0x64] sm:$0xf]
      %v5801 = vld [vmem:[#allocation2 + $0x68] sm:$0xf]
      %v5802 = vld [vmem:[#allocation2 + $0x6c] sm:$0xf]
      %v5803 = vld [vmem:[#allocation2 + $0x70] sm:$0xf]
      %v5804 = vld [vmem:[#allocation2 + $0x74] sm:$0xf]
      %v5805 = vld [vmem:[#allocation2 + $0x78] sm:$0xf]
      %v5806 = vld [vmem:[#allocation2 + $0x7c] sm:$0xf]
      %v5807 = vld [vmem:[#allocation2 + $0x80] sm:$0xf]
      %v5808 = vld [vmem:[#allocation2 + $0x84] sm:$0xf]
      %v5809 = vld [vmem:[#allocation2 + $0x88] sm:$0xf]
      %v5810 = vld [vmem:[#allocation2 + $0x8c] sm:$0xf]
      %v5811 = vld [vmem:[#allocation2 + $0x90] sm:$0xf]
      %v5812 = vld [vmem:[#allocation2 + $0x94] sm:$0xf]
      %s5813 = scalar_lea.vmem %s4, 6
      %v5814 = vld [vmem:[%s5813] sm:$0x3]
      %v5851 = vunpack.c.l.b16 %v5777
      %v5852 = vunpack.c.l.b16 %v5778
      %v5853 = vunpack.c.l.b16 %v5779
      %v5854 = vunpack.c.l.b16 %v5780
      %v5855 = vunpack.c.l.b16 %v5781
      %v5856 = vunpack.c.l.b16 %v5782
      %v5857 = vunpack.c.l.b16 %v5783
      %v5858 = vunpack.c.l.b16 %v5784
      %v5859 = vunpack.c.l.b16 %v5785
      %v5860 = vunpack.c.l.b16 %v5786
      %v5861 = vunpack.c.l.b16 %v5787
      %v5862 = vunpack.c.l.b16 %v5788
      %v5863 = vunpack.c.l.b16 %v5789
      %v5864 = vunpack.c.l.b16 %v5790
      %v5865 = vunpack.c.l.b16 %v5791
      %v5866 = vunpack.c.l.b16 %v5792
      %v5867 = vunpack.c.l.b16 %v5793
      %v5868 = vunpack.c.l.b16 %v5794
      %v5869 = vunpack.c.l.b16 %v5795
      %v5870 = vunpack.c.l.b16 %v5796
      %v5871 = vunpack.c.l.b16 %v5797
      %v5872 = vunpack.c.l.b16 %v5798
      %v5873 = vunpack.c.l.b16 %v5799
      %v5874 = vunpack.c.l.b16 %v5800
      %v5875 = vunpack.c.l.b16 %v5801
      %v5876 = vunpack.c.l.b16 %v5802
      %v5877 = vunpack.c.l.b16 %v5803
      %v5878 = vunpack.c.l.b16 %v5804
      %v5879 = vunpack.c.l.b16 %v5805
      %v5880 = vunpack.c.l.b16 %v5806
      %v5881 = vunpack.c.l.b16 %v5807
      %v5882 = vunpack.c.l.b16 %v5808
      %v5883 = vunpack.c.l.b16 %v5809
      %v5884 = vunpack.c.l.b16 %v5810
      %v5885 = vunpack.c.l.b16 %v5811
      %v5886 = vunpack.c.l.b16 %v5812
      %v5887 = vpack.c.b16 %v5852, %v5851
      %v5888 = vpack.c.b16 %v5854, %v5853
      %v5889 = vpack.c.b16 %v5856, %v5855
      %v5890 = vpack.c.b16 %v5858, %v5857
      %v5891 = vpack.c.b16 %v5860, %v5859
      %v5892 = vpack.c.b16 %v5862, %v5861
      %v5893 = vpack.c.b16 %v5864, %v5863
      %v5894 = vpack.c.b16 %v5866, %v5865
      %v5895 = vpack.c.b16 %v5868, %v5867
      %v5896 = vpack.c.b16 %v5870, %v5869
      %v5897 = vpack.c.b16 %v5872, %v5871
      %v5898 = vpack.c.b16 %v5874, %v5873
      %v5899 = vpack.c.b16 %v5876, %v5875
      %v5900 = vpack.c.b16 %v5878, %v5877
      %v5901 = vpack.c.b16 %v5880, %v5879
      %v5902 = vpack.c.b16 %v5882, %v5881
      %v5903 = vpack.c.b16 %v5884, %v5883
      %v5904 = vpack.c.b16 %v5886, %v5885
      %v5905 = vrot.slane %v5887, 1
      %v5906 = vrot.slane %v5888, 1
      %v5907 = vsel %vm989, %v5905, %v5906
      %v5908 = vrot.slane %v5889, 1
      %v5909 = vsel %vm989, %v5906, %v5908
      %v5910 = vrot.slane %v5890, 1
      %v5911 = vsel %vm989, %v5908, %v5910
      %v5912 = vrot.slane %v5891, 1
      %v5913 = vsel %vm989, %v5910, %v5912
      %v5914 = vrot.slane %v5892, 1
      %v5915 = vsel %vm989, %v5912, %v5914
      %v5916 = vrot.slane %v5893, 1
      %v5917 = vsel %vm989, %v5914, %v5916
      %v5918 = vrot.slane %v5894, 1
      %v5919 = vsel %vm989, %v5916, %v5918
      %v5920 = vrot.slane %v5895, 1
      %v5921 = vsel %vm989, %v5918, %v5920
      %v5922 = vrot.slane %v5896, 1
      %v5923 = vsel %vm989, %v5920, %v5922
      %v5924 = vrot.slane %v5897, 1
      %v5925 = vsel %vm989, %v5922, %v5924
      %v5926 = vrot.slane %v5898, 1
      %v5927 = vsel %vm989, %v5924, %v5926
      %v5928 = vrot.slane %v5899, 1
      %v5929 = vsel %vm989, %v5926, %v5928
      %v5930 = vrot.slane %v5900, 1
      %v5931 = vsel %vm989, %v5928, %v5930
      %v5932 = vrot.slane %v5901, 1
      %v5933 = vsel %vm989, %v5930, %v5932
      %v5934 = vrot.slane %v5902, 1
      %v5935 = vsel %vm989, %v5932, %v5934
      %v5936 = vrot.slane %v5903, 1
      %v5937 = vsel %vm989, %v5934, %v5936
      %v5938 = vrot.slane %v5904, 1
      %v5939 = vsel %vm989, %v5936, %v5938
      %v5941 = vsel %vm527, %v5907, 0
      %v5944 = vsel %vm527, %v5909, 0
      %v5947 = vsel %vm527, %v5911, 0
      %v5950 = vsel %vm527, %v5913, 0
      %v5953 = vsel %vm527, %v5915, 0
      %v5956 = vsel %vm527, %v5917, 0
      %v5959 = vsel %vm527, %v5919, 0
      %v5962 = vsel %vm527, %v5921, 0
      %v5965 = vsel %vm527, %v5923, 0
      %v5968 = vsel %vm527, %v5925, 0
      %v5971 = vsel %vm527, %v5927, 0
      %v5974 = vsel %vm527, %v5929, 0
      %v5977 = vsel %vm527, %v5931, 0
      %v5980 = vsel %vm527, %v5933, 0
      %v5983 = vsel %vm527, %v5935, 0
      %v5986 = vsel %vm527, %v5937, 0
      %v5989 = vsel %vm527, %v5939, 0
      %v5992 = vsel %vm527, %v5938, 0
      %v5995 = vsel %vm582, %v5814, 0
      %5997 = vmatprep.subr.bf16.mxu0 0
      %5998 = vmatpush1.bf16.msra.mxu0 %v5995
      %5999 = vmatprep.subr.bf16.mxu0 0
      %6000 = vmatpush1.bf16.msra.mxu0 0
      %6001 = vmatprep.subr.bf16.mxu0 0
      %6002 = vmatpush1.bf16.msra.mxu0 0
      %6003 = vmatprep.subr.bf16.mxu0 0
      %6004 = vmatpush1.bf16.msra.mxu0 0
      %6005 = vmatprep.subr.bf16.mxu0 0
      %6006 = vmatpush1.bf16.msra.mxu0 0
      %6007 = vmatprep.subr.bf16.mxu0 0
      %6008 = vmatpush1.bf16.msra.mxu0 0
      %6009 = vmatprep.subr.bf16.mxu0 0
      %6010 = vmatpush1.bf16.msra.mxu0 0
      %6011 = vmatprep.subr.bf16.mxu0 0
      %6012 = vmatpush1.bf16.msra.mxu0 0
      %6013 = vmatprep.subr.bf16.mxu0 0
      %6014 = vmatpush1.bf16.msra.mxu0 0
      %6015 = vmatprep.subr.bf16.mxu0 0
      %6016 = vmatpush1.bf16.msra.mxu0 0
      %6017 = vmatprep.subr.bf16.mxu0 0
      %6018 = vmatpush1.bf16.msra.mxu0 0
      %6019 = vmatprep.subr.bf16.mxu0 0
      %6020 = vmatpush1.bf16.msra.mxu0 0
      %6021 = vmatprep.subr.bf16.mxu0 0
      %6022 = vmatpush1.bf16.msra.mxu0 0
      %6023 = vmatprep.subr.bf16.mxu0 0
      %6024 = vmatpush1.bf16.msra.mxu0 0
      %6025 = vmatprep.subr.bf16.mxu0 0
      %6026 = vmatpush1.bf16.msra.mxu0 0
      %6027 = vmatprep.subr.bf16.mxu0 0
      %6028 = vmatpush1.bf16.msra.mxu0 0
      %6029 = vmatprep.mubr.bf16.mxu0 0
      %6030 = vmatmul.mubr.bf16.gmra.mrb[0].mxu0 %v5941
      %v6031 = vpop.f32.mrb[0].mxu0
      %v6032 = vadd.f32 0.0, %v6031
      %v6033 = vpop.f32.mrb[0].mxu0
      %v6034 = vpop.f32.mrb[0].mxu0
      %v6035 = vadd.f32 0.0, %v6034
      %v6036 = vpop.f32.mrb[0].mxu0
      %6037 = vmatprep.mubr.bf16.mxu0 0
      %6038 = vmatmul.mubr.bf16.gmra.mrb[0].mxu0 %v5944
      %v6039 = vpop.f32.mrb[0].mxu0
      %v6040 = vadd.f32 0.0, %v6039
      %v6041 = vpop.f32.mrb[0].mxu0
      %v6042 = vpop.f32.mrb[0].mxu0
      %v6043 = vadd.f32 0.0, %v6042
      %v6044 = vpop.f32.mrb[0].mxu0
      %6045 = vmatprep.mubr.bf16.mxu0 0
      %6046 = vmatmul.mubr.bf16.gmra.mrb[0].mxu0 %v5947
      %v6047 = vpop.f32.mrb[0].mxu0
      %v6048 = vadd.f32 0.0, %v6047
      %v6049 = vpop.f32.mrb[0].mxu0
      %v6050 = vpop.f32.mrb[0].mxu0
      %v6051 = vadd.f32 0.0, %v6050
      %v6052 = vpop.f32.mrb[0].mxu0
      %6053 = vmatprep.mubr.bf16.mxu0 0
      %6054 = vmatmul.mubr.bf16.gmra.mrb[0].mxu0 %v5950
      %v6055 = vpop.f32.mrb[0].mxu0
      %v6056 = vadd.f32 0.0, %v6055
      %v6057 = vpop.f32.mrb[0].mxu0
      %v6058 = vpop.f32.mrb[0].mxu0
      %v6059 = vadd.f32 0.0, %v6058
      %v6060 = vpop.f32.mrb[0].mxu0
      %6061 = vmatprep.mubr.bf16.mxu0 0
      %6062 = vmatmul.mubr.bf16.gmra.mrb[0].mxu0 %v5953
      %v6063 = vpop.f32.mrb[0].mxu0
      %v6064 = vadd.f32 0.0, %v6063
      %v6065 = vpop.f32.mrb[0].mxu0
      %v6066 = vpop.f32.mrb[0].mxu0
      %v6067 = vadd.f32 0.0, %v6066
      %v6068 = vpop.f32.mrb[0].mxu0
      %6069 = vmatprep.mubr.bf16.mxu0 0
      %6070 = vmatmul.mubr.bf16.gmra.mrb[0].mxu0 %v5956
      %v6071 = vpop.f32.mrb[0].mxu0
      %v6072 = vadd.f32 0.0, %v6071
      %v6073 = vpop.f32.mrb[0].mxu0
      %v6074 = vpop.f32.mrb[0].mxu0
      %v6075 = vadd.f32 0.0, %v6074
      %v6076 = vpop.f32.mrb[0].mxu0
      %6077 = vmatprep.mubr.bf16.mxu0 0
      %6078 = vmatmul.mubr.bf16.gmra.mrb[0].mxu0 %v5959
      %v6079 = vpop.f32.mrb[0].mxu0
      %v6080 = vadd.f32 0.0, %v6079
      %v6081 = vpop.f32.mrb[0].mxu0
      %v6082 = vpop.f32.mrb[0].mxu0
      %v6083 = vadd.f32 0.0, %v6082
      %v6084 = vpop.f32.mrb[0].mxu0
      %6085 = vmatprep.mubr.bf16.mxu0 0
      %6086 = vmatmul.mubr.bf16.gmra.mrb[0].mxu0 %v5962
      %v6087 = vpop.f32.mrb[0].mxu0
      %v6088 = vadd.f32 0.0, %v6087
      %v6089 = vpop.f32.mrb[0].mxu0
      %v6090 = vpop.f32.mrb[0].mxu0
      %v6091 = vadd.f32 0.0, %v6090
      %v6092 = vpop.f32.mrb[0].mxu0
      %6093 = vmatprep.mubr.bf16.mxu0 0
      %6094 = vmatmul.mubr.bf16.gmra.mrb[0].mxu0 %v5965
      %v6095 = vpop.f32.mrb[0].mxu0
      %v6096 = vadd.f32 0.0, %v6095
      %v6097 = vpop.f32.mrb[0].mxu0
      %v6098 = vpop.f32.mrb[0].mxu0
      %v6099 = vadd.f32 0.0, %v6098
      %v6100 = vpop.f32.mrb[0].mxu0
      %6101 = vmatprep.mubr.bf16.mxu0 0
      %6102 = vmatmul.mubr.bf16.gmra.mrb[0].mxu0 %v5968
      %v6103 = vpop.f32.mrb[0].mxu0
      %v6104 = vadd.f32 0.0, %v6103
      %v6105 = vpop.f32.mrb[0].mxu0
      %v6106 = vpop.f32.mrb[0].mxu0
      %v6107 = vadd.f32 0.0, %v6106
      %v6108 = vpop.f32.mrb[0].mxu0
      %6109 = vmatprep.mubr.bf16.mxu0 0
      %6110 = vmatmul.mubr.bf16.gmra.mrb[0].mxu0 %v5971
      %v6111 = vpop.f32.mrb[0].mxu0
      %v6112 = vadd.f32 0.0, %v6111
      %v6113 = vpop.f32.mrb[0].mxu0
      %v6114 = vpop.f32.mrb[0].mxu0
      %v6115 = vadd.f32 0.0, %v6114
      %v6116 = vpop.f32.mrb[0].mxu0
      %6117 = vmatprep.mubr.bf16.mxu0 0
      %6118 = vmatmul.mubr.bf16.gmra.mrb[0].mxu0 %v5974
      %v6119 = vpop.f32.mrb[0].mxu0
      %v6120 = vadd.f32 0.0, %v6119
      %v6121 = vpop.f32.mrb[0].mxu0
      %v6122 = vpop.f32.mrb[0].mxu0
      %v6123 = vadd.f32 0.0, %v6122
      %v6124 = vpop.f32.mrb[0].mxu0
      %6125 = vmatprep.mubr.bf16.mxu0 0
      %6126 = vmatmul.mubr.bf16.gmra.mrb[0].mxu0 %v5977
      %v6127 = vpop.f32.mrb[0].mxu0
      %v6128 = vadd.f32 0.0, %v6127
      %v6129 = vpop.f32.mrb[0].mxu0
      %v6130 = vpop.f32.mrb[0].mxu0
      %v6131 = vadd.f32 0.0, %v6130
      %v6132 = vpop.f32.mrb[0].mxu0
      %6133 = vmatprep.mubr.bf16.mxu0 0
      %6134 = vmatmul.mubr.bf16.gmra.mrb[0].mxu0 %v5980
      %v6135 = vpop.f32.mrb[0].mxu0
      %v6136 = vadd.f32 0.0, %v6135
      %v6137 = vpop.f32.mrb[0].mxu0
      %v6138 = vpop.f32.mrb[0].mxu0
      %v6139 = vadd.f32 0.0, %v6138
      %v6140 = vpop.f32.mrb[0].mxu0
      %6141 = vmatprep.mubr.bf16.mxu0 0
      %6142 = vmatmul.mubr.bf16.gmra.mrb[0].mxu0 %v5983
      %v6143 = vpop.f32.mrb[0].mxu0
      %v6144 = vadd.f32 0.0, %v6143
      %v6145 = vpop.f32.mrb[0].mxu0
      %v6146 = vpop.f32.mrb[0].mxu0
      %v6147 = vadd.f32 0.0, %v6146
      %v6148 = vpop.f32.mrb[0].mxu0
      %6149 = vmatprep.mubr.bf16.mxu0 0
      %6150 = vmatmul.mubr.bf16.gmra.mrb[0].mxu0 %v5986
      %v6151 = vpop.f32.mrb[0].mxu0
      %v6152 = vadd.f32 0.0, %v6151
      %v6153 = vpop.f32.mrb[0].mxu0
      %v6154 = vpop.f32.mrb[0].mxu0
      %v6155 = vadd.f32 0.0, %v6154
      %v6156 = vpop.f32.mrb[0].mxu0
      %6157 = vmatprep.mubr.bf16.mxu0 0
      %6158 = vmatmul.mubr.bf16.gmra.mrb[0].mxu0 %v5989
      %v6159 = vpop.f32.mrb[0].mxu0
      %v6160 = vadd.f32 0.0, %v6159
      %v6161 = vpop.f32.mrb[0].mxu0
      %v6162 = vpop.f32.mrb[0].mxu0
      %v6163 = vadd.f32 0.0, %v6162
      %v6164 = vpop.f32.mrb[0].mxu0
      %6165 = vmatprep.mubr.bf16.mxu0 0
      %6166 = vmatmul.mubr.bf16.gmra.mrb[0].mxu0 %v5992
      %v6167 = vpop.f32.mrb[0].mxu0
      %v6168 = vadd.f32 0.0, %v6167
      %v6169 = vpop.f32.mrb[0].mxu0
      %v6170 = vpop.f32.mrb[0].mxu0
      %v6171 = vadd.f32 0.0, %v6170
      %v6172 = vpop.f32.mrb[0].mxu0
      %6173 = vdwg.mxu0
      %v6174 = vadd.f32 %v5741, %v6032
      %v6175 = vadd.f32 %v5742, %v6035
      %v6176 = vadd.f32 %v5743, %v6040
      %v6177 = vadd.f32 %v5744, %v6043
      %v6178 = vadd.f32 %v5745, %v6048
      %v6179 = vadd.f32 %v5746, %v6051
      %v6180 = vadd.f32 %v5747, %v6056
      %v6181 = vadd.f32 %v5748, %v6059
      %v6182 = vadd.f32 %v5749, %v6064
      %v6183 = vadd.f32 %v5750, %v6067
      %v6184 = vadd.f32 %v5751, %v6072
      %v6185 = vadd.f32 %v5752, %v6075
      %v6186 = vadd.f32 %v5753, %v6080
      %v6187 = vadd.f32 %v5754, %v6083
      %v6188 = vadd.f32 %v5755, %v6088
      %v6189 = vadd.f32 %v5756, %v6091
      %v6190 = vadd.f32 %v5757, %v6096
      %v6191 = vadd.f32 %v5758, %v6099
      %v6192 = vadd.f32 %v5759, %v6104
      %v6193 = vadd.f32 %v5760, %v6107
      %v6194 = vadd.f32 %v5761, %v6112
      %v6195 = vadd.f32 %v5762, %v6115
      %v6196 = vadd.f32 %v5763, %v6120
      %v6197 = vadd.f32 %v5764, %v6123
      %v6198 = vadd.f32 %v5765, %v6128
      %v6199 = vadd.f32 %v5766, %v6131
      %v6200 = vadd.f32 %v5767, %v6136
      %v6201 = vadd.f32 %v5768, %v6139
      %v6202 = vadd.f32 %v5769, %v6144
      %v6203 = vadd.f32 %v5770, %v6147
      %v6204 = vadd.f32 %v5771, %v6152
      %v6205 = vadd.f32 %v5772, %v6155
      %v6206 = vadd.f32 %v5773, %v6160
      %v6207 = vadd.f32 %v5774, %v6163
      %v6208 = vadd.f32 %v5775, %v6168
      %v6209 = vadd.f32 %v5776, %v6171
      %v6210 = vld [vmem:[#allocation2 + $0x8] sm:$0xe]
      %v6211 = vld [vmem:[#allocation2 + $0xc] sm:$0xf]
      %v6212 = vld [vmem:[#allocation2 + $0x10] sm:$0xf]
      %v6213 = vld [vmem:[#allocation2 + $0x14] sm:$0xf]
      %v6214 = vld [vmem:[#allocation2 + $0x18] sm:$0xf]
      %v6215 = vld [vmem:[#allocation2 + $0x1c] sm:$0xf]
      %v6216 = vld [vmem:[#allocation2 + $0x20] sm:$0xf]
      %v6217 = vld [vmem:[#allocation2 + $0x24] sm:$0xf]
      %v6218 = vld [vmem:[#allocation2 + $0x28] sm:$0xf]
      %v6219 = vld [vmem:[#allocation2 + $0x2c] sm:$0xf]
      %v6220 = vld [vmem:[#allocation2 + $0x30] sm:$0xf]
      %v6221 = vld [vmem:[#allocation2 + $0x34] sm:$0xf]
      %v6222 = vld [vmem:[#allocation2 + $0x38] sm:$0xf]
      %v6223 = vld [vmem:[#allocation2 + $0x3c] sm:$0xf]
      %v6224 = vld [vmem:[#allocation2 + $0x40] sm:$0xf]
      %v6225 = vld [vmem:[#allocation2 + $0x44] sm:$0xf]
      %v6226 = vld [vmem:[#allocation2 + $0x48] sm:$0xf]
      %v6227 = vld [vmem:[#allocation2 + $0x4c] sm:$0xf]
      %v6228 = vld [vmem:[#allocation2 + $0x50] sm:$0xf]
      %v6229 = vld [vmem:[#allocation2 + $0x54] sm:$0xf]
      %v6230 = vld [vmem:[#allocation2 + $0x58] sm:$0xf]
      %v6231 = vld [vmem:[#allocation2 + $0x5c] sm:$0xf]
      %v6232 = vld [vmem:[#allocation2 + $0x60] sm:$0xf]
      %v6233 = vld [vmem:[#allocation2 + $0x64] sm:$0xf]
      %v6234 = vld [vmem:[#allocation2 + $0x68] sm:$0xf]
      %v6235 = vld [vmem:[#allocation2 + $0x6c] sm:$0xf]
      %v6236 = vld [vmem:[#allocation2 + $0x70] sm:$0xf]
      %v6237 = vld [vmem:[#allocation2 + $0x74] sm:$0xf]
      %v6238 = vld [vmem:[#allocation2 + $0x78] sm:$0xf]
      %v6239 = vld [vmem:[#allocation2 + $0x7c] sm:$0xf]
      %v6240 = vld [vmem:[#allocation2 + $0x80] sm:$0xf]
      %v6241 = vld [vmem:[#allocation2 + $0x84] sm:$0xf]
      %v6242 = vld [vmem:[#allocation2 + $0x88] sm:$0xf]
      %v6243 = vld [vmem:[#allocation2 + $0x8c] sm:$0xf]
      %v6244 = vld [vmem:[#allocation2 + $0x90] sm:$0xf]
      %v6245 = vld [vmem:[#allocation2 + $0x94] sm:$0xf]
      %v6246 = vld [vmem:[#allocation2 + $0x98] sm:$0x1]
      %s6247 = scalar_lea.vmem %s4, 8
      %v6248 = vld [vmem:[%s6247] sm:$0x3]
      %v6286 = vunpack.c.l.b16 %v6210
      %v6287 = vunpack.c.l.b16 %v6211
      %v6288 = vunpack.c.l.b16 %v6212
      %v6289 = vunpack.c.l.b16 %v6213
      %v6290 = vunpack.c.l.b16 %v6214
      %v6291 = vunpack.c.l.b16 %v6215
      %v6292 = vunpack.c.l.b16 %v6216
      %v6293 = vunpack.c.l.b16 %v6217
      %v6294 = vunpack.c.l.b16 %v6218
      %v6295 = vunpack.c.l.b16 %v6219
      %v6296 = vunpack.c.l.b16 %v6220
      %v6297 = vunpack.c.l.b16 %v6221
      %v6298 = vunpack.c.l.b16 %v6222
      %v6299 = vunpack.c.l.b16 %v6223
      %v6300 = vunpack.c.l.b16 %v6224
      %v6301 = vunpack.c.l.b16 %v6225
      %v6302 = vunpack.c.l.b16 %v6226
      %v6303 = vunpack.c.l.b16 %v6227
      %v6304 = vunpack.c.l.b16 %v6228
      %v6305 = vunpack.c.l.b16 %v6229
      %v6306 = vunpack.c.l.b16 %v6230
      %v6307 = vunpack.c.l.b16 %v6231
      %v6308 = vunpack.c.l.b16 %v6232
      %v6309 = vunpack.c.l.b16 %v6233
      %v6310 = vunpack.c.l.b16 %v6234
      %v6311 = vunpack.c.l.b16 %v6235
      %v6312 = vunpack.c.l.b16 %v6236
      %v6313 = vunpack.c.l.b16 %v6237
      %v6314 = vunpack.c.l.b16 %v6238
      %v6315 = vunpack.c.l.b16 %v6239
      %v6316 = vunpack.c.l.b16 %v6240
      %v6317 = vunpack.c.l.b16 %v6241
      %v6318 = vunpack.c.l.b16 %v6242
      %v6319 = vunpack.c.l.b16 %v6243
      %v6320 = vunpack.c.l.b16 %v6244
      %v6321 = vunpack.c.l.b16 %v6245
      %v6322 = vunpack.c.l.b16 %v6246
      %v6323 = vpack.c.b16 %v6287, %v6286
      %v6324 = vpack.c.b16 %v6289, %v6288
      %v6325 = vpack.c.b16 %v6291, %v6290
      %v6326 = vpack.c.b16 %v6293, %v6292
      %v6327 = vpack.c.b16 %v6295, %v6294
      %v6328 = vpack.c.b16 %v6297, %v6296
      %v6329 = vpack.c.b16 %v6299, %v6298
      %v6330 = vpack.c.b16 %v6301, %v6300
      %v6331 = vpack.c.b16 %v6303, %v6302
      %v6332 = vpack.c.b16 %v6305, %v6304
      %v6333 = vpack.c.b16 %v6307, %v6306
      %v6334 = vpack.c.b16 %v6309, %v6308
      %v6335 = vpack.c.b16 %v6311, %v6310
      %v6336 = vpack.c.b16 %v6313, %v6312
      %v6337 = vpack.c.b16 %v6315, %v6314
      %v6338 = vpack.c.b16 %v6317, %v6316
      %v6339 = vpack.c.b16 %v6319, %v6318
      %v6340 = vpack.c.b16 %v6321, %v6320
      %v6341 = vpack.c.b16 %v6322, %v6322
      %v6343 = vshrl.u32 %v6323, 16
      %v6345 = vrot.slane %v6343, 1
      %v6346 = vshll.u32 %v6323, 16
      %v6348 = vrot.slane %v6346, 2
      %v6349 = vor.u32 %v6345, %v6348
      %v6351 = vshrl.u32 %v6324, 16
      %v6353 = vrot.slane %v6351, 1
      %v6354 = vshll.u32 %v6324, 16
      %v6356 = vrot.slane %v6354, 2
      %v6357 = vor.u32 %v6353, %v6356
      %v6358 = vsel %vm1860, %v6349, %v6357
      %v6360 = vshrl.u32 %v6325, 16
      %v6362 = vrot.slane %v6360, 1
      %v6363 = vshll.u32 %v6325, 16
      %v6365 = vrot.slane %v6363, 2
      %v6366 = vor.u32 %v6362, %v6365
      %v6367 = vsel %vm1860, %v6357, %v6366
      %v6369 = vshrl.u32 %v6326, 16
      %v6371 = vrot.slane %v6369, 1
      %v6372 = vshll.u32 %v6326, 16
      %v6374 = vrot.slane %v6372, 2
      %v6375 = vor.u32 %v6371, %v6374
      %v6376 = vsel %vm1860, %v6366, %v6375
      %v6378 = vshrl.u32 %v6327, 16
      %v6380 = vrot.slane %v6378, 1
      %v6381 = vshll.u32 %v6327, 16
      %v6383 = vrot.slane %v6381, 2
      %v6384 = vor.u32 %v6380, %v6383
      %v6385 = vsel %vm1860, %v6375, %v6384
      %v6387 = vshrl.u32 %v6328, 16
      %v6389 = vrot.slane %v6387, 1
      %v6390 = vshll.u32 %v6328, 16
      %v6392 = vrot.slane %v6390, 2
      %v6393 = vor.u32 %v6389, %v6392
      %v6394 = vsel %vm1860, %v6384, %v6393
      %v6396 = vshrl.u32 %v6329, 16
      %v6398 = vrot.slane %v6396, 1
      %v6399 = vshll.u32 %v6329, 16
      %v6401 = vrot.slane %v6399, 2
      %v6402 = vor.u32 %v6398, %v6401
      %v6403 = vsel %vm1860, %v6393, %v6402
      %v6405 = vshrl.u32 %v6330, 16
      %v6407 = vrot.slane %v6405, 1
      %v6408 = vshll.u32 %v6330, 16
      %v6410 = vrot.slane %v6408, 2
      %v6411 = vor.u32 %v6407, %v6410
      %v6412 = vsel %vm1860, %v6402, %v6411
      %v6414 = vshrl.u32 %v6331, 16
      %v6416 = vrot.slane %v6414, 1
      %v6417 = vshll.u32 %v6331, 16
      %v6419 = vrot.slane %v6417, 2
      %v6420 = vor.u32 %v6416, %v6419
      %v6421 = vsel %vm1860, %v6411, %v6420
      %v6423 = vshrl.u32 %v6332, 16
      %v6425 = vrot.slane %v6423, 1
      %v6426 = vshll.u32 %v6332, 16
      %v6428 = vrot.slane %v6426, 2
      %v6429 = vor.u32 %v6425, %v6428
      %v6430 = vsel %vm1860, %v6420, %v6429
      %v6432 = vshrl.u32 %v6333, 16
      %v6434 = vrot.slane %v6432, 1
      %v6435 = vshll.u32 %v6333, 16
      %v6437 = vrot.slane %v6435, 2
      %v6438 = vor.u32 %v6434, %v6437
      %v6439 = vsel %vm1860, %v6429, %v6438
      %v6441 = vshrl.u32 %v6334, 16
      %v6443 = vrot.slane %v6441, 1
      %v6444 = vshll.u32 %v6334, 16
      %v6446 = vrot.slane %v6444, 2
      %v6447 = vor.u32 %v6443, %v6446
      %v6448 = vsel %vm1860, %v6438, %v6447
      %v6450 = vshrl.u32 %v6335, 16
      %v6452 = vrot.slane %v6450, 1
      %v6453 = vshll.u32 %v6335, 16
      %v6455 = vrot.slane %v6453, 2
      %v6456 = vor.u32 %v6452, %v6455
      %v6457 = vsel %vm1860, %v6447, %v6456
      %v6459 = vshrl.u32 %v6336, 16
      %v6461 = vrot.slane %v6459, 1
      %v6462 = vshll.u32 %v6336, 16
      %v6464 = vrot.slane %v6462, 2
      %v6465 = vor.u32 %v6461, %v6464
      %v6466 = vsel %vm1860, %v6456, %v6465
      %v6468 = vshrl.u32 %v6337, 16
      %v6470 = vrot.slane %v6468, 1
      %v6471 = vshll.u32 %v6337, 16
      %v6473 = vrot.slane %v6471, 2
      %v6474 = vor.u32 %v6470, %v6473
      %v6475 = vsel %vm1860, %v6465, %v6474
      %v6477 = vshrl.u32 %v6338, 16
      %v6479 = vrot.slane %v6477, 1
      %v6480 = vshll.u32 %v6338, 16
      %v6482 = vrot.slane %v6480, 2
      %v6483 = vor.u32 %v6479, %v6482
      %v6484 = vsel %vm1860, %v6474, %v6483
      %v6486 = vshrl.u32 %v6339, 16
      %v6488 = vrot.slane %v6486, 1
      %v6489 = vshll.u32 %v6339, 16
      %v6491 = vrot.slane %v6489, 2
      %v6492 = vor.u32 %v6488, %v6491
      %v6493 = vsel %vm1860, %v6483, %v6492
      %v6495 = vshrl.u32 %v6340, 16
      %v6497 = vrot.slane %v6495, 1
      %v6498 = vshll.u32 %v6340, 16
      %v6500 = vrot.slane %v6498, 2
      %v6501 = vor.u32 %v6497, %v6500
      %v6502 = vsel %vm1860, %v6492, %v6501
      %v6504 = vshll.u32 %v6341, 16
      %v6506 = vrot.slane %v6504, 2
      %v6507 = vsel %vm1860, %v6501, %v6506
      %v6509 = vsel %vm527, %v6358, 0
      %v6512 = vsel %vm527, %v6367, 0
      %v6515 = vsel %vm527, %v6376, 0
      %v6518 = vsel %vm527, %v6385, 0
      %v6521 = vsel %vm527, %v6394, 0
      %v6524 = vsel %vm527, %v6403, 0
      %v6527 = vsel %vm527, %v6412, 0
      %v6530 = vsel %vm527, %v6421, 0
      %v6533 = vsel %vm527, %v6430, 0
      %v6536 = vsel %vm527, %v6439, 0
      %v6539 = vsel %vm527, %v6448, 0
      %v6542 = vsel %vm527, %v6457, 0
      %v6545 = vsel %vm527, %v6466, 0
      %v6548 = vsel %vm527, %v6475, 0
      %v6551 = vsel %vm527, %v6484, 0
      %v6554 = vsel %vm527, %v6493, 0
      %v6557 = vsel %vm527, %v6502, 0
      %v6560 = vsel %vm527, %v6507, 0
      %v6563 = vsel %vm582, %v6248, 0
      %6565 = vmatprep.subr.bf16.mxu0 0
      %6566 = vmatpush1.bf16.msra.mxu0 %v6563
      %6567 = vmatprep.subr.bf16.mxu0 0
      %6568 = vmatpush1.bf16.msra.mxu0 0
      %6569 = vmatprep.subr.bf16.mxu0 0
      %6570 = vmatpush1.bf16.msra.mxu0 0
      %6571 = vmatprep.subr.bf16.mxu0 0
      %6572 = vmatpush1.bf16.msra.mxu0 0
      %6573 = vmatprep.subr.bf16.mxu0 0
      %6574 = vmatpush1.bf16.msra.mxu0 0
      %6575 = vmatprep.subr.bf16.mxu0 0
      %6576 = vmatpush1.bf16.msra.mxu0 0
      %6577 = vmatprep.subr.bf16.mxu0 0
      %6578 = vmatpush1.bf16.msra.mxu0 0
      %6579 = vmatprep.subr.bf16.mxu0 0
      %6580 = vmatpush1.bf16.msra.mxu0 0
      %6581 = vmatprep.subr.bf16.mxu0 0
      %6582 = vmatpush1.bf16.msra.mxu0 0
      %6583 = vmatprep.subr.bf16.mxu0 0
      %6584 = vmatpush1.bf16.msra.mxu0 0
      %6585 = vmatprep.subr.bf16.mxu0 0
      %6586 = vmatpush1.bf16.msra.mxu0 0
      %6587 = vmatprep.subr.bf16.mxu0 0
      %6588 = vmatpush1.bf16.msra.mxu0 0
      %6589 = vmatprep.subr.bf16.mxu0 0
      %6590 = vmatpush1.bf16.msra.mxu0 0
      %6591 = vmatprep.subr.bf16.mxu0 0
      %6592 = vmatpush1.bf16.msra.mxu0 0
      %6593 = vmatprep.subr.bf16.mxu0 0
      %6594 = vmatpush1.bf16.msra.mxu0 0
      %6595 = vmatprep.subr.bf16.mxu0 0
      %6596 = vmatpush1.bf16.msra.mxu0 0
      %6597 = vmatprep.mubr.bf16.mxu0 0
      %6598 = vmatmul.mubr.bf16.gmra.mrb[0].mxu0 %v6509
      %v6599 = vpop.f32.mrb[0].mxu0
      %v6600 = vadd.f32 0.0, %v6599
      %v6601 = vpop.f32.mrb[0].mxu0
      %v6602 = vpop.f32.mrb[0].mxu0
      %v6603 = vadd.f32 0.0, %v6602
      %v6604 = vpop.f32.mrb[0].mxu0
      %6605 = vmatprep.mubr.bf16.mxu0 0
      %6606 = vmatmul.mubr.bf16.gmra.mrb[0].mxu0 %v6512
      %v6607 = vpop.f32.mrb[0].mxu0
      %v6608 = vadd.f32 0.0, %v6607
      %v6609 = vpop.f32.mrb[0].mxu0
      %v6610 = vpop.f32.mrb[0].mxu0
      %v6611 = vadd.f32 0.0, %v6610
      %v6612 = vpop.f32.mrb[0].mxu0
      %6613 = vmatprep.mubr.bf16.mxu0 0
      %6614 = vmatmul.mubr.bf16.gmra.mrb[0].mxu0 %v6515
      %v6615 = vpop.f32.mrb[0].mxu0
      %v6616 = vadd.f32 0.0, %v6615
      %v6617 = vpop.f32.mrb[0].mxu0
      %v6618 = vpop.f32.mrb[0].mxu0
      %v6619 = vadd.f32 0.0, %v6618
      %v6620 = vpop.f32.mrb[0].mxu0
      %6621 = vmatprep.mubr.bf16.mxu0 0
      %6622 = vmatmul.mubr.bf16.gmra.mrb[0].mxu0 %v6518
      %v6623 = vpop.f32.mrb[0].mxu0
      %v6624 = vadd.f32 0.0, %v6623
      %v6625 = vpop.f32.mrb[0].mxu0
      %v6626 = vpop.f32.mrb[0].mxu0
      %v6627 = vadd.f32 0.0, %v6626
      %v6628 = vpop.f32.mrb[0].mxu0
      %6629 = vmatprep.mubr.bf16.mxu0 0
      %6630 = vmatmul.mubr.bf16.gmra.mrb[0].mxu0 %v6521
      %v6631 = vpop.f32.mrb[0].mxu0
      %v6632 = vadd.f32 0.0, %v6631
      %v6633 = vpop.f32.mrb[0].mxu0
      %v6634 = vpop.f32.mrb[0].mxu0
      %v6635 = vadd.f32 0.0, %v6634
      %v6636 = vpop.f32.mrb[0].mxu0
      %6637 = vmatprep.mubr.bf16.mxu0 0
      %6638 = vmatmul.mubr.bf16.gmra.mrb[0].mxu0 %v6524
      %v6639 = vpop.f32.mrb[0].mxu0
      %v6640 = vadd.f32 0.0, %v6639
      %v6641 = vpop.f32.mrb[0].mxu0
      %v6642 = vpop.f32.mrb[0].mxu0
      %v6643 = vadd.f32 0.0, %v6642
      %v6644 = vpop.f32.mrb[0].mxu0
      %6645 = vmatprep.mubr.bf16.mxu0 0
      %6646 = vmatmul.mubr.bf16.gmra.mrb[0].mxu0 %v6527
      %v6647 = vpop.f32.mrb[0].mxu0
      %v6648 = vadd.f32 0.0, %v6647
      %v6649 = vpop.f32.mrb[0].mxu0
      %v6650 = vpop.f32.mrb[0].mxu0
      %v6651 = vadd.f32 0.0, %v6650
      %v6652 = vpop.f32.mrb[0].mxu0
      %6653 = vmatprep.mubr.bf16.mxu0 0
      %6654 = vmatmul.mubr.bf16.gmra.mrb[0].mxu0 %v6530
      %v6655 = vpop.f32.mrb[0].mxu0
      %v6656 = vadd.f32 0.0, %v6655
      %v6657 = vpop.f32.mrb[0].mxu0
      %v6658 = vpop.f32.mrb[0].mxu0
      %v6659 = vadd.f32 0.0, %v6658
      %v6660 = vpop.f32.mrb[0].mxu0
      %6661 = vmatprep.mubr.bf16.mxu0 0
      %6662 = vmatmul.mubr.bf16.gmra.mrb[0].mxu0 %v6533
      %v6663 = vpop.f32.mrb[0].mxu0
      %v6664 = vadd.f32 0.0, %v6663
      %v6665 = vpop.f32.mrb[0].mxu0
      %v6666 = vpop.f32.mrb[0].mxu0
      %v6667 = vadd.f32 0.0, %v6666
      %v6668 = vpop.f32.mrb[0].mxu0
      %6669 = vmatprep.mubr.bf16.mxu0 0
      %6670 = vmatmul.mubr.bf16.gmra.mrb[0].mxu0 %v6536
      %v6671 = vpop.f32.mrb[0].mxu0
      %v6672 = vadd.f32 0.0, %v6671
      %v6673 = vpop.f32.mrb[0].mxu0
      %v6674 = vpop.f32.mrb[0].mxu0
      %v6675 = vadd.f32 0.0, %v6674
      %v6676 = vpop.f32.mrb[0].mxu0
      %6677 = vmatprep.mubr.bf16.mxu0 0
      %6678 = vmatmul.mubr.bf16.gmra.mrb[0].mxu0 %v6539
      %v6679 = vpop.f32.mrb[0].mxu0
      %v6680 = vadd.f32 0.0, %v6679
      %v6681 = vpop.f32.mrb[0].mxu0
      %v6682 = vpop.f32.mrb[0].mxu0
      %v6683 = vadd.f32 0.0, %v6682
      %v6684 = vpop.f32.mrb[0].mxu0
      %6685 = vmatprep.mubr.bf16.mxu0 0
      %6686 = vmatmul.mubr.bf16.gmra.mrb[0].mxu0 %v6542
      %v6687 = vpop.f32.mrb[0].mxu0
      %v6688 = vadd.f32 0.0, %v6687
      %v6689 = vpop.f32.mrb[0].mxu0
      %v6690 = vpop.f32.mrb[0].mxu0
      %v6691 = vadd.f32 0.0, %v6690
      %v6692 = vpop.f32.mrb[0].mxu0
      %6693 = vmatprep.mubr.bf16.mxu0 0
      %6694 = vmatmul.mubr.bf16.gmra.mrb[0].mxu0 %v6545
      %v6695 = vpop.f32.mrb[0].mxu0
      %v6696 = vadd.f32 0.0, %v6695
      %v6697 = vpop.f32.mrb[0].mxu0
      %v6698 = vpop.f32.mrb[0].mxu0
      %v6699 = vadd.f32 0.0, %v6698
      %v6700 = vpop.f32.mrb[0].mxu0
      %6701 = vmatprep.mubr.bf16.mxu0 0
      %6702 = vmatmul.mubr.bf16.gmra.mrb[0].mxu0 %v6548
      %v6703 = vpop.f32.mrb[0].mxu0
      %v6704 = vadd.f32 0.0, %v6703
      %v6705 = vpop.f32.mrb[0].mxu0
      %v6706 = vpop.f32.mrb[0].mxu0
      %v6707 = vadd.f32 0.0, %v6706
      %v6708 = vpop.f32.mrb[0].mxu0
      %6709 = vmatprep.mubr.bf16.mxu0 0
      %6710 = vmatmul.mubr.bf16.gmra.mrb[0].mxu0 %v6551
      %v6711 = vpop.f32.mrb[0].mxu0
      %v6712 = vadd.f32 0.0, %v6711
      %v6713 = vpop.f32.mrb[0].mxu0
      %v6714 = vpop.f32.mrb[0].mxu0
      %v6715 = vadd.f32 0.0, %v6714
      %v6716 = vpop.f32.mrb[0].mxu0
      %6717 = vmatprep.mubr.bf16.mxu0 0
      %6718 = vmatmul.mubr.bf16.gmra.mrb[0].mxu0 %v6554
      %v6719 = vpop.f32.mrb[0].mxu0
      %v6720 = vadd.f32 0.0, %v6719
      %v6721 = vpop.f32.mrb[0].mxu0
      %v6722 = vpop.f32.mrb[0].mxu0
      %v6723 = vadd.f32 0.0, %v6722
      %v6724 = vpop.f32.mrb[0].mxu0
      %6725 = vmatprep.mubr.bf16.mxu0 0
      %6726 = vmatmul.mubr.bf16.gmra.mrb[0].mxu0 %v6557
      %v6727 = vpop.f32.mrb[0].mxu0
      %v6728 = vadd.f32 0.0, %v6727
      %v6729 = vpop.f32.mrb[0].mxu0
      %v6730 = vpop.f32.mrb[0].mxu0
      %v6731 = vadd.f32 0.0, %v6730
      %v6732 = vpop.f32.mrb[0].mxu0
      %6733 = vmatprep.mubr.bf16.mxu0 0
      %6734 = vmatmul.mubr.bf16.gmra.mrb[0].mxu0 %v6560
      %v6735 = vpop.f32.mrb[0].mxu0
      %v6736 = vadd.f32 0.0, %v6735
      %v6737 = vpop.f32.mrb[0].mxu0
      %v6738 = vpop.f32.mrb[0].mxu0
      %v6739 = vadd.f32 0.0, %v6738
      %v6740 = vpop.f32.mrb[0].mxu0
      %6741 = vdwg.mxu0
      %v6742 = vadd.f32 %v6174, %v6600
      %v6743 = vadd.f32 %v6175, %v6603
      %v6744 = vadd.f32 %v6176, %v6608
      %v6745 = vadd.f32 %v6177, %v6611
      %v6746 = vadd.f32 %v6178, %v6616
      %v6747 = vadd.f32 %v6179, %v6619
      %v6748 = vadd.f32 %v6180, %v6624
      %v6749 = vadd.f32 %v6181, %v6627
      %v6750 = vadd.f32 %v6182, %v6632
      %v6751 = vadd.f32 %v6183, %v6635
      %v6752 = vadd.f32 %v6184, %v6640
      %v6753 = vadd.f32 %v6185, %v6643
      %v6754 = vadd.f32 %v6186, %v6648
      %v6755 = vadd.f32 %v6187, %v6651
      %v6756 = vadd.f32 %v6188, %v6656
      %v6757 = vadd.f32 %v6189, %v6659
      %v6758 = vadd.f32 %v6190, %v6664
      %v6759 = vadd.f32 %v6191, %v6667
      %v6760 = vadd.f32 %v6192, %v6672
      %v6761 = vadd.f32 %v6193, %v6675
      %v6762 = vadd.f32 %v6194, %v6680
      %v6763 = vadd.f32 %v6195, %v6683
      %v6764 = vadd.f32 %v6196, %v6688
      %v6765 = vadd.f32 %v6197, %v6691
      %v6766 = vadd.f32 %v6198, %v6696
      %v6767 = vadd.f32 %v6199, %v6699
      %v6768 = vadd.f32 %v6200, %v6704
      %v6769 = vadd.f32 %v6201, %v6707
      %v6770 = vadd.f32 %v6202, %v6712
      %v6771 = vadd.f32 %v6203, %v6715
      %v6772 = vadd.f32 %v6204, %v6720
      %v6773 = vadd.f32 %v6205, %v6723
      %v6774 = vadd.f32 %v6206, %v6728
      %v6775 = vadd.f32 %v6207, %v6731
      %v6776 = vadd.f32 %v6208, %v6736
      %v6777 = vadd.f32 %v6209, %v6739
      %v6778 = vld [vmem:[#allocation2 + $0x8] sm:$0xc]
      %s6779 = scalar_lea.vmem %s4, 10
      %v6780 = vld [vmem:[%s6779] sm:$0x3]
      %v6782 = vunpack.c.l.b16 %v6778
      %v6783 = vpack.c.b16 %v6287, %v6782
      %v6784 = vrot.slane %v6783, 2
      %v6785 = vrot.slane %v6324, 2
      %v6786 = vsel %vm2303, %v6784, %v6785
      %v6787 = vrot.slane %v6325, 2
      %v6788 = vsel %vm2303, %v6785, %v6787
      %v6789 = vrot.slane %v6326, 2
      %v6790 = vsel %vm2303, %v6787, %v6789
      %v6791 = vrot.slane %v6327, 2
      %v6792 = vsel %vm2303, %v6789, %v6791
      %v6793 = vrot.slane %v6328, 2
      %v6794 = vsel %vm2303, %v6791, %v6793
      %v6795 = vrot.slane %v6329, 2
      %v6796 = vsel %vm2303, %v6793, %v6795
      %v6797 = vrot.slane %v6330, 2
      %v6798 = vsel %vm2303, %v6795, %v6797
      %v6799 = vrot.slane %v6331, 2
      %v6800 = vsel %vm2303, %v6797, %v6799
      %v6801 = vrot.slane %v6332, 2
      %v6802 = vsel %vm2303, %v6799, %v6801
      %v6803 = vrot.slane %v6333, 2
      %v6804 = vsel %vm2303, %v6801, %v6803
      %v6805 = vrot.slane %v6334, 2
      %v6806 = vsel %vm2303, %v6803, %v6805
      %v6807 = vrot.slane %v6335, 2
      %v6808 = vsel %vm2303, %v6805, %v6807
      %v6809 = vrot.slane %v6336, 2
      %v6810 = vsel %vm2303, %v6807, %v6809
      %v6811 = vrot.slane %v6337, 2
      %v6812 = vsel %vm2303, %v6809, %v6811
      %v6813 = vrot.slane %v6338, 2
      %v6814 = vsel %vm2303, %v6811, %v6813
      %v6815 = vrot.slane %v6339, 2
      %v6816 = vsel %vm2303, %v6813, %v6815
      %v6817 = vrot.slane %v6340, 2
      %v6818 = vsel %vm2303, %v6815, %v6817
      %v6819 = vrot.slane %v6341, 2
      %v6820 = vsel %vm2303, %v6817, %v6819
      %v6822 = vsel %vm527, %v6786, 0
      %v6825 = vsel %vm527, %v6788, 0
      %v6828 = vsel %vm527, %v6790, 0
      %v6831 = vsel %vm527, %v6792, 0
      %v6834 = vsel %vm527, %v6794, 0
      %v6837 = vsel %vm527, %v6796, 0
      %v6840 = vsel %vm527, %v6798, 0
      %v6843 = vsel %vm527, %v6800, 0
      %v6846 = vsel %vm527, %v6802, 0
      %v6849 = vsel %vm527, %v6804, 0
      %v6852 = vsel %vm527, %v6806, 0
      %v6855 = vsel %vm527, %v6808, 0
      %v6858 = vsel %vm527, %v6810, 0
      %v6861 = vsel %vm527, %v6812, 0
      %v6864 = vsel %vm527, %v6814, 0
      %v6867 = vsel %vm527, %v6816, 0
      %v6870 = vsel %vm527, %v6818, 0
      %v6873 = vsel %vm527, %v6820, 0
      %v6876 = vsel %vm582, %v6780, 0
      %6878 = vmatprep.subr.bf16.mxu0 0
      %6879 = vmatpush1.bf16.msra.mxu0 %v6876
      %6880 = vmatprep.subr.bf16.mxu0 0
      %6881 = vmatpush1.bf16.msra.mxu0 0
      %6882 = vmatprep.subr.bf16.mxu0 0
      %6883 = vmatpush1.bf16.msra.mxu0 0
      %6884 = vmatprep.subr.bf16.mxu0 0
      %6885 = vmatpush1.bf16.msra.mxu0 0
      %6886 = vmatprep.subr.bf16.mxu0 0
      %6887 = vmatpush1.bf16.msra.mxu0 0
      %6888 = vmatprep.subr.bf16.mxu0 0
      %6889 = vmatpush1.bf16.msra.mxu0 0
      %6890 = vmatprep.subr.bf16.mxu0 0
      %6891 = vmatpush1.bf16.msra.mxu0 0
      %6892 = vmatprep.subr.bf16.mxu0 0
      %6893 = vmatpush1.bf16.msra.mxu0 0
      %6894 = vmatprep.subr.bf16.mxu0 0
      %6895 = vmatpush1.bf16.msra.mxu0 0
      %6896 = vmatprep.subr.bf16.mxu0 0
      %6897 = vmatpush1.bf16.msra.mxu0 0
      %6898 = vmatprep.subr.bf16.mxu0 0
      %6899 = vmatpush1.bf16.msra.mxu0 0
      %6900 = vmatprep.subr.bf16.mxu0 0
      %6901 = vmatpush1.bf16.msra.mxu0 0
      %6902 = vmatprep.subr.bf16.mxu0 0
      %6903 = vmatpush1.bf16.msra.mxu0 0
      %6904 = vmatprep.subr.bf16.mxu0 0
      %6905 = vmatpush1.bf16.msra.mxu0 0
      %6906 = vmatprep.subr.bf16.mxu0 0
      %6907 = vmatpush1.bf16.msra.mxu0 0
      %6908 = vmatprep.subr.bf16.mxu0 0
      %6909 = vmatpush1.bf16.msra.mxu0 0
      %6910 = vmatprep.mubr.bf16.mxu0 0
      %6911 = vmatmul.mubr.bf16.gmra.mrb[0].mxu0 %v6822
      %v6912 = vpop.f32.mrb[0].mxu0
      %v6913 = vadd.f32 0.0, %v6912
      %v6914 = vpop.f32.mrb[0].mxu0
      %v6915 = vpop.f32.mrb[0].mxu0
      %v6916 = vadd.f32 0.0, %v6915
      %v6917 = vpop.f32.mrb[0].mxu0
      %6918 = vmatprep.mubr.bf16.mxu0 0
      %6919 = vmatmul.mubr.bf16.gmra.mrb[0].mxu0 %v6825
      %v6920 = vpop.f32.mrb[0].mxu0
      %v6921 = vadd.f32 0.0, %v6920
      %v6922 = vpop.f32.mrb[0].mxu0
      %v6923 = vpop.f32.mrb[0].mxu0
      %v6924 = vadd.f32 0.0, %v6923
      %v6925 = vpop.f32.mrb[0].mxu0
      %6926 = vmatprep.mubr.bf16.mxu0 0
      %6927 = vmatmul.mubr.bf16.gmra.mrb[0].mxu0 %v6828
      %v6928 = vpop.f32.mrb[0].mxu0
      %v6929 = vadd.f32 0.0, %v6928
      %v6930 = vpop.f32.mrb[0].mxu0
      %v6931 = vpop.f32.mrb[0].mxu0
      %v6932 = vadd.f32 0.0, %v6931
      %v6933 = vpop.f32.mrb[0].mxu0
      %6934 = vmatprep.mubr.bf16.mxu0 0
      %6935 = vmatmul.mubr.bf16.gmra.mrb[0].mxu0 %v6831
      %v6936 = vpop.f32.mrb[0].mxu0
      %v6937 = vadd.f32 0.0, %v6936
      %v6938 = vpop.f32.mrb[0].mxu0
      %v6939 = vpop.f32.mrb[0].mxu0
      %v6940 = vadd.f32 0.0, %v6939
      %v6941 = vpop.f32.mrb[0].mxu0
      %6942 = vmatprep.mubr.bf16.mxu0 0
      %6943 = vmatmul.mubr.bf16.gmra.mrb[0].mxu0 %v6834
      %v6944 = vpop.f32.mrb[0].mxu0
      %v6945 = vadd.f32 0.0, %v6944
      %v6946 = vpop.f32.mrb[0].mxu0
      %v6947 = vpop.f32.mrb[0].mxu0
      %v6948 = vadd.f32 0.0, %v6947
      %v6949 = vpop.f32.mrb[0].mxu0
      %6950 = vmatprep.mubr.bf16.mxu0 0
      %6951 = vmatmul.mubr.bf16.gmra.mrb[0].mxu0 %v6837
      %v6952 = vpop.f32.mrb[0].mxu0
      %v6953 = vadd.f32 0.0, %v6952
      %v6954 = vpop.f32.mrb[0].mxu0
      %v6955 = vpop.f32.mrb[0].mxu0
      %v6956 = vadd.f32 0.0, %v6955
      %v6957 = vpop.f32.mrb[0].mxu0
      %6958 = vmatprep.mubr.bf16.mxu0 0
      %6959 = vmatmul.mubr.bf16.gmra.mrb[0].mxu0 %v6840
      %v6960 = vpop.f32.mrb[0].mxu0
      %v6961 = vadd.f32 0.0, %v6960
      %v6962 = vpop.f32.mrb[0].mxu0
      %v6963 = vpop.f32.mrb[0].mxu0
      %v6964 = vadd.f32 0.0, %v6963
      %v6965 = vpop.f32.mrb[0].mxu0
      %6966 = vmatprep.mubr.bf16.mxu0 0
      %6967 = vmatmul.mubr.bf16.gmra.mrb[0].mxu0 %v6843
      %v6968 = vpop.f32.mrb[0].mxu0
      %v6969 = vadd.f32 0.0, %v6968
      %v6970 = vpop.f32.mrb[0].mxu0
      %v6971 = vpop.f32.mrb[0].mxu0
      %v6972 = vadd.f32 0.0, %v6971
      %v6973 = vpop.f32.mrb[0].mxu0
      %6974 = vmatprep.mubr.bf16.mxu0 0
      %6975 = vmatmul.mubr.bf16.gmra.mrb[0].mxu0 %v6846
      %v6976 = vpop.f32.mrb[0].mxu0
      %v6977 = vadd.f32 0.0, %v6976
      %v6978 = vpop.f32.mrb[0].mxu0
      %v6979 = vpop.f32.mrb[0].mxu0
      %v6980 = vadd.f32 0.0, %v6979
      %v6981 = vpop.f32.mrb[0].mxu0
      %6982 = vmatprep.mubr.bf16.mxu0 0
      %6983 = vmatmul.mubr.bf16.gmra.mrb[0].mxu0 %v6849
      %v6984 = vpop.f32.mrb[0].mxu0
      %v6985 = vadd.f32 0.0, %v6984
      %v6986 = vpop.f32.mrb[0].mxu0
      %v6987 = vpop.f32.mrb[0].mxu0
      %v6988 = vadd.f32 0.0, %v6987
      %v6989 = vpop.f32.mrb[0].mxu0
      %6990 = vmatprep.mubr.bf16.mxu0 0
      %6991 = vmatmul.mubr.bf16.gmra.mrb[0].mxu0 %v6852
      %v6992 = vpop.f32.mrb[0].mxu0
      %v6993 = vadd.f32 0.0, %v6992
      %v6994 = vpop.f32.mrb[0].mxu0
      %v6995 = vpop.f32.mrb[0].mxu0
      %v6996 = vadd.f32 0.0, %v6995
      %v6997 = vpop.f32.mrb[0].mxu0
      %6998 = vmatprep.mubr.bf16.mxu0 0
      %6999 = vmatmul.mubr.bf16.gmra.mrb[0].mxu0 %v6855
      %v7000 = vpop.f32.mrb[0].mxu0
      %v7001 = vadd.f32 0.0, %v7000
      %v7002 = vpop.f32.mrb[0].mxu0
      %v7003 = vpop.f32.mrb[0].mxu0
      %v7004 = vadd.f32 0.0, %v7003
      %v7005 = vpop.f32.mrb[0].mxu0
      %7006 = vmatprep.mubr.bf16.mxu0 0
      %7007 = vmatmul.mubr.bf16.gmra.mrb[0].mxu0 %v6858
      %v7008 = vpop.f32.mrb[0].mxu0
      %v7009 = vadd.f32 0.0, %v7008
      %v7010 = vpop.f32.mrb[0].mxu0
      %v7011 = vpop.f32.mrb[0].mxu0
      %v7012 = vadd.f32 0.0, %v7011
      %v7013 = vpop.f32.mrb[0].mxu0
      %7014 = vmatprep.mubr.bf16.mxu0 0
      %7015 = vmatmul.mubr.bf16.gmra.mrb[0].mxu0 %v6861
      %v7016 = vpop.f32.mrb[0].mxu0
      %v7017 = vadd.f32 0.0, %v7016
      %v7018 = vpop.f32.mrb[0].mxu0
      %v7019 = vpop.f32.mrb[0].mxu0
      %v7020 = vadd.f32 0.0, %v7019
      %v7021 = vpop.f32.mrb[0].mxu0
      %7022 = vmatprep.mubr.bf16.mxu0 0
      %7023 = vmatmul.mubr.bf16.gmra.mrb[0].mxu0 %v6864
      %v7024 = vpop.f32.mrb[0].mxu0
      %v7025 = vadd.f32 0.0, %v7024
      %v7026 = vpop.f32.mrb[0].mxu0
      %v7027 = vpop.f32.mrb[0].mxu0
      %v7028 = vadd.f32 0.0, %v7027
      %v7029 = vpop.f32.mrb[0].mxu0
      %7030 = vmatprep.mubr.bf16.mxu0 0
      %7031 = vmatmul.mubr.bf16.gmra.mrb[0].mxu0 %v6867
      %v7032 = vpop.f32.mrb[0].mxu0
      %v7033 = vadd.f32 0.0, %v7032
      %v7034 = vpop.f32.mrb[0].mxu0
      %v7035 = vpop.f32.mrb[0].mxu0
      %v7036 = vadd.f32 0.0, %v7035
      %v7037 = vpop.f32.mrb[0].mxu0
      %7038 = vmatprep.mubr.bf16.mxu0 0
      %7039 = vmatmul.mubr.bf16.gmra.mrb[0].mxu0 %v6870
      %v7040 = vpop.f32.mrb[0].mxu0
      %v7041 = vadd.f32 0.0, %v7040
      %v7042 = vpop.f32.mrb[0].mxu0
      %v7043 = vpop.f32.mrb[0].mxu0
      %v7044 = vadd.f32 0.0, %v7043
      %v7045 = vpop.f32.mrb[0].mxu0
      %7046 = vmatprep.mubr.bf16.mxu0 0
      %7047 = vmatmul.mubr.bf16.gmra.mrb[0].mxu0 %v6873
      %v7048 = vpop.f32.mrb[0].mxu0
      %v7049 = vadd.f32 0.0, %v7048
      %v7050 = vpop.f32.mrb[0].mxu0
      %v7051 = vpop.f32.mrb[0].mxu0
      %v7052 = vadd.f32 0.0, %v7051
      %v7053 = vpop.f32.mrb[0].mxu0
      %7054 = vdwg.mxu0
      %v7055 = vadd.f32 %v6742, %v6913
      %v7056 = vadd.f32 %v6743, %v6916
      %v7057 = vadd.f32 %v6744, %v6921
      %v7058 = vadd.f32 %v6745, %v6924
      %v7059 = vadd.f32 %v6746, %v6929
      %v7060 = vadd.f32 %v6747, %v6932
      %v7061 = vadd.f32 %v6748, %v6937
      %v7062 = vadd.f32 %v6749, %v6940
      %v7063 = vadd.f32 %v6750, %v6945
      %v7064 = vadd.f32 %v6751, %v6948
      %v7065 = vadd.f32 %v6752, %v6953
      %v7066 = vadd.f32 %v6753, %v6956
      %v7067 = vadd.f32 %v6754, %v6961
      %v7068 = vadd.f32 %v6755, %v6964
      %v7069 = vadd.f32 %v6756, %v6969
      %v7070 = vadd.f32 %v6757, %v6972
      %v7071 = vadd.f32 %v6758, %v6977
      %v7072 = vadd.f32 %v6759, %v6980
      %v7073 = vadd.f32 %v6760, %v6985
      %v7074 = vadd.f32 %v6761, %v6988
      %v7075 = vadd.f32 %v6762, %v6993
      %v7076 = vadd.f32 %v6763, %v6996
      %v7077 = vadd.f32 %v6764, %v7001
      %v7078 = vadd.f32 %v6765, %v7004
      %v7079 = vadd.f32 %v6766, %v7009
      %v7080 = vadd.f32 %v6767, %v7012
      %v7081 = vadd.f32 %v6768, %v7017
      %v7082 = vadd.f32 %v6769, %v7020
      %v7083 = vadd.f32 %v6770, %v7025
      %v7084 = vadd.f32 %v6771, %v7028
      %v7085 = vadd.f32 %v6772, %v7033
      %v7086 = vadd.f32 %v6773, %v7036
      %v7087 = vadd.f32 %v6774, %v7041
      %v7088 = vadd.f32 %v6775, %v7044
      %v7089 = vadd.f32 %v6776, %v7049
      %v7090 = vadd.f32 %v6777, %v7052
      %v7091 = vld [vmem:[#allocation2 + $0x10] sm:$0xc]
      %v7092 = vld [vmem:[#allocation2 + $0x14] sm:$0xf]
      %v7093 = vld [vmem:[#allocation2 + $0x18] sm:$0xf]
      %v7094 = vld [vmem:[#allocation2 + $0x1c] sm:$0xf]
      %v7095 = vld [vmem:[#allocation2 + $0x20] sm:$0xf]
      %v7096 = vld [vmem:[#allocation2 + $0x24] sm:$0xf]
      %v7097 = vld [vmem:[#allocation2 + $0x28] sm:$0xf]
      %v7098 = vld [vmem:[#allocation2 + $0x2c] sm:$0xf]
      %v7099 = vld [vmem:[#allocation2 + $0x30] sm:$0xf]
      %v7100 = vld [vmem:[#allocation2 + $0x34] sm:$0xf]
      %v7101 = vld [vmem:[#allocation2 + $0x38] sm:$0xf]
      %v7102 = vld [vmem:[#allocation2 + $0x3c] sm:$0xf]
      %v7103 = vld [vmem:[#allocation2 + $0x40] sm:$0xf]
      %v7104 = vld [vmem:[#allocation2 + $0x44] sm:$0xf]
      %v7105 = vld [vmem:[#allocation2 + $0x48] sm:$0xf]
      %v7106 = vld [vmem:[#allocation2 + $0x4c] sm:$0xf]
      %v7107 = vld [vmem:[#allocation2 + $0x50] sm:$0xf]
      %v7108 = vld [vmem:[#allocation2 + $0x54] sm:$0xf]
      %v7109 = vld [vmem:[#allocation2 + $0x58] sm:$0xf]
      %v7110 = vld [vmem:[#allocation2 + $0x5c] sm:$0xf]
      %v7111 = vld [vmem:[#allocation2 + $0x60] sm:$0xf]
      %v7112 = vld [vmem:[#allocation2 + $0x64] sm:$0xf]
      %v7113 = vld [vmem:[#allocation2 + $0x68] sm:$0xf]
      %v7114 = vld [vmem:[#allocation2 + $0x6c] sm:$0xf]
      %v7115 = vld [vmem:[#allocation2 + $0x70] sm:$0xf]
      %v7116 = vld [vmem:[#allocation2 + $0x74] sm:$0xf]
      %v7117 = vld [vmem:[#allocation2 + $0x78] sm:$0xf]
      %v7118 = vld [vmem:[#allocation2 + $0x7c] sm:$0xf]
      %v7119 = vld [vmem:[#allocation2 + $0x80] sm:$0xf]
      %v7120 = vld [vmem:[#allocation2 + $0x84] sm:$0xf]
      %v7121 = vld [vmem:[#allocation2 + $0x88] sm:$0xf]
      %v7122 = vld [vmem:[#allocation2 + $0x8c] sm:$0xf]
      %v7123 = vld [vmem:[#allocation2 + $0x90] sm:$0xf]
      %v7124 = vld [vmem:[#allocation2 + $0x94] sm:$0xf]
      %v7125 = vld [vmem:[#allocation2 + $0x98] sm:$0xf]
      %v7126 = vld [vmem:[#allocation2 + $0x9c] sm:$0xf]
      %v7127 = vld [vmem:[#allocation2 + $0xa0] sm:$0x1]
      %s7128 = scalar_lea.vmem %s4, 12
      %v7129 = vld [vmem:[%s7128] sm:$0x3]
      %v7167 = vunpack.c.l.b16 %v7091
      %v7168 = vunpack.c.l.b16 %v7092
      %v7169 = vunpack.c.l.b16 %v7093
      %v7170 = vunpack.c.l.b16 %v7094
      %v7171 = vunpack.c.l.b16 %v7095
      %v7172 = vunpack.c.l.b16 %v7096
      %v7173 = vunpack.c.l.b16 %v7097
      %v7174 = vunpack.c.l.b16 %v7098
      %v7175 = vunpack.c.l.b16 %v7099
      %v7176 = vunpack.c.l.b16 %v7100
      %v7177 = vunpack.c.l.b16 %v7101
      %v7178 = vunpack.c.l.b16 %v7102
      %v7179 = vunpack.c.l.b16 %v7103
      %v7180 = vunpack.c.l.b16 %v7104
      %v7181 = vunpack.c.l.b16 %v7105
      %v7182 = vunpack.c.l.b16 %v7106
      %v7183 = vunpack.c.l.b16 %v7107
      %v7184 = vunpack.c.l.b16 %v7108
      %v7185 = vunpack.c.l.b16 %v7109
      %v7186 = vunpack.c.l.b16 %v7110
      %v7187 = vunpack.c.l.b16 %v7111
      %v7188 = vunpack.c.l.b16 %v7112
      %v7189 = vunpack.c.l.b16 %v7113
      %v7190 = vunpack.c.l.b16 %v7114
      %v7191 = vunpack.c.l.b16 %v7115
      %v7192 = vunpack.c.l.b16 %v7116
      %v7193 = vunpack.c.l.b16 %v7117
      %v7194 = vunpack.c.l.b16 %v7118
      %v7195 = vunpack.c.l.b16 %v7119
      %v7196 = vunpack.c.l.b16 %v7120
      %v7197 = vunpack.c.l.b16 %v7121
      %v7198 = vunpack.c.l.b16 %v7122
      %v7199 = vunpack.c.l.b16 %v7123
      %v7200 = vunpack.c.l.b16 %v7124
      %v7201 = vunpack.c.l.b16 %v7125
      %v7202 = vunpack.c.l.b16 %v7126
      %v7203 = vunpack.c.l.b16 %v7127
      %v7204 = vpack.c.b16 %v7168, %v7167
      %v7205 = vpack.c.b16 %v7170, %v7169
      %v7206 = vpack.c.b16 %v7172, %v7171
      %v7207 = vpack.c.b16 %v7174, %v7173
      %v7208 = vpack.c.b16 %v7176, %v7175
      %v7209 = vpack.c.b16 %v7178, %v7177
      %v7210 = vpack.c.b16 %v7180, %v7179
      %v7211 = vpack.c.b16 %v7182, %v7181
      %v7212 = vpack.c.b16 %v7184, %v7183
      %v7213 = vpack.c.b16 %v7186, %v7185
      %v7214 = vpack.c.b16 %v7188, %v7187
      %v7215 = vpack.c.b16 %v7190, %v7189
      %v7216 = vpack.c.b16 %v7192, %v7191
      %v7217 = vpack.c.b16 %v7194, %v7193
      %v7218 = vpack.c.b16 %v7196, %v7195
      %v7219 = vpack.c.b16 %v7198, %v7197
      %v7220 = vpack.c.b16 %v7200, %v7199
      %v7221 = vpack.c.b16 %v7202, %v7201
      %v7222 = vpack.c.b16 %v7203, %v7203
      %v7223 = vrot.slane %v7204, 2
      %v7224 = vrot.slane %v7205, 2
      %v7225 = vsel %vm2303, %v7223, %v7224
      %v7226 = vrot.slane %v7206, 2
      %v7227 = vsel %vm2303, %v7224, %v7226
      %v7228 = vrot.slane %v7207, 2
      %v7229 = vsel %vm2303, %v7226, %v7228
      %v7230 = vrot.slane %v7208, 2
      %v7231 = vsel %vm2303, %v7228, %v7230
      %v7232 = vrot.slane %v7209, 2
      %v7233 = vsel %vm2303, %v7230, %v7232
      %v7234 = vrot.slane %v7210, 2
      %v7235 = vsel %vm2303, %v7232, %v7234
      %v7236 = vrot.slane %v7211, 2
      %v7237 = vsel %vm2303, %v7234, %v7236
      %v7238 = vrot.slane %v7212, 2
      %v7239 = vsel %vm2303, %v7236, %v7238
      %v7240 = vrot.slane %v7213, 2
      %v7241 = vsel %vm2303, %v7238, %v7240
      %v7242 = vrot.slane %v7214, 2
      %v7243 = vsel %vm2303, %v7240, %v7242
      %v7244 = vrot.slane %v7215, 2
      %v7245 = vsel %vm2303, %v7242, %v7244
      %v7246 = vrot.slane %v7216, 2
      %v7247 = vsel %vm2303, %v7244, %v7246
      %v7248 = vrot.slane %v7217, 2
      %v7249 = vsel %vm2303, %v7246, %v7248
      %v7250 = vrot.slane %v7218, 2
      %v7251 = vsel %vm2303, %v7248, %v7250
      %v7252 = vrot.slane %v7219, 2
      %v7253 = vsel %vm2303, %v7250, %v7252
      %v7254 = vrot.slane %v7220, 2
      %v7255 = vsel %vm2303, %v7252, %v7254
      %v7256 = vrot.slane %v7221, 2
      %v7257 = vsel %vm2303, %v7254, %v7256
      %v7258 = vrot.slane %v7222, 2
      %v7259 = vsel %vm2303, %v7256, %v7258
      %v7261 = vsel %vm527, %v7225, 0
      %v7264 = vsel %vm527, %v7227, 0
      %v7267 = vsel %vm527, %v7229, 0
      %v7270 = vsel %vm527, %v7231, 0
      %v7273 = vsel %vm527, %v7233, 0
      %v7276 = vsel %vm527, %v7235, 0
      %v7279 = vsel %vm527, %v7237, 0
      %v7282 = vsel %vm527, %v7239, 0
      %v7285 = vsel %vm527, %v7241, 0
      %v7288 = vsel %vm527, %v7243, 0
      %v7291 = vsel %vm527, %v7245, 0
      %v7294 = vsel %vm527, %v7247, 0
      %v7297 = vsel %vm527, %v7249, 0
      %v7300 = vsel %vm527, %v7251, 0
      %v7303 = vsel %vm527, %v7253, 0
      %v7306 = vsel %vm527, %v7255, 0
      %v7309 = vsel %vm527, %v7257, 0
      %v7312 = vsel %vm527, %v7259, 0
      %v7315 = vsel %vm582, %v7129, 0
      %7317 = vmatprep.subr.bf16.mxu0 0
      %7318 = vmatpush1.bf16.msra.mxu0 %v7315
      %7319 = vmatprep.subr.bf16.mxu0 0
      %7320 = vmatpush1.bf16.msra.mxu0 0
      %7321 = vmatprep.subr.bf16.mxu0 0
      %7322 = vmatpush1.bf16.msra.mxu0 0
      %7323 = vmatprep.subr.bf16.mxu0 0
      %7324 = vmatpush1.bf16.msra.mxu0 0
      %7325 = vmatprep.subr.bf16.mxu0 0
      %7326 = vmatpush1.bf16.msra.mxu0 0
      %7327 = vmatprep.subr.bf16.mxu0 0
      %7328 = vmatpush1.bf16.msra.mxu0 0
      %7329 = vmatprep.subr.bf16.mxu0 0
      %7330 = vmatpush1.bf16.msra.mxu0 0
      %7331 = vmatprep.subr.bf16.mxu0 0
      %7332 = vmatpush1.bf16.msra.mxu0 0
      %7333 = vmatprep.subr.bf16.mxu0 0
      %7334 = vmatpush1.bf16.msra.mxu0 0
      %7335 = vmatprep.subr.bf16.mxu0 0
      %7336 = vmatpush1.bf16.msra.mxu0 0
      %7337 = vmatprep.subr.bf16.mxu0 0
      %7338 = vmatpush1.bf16.msra.mxu0 0
      %7339 = vmatprep.subr.bf16.mxu0 0
      %7340 = vmatpush1.bf16.msra.mxu0 0
      %7341 = vmatprep.subr.bf16.mxu0 0
      %7342 = vmatpush1.bf16.msra.mxu0 0
      %7343 = vmatprep.subr.bf16.mxu0 0
      %7344 = vmatpush1.bf16.msra.mxu0 0
      %7345 = vmatprep.subr.bf16.mxu0 0
      %7346 = vmatpush1.bf16.msra.mxu0 0
      %7347 = vmatprep.subr.bf16.mxu0 0
      %7348 = vmatpush1.bf16.msra.mxu0 0
      %7349 = vmatprep.mubr.bf16.mxu0 0
      %7350 = vmatmul.mubr.bf16.gmra.mrb[0].mxu0 %v7261
      %v7351 = vpop.f32.mrb[0].mxu0
      %v7352 = vadd.f32 0.0, %v7351
      %v7353 = vpop.f32.mrb[0].mxu0
      %v7354 = vpop.f32.mrb[0].mxu0
      %v7355 = vadd.f32 0.0, %v7354
      %v7356 = vpop.f32.mrb[0].mxu0
      %7357 = vmatprep.mubr.bf16.mxu0 0
      %7358 = vmatmul.mubr.bf16.gmra.mrb[0].mxu0 %v7264
      %v7359 = vpop.f32.mrb[0].mxu0
      %v7360 = vadd.f32 0.0, %v7359
      %v7361 = vpop.f32.mrb[0].mxu0
      %v7362 = vpop.f32.mrb[0].mxu0
      %v7363 = vadd.f32 0.0, %v7362
      %v7364 = vpop.f32.mrb[0].mxu0
      %7365 = vmatprep.mubr.bf16.mxu0 0
      %7366 = vmatmul.mubr.bf16.gmra.mrb[0].mxu0 %v7267
      %v7367 = vpop.f32.mrb[0].mxu0
      %v7368 = vadd.f32 0.0, %v7367
      %v7369 = vpop.f32.mrb[0].mxu0
      %v7370 = vpop.f32.mrb[0].mxu0
      %v7371 = vadd.f32 0.0, %v7370
      %v7372 = vpop.f32.mrb[0].mxu0
      %7373 = vmatprep.mubr.bf16.mxu0 0
      %7374 = vmatmul.mubr.bf16.gmra.mrb[0].mxu0 %v7270
      %v7375 = vpop.f32.mrb[0].mxu0
      %v7376 = vadd.f32 0.0, %v7375
      %v7377 = vpop.f32.mrb[0].mxu0
      %v7378 = vpop.f32.mrb[0].mxu0
      %v7379 = vadd.f32 0.0, %v7378
      %v7380 = vpop.f32.mrb[0].mxu0
      %7381 = vmatprep.mubr.bf16.mxu0 0
      %7382 = vmatmul.mubr.bf16.gmra.mrb[0].mxu0 %v7273
      %v7383 = vpop.f32.mrb[0].mxu0
      %v7384 = vadd.f32 0.0, %v7383
      %v7385 = vpop.f32.mrb[0].mxu0
      %v7386 = vpop.f32.mrb[0].mxu0
      %v7387 = vadd.f32 0.0, %v7386
      %v7388 = vpop.f32.mrb[0].mxu0
      %7389 = vmatprep.mubr.bf16.mxu0 0
      %7390 = vmatmul.mubr.bf16.gmra.mrb[0].mxu0 %v7276
      %v7391 = vpop.f32.mrb[0].mxu0
      %v7392 = vadd.f32 0.0, %v7391
      %v7393 = vpop.f32.mrb[0].mxu0
      %v7394 = vpop.f32.mrb[0].mxu0
      %v7395 = vadd.f32 0.0, %v7394
      %v7396 = vpop.f32.mrb[0].mxu0
      %7397 = vmatprep.mubr.bf16.mxu0 0
      %7398 = vmatmul.mubr.bf16.gmra.mrb[0].mxu0 %v7279
      %v7399 = vpop.f32.mrb[0].mxu0
      %v7400 = vadd.f32 0.0, %v7399
      %v7401 = vpop.f32.mrb[0].mxu0
      %v7402 = vpop.f32.mrb[0].mxu0
      %v7403 = vadd.f32 0.0, %v7402
      %v7404 = vpop.f32.mrb[0].mxu0
      %7405 = vmatprep.mubr.bf16.mxu0 0
      %7406 = vmatmul.mubr.bf16.gmra.mrb[0].mxu0 %v7282
      %v7407 = vpop.f32.mrb[0].mxu0
      %v7408 = vadd.f32 0.0, %v7407
      %v7409 = vpop.f32.mrb[0].mxu0
      %v7410 = vpop.f32.mrb[0].mxu0
      %v7411 = vadd.f32 0.0, %v7410
      %v7412 = vpop.f32.mrb[0].mxu0
      %7413 = vmatprep.mubr.bf16.mxu0 0
      %7414 = vmatmul.mubr.bf16.gmra.mrb[0].mxu0 %v7285
      %v7415 = vpop.f32.mrb[0].mxu0
      %v7416 = vadd.f32 0.0, %v7415
      %v7417 = vpop.f32.mrb[0].mxu0
      %v7418 = vpop.f32.mrb[0].mxu0
      %v7419 = vadd.f32 0.0, %v7418
      %v7420 = vpop.f32.mrb[0].mxu0
      %7421 = vmatprep.mubr.bf16.mxu0 0
      %7422 = vmatmul.mubr.bf16.gmra.mrb[0].mxu0 %v7288
      %v7423 = vpop.f32.mrb[0].mxu0
      %v7424 = vadd.f32 0.0, %v7423
      %v7425 = vpop.f32.mrb[0].mxu0
      %v7426 = vpop.f32.mrb[0].mxu0
      %v7427 = vadd.f32 0.0, %v7426
      %v7428 = vpop.f32.mrb[0].mxu0
      %7429 = vmatprep.mubr.bf16.mxu0 0
      %7430 = vmatmul.mubr.bf16.gmra.mrb[0].mxu0 %v7291
      %v7431 = vpop.f32.mrb[0].mxu0
      %v7432 = vadd.f32 0.0, %v7431
      %v7433 = vpop.f32.mrb[0].mxu0
      %v7434 = vpop.f32.mrb[0].mxu0
      %v7435 = vadd.f32 0.0, %v7434
      %v7436 = vpop.f32.mrb[0].mxu0
      %7437 = vmatprep.mubr.bf16.mxu0 0
      %7438 = vmatmul.mubr.bf16.gmra.mrb[0].mxu0 %v7294
      %v7439 = vpop.f32.mrb[0].mxu0
      %v7440 = vadd.f32 0.0, %v7439
      %v7441 = vpop.f32.mrb[0].mxu0
      %v7442 = vpop.f32.mrb[0].mxu0
      %v7443 = vadd.f32 0.0, %v7442
      %v7444 = vpop.f32.mrb[0].mxu0
      %7445 = vmatprep.mubr.bf16.mxu0 0
      %7446 = vmatmul.mubr.bf16.gmra.mrb[0].mxu0 %v7297
      %v7447 = vpop.f32.mrb[0].mxu0
      %v7448 = vadd.f32 0.0, %v7447
      %v7449 = vpop.f32.mrb[0].mxu0
      %v7450 = vpop.f32.mrb[0].mxu0
      %v7451 = vadd.f32 0.0, %v7450
      %v7452 = vpop.f32.mrb[0].mxu0
      %7453 = vmatprep.mubr.bf16.mxu0 0
      %7454 = vmatmul.mubr.bf16.gmra.mrb[0].mxu0 %v7300
      %v7455 = vpop.f32.mrb[0].mxu0
      %v7456 = vadd.f32 0.0, %v7455
      %v7457 = vpop.f32.mrb[0].mxu0
      %v7458 = vpop.f32.mrb[0].mxu0
      %v7459 = vadd.f32 0.0, %v7458
      %v7460 = vpop.f32.mrb[0].mxu0
      %7461 = vmatprep.mubr.bf16.mxu0 0
      %7462 = vmatmul.mubr.bf16.gmra.mrb[0].mxu0 %v7303
      %v7463 = vpop.f32.mrb[0].mxu0
      %v7464 = vadd.f32 0.0, %v7463
      %v7465 = vpop.f32.mrb[0].mxu0
      %v7466 = vpop.f32.mrb[0].mxu0
      %v7467 = vadd.f32 0.0, %v7466
      %v7468 = vpop.f32.mrb[0].mxu0
      %7469 = vmatprep.mubr.bf16.mxu0 0
      %7470 = vmatmul.mubr.bf16.gmra.mrb[0].mxu0 %v7306
      %v7471 = vpop.f32.mrb[0].mxu0
      %v7472 = vadd.f32 0.0, %v7471
      %v7473 = vpop.f32.mrb[0].mxu0
      %v7474 = vpop.f32.mrb[0].mxu0
      %v7475 = vadd.f32 0.0, %v7474
      %v7476 = vpop.f32.mrb[0].mxu0
      %7477 = vmatprep.mubr.bf16.mxu0 0
      %7478 = vmatmul.mubr.bf16.gmra.mrb[0].mxu0 %v7309
      %v7479 = vpop.f32.mrb[0].mxu0
      %v7480 = vadd.f32 0.0, %v7479
      %v7481 = vpop.f32.mrb[0].mxu0
      %v7482 = vpop.f32.mrb[0].mxu0
      %v7483 = vadd.f32 0.0, %v7482
      %v7484 = vpop.f32.mrb[0].mxu0
      %7485 = vmatprep.mubr.bf16.mxu0 0
      %7486 = vmatmul.mubr.bf16.gmra.mrb[0].mxu0 %v7312
      %v7487 = vpop.f32.mrb[0].mxu0
      %v7488 = vadd.f32 0.0, %v7487
      %v7489 = vpop.f32.mrb[0].mxu0
      %v7490 = vpop.f32.mrb[0].mxu0
      %v7491 = vadd.f32 0.0, %v7490
      %v7492 = vpop.f32.mrb[0].mxu0
      %7493 = vdwg.mxu0
      %v7494 = vadd.f32 %v7055, %v7352
      %v7495 = vadd.f32 %v7056, %v7355
      %v7496 = vadd.f32 %v7057, %v7360
      %v7497 = vadd.f32 %v7058, %v7363
      %v7498 = vadd.f32 %v7059, %v7368
      %v7499 = vadd.f32 %v7060, %v7371
      %v7500 = vadd.f32 %v7061, %v7376
      %v7501 = vadd.f32 %v7062, %v7379
      %v7502 = vadd.f32 %v7063, %v7384
      %v7503 = vadd.f32 %v7064, %v7387
      %v7504 = vadd.f32 %v7065, %v7392
      %v7505 = vadd.f32 %v7066, %v7395
      %v7506 = vadd.f32 %v7067, %v7400
      %v7507 = vadd.f32 %v7068, %v7403
      %v7508 = vadd.f32 %v7069, %v7408
      %v7509 = vadd.f32 %v7070, %v7411
      %v7510 = vadd.f32 %v7071, %v7416
      %v7511 = vadd.f32 %v7072, %v7419
      %v7512 = vadd.f32 %v7073, %v7424
      %v7513 = vadd.f32 %v7074, %v7427
      %v7514 = vadd.f32 %v7075, %v7432
      %v7515 = vadd.f32 %v7076, %v7435
      %v7516 = vadd.f32 %v7077, %v7440
      %v7517 = vadd.f32 %v7078, %v7443
      %v7518 = vadd.f32 %v7079, %v7448
      %v7519 = vadd.f32 %v7080, %v7451
      %v7520 = vadd.f32 %v7081, %v7456
      %v7521 = vadd.f32 %v7082, %v7459
      %v7522 = vadd.f32 %v7083, %v7464
      %v7523 = vadd.f32 %v7084, %v7467
      %v7524 = vadd.f32 %v7085, %v7472
      %v7525 = vadd.f32 %v7086, %v7475
      %v7526 = vadd.f32 %v7087, %v7480
      %v7527 = vadd.f32 %v7088, %v7483
      %v7528 = vadd.f32 %v7089, %v7488
      %v7529 = vadd.f32 %v7090, %v7491
      %v7530 = vld [vmem:[#allocation2 + $0xa0] sm:$0x3]
      %s7531 = scalar_lea.vmem %s4, 14
      %v7532 = vld [vmem:[%s7531] sm:$0x3]
      %v7534 = vunpack.c.l.b16 %v7530
      %v7535 = vpack.c.b16 %v7534, %v7534
      %v7537 = vshrl.u32 %v7204, 16
      %v7539 = vrot.slane %v7537, 2
      %v7540 = vshll.u32 %v7204, 16
      %v7542 = vrot.slane %v7540, 3
      %v7543 = vor.u32 %v7539, %v7542
      %v7545 = vshrl.u32 %v7205, 16
      %v7547 = vrot.slane %v7545, 2
      %v7548 = vshll.u32 %v7205, 16
      %v7550 = vrot.slane %v7548, 3
      %v7551 = vor.u32 %v7547, %v7550
      %v7552 = vsel %vm3056, %v7543, %v7551
      %v7554 = vshrl.u32 %v7206, 16
      %v7556 = vrot.slane %v7554, 2
      %v7557 = vshll.u32 %v7206, 16
      %v7559 = vrot.slane %v7557, 3
      %v7560 = vor.u32 %v7556, %v7559
      %v7561 = vsel %vm3056, %v7551, %v7560
      %v7563 = vshrl.u32 %v7207, 16
      %v7565 = vrot.slane %v7563, 2
      %v7566 = vshll.u32 %v7207, 16
      %v7568 = vrot.slane %v7566, 3
      %v7569 = vor.u32 %v7565, %v7568
      %v7570 = vsel %vm3056, %v7560, %v7569
      %v7572 = vshrl.u32 %v7208, 16
      %v7574 = vrot.slane %v7572, 2
      %v7575 = vshll.u32 %v7208, 16
      %v7577 = vrot.slane %v7575, 3
      %v7578 = vor.u32 %v7574, %v7577
      %v7579 = vsel %vm3056, %v7569, %v7578
      %v7581 = vshrl.u32 %v7209, 16
      %v7583 = vrot.slane %v7581, 2
      %v7584 = vshll.u32 %v7209, 16
      %v7586 = vrot.slane %v7584, 3
      %v7587 = vor.u32 %v7583, %v7586
      %v7588 = vsel %vm3056, %v7578, %v7587
      %v7590 = vshrl.u32 %v7210, 16
      %v7592 = vrot.slane %v7590, 2
      %v7593 = vshll.u32 %v7210, 16
      %v7595 = vrot.slane %v7593, 3
      %v7596 = vor.u32 %v7592, %v7595
      %v7597 = vsel %vm3056, %v7587, %v7596
      %v7599 = vshrl.u32 %v7211, 16
      %v7601 = vrot.slane %v7599, 2
      %v7602 = vshll.u32 %v7211, 16
      %v7604 = vrot.slane %v7602, 3
      %v7605 = vor.u32 %v7601, %v7604
      %v7606 = vsel %vm3056, %v7596, %v7605
      %v7608 = vshrl.u32 %v7212, 16
      %v7610 = vrot.slane %v7608, 2
      %v7611 = vshll.u32 %v7212, 16
      %v7613 = vrot.slane %v7611, 3
      %v7614 = vor.u32 %v7610, %v7613
      %v7615 = vsel %vm3056, %v7605, %v7614
      %v7617 = vshrl.u32 %v7213, 16
      %v7619 = vrot.slane %v7617, 2
      %v7620 = vshll.u32 %v7213, 16
      %v7622 = vrot.slane %v7620, 3
      %v7623 = vor.u32 %v7619, %v7622
      %v7624 = vsel %vm3056, %v7614, %v7623
      %v7626 = vshrl.u32 %v7214, 16
      %v7628 = vrot.slane %v7626, 2
      %v7629 = vshll.u32 %v7214, 16
      %v7631 = vrot.slane %v7629, 3
      %v7632 = vor.u32 %v7628, %v7631
      %v7633 = vsel %vm3056, %v7623, %v7632
      %v7635 = vshrl.u32 %v7215, 16
      %v7637 = vrot.slane %v7635, 2
      %v7638 = vshll.u32 %v7215, 16
      %v7640 = vrot.slane %v7638, 3
      %v7641 = vor.u32 %v7637, %v7640
      %v7642 = vsel %vm3056, %v7632, %v7641
      %v7644 = vshrl.u32 %v7216, 16
      %v7646 = vrot.slane %v7644, 2
      %v7647 = vshll.u32 %v7216, 16
      %v7649 = vrot.slane %v7647, 3
      %v7650 = vor.u32 %v7646, %v7649
      %v7651 = vsel %vm3056, %v7641, %v7650
      %v7653 = vshrl.u32 %v7217, 16
      %v7655 = vrot.slane %v7653, 2
      %v7656 = vshll.u32 %v7217, 16
      %v7658 = vrot.slane %v7656, 3
      %v7659 = vor.u32 %v7655, %v7658
      %v7660 = vsel %vm3056, %v7650, %v7659
      %v7662 = vshrl.u32 %v7218, 16
      %v7664 = vrot.slane %v7662, 2
      %v7665 = vshll.u32 %v7218, 16
      %v7667 = vrot.slane %v7665, 3
      %v7668 = vor.u32 %v7664, %v7667
      %v7669 = vsel %vm3056, %v7659, %v7668
      %v7671 = vshrl.u32 %v7219, 16
      %v7673 = vrot.slane %v7671, 2
      %v7674 = vshll.u32 %v7219, 16
      %v7676 = vrot.slane %v7674, 3
      %v7677 = vor.u32 %v7673, %v7676
      %v7678 = vsel %vm3056, %v7668, %v7677
      %v7680 = vshrl.u32 %v7220, 16
      %v7682 = vrot.slane %v7680, 2
      %v7683 = vshll.u32 %v7220, 16
      %v7685 = vrot.slane %v7683, 3
      %v7686 = vor.u32 %v7682, %v7685
      %v7687 = vsel %vm3056, %v7677, %v7686
      %v7689 = vshrl.u32 %v7221, 16
      %v7691 = vrot.slane %v7689, 2
      %v7692 = vshll.u32 %v7221, 16
      %v7694 = vrot.slane %v7692, 3
      %v7695 = vor.u32 %v7691, %v7694
      %v7696 = vsel %vm3056, %v7686, %v7695
      %v7698 = vshrl.u32 %v7535, 16
      %v7700 = vrot.slane %v7698, 2
      %v7701 = vshll.u32 %v7535, 16
      %v7703 = vrot.slane %v7701, 3
      %v7704 = vor.u32 %v7700, %v7703
      %v7705 = vsel %vm3056, %v7695, %v7704
      %v7707 = vsel %vm527, %v7552, 0
      %v7710 = vsel %vm527, %v7561, 0
      %v7713 = vsel %vm527, %v7570, 0
      %v7716 = vsel %vm527, %v7579, 0
      %v7719 = vsel %vm527, %v7588, 0
      %v7722 = vsel %vm527, %v7597, 0
      %v7725 = vsel %vm527, %v7606, 0
      %v7728 = vsel %vm527, %v7615, 0
      %v7731 = vsel %vm527, %v7624, 0
      %v7734 = vsel %vm527, %v7633, 0
      %v7737 = vsel %vm527, %v7642, 0
      %v7740 = vsel %vm527, %v7651, 0
      %v7743 = vsel %vm527, %v7660, 0
      %v7746 = vsel %vm527, %v7669, 0
      %v7749 = vsel %vm527, %v7678, 0
      %v7752 = vsel %vm527, %v7687, 0
      %v7755 = vsel %vm527, %v7696, 0
      %v7758 = vsel %vm527, %v7705, 0
      %v7761 = vsel %vm582, %v7532, 0
      %7763 = vmatprep.subr.bf16.mxu0 0
      %7764 = vmatpush1.bf16.msra.mxu0 %v7761
      %7765 = vmatprep.subr.bf16.mxu0 0
      %7766 = vmatpush1.bf16.msra.mxu0 0
      %7767 = vmatprep.subr.bf16.mxu0 0
      %7768 = vmatpush1.bf16.msra.mxu0 0
      %7769 = vmatprep.subr.bf16.mxu0 0
      %7770 = vmatpush1.bf16.msra.mxu0 0
      %7771 = vmatprep.subr.bf16.mxu0 0
      %7772 = vmatpush1.bf16.msra.mxu0 0
      %7773 = vmatprep.subr.bf16.mxu0 0
      %7774 = vmatpush1.bf16.msra.mxu0 0
      %7775 = vmatprep.subr.bf16.mxu0 0
      %7776 = vmatpush1.bf16.msra.mxu0 0
      %7777 = vmatprep.subr.bf16.mxu0 0
      %7778 = vmatpush1.bf16.msra.mxu0 0
      %7779 = vmatprep.subr.bf16.mxu0 0
      %7780 = vmatpush1.bf16.msra.mxu0 0
      %7781 = vmatprep.subr.bf16.mxu0 0
      %7782 = vmatpush1.bf16.msra.mxu0 0
      %7783 = vmatprep.subr.bf16.mxu0 0
      %7784 = vmatpush1.bf16.msra.mxu0 0
      %7785 = vmatprep.subr.bf16.mxu0 0
      %7786 = vmatpush1.bf16.msra.mxu0 0
      %7787 = vmatprep.subr.bf16.mxu0 0
      %7788 = vmatpush1.bf16.msra.mxu0 0
      %7789 = vmatprep.subr.bf16.mxu0 0
      %7790 = vmatpush1.bf16.msra.mxu0 0
      %7791 = vmatprep.subr.bf16.mxu0 0
      %7792 = vmatpush1.bf16.msra.mxu0 0
      %7793 = vmatprep.subr.bf16.mxu0 0
      %7794 = vmatpush1.bf16.msra.mxu0 0
      %7795 = vmatprep.mubr.bf16.mxu0 0
      %7796 = vmatmul.mubr.bf16.gmra.mrb[0].mxu0 %v7707
      %v7797 = vpop.f32.mrb[0].mxu0
      %v7798 = vadd.f32 0.0, %v7797
      %v7799 = vpop.f32.mrb[0].mxu0
      %v7800 = vpop.f32.mrb[0].mxu0
      %v7801 = vadd.f32 0.0, %v7800
      %v7802 = vpop.f32.mrb[0].mxu0
      %7803 = vmatprep.mubr.bf16.mxu0 0
      %7804 = vmatmul.mubr.bf16.gmra.mrb[0].mxu0 %v7710
      %v7805 = vpop.f32.mrb[0].mxu0
      %v7806 = vadd.f32 0.0, %v7805
      %v7807 = vpop.f32.mrb[0].mxu0
      %v7808 = vpop.f32.mrb[0].mxu0
      %v7809 = vadd.f32 0.0, %v7808
      %v7810 = vpop.f32.mrb[0].mxu0
      %7811 = vmatprep.mubr.bf16.mxu0 0
      %7812 = vmatmul.mubr.bf16.gmra.mrb[0].mxu0 %v7713
      %v7813 = vpop.f32.mrb[0].mxu0
      %v7814 = vadd.f32 0.0, %v7813
      %v7815 = vpop.f32.mrb[0].mxu0
      %v7816 = vpop.f32.mrb[0].mxu0
      %v7817 = vadd.f32 0.0, %v7816
      %v7818 = vpop.f32.mrb[0].mxu0
      %7819 = vmatprep.mubr.bf16.mxu0 0
      %7820 = vmatmul.mubr.bf16.gmra.mrb[0].mxu0 %v7716
      %v7821 = vpop.f32.mrb[0].mxu0
      %v7822 = vadd.f32 0.0, %v7821
      %v7823 = vpop.f32.mrb[0].mxu0
      %v7824 = vpop.f32.mrb[0].mxu0
      %v7825 = vadd.f32 0.0, %v7824
      %v7826 = vpop.f32.mrb[0].mxu0
      %7827 = vmatprep.mubr.bf16.mxu0 0
      %7828 = vmatmul.mubr.bf16.gmra.mrb[0].mxu0 %v7719
      %v7829 = vpop.f32.mrb[0].mxu0
      %v7830 = vadd.f32 0.0, %v7829
      %v7831 = vpop.f32.mrb[0].mxu0
      %v7832 = vpop.f32.mrb[0].mxu0
      %v7833 = vadd.f32 0.0, %v7832
      %v7834 = vpop.f32.mrb[0].mxu0
      %7835 = vmatprep.mubr.bf16.mxu0 0
      %7836 = vmatmul.mubr.bf16.gmra.mrb[0].mxu0 %v7722
      %v7837 = vpop.f32.mrb[0].mxu0
      %v7838 = vadd.f32 0.0, %v7837
      %v7839 = vpop.f32.mrb[0].mxu0
      %v7840 = vpop.f32.mrb[0].mxu0
      %v7841 = vadd.f32 0.0, %v7840
      %v7842 = vpop.f32.mrb[0].mxu0
      %7843 = vmatprep.mubr.bf16.mxu0 0
      %7844 = vmatmul.mubr.bf16.gmra.mrb[0].mxu0 %v7725
      %v7845 = vpop.f32.mrb[0].mxu0
      %v7846 = vadd.f32 0.0, %v7845
      %v7847 = vpop.f32.mrb[0].mxu0
      %v7848 = vpop.f32.mrb[0].mxu0
      %v7849 = vadd.f32 0.0, %v7848
      %v7850 = vpop.f32.mrb[0].mxu0
      %7851 = vmatprep.mubr.bf16.mxu0 0
      %7852 = vmatmul.mubr.bf16.gmra.mrb[0].mxu0 %v7728
      %v7853 = vpop.f32.mrb[0].mxu0
      %v7854 = vadd.f32 0.0, %v7853
      %v7855 = vpop.f32.mrb[0].mxu0
      %v7856 = vpop.f32.mrb[0].mxu0
      %v7857 = vadd.f32 0.0, %v7856
      %v7858 = vpop.f32.mrb[0].mxu0
      %7859 = vmatprep.mubr.bf16.mxu0 0
      %7860 = vmatmul.mubr.bf16.gmra.mrb[0].mxu0 %v7731
      %v7861 = vpop.f32.mrb[0].mxu0
      %v7862 = vadd.f32 0.0, %v7861
      %v7863 = vpop.f32.mrb[0].mxu0
      %v7864 = vpop.f32.mrb[0].mxu0
      %v7865 = vadd.f32 0.0, %v7864
      %v7866 = vpop.f32.mrb[0].mxu0
      %7867 = vmatprep.mubr.bf16.mxu0 0
      %7868 = vmatmul.mubr.bf16.gmra.mrb[0].mxu0 %v7734
      %v7869 = vpop.f32.mrb[0].mxu0
      %v7870 = vadd.f32 0.0, %v7869
      %v7871 = vpop.f32.mrb[0].mxu0
      %v7872 = vpop.f32.mrb[0].mxu0
      %v7873 = vadd.f32 0.0, %v7872
      %v7874 = vpop.f32.mrb[0].mxu0
      %7875 = vmatprep.mubr.bf16.mxu0 0
      %7876 = vmatmul.mubr.bf16.gmra.mrb[0].mxu0 %v7737
      %v7877 = vpop.f32.mrb[0].mxu0
      %v7878 = vadd.f32 0.0, %v7877
      %v7879 = vpop.f32.mrb[0].mxu0
      %v7880 = vpop.f32.mrb[0].mxu0
      %v7881 = vadd.f32 0.0, %v7880
      %v7882 = vpop.f32.mrb[0].mxu0
      %7883 = vmatprep.mubr.bf16.mxu0 0
      %7884 = vmatmul.mubr.bf16.gmra.mrb[0].mxu0 %v7740
      %v7885 = vpop.f32.mrb[0].mxu0
      %v7886 = vadd.f32 0.0, %v7885
      %v7887 = vpop.f32.mrb[0].mxu0
      %v7888 = vpop.f32.mrb[0].mxu0
      %v7889 = vadd.f32 0.0, %v7888
      %v7890 = vpop.f32.mrb[0].mxu0
      %7891 = vmatprep.mubr.bf16.mxu0 0
      %7892 = vmatmul.mubr.bf16.gmra.mrb[0].mxu0 %v7743
      %v7893 = vpop.f32.mrb[0].mxu0
      %v7894 = vadd.f32 0.0, %v7893
      %v7895 = vpop.f32.mrb[0].mxu0
      %v7896 = vpop.f32.mrb[0].mxu0
      %v7897 = vadd.f32 0.0, %v7896
      %v7898 = vpop.f32.mrb[0].mxu0
      %7899 = vmatprep.mubr.bf16.mxu0 0
      %7900 = vmatmul.mubr.bf16.gmra.mrb[0].mxu0 %v7746
      %v7901 = vpop.f32.mrb[0].mxu0
      %v7902 = vadd.f32 0.0, %v7901
      %v7903 = vpop.f32.mrb[0].mxu0
      %v7904 = vpop.f32.mrb[0].mxu0
      %v7905 = vadd.f32 0.0, %v7904
      %v7906 = vpop.f32.mrb[0].mxu0
      %7907 = vmatprep.mubr.bf16.mxu0 0
      %7908 = vmatmul.mubr.bf16.gmra.mrb[0].mxu0 %v7749
      %v7909 = vpop.f32.mrb[0].mxu0
      %v7910 = vadd.f32 0.0, %v7909
      %v7911 = vpop.f32.mrb[0].mxu0
      %v7912 = vpop.f32.mrb[0].mxu0
      %v7913 = vadd.f32 0.0, %v7912
      %v7914 = vpop.f32.mrb[0].mxu0
      %7915 = vmatprep.mubr.bf16.mxu0 0
      %7916 = vmatmul.mubr.bf16.gmra.mrb[0].mxu0 %v7752
      %v7917 = vpop.f32.mrb[0].mxu0
      %v7918 = vadd.f32 0.0, %v7917
      %v7919 = vpop.f32.mrb[0].mxu0
      %v7920 = vpop.f32.mrb[0].mxu0
      %v7921 = vadd.f32 0.0, %v7920
      %v7922 = vpop.f32.mrb[0].mxu0
      %7923 = vmatprep.mubr.bf16.mxu0 0
      %7924 = vmatmul.mubr.bf16.gmra.mrb[0].mxu0 %v7755
      %v7925 = vpop.f32.mrb[0].mxu0
      %v7926 = vadd.f32 0.0, %v7925
      %v7927 = vpop.f32.mrb[0].mxu0
      %v7928 = vpop.f32.mrb[0].mxu0
      %v7929 = vadd.f32 0.0, %v7928
      %v7930 = vpop.f32.mrb[0].mxu0
      %7931 = vmatprep.mubr.bf16.mxu0 0
      %7932 = vmatmul.mubr.bf16.gmra.mrb[0].mxu0 %v7758
      %v7933 = vpop.f32.mrb[0].mxu0
      %v7934 = vadd.f32 0.0, %v7933
      %v7935 = vpop.f32.mrb[0].mxu0
      %v7936 = vpop.f32.mrb[0].mxu0
      %v7937 = vadd.f32 0.0, %v7936
      %v7938 = vpop.f32.mrb[0].mxu0
      %7939 = vdwg.mxu0
      %v7940 = vadd.f32 %v7494, %v7798
      %v7941 = vadd.f32 %v7495, %v7801
      %v7942 = vadd.f32 %v7496, %v7806
      %v7943 = vadd.f32 %v7497, %v7809
      %v7944 = vadd.f32 %v7498, %v7814
      %v7945 = vadd.f32 %v7499, %v7817
      %v7946 = vadd.f32 %v7500, %v7822
      %v7947 = vadd.f32 %v7501, %v7825
      %v7948 = vadd.f32 %v7502, %v7830
      %v7949 = vadd.f32 %v7503, %v7833
      %v7950 = vadd.f32 %v7504, %v7838
      %v7951 = vadd.f32 %v7505, %v7841
      %v7952 = vadd.f32 %v7506, %v7846
      %v7953 = vadd.f32 %v7507, %v7849
      %v7954 = vadd.f32 %v7508, %v7854
      %v7955 = vadd.f32 %v7509, %v7857
      %v7956 = vadd.f32 %v7510, %v7862
      %v7957 = vadd.f32 %v7511, %v7865
      %v7958 = vadd.f32 %v7512, %v7870
      %v7959 = vadd.f32 %v7513, %v7873
      %v7960 = vadd.f32 %v7514, %v7878
      %v7961 = vadd.f32 %v7515, %v7881
      %v7962 = vadd.f32 %v7516, %v7886
      %v7963 = vadd.f32 %v7517, %v7889
      %v7964 = vadd.f32 %v7518, %v7894
      %v7965 = vadd.f32 %v7519, %v7897
      %v7966 = vadd.f32 %v7520, %v7902
      %v7967 = vadd.f32 %v7521, %v7905
      %v7968 = vadd.f32 %v7522, %v7910
      %v7969 = vadd.f32 %v7523, %v7913
      %v7970 = vadd.f32 %v7524, %v7918
      %v7971 = vadd.f32 %v7525, %v7921
      %v7972 = vadd.f32 %v7526, %v7926
      %v7973 = vadd.f32 %v7527, %v7929
      %v7974 = vadd.f32 %v7528, %v7934
      %v7975 = vadd.f32 %v7529, %v7937
      %v7976 = vld [vmem:[#allocation2 + $0x10] sm:$0x8]
      %s7977 = scalar_lea.vmem %s4, 16
      %v7978 = vld [vmem:[%s7977] sm:$0x3]
      %v7980 = vunpack.c.l.b16 %v7976
      %v7981 = vpack.c.b16 %v7168, %v7980
      %v7982 = vrot.slane %v7981, 3
      %v7983 = vrot.slane %v7205, 3
      %v7984 = vsel %vm3503, %v7982, %v7983
      %v7985 = vrot.slane %v7206, 3
      %v7986 = vsel %vm3503, %v7983, %v7985
      %v7987 = vrot.slane %v7207, 3
      %v7988 = vsel %vm3503, %v7985, %v7987
      %v7989 = vrot.slane %v7208, 3
      %v7990 = vsel %vm3503, %v7987, %v7989
      %v7991 = vrot.slane %v7209, 3
      %v7992 = vsel %vm3503, %v7989, %v7991
      %v7993 = vrot.slane %v7210, 3
      %v7994 = vsel %vm3503, %v7991, %v7993
      %v7995 = vrot.slane %v7211, 3
      %v7996 = vsel %vm3503, %v7993, %v7995
      %v7997 = vrot.slane %v7212, 3
      %v7998 = vsel %vm3503, %v7995, %v7997
      %v7999 = vrot.slane %v7213, 3
      %v8000 = vsel %vm3503, %v7997, %v7999
      %v8001 = vrot.slane %v7214, 3
      %v8002 = vsel %vm3503, %v7999, %v8001
      %v8003 = vrot.slane %v7215, 3
      %v8004 = vsel %vm3503, %v8001, %v8003
      %v8005 = vrot.slane %v7216, 3
      %v8006 = vsel %vm3503, %v8003, %v8005
      %v8007 = vrot.slane %v7217, 3
      %v8008 = vsel %vm3503, %v8005, %v8007
      %v8009 = vrot.slane %v7218, 3
      %v8010 = vsel %vm3503, %v8007, %v8009
      %v8011 = vrot.slane %v7219, 3
      %v8012 = vsel %vm3503, %v8009, %v8011
      %v8013 = vrot.slane %v7220, 3
      %v8014 = vsel %vm3503, %v8011, %v8013
      %v8015 = vrot.slane %v7221, 3
      %v8016 = vsel %vm3503, %v8013, %v8015
      %v8017 = vrot.slane %v7535, 3
      %v8018 = vsel %vm3503, %v8015, %v8017
      %v8020 = vsel %vm527, %v7984, 0
      %v8023 = vsel %vm527, %v7986, 0
      %v8026 = vsel %vm527, %v7988, 0
      %v8029 = vsel %vm527, %v7990, 0
      %v8032 = vsel %vm527, %v7992, 0
      %v8035 = vsel %vm527, %v7994, 0
      %v8038 = vsel %vm527, %v7996, 0
      %v8041 = vsel %vm527, %v7998, 0
      %v8044 = vsel %vm527, %v8000, 0
      %v8047 = vsel %vm527, %v8002, 0
      %v8050 = vsel %vm527, %v8004, 0
      %v8053 = vsel %vm527, %v8006, 0
      %v8056 = vsel %vm527, %v8008, 0
      %v8059 = vsel %vm527, %v8010, 0
      %v8062 = vsel %vm527, %v8012, 0
      %v8065 = vsel %vm527, %v8014, 0
      %v8068 = vsel %vm527, %v8016, 0
      %v8071 = vsel %vm527, %v8018, 0
      %v8074 = vsel %vm582, %v7978, 0
      %8076 = vmatprep.subr.bf16.mxu0 0
      %8077 = vmatpush1.bf16.msra.mxu0 %v8074
      %8078 = vmatprep.subr.bf16.mxu0 0
      %8079 = vmatpush1.bf16.msra.mxu0 0
      %8080 = vmatprep.subr.bf16.mxu0 0
      %8081 = vmatpush1.bf16.msra.mxu0 0
      %8082 = vmatprep.subr.bf16.mxu0 0
      %8083 = vmatpush1.bf16.msra.mxu0 0
      %8084 = vmatprep.subr.bf16.mxu0 0
      %8085 = vmatpush1.bf16.msra.mxu0 0
      %8086 = vmatprep.subr.bf16.mxu0 0
      %8087 = vmatpush1.bf16.msra.mxu0 0
      %8088 = vmatprep.subr.bf16.mxu0 0
      %8089 = vmatpush1.bf16.msra.mxu0 0
      %8090 = vmatprep.subr.bf16.mxu0 0
      %8091 = vmatpush1.bf16.msra.mxu0 0
      %8092 = vmatprep.subr.bf16.mxu0 0
      %8093 = vmatpush1.bf16.msra.mxu0 0
      %8094 = vmatprep.subr.bf16.mxu0 0
      %8095 = vmatpush1.bf16.msra.mxu0 0
      %8096 = vmatprep.subr.bf16.mxu0 0
      %8097 = vmatpush1.bf16.msra.mxu0 0
      %8098 = vmatprep.subr.bf16.mxu0 0
      %8099 = vmatpush1.bf16.msra.mxu0 0
      %8100 = vmatprep.subr.bf16.mxu0 0
      %8101 = vmatpush1.bf16.msra.mxu0 0
      %8102 = vmatprep.subr.bf16.mxu0 0
      %8103 = vmatpush1.bf16.msra.mxu0 0
      %8104 = vmatprep.subr.bf16.mxu0 0
      %8105 = vmatpush1.bf16.msra.mxu0 0
      %8106 = vmatprep.subr.bf16.mxu0 0
      %8107 = vmatpush1.bf16.msra.mxu0 0
      %8108 = vmatprep.mubr.bf16.mxu0 0
      %8109 = vmatmul.mubr.bf16.gmra.mrb[0].mxu0 %v8020
      %v8110 = vpop.f32.mrb[0].mxu0
      %v8111 = vadd.f32 0.0, %v8110
      %v8112 = vpop.f32.mrb[0].mxu0
      %v8113 = vpop.f32.mrb[0].mxu0
      %v8114 = vadd.f32 0.0, %v8113
      %v8115 = vpop.f32.mrb[0].mxu0
      %8116 = vmatprep.mubr.bf16.mxu0 0
      %8117 = vmatmul.mubr.bf16.gmra.mrb[0].mxu0 %v8023
      %v8118 = vpop.f32.mrb[0].mxu0
      %v8119 = vadd.f32 0.0, %v8118
      %v8120 = vpop.f32.mrb[0].mxu0
      %v8121 = vpop.f32.mrb[0].mxu0
      %v8122 = vadd.f32 0.0, %v8121
      %v8123 = vpop.f32.mrb[0].mxu0
      %8124 = vmatprep.mubr.bf16.mxu0 0
      %8125 = vmatmul.mubr.bf16.gmra.mrb[0].mxu0 %v8026
      %v8126 = vpop.f32.mrb[0].mxu0
      %v8127 = vadd.f32 0.0, %v8126
      %v8128 = vpop.f32.mrb[0].mxu0
      %v8129 = vpop.f32.mrb[0].mxu0
      %v8130 = vadd.f32 0.0, %v8129
      %v8131 = vpop.f32.mrb[0].mxu0
      %8132 = vmatprep.mubr.bf16.mxu0 0
      %8133 = vmatmul.mubr.bf16.gmra.mrb[0].mxu0 %v8029
      %v8134 = vpop.f32.mrb[0].mxu0
      %v8135 = vadd.f32 0.0, %v8134
      %v8136 = vpop.f32.mrb[0].mxu0
      %v8137 = vpop.f32.mrb[0].mxu0
      %v8138 = vadd.f32 0.0, %v8137
      %v8139 = vpop.f32.mrb[0].mxu0
      %8140 = vmatprep.mubr.bf16.mxu0 0
      %8141 = vmatmul.mubr.bf16.gmra.mrb[0].mxu0 %v8032
      %v8142 = vpop.f32.mrb[0].mxu0
      %v8143 = vadd.f32 0.0, %v8142
      %v8144 = vpop.f32.mrb[0].mxu0
      %v8145 = vpop.f32.mrb[0].mxu0
      %v8146 = vadd.f32 0.0, %v8145
      %v8147 = vpop.f32.mrb[0].mxu0
      %8148 = vmatprep.mubr.bf16.mxu0 0
      %8149 = vmatmul.mubr.bf16.gmra.mrb[0].mxu0 %v8035
      %v8150 = vpop.f32.mrb[0].mxu0
      %v8151 = vadd.f32 0.0, %v8150
      %v8152 = vpop.f32.mrb[0].mxu0
      %v8153 = vpop.f32.mrb[0].mxu0
      %v8154 = vadd.f32 0.0, %v8153
      %v8155 = vpop.f32.mrb[0].mxu0
      %8156 = vmatprep.mubr.bf16.mxu0 0
      %8157 = vmatmul.mubr.bf16.gmra.mrb[0].mxu0 %v8038
      %v8158 = vpop.f32.mrb[0].mxu0
      %v8159 = vadd.f32 0.0, %v8158
      %v8160 = vpop.f32.mrb[0].mxu0
      %v8161 = vpop.f32.mrb[0].mxu0
      %v8162 = vadd.f32 0.0, %v8161
      %v8163 = vpop.f32.mrb[0].mxu0
      %8164 = vmatprep.mubr.bf16.mxu0 0
      %8165 = vmatmul.mubr.bf16.gmra.mrb[0].mxu0 %v8041
      %v8166 = vpop.f32.mrb[0].mxu0
      %v8167 = vadd.f32 0.0, %v8166
      %v8168 = vpop.f32.mrb[0].mxu0
      %v8169 = vpop.f32.mrb[0].mxu0
      %v8170 = vadd.f32 0.0, %v8169
      %v8171 = vpop.f32.mrb[0].mxu0
      %8172 = vmatprep.mubr.bf16.mxu0 0
      %8173 = vmatmul.mubr.bf16.gmra.mrb[0].mxu0 %v8044
      %v8174 = vpop.f32.mrb[0].mxu0
      %v8175 = vadd.f32 0.0, %v8174
      %v8176 = vpop.f32.mrb[0].mxu0
      %v8177 = vpop.f32.mrb[0].mxu0
      %v8178 = vadd.f32 0.0, %v8177
      %v8179 = vpop.f32.mrb[0].mxu0
      %8180 = vmatprep.mubr.bf16.mxu0 0
      %8181 = vmatmul.mubr.bf16.gmra.mrb[0].mxu0 %v8047
      %v8182 = vpop.f32.mrb[0].mxu0
      %v8183 = vadd.f32 0.0, %v8182
      %v8184 = vpop.f32.mrb[0].mxu0
      %v8185 = vpop.f32.mrb[0].mxu0
      %v8186 = vadd.f32 0.0, %v8185
      %v8187 = vpop.f32.mrb[0].mxu0
      %8188 = vmatprep.mubr.bf16.mxu0 0
      %8189 = vmatmul.mubr.bf16.gmra.mrb[0].mxu0 %v8050
      %v8190 = vpop.f32.mrb[0].mxu0
      %v8191 = vadd.f32 0.0, %v8190
      %v8192 = vpop.f32.mrb[0].mxu0
      %v8193 = vpop.f32.mrb[0].mxu0
      %v8194 = vadd.f32 0.0, %v8193
      %v8195 = vpop.f32.mrb[0].mxu0
      %8196 = vmatprep.mubr.bf16.mxu0 0
      %8197 = vmatmul.mubr.bf16.gmra.mrb[0].mxu0 %v8053
      %v8198 = vpop.f32.mrb[0].mxu0
      %v8199 = vadd.f32 0.0, %v8198
      %v8200 = vpop.f32.mrb[0].mxu0
      %v8201 = vpop.f32.mrb[0].mxu0
      %v8202 = vadd.f32 0.0, %v8201
      %v8203 = vpop.f32.mrb[0].mxu0
      %8204 = vmatprep.mubr.bf16.mxu0 0
      %8205 = vmatmul.mubr.bf16.gmra.mrb[0].mxu0 %v8056
      %v8206 = vpop.f32.mrb[0].mxu0
      %v8207 = vadd.f32 0.0, %v8206
      %v8208 = vpop.f32.mrb[0].mxu0
      %v8209 = vpop.f32.mrb[0].mxu0
      %v8210 = vadd.f32 0.0, %v8209
      %v8211 = vpop.f32.mrb[0].mxu0
      %8212 = vmatprep.mubr.bf16.mxu0 0
      %8213 = vmatmul.mubr.bf16.gmra.mrb[0].mxu0 %v8059
      %v8214 = vpop.f32.mrb[0].mxu0
      %v8215 = vadd.f32 0.0, %v8214
      %v8216 = vpop.f32.mrb[0].mxu0
      %v8217 = vpop.f32.mrb[0].mxu0
      %v8218 = vadd.f32 0.0, %v8217
      %v8219 = vpop.f32.mrb[0].mxu0
      %8220 = vmatprep.mubr.bf16.mxu0 0
      %8221 = vmatmul.mubr.bf16.gmra.mrb[0].mxu0 %v8062
      %v8222 = vpop.f32.mrb[0].mxu0
      %v8223 = vadd.f32 0.0, %v8222
      %v8224 = vpop.f32.mrb[0].mxu0
      %v8225 = vpop.f32.mrb[0].mxu0
      %v8226 = vadd.f32 0.0, %v8225
      %v8227 = vpop.f32.mrb[0].mxu0
      %8228 = vmatprep.mubr.bf16.mxu0 0
      %8229 = vmatmul.mubr.bf16.gmra.mrb[0].mxu0 %v8065
      %v8230 = vpop.f32.mrb[0].mxu0
      %v8231 = vadd.f32 0.0, %v8230
      %v8232 = vpop.f32.mrb[0].mxu0
      %v8233 = vpop.f32.mrb[0].mxu0
      %v8234 = vadd.f32 0.0, %v8233
      %v8235 = vpop.f32.mrb[0].mxu0
      %8236 = vmatprep.mubr.bf16.mxu0 0
      %8237 = vmatmul.mubr.bf16.gmra.mrb[0].mxu0 %v8068
      %v8238 = vpop.f32.mrb[0].mxu0
      %v8239 = vadd.f32 0.0, %v8238
      %v8240 = vpop.f32.mrb[0].mxu0
      %v8241 = vpop.f32.mrb[0].mxu0
      %v8242 = vadd.f32 0.0, %v8241
      %v8243 = vpop.f32.mrb[0].mxu0
      %8244 = vmatprep.mubr.bf16.mxu0 0
      %8245 = vmatmul.mubr.bf16.gmra.mrb[0].mxu0 %v8071
      %v8246 = vpop.f32.mrb[0].mxu0
      %v8247 = vadd.f32 0.0, %v8246
      %v8248 = vpop.f32.mrb[0].mxu0
      %v8249 = vpop.f32.mrb[0].mxu0
      %v8250 = vadd.f32 0.0, %v8249
      %v8251 = vpop.f32.mrb[0].mxu0
      %8252 = vdwg.mxu0
      %v8253 = vadd.f32 %v7940, %v8111
      %v8254 = vadd.f32 %v7941, %v8114
      %v8255 = vadd.f32 %v7942, %v8119
      %v8256 = vadd.f32 %v7943, %v8122
      %v8257 = vadd.f32 %v7944, %v8127
      %v8258 = vadd.f32 %v7945, %v8130
      %v8259 = vadd.f32 %v7946, %v8135
      %v8260 = vadd.f32 %v7947, %v8138
      %v8261 = vadd.f32 %v7948, %v8143
      %v8262 = vadd.f32 %v7949, %v8146
      %v8263 = vadd.f32 %v7950, %v8151
      %v8264 = vadd.f32 %v7951, %v8154
      %v8265 = vadd.f32 %v7952, %v8159
      %v8266 = vadd.f32 %v7953, %v8162
      %v8267 = vadd.f32 %v7954, %v8167
      %v8268 = vadd.f32 %v7955, %v8170
      %v8269 = vadd.f32 %v7956, %v8175
      %v8270 = vadd.f32 %v7957, %v8178
      %v8271 = vadd.f32 %v7958, %v8183
      %v8272 = vadd.f32 %v7959, %v8186
      %v8273 = vadd.f32 %v7960, %v8191
      %v8274 = vadd.f32 %v7961, %v8194
      %v8275 = vadd.f32 %v7962, %v8199
      %v8276 = vadd.f32 %v7963, %v8202
      %v8277 = vadd.f32 %v7964, %v8207
      %v8278 = vadd.f32 %v7965, %v8210
      %v8279 = vadd.f32 %v7966, %v8215
      %v8280 = vadd.f32 %v7967, %v8218
      %v8281 = vadd.f32 %v7968, %v8223
      %v8282 = vadd.f32 %v7969, %v8226
      %v8283 = vadd.f32 %v7970, %v8231
      %v8284 = vadd.f32 %v7971, %v8234
      %v8285 = vadd.f32 %v7972, %v8239
      %v8286 = vadd.f32 %v7973, %v8242
      %v8287 = vadd.f32 %v7974, %v8247
      %v8288 = vadd.f32 %v7975, %v8250
      %v8289 = vld [vmem:[%s5] sm:$0x1]
      %v8291 = vlaneseq
      %v8292 = vshrl.u32 %v8291, 7
      %v8293 = vsub.s32 0, %v8292
      %v8294 = vrot.slane %v8289, %v8293
      %v8296 = vadd.f32 %v8253, %v8294
      %v8297 = vadd.f32 %v8254, %v8294
      %v8298 = vadd.f32 %v8255, %v8294
      %v8299 = vadd.f32 %v8256, %v8294
      %v8300 = vadd.f32 %v8257, %v8294
      %v8301 = vadd.f32 %v8258, %v8294
      %v8302 = vadd.f32 %v8259, %v8294
      %v8303 = vadd.f32 %v8260, %v8294
      %v8304 = vadd.f32 %v8261, %v8294
      %v8305 = vadd.f32 %v8262, %v8294
      %v8306 = vadd.f32 %v8263, %v8294
      %v8307 = vadd.f32 %v8264, %v8294
      %v8308 = vadd.f32 %v8265, %v8294
      %v8309 = vadd.f32 %v8266, %v8294
      %v8310 = vadd.f32 %v8267, %v8294
      %v8311 = vadd.f32 %v8268, %v8294
      %v8312 = vadd.f32 %v8269, %v8294
      %v8313 = vadd.f32 %v8270, %v8294
      %v8314 = vadd.f32 %v8271, %v8294
      %v8315 = vadd.f32 %v8272, %v8294
      %v8316 = vadd.f32 %v8273, %v8294
      %v8317 = vadd.f32 %v8274, %v8294
      %v8318 = vadd.f32 %v8275, %v8294
      %v8319 = vadd.f32 %v8276, %v8294
      %v8320 = vadd.f32 %v8277, %v8294
      %v8321 = vadd.f32 %v8278, %v8294
      %v8322 = vadd.f32 %v8279, %v8294
      %v8323 = vadd.f32 %v8280, %v8294
      %v8324 = vadd.f32 %v8281, %v8294
      %v8325 = vadd.f32 %v8282, %v8294
      %v8326 = vadd.f32 %v8283, %v8294
      %v8327 = vadd.f32 %v8284, %v8294
      %v8328 = vadd.f32 %v8285, %v8294
      %v8329 = vadd.f32 %v8286, %v8294
      %v8330 = vadd.f32 %v8287, %v8294
      %v8331 = vadd.f32 %v8288, %v8294
      %v8332 = vld [vmem:[%s246 + $0x8] sm:$0xe]
      %v8333 = vld [vmem:[%s246 + $0xc] sm:$0xf]
      %v8334 = vld [vmem:[%s246 + $0x10] sm:$0xf]
      %v8335 = vld [vmem:[%s246 + $0x14] sm:$0xf]
      %v8336 = vld [vmem:[%s246 + $0x18] sm:$0xf]
      %v8337 = vld [vmem:[%s246 + $0x1c] sm:$0xf]
      %v8338 = vld [vmem:[%s246 + $0x20] sm:$0xf]
      %v8339 = vld [vmem:[%s246 + $0x24] sm:$0xf]
      %v8340 = vld [vmem:[%s246 + $0x28] sm:$0xf]
      %v8341 = vld [vmem:[%s246 + $0x2c] sm:$0xf]
      %v8342 = vld [vmem:[%s246 + $0x30] sm:$0xf]
      %v8343 = vld [vmem:[%s246 + $0x34] sm:$0xf]
      %v8344 = vld [vmem:[%s246 + $0x38] sm:$0xf]
      %v8345 = vld [vmem:[%s246 + $0x3c] sm:$0xf]
      %v8346 = vld [vmem:[%s246 + $0x40] sm:$0xf]
      %v8347 = vld [vmem:[%s246 + $0x44] sm:$0xf]
      %v8348 = vld [vmem:[%s246 + $0x48] sm:$0xf]
      %v8349 = vld [vmem:[%s246 + $0x4c] sm:$0xf]
      %v8350 = vld [vmem:[%s246 + $0x50] sm:$0xf]
      %v8351 = vld [vmem:[%s246 + $0x54] sm:$0xf]
      %v8352 = vld [vmem:[%s246 + $0x58] sm:$0xf]
      %v8353 = vld [vmem:[%s246 + $0x5c] sm:$0xf]
      %v8354 = vld [vmem:[%s246 + $0x60] sm:$0xf]
      %v8355 = vld [vmem:[%s246 + $0x64] sm:$0xf]
      %v8356 = vld [vmem:[%s246 + $0x68] sm:$0xf]
      %v8357 = vld [vmem:[%s246 + $0x6c] sm:$0xf]
      %v8358 = vld [vmem:[%s246 + $0x70] sm:$0xf]
      %v8359 = vld [vmem:[%s246 + $0x74] sm:$0xf]
      %v8360 = vld [vmem:[%s246 + $0x78] sm:$0xf]
      %v8361 = vld [vmem:[%s246 + $0x7c] sm:$0xf]
      %v8362 = vld [vmem:[%s246 + $0x80] sm:$0xf]
      %v8363 = vld [vmem:[%s246 + $0x84] sm:$0xf]
      %v8364 = vld [vmem:[%s246 + $0x88] sm:$0xf]
      %v8365 = vld [vmem:[%s246 + $0x8c] sm:$0xf]
      %v8366 = vld [vmem:[%s246 + $0x90] sm:$0xf]
      %v8367 = vld [vmem:[%s246 + $0x94] sm:$0xf]
      %v8368 = vld [vmem:[%s246 + $0x98] sm:$0x1]
      %v8369 = vunpack.c.l.bf16 %v8332
      %v8370 = vunpack.c.l.bf16 %v8333
      %v8371 = vunpack.c.l.bf16 %v8334
      %v8372 = vunpack.c.l.bf16 %v8335
      %v8373 = vunpack.c.l.bf16 %v8336
      %v8374 = vunpack.c.l.bf16 %v8337
      %v8375 = vunpack.c.l.bf16 %v8338
      %v8376 = vunpack.c.l.bf16 %v8339
      %v8377 = vunpack.c.l.bf16 %v8340
      %v8378 = vunpack.c.l.bf16 %v8341
      %v8379 = vunpack.c.l.bf16 %v8342
      %v8380 = vunpack.c.l.bf16 %v8343
      %v8381 = vunpack.c.l.bf16 %v8344
      %v8382 = vunpack.c.l.bf16 %v8345
      %v8383 = vunpack.c.l.bf16 %v8346
      %v8384 = vunpack.c.l.bf16 %v8347
      %v8385 = vunpack.c.l.bf16 %v8348
      %v8386 = vunpack.c.l.bf16 %v8349
      %v8387 = vunpack.c.l.bf16 %v8350
      %v8388 = vunpack.c.l.bf16 %v8351
      %v8389 = vunpack.c.l.bf16 %v8352
      %v8390 = vunpack.c.l.bf16 %v8353
      %v8391 = vunpack.c.l.bf16 %v8354
      %v8392 = vunpack.c.l.bf16 %v8355
      %v8393 = vunpack.c.l.bf16 %v8356
      %v8394 = vunpack.c.l.bf16 %v8357
      %v8395 = vunpack.c.l.bf16 %v8358
      %v8396 = vunpack.c.l.bf16 %v8359
      %v8397 = vunpack.c.l.bf16 %v8360
      %v8398 = vunpack.c.l.bf16 %v8361
      %v8399 = vunpack.c.l.bf16 %v8362
      %v8400 = vunpack.c.l.bf16 %v8363
      %v8401 = vunpack.c.l.bf16 %v8364
      %v8402 = vunpack.c.l.bf16 %v8365
      %v8403 = vunpack.c.l.bf16 %v8366
      %v8404 = vunpack.c.l.bf16 %v8367
      %v8405 = vunpack.c.l.bf16 %v8368
      %vm8443 = vcmask 1044480
      %v8444 = vrot.slane %v8369, 3
      %v8445 = vrot.slane %v8370, 3
      %v8446 = vsel %vm8443, %v8444, %v8445
      %v8447 = vrot.slane %v8371, 3
      %v8448 = vsel %vm8443, %v8445, %v8447
      %v8449 = vrot.slane %v8372, 3
      %v8450 = vsel %vm8443, %v8447, %v8449
      %v8451 = vrot.slane %v8373, 3
      %v8452 = vsel %vm8443, %v8449, %v8451
      %v8453 = vrot.slane %v8374, 3
      %v8454 = vsel %vm8443, %v8451, %v8453
      %v8455 = vrot.slane %v8375, 3
      %v8456 = vsel %vm8443, %v8453, %v8455
      %v8457 = vrot.slane %v8376, 3
      %v8458 = vsel %vm8443, %v8455, %v8457
      %v8459 = vrot.slane %v8377, 3
      %v8460 = vsel %vm8443, %v8457, %v8459
      %v8461 = vrot.slane %v8378, 3
      %v8462 = vsel %vm8443, %v8459, %v8461
      %v8463 = vrot.slane %v8379, 3
      %v8464 = vsel %vm8443, %v8461, %v8463
      %v8465 = vrot.slane %v8380, 3
      %v8466 = vsel %vm8443, %v8463, %v8465
      %v8467 = vrot.slane %v8381, 3
      %v8468 = vsel %vm8443, %v8465, %v8467
      %v8469 = vrot.slane %v8382, 3
      %v8470 = vsel %vm8443, %v8467, %v8469
      %v8471 = vrot.slane %v8383, 3
      %v8472 = vsel %vm8443, %v8469, %v8471
      %v8473 = vrot.slane %v8384, 3
      %v8474 = vsel %vm8443, %v8471, %v8473
      %v8475 = vrot.slane %v8385, 3
      %v8476 = vsel %vm8443, %v8473, %v8475
      %v8477 = vrot.slane %v8386, 3
      %v8478 = vsel %vm8443, %v8475, %v8477
      %v8479 = vrot.slane %v8387, 3
      %v8480 = vsel %vm8443, %v8477, %v8479
      %v8481 = vrot.slane %v8388, 3
      %v8482 = vsel %vm8443, %v8479, %v8481
      %v8483 = vrot.slane %v8389, 3
      %v8484 = vsel %vm8443, %v8481, %v8483
      %v8485 = vrot.slane %v8390, 3
      %v8486 = vsel %vm8443, %v8483, %v8485
      %v8487 = vrot.slane %v8391, 3
      %v8488 = vsel %vm8443, %v8485, %v8487
      %v8489 = vrot.slane %v8392, 3
      %v8490 = vsel %vm8443, %v8487, %v8489
      %v8491 = vrot.slane %v8393, 3
      %v8492 = vsel %vm8443, %v8489, %v8491
      %v8493 = vrot.slane %v8394, 3
      %v8494 = vsel %vm8443, %v8491, %v8493
      %v8495 = vrot.slane %v8395, 3
      %v8496 = vsel %vm8443, %v8493, %v8495
      %v8497 = vrot.slane %v8396, 3
      %v8498 = vsel %vm8443, %v8495, %v8497
      %v8499 = vrot.slane %v8397, 3
      %v8500 = vsel %vm8443, %v8497, %v8499
      %v8501 = vrot.slane %v8398, 3
      %v8502 = vsel %vm8443, %v8499, %v8501
      %v8503 = vrot.slane %v8399, 3
      %v8504 = vsel %vm8443, %v8501, %v8503
      %v8505 = vrot.slane %v8400, 3
      %v8506 = vsel %vm8443, %v8503, %v8505
      %v8507 = vrot.slane %v8401, 3
      %v8508 = vsel %vm8443, %v8505, %v8507
      %v8509 = vrot.slane %v8402, 3
      %v8510 = vsel %vm8443, %v8507, %v8509
      %v8511 = vrot.slane %v8403, 3
      %v8512 = vsel %vm8443, %v8509, %v8511
      %v8513 = vrot.slane %v8404, 3
      %v8514 = vsel %vm8443, %v8511, %v8513
      %v8515 = vrot.slane %v8405, 3
      %v8516 = vsel %vm8443, %v8513, %v8515
      %v8553 = vadd.f32 %v8296, %v8446
      %v8554 = vadd.f32 %v8297, %v8448
      %v8555 = vadd.f32 %v8298, %v8450
      %v8556 = vadd.f32 %v8299, %v8452
      %v8557 = vadd.f32 %v8300, %v8454
      %v8558 = vadd.f32 %v8301, %v8456
      %v8559 = vadd.f32 %v8302, %v8458
      %v8560 = vadd.f32 %v8303, %v8460
      %v8561 = vadd.f32 %v8304, %v8462
      %v8562 = vadd.f32 %v8305, %v8464
      %v8563 = vadd.f32 %v8306, %v8466
      %v8564 = vadd.f32 %v8307, %v8468
      %v8565 = vadd.f32 %v8308, %v8470
      %v8566 = vadd.f32 %v8309, %v8472
      %v8567 = vadd.f32 %v8310, %v8474
      %v8568 = vadd.f32 %v8311, %v8476
      %v8569 = vadd.f32 %v8312, %v8478
      %v8570 = vadd.f32 %v8313, %v8480
      %v8571 = vadd.f32 %v8314, %v8482
      %v8572 = vadd.f32 %v8315, %v8484
      %v8573 = vadd.f32 %v8316, %v8486
      %v8574 = vadd.f32 %v8317, %v8488
      %v8575 = vadd.f32 %v8318, %v8490
      %v8576 = vadd.f32 %v8319, %v8492
      %v8577 = vadd.f32 %v8320, %v8494
      %v8578 = vadd.f32 %v8321, %v8496
      %v8579 = vadd.f32 %v8322, %v8498
      %v8580 = vadd.f32 %v8323, %v8500
      %v8581 = vadd.f32 %v8324, %v8502
      %v8582 = vadd.f32 %v8325, %v8504
      %v8583 = vadd.f32 %v8326, %v8506
      %v8584 = vadd.f32 %v8327, %v8508
      %v8585 = vadd.f32 %v8328, %v8510
      %v8586 = vadd.f32 %v8329, %v8512
      %v8587 = vadd.f32 %v8330, %v8514
      %v8588 = vadd.f32 %v8331, %v8516
      %v8589 = vmax.f32 %v8553, 0.0
      %v8590 = vmax.f32 %v8554, 0.0
      %v8591 = vmax.f32 %v8555, 0.0
      %v8592 = vmax.f32 %v8556, 0.0
      %v8593 = vmax.f32 %v8557, 0.0
      %v8594 = vmax.f32 %v8558, 0.0
      %v8595 = vmax.f32 %v8559, 0.0
      %v8596 = vmax.f32 %v8560, 0.0
      %v8597 = vmax.f32 %v8561, 0.0
      %v8598 = vmax.f32 %v8562, 0.0
      %v8599 = vmax.f32 %v8563, 0.0
      %v8600 = vmax.f32 %v8564, 0.0
      %v8601 = vmax.f32 %v8565, 0.0
      %v8602 = vmax.f32 %v8566, 0.0
      %v8603 = vmax.f32 %v8567, 0.0
      %v8604 = vmax.f32 %v8568, 0.0
      %v8605 = vmax.f32 %v8569, 0.0
      %v8606 = vmax.f32 %v8570, 0.0
      %v8607 = vmax.f32 %v8571, 0.0
      %v8608 = vmax.f32 %v8572, 0.0
      %v8609 = vmax.f32 %v8573, 0.0
      %v8610 = vmax.f32 %v8574, 0.0
      %v8611 = vmax.f32 %v8575, 0.0
      %v8612 = vmax.f32 %v8576, 0.0
      %v8613 = vmax.f32 %v8577, 0.0
      %v8614 = vmax.f32 %v8578, 0.0
      %v8615 = vmax.f32 %v8579, 0.0
      %v8616 = vmax.f32 %v8580, 0.0
      %v8617 = vmax.f32 %v8581, 0.0
      %v8618 = vmax.f32 %v8582, 0.0
      %v8619 = vmax.f32 %v8583, 0.0
      %v8620 = vmax.f32 %v8584, 0.0
      %v8621 = vmax.f32 %v8585, 0.0
      %v8622 = vmax.f32 %v8586, 0.0
      %v8623 = vmax.f32 %v8587, 0.0
      %v8624 = vmax.f32 %v8588, 0.0
      %v8625 = vpack.c.bf16 %v8590, %v8589
      %v8626 = vpack.c.bf16 %v8592, %v8591
      %v8627 = vpack.c.bf16 %v8594, %v8593
      %v8628 = vpack.c.bf16 %v8596, %v8595
      %v8629 = vpack.c.bf16 %v8598, %v8597
      %v8630 = vpack.c.bf16 %v8600, %v8599
      %v8631 = vpack.c.bf16 %v8602, %v8601
      %v8632 = vpack.c.bf16 %v8604, %v8603
      %v8633 = vpack.c.bf16 %v8606, %v8605
      %v8634 = vpack.c.bf16 %v8608, %v8607
      %v8635 = vpack.c.bf16 %v8610, %v8609
      %v8636 = vpack.c.bf16 %v8612, %v8611
      %v8637 = vpack.c.bf16 %v8614, %v8613
      %v8638 = vpack.c.bf16 %v8616, %v8615
      %v8639 = vpack.c.bf16 %v8618, %v8617
      %v8640 = vpack.c.bf16 %v8620, %v8619
      %v8641 = vpack.c.bf16 %v8622, %v8621
      %v8642 = vpack.c.bf16 %v8624, %v8623
      %v8661 = vunpack.c.l.b16 %v8625
      %v8662 = vunpack.c.h.b16 %v8625
      %v8663 = vunpack.c.l.b16 %v8626
      %v8664 = vunpack.c.h.b16 %v8626
      %v8665 = vunpack.c.l.b16 %v8627
      %v8666 = vunpack.c.h.b16 %v8627
      %v8667 = vunpack.c.l.b16 %v8628
      %v8668 = vunpack.c.h.b16 %v8628
      %v8669 = vunpack.c.l.b16 %v8629
      %v8670 = vunpack.c.h.b16 %v8629
      %v8671 = vunpack.c.l.b16 %v8630
      %v8672 = vunpack.c.h.b16 %v8630
      %v8673 = vunpack.c.l.b16 %v8631
      %v8674 = vunpack.c.h.b16 %v8631
      %v8675 = vunpack.c.l.b16 %v8632
      %v8676 = vunpack.c.h.b16 %v8632
      %v8677 = vunpack.c.l.b16 %v8633
      %v8678 = vunpack.c.h.b16 %v8633
      %v8679 = vunpack.c.l.b16 %v8634
      %v8680 = vunpack.c.h.b16 %v8634
      %v8681 = vunpack.c.l.b16 %v8635
      %v8682 = vunpack.c.h.b16 %v8635
      %v8683 = vunpack.c.l.b16 %v8636
      %v8684 = vunpack.c.h.b16 %v8636
      %v8685 = vunpack.c.l.b16 %v8637
      %v8686 = vunpack.c.h.b16 %v8637
      %v8687 = vunpack.c.l.b16 %v8638
      %v8688 = vunpack.c.h.b16 %v8638
      %v8689 = vunpack.c.l.b16 %v8639
      %v8690 = vunpack.c.h.b16 %v8639
      %v8691 = vunpack.c.l.b16 %v8640
      %v8692 = vunpack.c.h.b16 %v8640
      %v8693 = vunpack.c.l.b16 %v8641
      %v8694 = vunpack.c.h.b16 %v8641
      %v8695 = vunpack.c.l.b16 %v8642
      %v8696 = vunpack.c.h.b16 %v8642
      %v8697 = vpack.c.b16 %v8661, %v8661
      %v8698 = vpack.c.b16 %v8662, %v8662
      %v8699 = vpack.c.b16 %v8663, %v8663
      %v8700 = vpack.c.b16 %v8664, %v8664
      %v8701 = vpack.c.b16 %v8665, %v8665
      %v8702 = vpack.c.b16 %v8666, %v8666
      %v8703 = vpack.c.b16 %v8667, %v8667
      %v8704 = vpack.c.b16 %v8668, %v8668
      %v8705 = vpack.c.b16 %v8669, %v8669
      %v8706 = vpack.c.b16 %v8670, %v8670
      %v8707 = vpack.c.b16 %v8671, %v8671
      %v8708 = vpack.c.b16 %v8672, %v8672
      %v8709 = vpack.c.b16 %v8673, %v8673
      %v8710 = vpack.c.b16 %v8674, %v8674
      %v8711 = vpack.c.b16 %v8675, %v8675
      %v8712 = vpack.c.b16 %v8676, %v8676
      %v8713 = vpack.c.b16 %v8677, %v8677
      %v8714 = vpack.c.b16 %v8678, %v8678
      %v8715 = vpack.c.b16 %v8679, %v8679
      %v8716 = vpack.c.b16 %v8680, %v8680
      %v8717 = vpack.c.b16 %v8681, %v8681
      %v8718 = vpack.c.b16 %v8682, %v8682
      %v8719 = vpack.c.b16 %v8683, %v8683
      %v8720 = vpack.c.b16 %v8684, %v8684
      %v8721 = vpack.c.b16 %v8685, %v8685
      %v8722 = vpack.c.b16 %v8686, %v8686
      %v8723 = vpack.c.b16 %v8687, %v8687
      %v8724 = vpack.c.b16 %v8688, %v8688
      %v8725 = vpack.c.b16 %v8689, %v8689
      %v8726 = vpack.c.b16 %v8690, %v8690
      %v8727 = vpack.c.b16 %v8691, %v8691
      %v8728 = vpack.c.b16 %v8692, %v8692
      %v8729 = vpack.c.b16 %v8693, %v8693
      %v8730 = vpack.c.b16 %v8694, %v8694
      %v8731 = vpack.c.b16 %v8695, %v8695
      %v8732 = vpack.c.b16 %v8696, %v8696
      %8769 = vst.msk [vmem:[%s251] sm:$0xf] %vm4142, %v8697
      %8770 = vst.msk [vmem:[%s251 + $0x4] sm:$0xf] %vm4142, %v8698
      %8771 = vst.msk [vmem:[%s251 + $0x8] sm:$0xf] %vm4142, %v8699
      %8772 = vst.msk [vmem:[%s251 + $0xc] sm:$0xf] %vm4142, %v8700
      %8773 = vst.msk [vmem:[%s251 + $0x10] sm:$0xf] %vm4142, %v8701
      %8774 = vst.msk [vmem:[%s251 + $0x14] sm:$0xf] %vm4142, %v8702
      %8775 = vst.msk [vmem:[%s251 + $0x18] sm:$0xf] %vm4142, %v8703
      %8776 = vst.msk [vmem:[%s251 + $0x1c] sm:$0xf] %vm4142, %v8704
      %8777 = vst.msk [vmem:[%s251 + $0x20] sm:$0xf] %vm4142, %v8705
      %8778 = vst.msk [vmem:[%s251 + $0x24] sm:$0xf] %vm4142, %v8706
      %8779 = vst.msk [vmem:[%s251 + $0x28] sm:$0xf] %vm4142, %v8707
      %8780 = vst.msk [vmem:[%s251 + $0x2c] sm:$0xf] %vm4142, %v8708
      %8781 = vst.msk [vmem:[%s251 + $0x30] sm:$0xf] %vm4142, %v8709
      %8782 = vst.msk [vmem:[%s251 + $0x34] sm:$0xf] %vm4142, %v8710
      %8783 = vst.msk [vmem:[%s251 + $0x38] sm:$0xf] %vm4142, %v8711
      %8784 = vst.msk [vmem:[%s251 + $0x3c] sm:$0xf] %vm4142, %v8712
      %8785 = vst.msk [vmem:[%s251 + $0x40] sm:$0xf] %vm4142, %v8713
      %8786 = vst.msk [vmem:[%s251 + $0x44] sm:$0xf] %vm4142, %v8714
      %8787 = vst.msk [vmem:[%s251 + $0x48] sm:$0xf] %vm4142, %v8715
      %8788 = vst.msk [vmem:[%s251 + $0x4c] sm:$0xf] %vm4142, %v8716
      %8789 = vst.msk [vmem:[%s251 + $0x50] sm:$0xf] %vm4142, %v8717
      %8790 = vst.msk [vmem:[%s251 + $0x54] sm:$0xf] %vm4142, %v8718
      %8791 = vst.msk [vmem:[%s251 + $0x58] sm:$0xf] %vm4142, %v8719
      %8792 = vst.msk [vmem:[%s251 + $0x5c] sm:$0xf] %vm4142, %v8720
      %8793 = vst.msk [vmem:[%s251 + $0x60] sm:$0xf] %vm4142, %v8721
      %8794 = vst.msk [vmem:[%s251 + $0x64] sm:$0xf] %vm4142, %v8722
      %8795 = vst.msk [vmem:[%s251 + $0x68] sm:$0xf] %vm4142, %v8723
      %8796 = vst.msk [vmem:[%s251 + $0x6c] sm:$0xf] %vm4142, %v8724
      %8797 = vst.msk [vmem:[%s251 + $0x70] sm:$0xf] %vm4142, %v8725
      %8798 = vst.msk [vmem:[%s251 + $0x74] sm:$0xf] %vm4142, %v8726
      %8799 = vst.msk [vmem:[%s251 + $0x78] sm:$0xf] %vm4142, %v8727
      %8800 = vst.msk [vmem:[%s251 + $0x7c] sm:$0xf] %vm4142, %v8728
      %8801 = vst.msk [vmem:[%s251 + $0x80] sm:$0xf] %vm4142, %v8729
      %8802 = vst.msk [vmem:[%s251 + $0x84] sm:$0xf] %vm4142, %v8730
      %8803 = vst.msk [vmem:[%s251 + $0x88] sm:$0xf] %vm4142, %v8731
      %vm8804 = vcmask 26624
      %8805 = vst.msk [vmem:[%s251 + $0x8c] sm:$0x7] %vm8804, %v8732
      %p8806 = scmp.lt.s32.totalorder %s17, 1
      %s8807 = scalar_select %p8806, %s17, 1
      %s8808 = smul.addr %s8807, 36
      %s8809 = smul.addr %s8808, 4
      %s8810 = scalar_lea.vmem %s6, %s8809
      // Predicated region
      $region45: #{basic_block_forward.1} parent=43 // pred_check
        %p8811 = pneg %p166
      $region46: #{basic_block_forward.1} parent=43 // pred_check_branch
        %8813 = sbr.rel (%p8811) target = $region48
      $region47: #{basic_block_forward.1} parent=43 // pred_region
        _
      $region48: #{basic_block_forward.1} parent=43 // pred_fallthru
        _
    $region44: #{basic_block_forward.1} parent=5 // pred_fallthru
      _
    %p8814 = scmp.le.s32.totalorder 2, %s12
    // Predicated region
    $region49: #{basic_block_forward.1} parent=5 // pred_check
      %p8815 = pneg %p8814
    $region50: #{basic_block_forward.1} parent=5 // pred_check_branch
      %8817 = sbr.rel (%p8815) target = $region52
    $region51: #{basic_block_forward.1} parent=5 // pred_region
      %s8818 = ssub.s32 %s12, 2
      // Predicated region
      $region53: #{basic_block_forward.1} parent=51 // pred_check
        %p8819 = pneg %p172
      $region54: #{basic_block_forward.1} parent=51 // pred_check_branch
        %8821 = sbr.rel (%p8819) target = $region56
      $region55: #{basic_block_forward.1} parent=51 // pred_region
        %p8822 = scmp.lt.s32.totalorder %s18, 1
        %s8823 = scalar_select %p8822, %s18, 1
        %s8824 = smul.addr %s8823, 36
        %s8825 = smul.addr %s8824, 4
        %s8826 = scalar_lea.vmem %s6, %s8825
      $region56: #{basic_block_forward.1} parent=51 // pred_fallthru
        _
    $region52: #{basic_block_forward.1} parent=5 // pred_fallthru
      _
  $region6: #{basic_block_forward.1} parent=0 // loop_footer
    %s16 = sadd.s32 1, %s12
  $region7: #{basic_block_forward.1} parent=0 // loop_footer_branch
    %11 = sbr.rel target = $region3
  $region8: #{basic_block_forward.1} parent=0 // loop_exit
    _

</llo_original>
